<compile_context>
chip_gen: v7x
topology: tpu7x:2x2x1
jax: 0.10.0
libtpu: 0.0.40
codegen_flags: <defaults>
</compile_context>

<pallas_src>
import functools

import jax
import jax.numpy as jnp
from jax import lax
from jax.experimental import pallas as pl
from jax.experimental.pallas import tpu as pltpu


# ----------------------------------------------------------------------------
# Pallas kernel: one grid step == one timestep of the ConvLSTM recurrence.
# ----------------------------------------------------------------------------
def _convlstm_step_kernel(gx_ref, m_ref,          # inputs
                          y_ref, c_ref,           # outputs (c_ref is resident state)
                          hpad_ref,               # persistent scratch (padded h rows)
                          *, B, H, WC, KH, PT):
    t = pl.program_id(0)
    BH = B * H

    @pl.when(t == 0)
    def _init():
        # zero initial hidden state (incl. the H-padding rows) and cell state
        hpad_ref[...] = jnp.zeros_like(hpad_ref)
        c_ref[...] = jnp.zeros_like(c_ref)

    # x-path pre-activations (conv + bias, precomputed outside) in gate-major
    # lane layout: column = gate*W*Chid + x*Chid + c.
    acc = gx_ref[0]                                              # (BH, 4*WC) f32

    # --- hidden-to-hidden conv: KH row-shifted lane-dense matmuls -------------
    # Each dy is a sublane-offset slice of the padded h state (no lane relayout)
    # matmul'd against a banded (WC, 4*WC) weight matrix that performs the KW
    # lane convolution.  bf16 operands, f32 accumulation.
    for dy in range(KH):                                         # static unroll
        r = hpad_ref[:, dy:dy + H, :].reshape(BH, WC)            # (BH, WC) bf16
        acc = acc + jnp.dot(r, m_ref[dy], preferred_element_type=jnp.float32)

    # --- gate nonlinearities: single-tanh trick --------------------------------
    # sigmoid(x) = 0.5*tanh(0.5*x) + 0.5 on the i/f/o lane block; plain tanh on
    # the g block.  Total EUP work = one pass over the gates; slices are at
    # 128-lane boundaries so no iota / mask / select is emitted.
    sig = 0.5 * jnp.tanh(0.5 * acc[:, :3 * WC]) + 0.5            # (BH, 3*WC)
    i = sig[:, 0 * WC:1 * WC]
    f = sig[:, 1 * WC:2 * WC]
    o = sig[:, 2 * WC:3 * WC]
    g = jnp.tanh(acc[:, 3 * WC:])                                # (BH, WC)

    # --- lane-dense pointwise state update -------------------------------------
    # The resident cout output block (constant index_map) doubles as the f32
    # cell-state accumulator -> no separate c scratch.
    c_new = f * c_ref[...] + i * g                               # (BH, WC) f32
    h_new = o * jnp.tanh(c_new)

    c_ref[...] = c_new
    # Note: the recurrence consumes the bf16 copy of h (hpad), while the f32
    # h_new is what gets emitted to y — so the returned h_n is marginally more
    # precise than the state actually fed to the next step (benign).
    hpad_ref[:, PT:PT + H, :] = h_new.reshape(B, H, WC).astype(hpad_ref.dtype)
    y_ref[0] = h_new.astype(y_ref.dtype)


# ----------------------------------------------------------------------------
# Wrapper: PyTorch-layout in/out, x-path precompute, banded weight build,
# pallas_call.
# ----------------------------------------------------------------------------
def conv_lstm_pallas(xs_nchw, params, kernel_size=3, stride=1):
    assert stride == 1, "only stride=1 supported"
    B, T, Cin, H, W = xs_nchw.shape
    KH = KW = kernel_size
    Chid = params["wxi"].shape[0]
    C4 = 4 * Chid
    WC = W * Chid
    BH = B * H

    # TF-SAME padding amounts (stride 1)
    pad_h, pad_w = KH - 1, KW - 1
    pt, pb = pad_h // 2, pad_h - pad_h // 2
    pwl, pwr = pad_w // 2, pad_w - pad_w // 2

    # PyTorch conv weight (Cout, Cin, kh, kw) -> (kh, kw, Cin, Cout); gates fused.
    def to_hwio(w):
        return jnp.transpose(w, (2, 3, 1, 0)).astype(jnp.float32)

    wx = jnp.concatenate(
        [to_hwio(params[k]) for k in ("wxi", "wxf", "wxo", "wxg")], axis=-1)   # (KH,KW,Cin,C4)
    wh = jnp.concatenate(
        [to_hwio(params[k]) for k in ("whi", "whf", "who", "whg")], axis=-1)   # (KH,KW,Chid,C4)
    bias = jnp.concatenate(
        [params[k] for k in ("bi", "bf", "bo", "bg")], axis=-1).astype(jnp.float32)

    # --- x-path precompute for ALL timesteps (no recurrence on this path) ------
    # DEFAULT precision (perf review: avoid HIGHEST f32 emulation on the MXU).
    xs = jnp.transpose(xs_nchw, (1, 0, 3, 4, 2)).astype(jnp.float32)           # (T,B,H,W,Cin)
    gx = lax.conv_general_dilated(
        xs.reshape(T * B, H, W, Cin), wx, window_strides=(1, 1),
        padding=[(pt, pb), (pwl, pwr)],
        dimension_numbers=("NHWC", "HWIO", "NHWC"))                            # (T*B,H,W,C4)
    gx = gx + bias
    # gate-major lane layout: column index = gate*W*Chid + x*Chid + c
    gx = gx.reshape(T, B, H, W, 4, Chid)
    gx = jnp.transpose(gx, (0, 1, 2, 4, 3, 5)).reshape(T, BH, 4 * WC)          # f32

    # --- banded hidden-to-hidden weight matrices (one per dy) ------------------
    # m[dy][x_in*Chid + c_in, gate*W*Chid + x_out*Chid + c_out]
    #   = wh[dy, x_in - x_out + pwl, c_in, gate*Chid + c_out]  (zero outside band)
    x_idx = jnp.arange(W)
    dx = x_idx[:, None] - x_idx[None, :] + pwl                                 # (W_in, W_out)
    valid = (dx >= 0) & (dx < KW)
    dx_c = jnp.clip(dx, 0, KW - 1)
    taps = wh[:, dx_c] * valid[None, :, :, None, None].astype(wh.dtype)        # (KH,W,W,Chid,C4)
    taps = taps.reshape(KH, W, W, Chid, 4, Chid)                               # (dy,x_in,x_out,c_in,gate,c_out)
    m = jnp.transpose(taps, (0, 1, 3, 4, 2, 5)).reshape(KH, WC, 4 * WC)
    m = m.astype(jnp.bfloat16)                                                 # MXU operands

    kernel = functools.partial(
        _convlstm_step_kernel, B=B, H=H, WC=WC, KH=KH, PT=pt)

    grid_spec = pltpu.PrefetchScalarGridSpec(
        num_scalar_prefetch=0,
        grid=(T,),
        in_specs=[
            pl.BlockSpec((1, BH, 4 * WC), lambda t: (t, 0, 0)),    # gx (per-step stream)
            pl.BlockSpec((KH, WC, 4 * WC), lambda t: (0, 0, 0)),   # banded wh (resident)
        ],
        out_specs=[
            pl.BlockSpec((1, BH, WC), lambda t: (t, 0, 0)),        # y  (lane-dense)
            pl.BlockSpec((BH, WC), lambda t: (0, 0)),              # c  (resident state)
        ],
        scratch_shapes=[
            pltpu.VMEM((B, H + KH - 1, WC), jnp.bfloat16),         # padded h rows (bf16)
        ],
    )

    y2d, c2d = pl.pallas_call(
        kernel,
        out_shape=(
            jax.ShapeDtypeStruct((T, BH, WC), jnp.float32),
            jax.ShapeDtypeStruct((BH, WC), jnp.float32),
        ),
        grid_spec=grid_spec,
        compiler_params=pltpu.CompilerParams(
            dimension_semantics=("arbitrary",),      # sequential recurrence over time
            vmem_limit_bytes=32 * 1024 * 1024),      # banded wh (~6 MiB bf16) + buffers
    )(gx, m)

    # back to PyTorch layout
    y = y2d.reshape(T, B, H, W, Chid)
    output = jnp.transpose(y, (1, 0, 4, 2, 3))                         # (B,T,Chid,H,W)
    h_final = jnp.transpose(y[-1], (0, 3, 1, 2))                       # (B,Chid,H,W)
    c_final = jnp.transpose(c2d.reshape(B, H, W, Chid), (0, 3, 1, 2))  # (B,Chid,H,W)
    return output, (h_final, c_final)


# ----------------------------------------------------------------------------
# Pure-JAX reference (mirrors the PyTorch module exactly), used for validation.
# ----------------------------------------------------------------------------
def conv_lstm_reference(xs_nchw, params, kernel_size=3):
    B, T, Cin, H, W = xs_nchw.shape
    Chid = params["wxi"].shape[0]
    KH = KW = kernel_size
    pads = [((KH - 1) // 2, (KH - 1) - (KH - 1) // 2),
            ((KW - 1) // 2, (KW - 1) - (KW - 1) // 2)]

    def conv(x, w, b=None):
        out = lax.conv_general_dilated(
            x, w, window_strides=(1, 1), padding=pads,
            dimension_numbers=("NCHW", "OIHW", "NCHW"),
            precision=lax.Precision.HIGHEST)
        if b is not None:
            out = out + b[None, :, None, None]
        return out

    h = jnp.zeros((B, Chid, H, W), jnp.float32)
    c = jnp.zeros((B, Chid, H, W), jnp.float32)
    outs = []
    for t in range(T):
        x = xs_nchw[:, t]
        i = jax.nn.sigmoid(conv(x, params["wxi"], params["bi"]) + conv(h, params["whi"]))
        f = jax.nn.sigmoid(conv(x, params["wxf"], params["bf"]) + conv(h, params["whf"]))
        o = jax.nn.sigmoid(conv(x, params["wxo"], params["bo"]) + conv(h, params["who"]))
        g = jnp.tanh(conv(x, params["wxg"], params["bg"]) + conv(h, params["whg"]))
        c = f * c + i * g
        h = o * jnp.tanh(c)
        outs.append(h)
    return jnp.stack(outs, axis=1), (h, c)


if __name__ == "__main__":
    B, T, Cin, H, W = 2, 8, 4, 16, 16
    Chid, K = 32, 3

    key = jax.random.PRNGKey(0)
    keys = jax.random.split(key, 16)

    def w(k, cout, cin):
        return jax.random.normal(k, (cout, cin, K, K), jnp.float32) * 0.1

    params = {
        "wxi": w(keys[0], Chid, Cin), "wxf": w(keys[1], Chid, Cin),
        "wxo": w(keys[2], Chid, Cin), "wxg": w(keys[3], Chid, Cin),
        "whi": w(keys[4], Chid, Chid), "whf": w(keys[5], Chid, Chid),
        "who": w(keys[6], Chid, Chid), "whg": w(keys[7], Chid, Chid),
        "bi": jax.random.normal(keys[8], (Chid,), jnp.float32) * 0.05,
        "bf": jax.random.normal(keys[9], (Chid,), jnp.float32) * 0.05,
        "bo": jax.random.normal(keys[10], (Chid,), jnp.float32) * 0.05,
        "bg": jax.random.normal(keys[11], (Chid,), jnp.float32) * 0.05,
    }

    xs = jax.random.normal(keys[12], (B, T, Cin, H, W), jnp.float32)

    out, (h_n, c_n) = conv_lstm_pallas(xs, params, kernel_size=K, stride=1)
    out = jax.block_until_ready(out)
    h_n = jax.block_until_ready(h_n)
    c_n = jax.block_until_ready(c_n)

    out_ref, (h_ref, c_ref) = conv_lstm_reference(xs, params, kernel_size=K)

    assert out.shape == (B, T, Chid, H, W)
    assert h_n.shape == (B, Chid, H, W) and c_n.shape == (B, Chid, H, W)
    # Tolerance accounts for bf16 hidden-path matmul operands (f32 accumulation)
    # and a DEFAULT-precision x-path conv, compared against an f32 HIGHEST
    # reference over 8 recurrent steps.
    tol = 5e-2
    assert jnp.max(jnp.abs(out - out_ref)) < tol
    assert jnp.max(jnp.abs(h_n - h_ref)) < tol
    assert jnp.max(jnp.abs(c_n - c_ref)) < tol

    print("KERNEL_OK")
</pallas_src>

<mosaic_0001>
module attributes {stable_mosaic.version = 11 : i64} {
  func.func @_convlstm_step_kernel(%arg0: i32, %arg1: memref<1x32x2048xf32, #tpu.memory_space<vmem>>, %arg2: memref<3x512x2048xbf16, #tpu.memory_space<vmem>>, %arg3: memref<1x32x512xf32, #tpu.memory_space<vmem>>, %arg4: memref<32x512xf32, #tpu.memory_space<vmem>>, %arg5: memref<2x18x512xbf16, #tpu.memory_space<vmem>>) attributes {dimension_semantics = [#tpu.dimension_semantics<arbitrary>], iteration_bounds = array<i64: 8>, scalar_prefetch = 0 : i64, scratch_operands = 1 : i64, tpu.core_type = #tpu.core_type<tc>, window_params = [{transform_indices = @transform_0, window_bounds = array<i64: 1, 32, 2048>}, {pipeline_mode = #tpu.pipeline_mode<synchronous>, transform_indices = @transform_1, window_bounds = array<i64: 3, 512, 2048>}, {transform_indices = @transform_2, window_bounds = array<i64: 1, 32, 512>}, {pipeline_mode = #tpu.pipeline_mode<synchronous>, transform_indices = @transform_3, window_bounds = array<i64: 32, 512>}]} {
    %c0_i32 = arith.constant 0 : i32
    %0 = arith.cmpi eq, %arg0, %c0_i32 : i32
    %1 = arith.extui %0 : i1 to i32
    %c0_i32_0 = arith.constant 0 : i32
    %2 = arith.cmpi ne, %1, %c0_i32_0 : i32
    scf.if %2 {
      %cst_34 = arith.constant 0.000000e+00 : bf16
      %49 = vector.broadcast %cst_34 : bf16 to vector<2x18x512xbf16>
      %c0_35 = arith.constant 0 : index
      %c0_36 = arith.constant 0 : index
      %c0_37 = arith.constant 0 : index
      %50 = vector.load %arg5[%c0_35, %c0_36, %c0_37] : memref<2x18x512xbf16, #tpu.memory_space<vmem>>, vector<2x18x512xbf16>
      tpu.vector_store %arg5[%c0_35, %c0_36, %c0_37], %49 {strides = array<i32>} : memref<2x18x512xbf16, #tpu.memory_space<vmem>>, vector<2x18x512xbf16>,
      %cst_38 = arith.constant 0.000000e+00 : f32
      %51 = vector.broadcast %cst_38 : f32 to vector<32x512xf32>
      %c0_39 = arith.constant 0 : index
      %c0_40 = arith.constant 0 : index
      %52 = vector.load %arg4[%c0_39, %c0_40] : memref<32x512xf32, #tpu.memory_space<vmem>>, vector<32x512xf32>
      tpu.vector_store %arg4[%c0_39, %c0_40], %51 {strides = array<i32>} : memref<32x512xf32, #tpu.memory_space<vmem>>, vector<32x512xf32>,
    } else {
    }
    %c0 = arith.constant 0 : index
    %c0_1 = arith.constant 0 : index
    %c0_2 = arith.constant 0 : index
    %3 = vector.load %arg1[%c0, %c0_1, %c0_2] : memref<1x32x2048xf32, #tpu.memory_space<vmem>>, vector<1x32x2048xf32>
    %4 = vector.shape_cast %3 : vector<1x32x2048xf32> to vector<32x2048xf32>
    %c0_3 = arith.constant 0 : index
    %c0_4 = arith.constant 0 : index
    %c0_5 = arith.constant 0 : index
    %5 = vector.load %arg5[%c0_3, %c0_4, %c0_5] : memref<2x18x512xbf16, #tpu.memory_space<vmem>>, vector<2x16x512xbf16>
    %6 = vector.shape_cast %5 : vector<2x16x512xbf16> to vector<32x512xbf16>
    %c0_6 = arith.constant 0 : index
    %c0_7 = arith.constant 0 : index
    %c0_8 = arith.constant 0 : index
    %7 = vector.load %arg2[%c0_6, %c0_7, %c0_8] : memref<3x512x2048xbf16, #tpu.memory_space<vmem>>, vector<1x512x2048xbf16>
    %8 = vector.shape_cast %7 : vector<1x512x2048xbf16> to vector<512x2048xbf16>
    %cst = arith.constant dense<0.000000e+00> : vector<32x2048xf32>
    %9 = tpu.matmul %6, %8, %cst {dimension_numbers = #tpu.dot_dimension_numbers<[1], [0], [0], [1], [0, 0, 1, 1], [], []>} : vector<32x512xbf16>, vector<512x2048xbf16>, vector<32x2048xf32> -> vector<32x2048xf32>
    %10 = arith.addf %4, %9 : vector<32x2048xf32>
    %c0_9 = arith.constant 0 : index
    %c1 = arith.constant 1 : index
    %c0_10 = arith.constant 0 : index
    %11 = vector.load %arg5[%c0_9, %c1, %c0_10] : memref<2x18x512xbf16, #tpu.memory_space<vmem>>, vector<2x16x512xbf16>
    %12 = vector.shape_cast %11 : vector<2x16x512xbf16> to vector<32x512xbf16>
    %c1_11 = arith.constant 1 : index
    %c0_12 = arith.constant 0 : index
    %c0_13 = arith.constant 0 : index
    %13 = vector.load %arg2[%c1_11, %c0_12, %c0_13] : memref<3x512x2048xbf16, #tpu.memory_space<vmem>>, vector<1x512x2048xbf16>
    %14 = vector.shape_cast %13 : vector<1x512x2048xbf16> to vector<512x2048xbf16>
    %cst_14 = arith.constant dense<0.000000e+00> : vector<32x2048xf32>
    %15 = tpu.matmul %12, %14, %cst_14 {dimension_numbers = #tpu.dot_dimension_numbers<[1], [0], [0], [1], [0, 0, 1, 1], [], []>} : vector<32x512xbf16>, vector<512x2048xbf16>, vector<32x2048xf32> -> vector<32x2048xf32>
    %16 = arith.addf %10, %15 : vector<32x2048xf32>
    %c0_15 = arith.constant 0 : index
    %c2 = arith.constant 2 : index
    %c0_16 = arith.constant 0 : index
    %17 = vector.load %arg5[%c0_15, %c2, %c0_16] : memref<2x18x512xbf16, #tpu.memory_space<vmem>>, vector<2x16x512xbf16>
    %18 = vector.shape_cast %17 : vector<2x16x512xbf16> to vector<32x512xbf16>
    %c2_17 = arith.constant 2 : index
    %c0_18 = arith.constant 0 : index
    %c0_19 = arith.constant 0 : index
    %19 = vector.load %arg2[%c2_17, %c0_18, %c0_19] : memref<3x512x2048xbf16, #tpu.memory_space<vmem>>, vector<1x512x2048xbf16>
    %20 = vector.shape_cast %19 : vector<1x512x2048xbf16> to vector<512x2048xbf16>
    %cst_20 = arith.constant dense<0.000000e+00> : vector<32x2048xf32>
    %21 = tpu.matmul %18, %20, %cst_20 {dimension_numbers = #tpu.dot_dimension_numbers<[1], [0], [0], [1], [0, 0, 1, 1], [], []>} : vector<32x512xbf16>, vector<512x2048xbf16>, vector<32x2048xf32> -> vector<32x2048xf32>
    %22 = arith.addf %16, %21 : vector<32x2048xf32>
    %23 = vector.extract_strided_slice %22 {offsets = [0, 0], sizes = [32, 1536], strides = [1, 1]} : vector<32x2048xf32> to vector<32x1536xf32>
    %cst_21 = arith.constant 5.000000e-01 : f32
    %24 = vector.broadcast %cst_21 : f32 to vector<32x1536xf32>
    %25 = arith.mulf %24, %23 : vector<32x1536xf32>
    %26 = math.tanh %25 : vector<32x1536xf32>
    %cst_22 = arith.constant 5.000000e-01 : f32
    %27 = vector.broadcast %cst_22 : f32 to vector<32x1536xf32>
    %28 = arith.mulf %27, %26 : vector<32x1536xf32>
    %cst_23 = arith.constant 5.000000e-01 : f32
    %29 = vector.broadcast %cst_23 : f32 to vector<32x1536xf32>
    %30 = arith.addf %28, %29 : vector<32x1536xf32>
    %31 = vector.extract_strided_slice %30 {offsets = [0, 0], sizes = [32, 512], strides = [1, 1]} : vector<32x1536xf32> to vector<32x512xf32>
    %32 = vector.extract_strided_slice %30 {offsets = [0, 512], sizes = [32, 512], strides = [1, 1]} : vector<32x1536xf32> to vector<32x512xf32>
    %33 = vector.extract_strided_slice %30 {offsets = [0, 1024], sizes = [32, 512], strides = [1, 1]} : vector<32x1536xf32> to vector<32x512xf32>
    %34 = vector.extract_strided_slice %22 {offsets = [0, 1536], sizes = [32, 512], strides = [1, 1]} : vector<32x2048xf32> to vector<32x512xf32>
    %35 = math.tanh %34 : vector<32x512xf32>
    %c0_24 = arith.constant 0 : index
    %c0_25 = arith.constant 0 : index
    %36 = vector.load %arg4[%c0_24, %c0_25] : memref<32x512xf32, #tpu.memory_space<vmem>>, vector<32x512xf32>
    %37 = arith.mulf %32, %36 : vector<32x512xf32>
    %38 = arith.mulf %31, %35 : vector<32x512xf32>
    %39 = arith.addf %37, %38 : vector<32x512xf32>
    %40 = math.tanh %39 : vector<32x512xf32>
    %41 = arith.mulf %33, %40 : vector<32x512xf32>
    %c0_26 = arith.constant 0 : index
    %c0_27 = arith.constant 0 : index
    %42 = vector.load %arg4[%c0_26, %c0_27] : memref<32x512xf32, #tpu.memory_space<vmem>>, vector<32x512xf32>
    tpu.vector_store %arg4[%c0_26, %c0_27], %39 {strides = array<i32>} : memref<32x512xf32, #tpu.memory_space<vmem>>, vector<32x512xf32>,
    %43 = vector.shape_cast %41 : vector<32x512xf32> to vector<2x16x512xf32>
    %44 = arith.truncf %43 : vector<2x16x512xf32> to vector<2x16x512xbf16>
    %c0_28 = arith.constant 0 : index
    %c1_29 = arith.constant 1 : index
    %c0_30 = arith.constant 0 : index
    %45 = vector.load %arg5[%c0_28, %c1_29, %c0_30] : memref<2x18x512xbf16, #tpu.memory_space<vmem>>, vector<2x16x512xbf16>
    tpu.vector_store %arg5[%c0_28, %c1_29, %c0_30], %44 {strides = array<i32>} : memref<2x18x512xbf16, #tpu.memory_space<vmem>>, vector<2x16x512xbf16>,
    %c0_31 = arith.constant 0 : index
    %c0_32 = arith.constant 0 : index
    %c0_33 = arith.constant 0 : index
    %46 = vector.load %arg3[%c0_31, %c0_32, %c0_33] : memref<1x32x512xf32, #tpu.memory_space<vmem>>, vector<1x32x512xf32>
    %47 = vector.shape_cast %46 : vector<1x32x512xf32> to vector<32x512xf32>
    %48 = vector.shape_cast %41 : vector<32x512xf32> to vector<1x32x512xf32>
    tpu.vector_store %arg3[%c0_31, %c0_32, %c0_33], %48 {strides = array<i32>} : memref<1x32x512xf32, #tpu.memory_space<vmem>>, vector<1x32x512xf32>,
    return
  }
  func.func @transform_0(%arg0: i32) -> (i32, i32, i32) {
    %c0_i32 = arith.constant 0 : i32
    %c0_i32_0 = arith.constant 0 : i32
    %c0_i32_1 = arith.constant 0 : i32
    return %arg0, %c0_i32, %c0_i32_0 : i32, i32, i32
  }
  func.func @transform_1(%arg0: i32) -> (i32, i32, i32) {
    %c0_i32 = arith.constant 0 : i32
    %c0_i32_0 = arith.constant 0 : i32
    %c0_i32_1 = arith.constant 0 : i32
    %c0_i32_2 = arith.constant 0 : i32
    return %c0_i32, %c0_i32_0, %c0_i32_1 : i32, i32, i32
  }
  func.func @transform_2(%arg0: i32) -> (i32, i32, i32) {
    %c0_i32 = arith.constant 0 : i32
    %c0_i32_0 = arith.constant 0 : i32
    %c0_i32_1 = arith.constant 0 : i32
    return %arg0, %c0_i32, %c0_i32_0 : i32, i32, i32
  }
  func.func @transform_3(%arg0: i32) -> (i32, i32) {
    %c0_i32 = arith.constant 0 : i32
    %c0_i32_0 = arith.constant 0 : i32
    %c0_i32_1 = arith.constant 0 : i32
    return %c0_i32, %c0_i32_0 : i32, i32
  }
}

</mosaic_0001>

<llo_original>
// kernel: tpu_custom_call.1
$region0: #{tpu_custom_call.1}
  #allocation0 [shape = 'u32[]', space=smem, size = 0x4, offset = 0x4, fixed_abs, tag = 'smem constant byte address 0x4 - core index']
  #allocation1 [shape = 'u32[144,128]{1,0:T(1,128)}', space=vmem, size = 0x12000, scoped, tag = 'internal scratch']
  #allocation2 [shape = 'bf16[2,18,512]{2,1,0:T(8,128)(2,1)}', space=vmem, size = 0xc000, scoped, tag = 'scratch operand']
  %s0 = inlined_call_operand.hbm [shape: f32[8,32,2048], index: 0, kind: input, shape index: {}]
  %s1 = inlined_call_operand.hbm [shape: bf16[3,512,2048], index: 1, kind: input, shape index: {}]
  %s2 = inlined_call_operand.hbm [shape: f32[8,32,512], index: 2, kind: output, shape index: {0}]
  %s3 = inlined_call_operand.hbm [shape: f32[32,512], index: 3, kind: output, shape index: {1}]
  %4 = xla_tuple %s2, %s3
  %s5 = sld [smem:[#allocation0]]
  $region61: #{tpu_custom_call.1} parent=0
    _
  %s7 = ssub.s32 1, %s5
  %s8 = scalar_select 0, %s7, %s5
  $region1: #{tpu_custom_call.1} parent=0
    #allocation3 [shape = 'u8[524288]{0}', space=vmem, size = 0x80000, scoped, tag = 'input window, operand 0']
    #allocation4 [shape = 's32[2]{0}', space=sflag, size = 0x8, scoped, tag = 'scoped memory for tpu_custom_call.1']
    #allocation5 [shape = 's32[2]{0}', space=sflag, size = 0x8, scoped, tag = 'scoped memory for tpu_custom_call.1']
    #allocation6 [shape = 'u8[6291456]{0}', space=vmem, size = 0x600000, scoped, tag = 'input window, operand 1, single buffered']
    #allocation7 [shape = 's32[1]{0}', space=sflag, size = 0x4, scoped, tag = 'scoped memory for tpu_custom_call.1']
    #allocation8 [shape = 'u8[131072]{0}', space=vmem, size = 0x20000, scoped, tag = 'output window, operand 0']
    #allocation9 [shape = 'u8[65536]{0}', space=vmem, size = 0x10000, scoped, tag = 'output window, operand 1, single buffered']
    #allocation10 [shape = 's32[1]{0}', space=sflag, size = 0x4, scoped, tag = 'scoped memory for tpu_custom_call.1']
    %9 = vsyncpa [#allocation4], 0
    %s10 = scalar_lea.sflag [#allocation4], 1
    %11 = vsyncpa %s10, 0
    %12 = vsyncpa [#allocation7], 0
    %13 = vsyncpa [#allocation5], 0
    %s14 = scalar_lea.sflag [#allocation5], 1
    %15 = vsyncpa %s14, 0
    %16 = vsyncpa [#allocation10], 0
    loop: start=0, step=1, limit=10
    $region2: #{tpu_custom_call.1} parent=1 // loop_pre_header
      _
    $region3: #{tpu_custom_call.1} parent=1 // loop_header
      %s18 = sphi 0, %s22
      %p19 = scmp.ge.s32.totalorder %s18, 10
      %s28 = sphi 0, %s30
      %s31 = sphi 0, %s28
      %s32 = sphi 0, %s31
      %s48 = sphi 0, %s32
      %s52 = sphi 0, %s52
      %s54 = sphi 0, %s52
      %s55 = sphi 0, %s54
      %s69 = sphi 0, %s55
      %s75 = sphi 0, %s77
      %s78 = sphi 0, %s75
      %s79 = sphi 0, %s78
      %s95 = sphi 0, %s79
      %s99 = sphi 0, %s99
      %s101 = sphi 0, %s99
      %s102 = sphi 0, %s101
      %s116 = sphi 0, %s102
    $region4: #{tpu_custom_call.1} parent=1 // loop_header_branch
      %21 = sbr.rel (%p19) target = $region8
    $region5: #{tpu_custom_call.1} parent=1 // loop_body
      %s23 = ssub.s32 %s18, 1
      %s24 = ssub.s32 %s18, 2
      %s25 = sadd.s32 %s18, 1
      %s26 = ssub.s32 %s18, %s25
      %p27 = scmp.eq.s32.totalorder %s26, 0
      %s29 = sadd.s32 %s28, 1
      %s30 = scalar_select %p27, %s28, %s29
      %p33 = pneg %p27
      %p34 = scmp.eq.s32.totalorder %s18, 7
      %p35 = por %p33, %p34
      %p36 = scmp.ne.s32.totalorder %s28, %s31
      %p37 = scmp.eq.s32.totalorder %s18, 0
      %p38 = por %p36, %p37
      %p39 = scmp.ne.s32.totalorder %s28, %s31
      %p40 = scmp.eq.s32.totalorder %s23, 7
      %p41 = por %p39, %p40
      %p42 = scmp.ne.s32.totalorder %s31, %s32
      %p43 = scmp.eq.s32.totalorder %s23, 0
      %p44 = por %p42, %p43
      %p45 = scmp.ne.s32.totalorder %s31, %s32
      %p46 = scmp.eq.s32.totalorder %s24, 7
      %p47 = por %p45, %p46
      %p49 = scmp.ne.s32.totalorder %s32, %s48
      %p50 = scmp.eq.s32.totalorder %s24, 0
      %p51 = por %p49, %p50
      %s53 = sadd.s32 %s52, 1
      %p56 = scmp.eq.s32.totalorder %s18, 7
      %p57 = scmp.ne.s32.totalorder %s52, %s54
      %p58 = scmp.eq.s32.totalorder %s18, 0
      %p59 = por %p57, %p58
      %p60 = scmp.ne.s32.totalorder %s52, %s54
      %p61 = scmp.eq.s32.totalorder %s23, 7
      %p62 = por %p60, %p61
      %p63 = scmp.ne.s32.totalorder %s54, %s55
      %p64 = scmp.eq.s32.totalorder %s23, 0
      %p65 = por %p63, %p64
      %p66 = scmp.ne.s32.totalorder %s54, %s55
      %p67 = scmp.eq.s32.totalorder %s24, 7
      %p68 = por %p66, %p67
      %p70 = scmp.ne.s32.totalorder %s55, %s69
      %p71 = scmp.eq.s32.totalorder %s24, 0
      %p72 = por %p70, %p71
      %s73 = ssub.s32 %s18, %s25
      %p74 = scmp.eq.s32.totalorder %s73, 0
      %s76 = sadd.s32 %s75, 1
      %s77 = scalar_select %p74, %s75, %s76
      %p80 = pneg %p74
      %p81 = scmp.eq.s32.totalorder %s18, 7
      %p82 = por %p80, %p81
      %p83 = scmp.ne.s32.totalorder %s75, %s78
      %p84 = scmp.eq.s32.totalorder %s18, 0
      %p85 = por %p83, %p84
      %p86 = scmp.ne.s32.totalorder %s75, %s78
      %p87 = scmp.eq.s32.totalorder %s23, 7
      %p88 = por %p86, %p87
      %p89 = scmp.ne.s32.totalorder %s78, %s79
      %p90 = scmp.eq.s32.totalorder %s23, 0
      %p91 = por %p89, %p90
      %p92 = scmp.ne.s32.totalorder %s78, %s79
      %p93 = scmp.eq.s32.totalorder %s24, 7
      %p94 = por %p92, %p93
      %p96 = scmp.ne.s32.totalorder %s79, %s95
      %p97 = scmp.eq.s32.totalorder %s24, 0
      %p98 = por %p96, %p97
      %s100 = sadd.s32 %s99, 1
      %p103 = scmp.eq.s32.totalorder %s18, 7
      %p104 = scmp.ne.s32.totalorder %s99, %s101
      %p105 = scmp.eq.s32.totalorder %s18, 0
      %p106 = por %p104, %p105
      %p107 = scmp.ne.s32.totalorder %s99, %s101
      %p108 = scmp.eq.s32.totalorder %s23, 7
      %p109 = por %p107, %p108
      %p110 = scmp.ne.s32.totalorder %s101, %s102
      %p111 = scmp.eq.s32.totalorder %s23, 0
      %p112 = por %p110, %p111
      %p113 = scmp.ne.s32.totalorder %s101, %s102
      %p114 = scmp.eq.s32.totalorder %s24, 7
      %p115 = por %p113, %p114
      %p117 = scmp.ne.s32.totalorder %s102, %s116
      %p118 = scmp.eq.s32.totalorder %s24, 0
      %p119 = por %p117, %p118
      %p120 = scmp.le.s32.totalorder 1, %s18
      %p121 = scmp.lt.s32.totalorder %s18, 9
      %p122 = pnand %p120, %p121
      %p123 = pneg %p122
      // Predicated region
      $region9: #{tpu_custom_call.1} parent=5 // pred_check
        _
      $region10: #{tpu_custom_call.1} parent=5 // pred_check_branch
        %125 = sbr.rel (%p122) target = $region12
      $region11: #{tpu_custom_call.1} parent=5 // pred_region
        %s126 = ssub.s32 %s18, 1
        // Predicated region
        $region13: #{tpu_custom_call.1} parent=11 // pred_check
          %p127 = pneg %p65
        $region14: #{tpu_custom_call.1} parent=11 // pred_check_branch
          %129 = sbr.rel (%p127) target = $region16
        $region15: #{tpu_custom_call.1} parent=11 // pred_region
          %s131 = ssub.s32 196608, 196608
          %132 = vsyncadd [#allocation7], %s131
          %s133 = sshll.u32 [#allocation6], 4
          %s134 = int_to_ptr.vmem [resolvable:$true] %s133
          %139 = dma.hbm_to_vmem [thread:$0]  %s1, 196608, %s134, [#allocation7], 1024, 1024, 64
        $region16: #{tpu_custom_call.1} parent=11 // pred_fallthru
          _
      $region12: #{tpu_custom_call.1} parent=5 // pred_fallthru
        _
      %p140 = scmp.lt.s32.totalorder %s18, 8
      // Predicated region
      $region17: #{tpu_custom_call.1} parent=5 // pred_check
        %p141 = pneg %p140
      $region18: #{tpu_custom_call.1} parent=5 // pred_check_branch
        %143 = sbr.rel (%p141) target = $region20
      $region19: #{tpu_custom_call.1} parent=5 // pred_region
        // Predicated region
        $region21: #{tpu_custom_call.1} parent=19 // pred_check
          %p144 = pneg %p38
        $region22: #{tpu_custom_call.1} parent=19 // pred_check_branch
          %146 = sbr.rel (%p144) target = $region24
        $region23: #{tpu_custom_call.1} parent=19 // pred_region
          %s147 = sand.u32 %s28, 1
          %s148 = scalar_lea.sflag [#allocation4], %s147
          %s149 = sand.u32 %s28, 1
          %s150 = smul.addr %s149, 512
          %s151 = scalar_lea.vmem [#allocation3], %s150
          %s153 = ssub.s32 8192, 8192
          %154 = vsyncadd %s148, %s153
          %s155 = smul.addr %s18, 64
          %s156 = smul.addr %s155, 128
          %s157 = scalar_lea.hbm %s0, %s156
          %s158 = sshll.u32 %s151, 4
          %s159 = int_to_ptr.vmem [resolvable:$true] %s158
          %164 = dma.hbm_to_vmem [thread:$0]  %s157, 8192, %s159, %s148, 2048, 2048, 128
        $region24: #{tpu_custom_call.1} parent=19 // pred_fallthru
          _
      $region20: #{tpu_custom_call.1} parent=5 // pred_fallthru
        _
      %p165 = scmp.le.s32.totalorder 1, %s18
      %p166 = scmp.lt.s32.totalorder %s18, 9
      %p167 = pnand %p165, %p166
      %p168 = pneg %p167
      // Predicated region
      $region25: #{tpu_custom_call.1} parent=5 // pred_check
        _
      $region26: #{tpu_custom_call.1} parent=5 // pred_check_branch
        %170 = sbr.rel (%p167) target = $region28
      $region27: #{tpu_custom_call.1} parent=5 // pred_region
        %s171 = ssub.s32 %s18, 1
        %s172 = sand.u32 %s31, 1
        %s173 = scalar_lea.sflag [#allocation4], %s172
        %s174 = sand.u32 %s31, 1
        %s175 = smul.addr %s174, 512
        %s176 = scalar_lea.vmem [#allocation3], %s175
        // Predicated region
        $region29: #{tpu_custom_call.1} parent=27 // pred_check
          %p177 = pneg %p44
        $region30: #{tpu_custom_call.1} parent=27 // pred_check_branch
          %179 = sbr.rel (%p177) target = $region32
        $region31: #{tpu_custom_call.1} parent=27 // pred_region
          %180 = dma.done %s173, 8192
        $region32: #{tpu_custom_call.1} parent=27 // pred_fallthru
          _
        // Predicated region
        $region33: #{tpu_custom_call.1} parent=27 // pred_check
          %p181 = pneg %p65
        $region34: #{tpu_custom_call.1} parent=27 // pred_check_branch
          %183 = sbr.rel (%p181) target = $region36
        $region35: #{tpu_custom_call.1} parent=27 // pred_region
          %184 = dma.done [#allocation7], 196608
        $region36: #{tpu_custom_call.1} parent=27 // pred_fallthru
          _
        %s185 = sand.u32 %s31, 1
        %s186 = scalar_lea.sflag [#allocation4], %s185
        %s187 = sand.u32 %s31, 1
        %s188 = smul.addr %s187, 512
        %s189 = scalar_lea.vmem [#allocation3], %s188
        %p190 = pneg %p44
        %p191 = pneg %p41
        %p192 = pneg %p65
        %p193 = pneg %p62
        %p194 = pneg %p91
        %p195 = pneg %p88
        %s196 = sand.u32 %s78, 1
        %s197 = scalar_lea.sflag [#allocation5], %s196
        %s198 = sand.u32 %s78, 1
        %s199 = smul.addr %s198, 128
        %s200 = scalar_lea.vmem [#allocation8], %s199
        %p201 = pneg %p112
        %p202 = pneg %p109
        %p204 = scmp.eq.s32.totalorder %s23, 0
        // Predicated region
        $region37: #{tpu_custom_call.1} parent=27 // pred_check
          %p205 = pneg %p204
        $region38: #{tpu_custom_call.1} parent=27 // pred_check_branch
          %207 = sbr.rel (%p205) target = $region40
        $region39: #{tpu_custom_call.1} parent=27 // pred_region
          %208 = vst [vmem:[#allocation2] sm:$0xff] 0
          %209 = vst [vmem:[#allocation2 + $0x8] sm:$0xff] 0
          %210 = vst [vmem:[#allocation2 + $0x10] sm:$0xff] 0
          %211 = vst [vmem:[#allocation2 + $0x18] sm:$0xff] 0
          %212 = vst [vmem:[#allocation2 + $0x20] sm:$0x11] 0
          %213 = vst [vmem:[#allocation2 + $0x28] sm:$0x11] 0
          %214 = vst [vmem:[#allocation2 + $0x30] sm:$0xff] 0
          %215 = vst [vmem:[#allocation2 + $0x38] sm:$0xff] 0
          %216 = vst [vmem:[#allocation2 + $0x40] sm:$0xff] 0
          %217 = vst [vmem:[#allocation2 + $0x48] sm:$0xff] 0
          %218 = vst [vmem:[#allocation2 + $0x50] sm:$0x11] 0
          %219 = vst [vmem:[#allocation2 + $0x58] sm:$0x11] 0
          %220 = vst [vmem:[#allocation9] sm:$0xff] 0.0
          %221 = vst [vmem:[#allocation9 + $0x8] sm:$0xff] 0.0
          %222 = vst [vmem:[#allocation9 + $0x10] sm:$0xff] 0.0
          %223 = vst [vmem:[#allocation9 + $0x18] sm:$0xff] 0.0
          %224 = vst [vmem:[#allocation9 + $0x20] sm:$0xff] 0.0
          %225 = vst [vmem:[#allocation9 + $0x28] sm:$0xff] 0.0
          %226 = vst [vmem:[#allocation9 + $0x30] sm:$0xff] 0.0
          %227 = vst [vmem:[#allocation9 + $0x38] sm:$0xff] 0.0
          %228 = vst [vmem:[#allocation9 + $0x40] sm:$0xff] 0.0
          %229 = vst [vmem:[#allocation9 + $0x48] sm:$0xff] 0.0
          %230 = vst [vmem:[#allocation9 + $0x50] sm:$0xff] 0.0
          %231 = vst [vmem:[#allocation9 + $0x58] sm:$0xff] 0.0
          %232 = vst [vmem:[#allocation9 + $0x60] sm:$0xff] 0.0
          %233 = vst [vmem:[#allocation9 + $0x68] sm:$0xff] 0.0
          %234 = vst [vmem:[#allocation9 + $0x70] sm:$0xff] 0.0
          %235 = vst [vmem:[#allocation9 + $0x78] sm:$0xff] 0.0
        $region40: #{tpu_custom_call.1} parent=27 // pred_fallthru
          _
        %v236 = vld [vmem:[%s176] sm:$0xff]
        %v237 = vld [vmem:[%s176 + $0x8] sm:$0xff]
        %v238 = vld [vmem:[%s176 + $0x10] sm:$0xff]
        %v239 = vld [vmem:[%s176 + $0x18] sm:$0xff]
        %v240 = vld [vmem:[%s176 + $0x20] sm:$0xff]
        %v241 = vld [vmem:[%s176 + $0x28] sm:$0xff]
        %v242 = vld [vmem:[%s176 + $0x30] sm:$0xff]
        %v243 = vld [vmem:[%s176 + $0x38] sm:$0xff]
        %v244 = vld [vmem:[%s176 + $0x40] sm:$0xff]
        %v245 = vld [vmem:[%s176 + $0x48] sm:$0xff]
        %v246 = vld [vmem:[%s176 + $0x50] sm:$0xff]
        %v247 = vld [vmem:[%s176 + $0x58] sm:$0xff]
        %v248 = vld [vmem:[%s176 + $0x60] sm:$0xff]
        %v249 = vld [vmem:[%s176 + $0x68] sm:$0xff]
        %v250 = vld [vmem:[%s176 + $0x70] sm:$0xff]
        %v251 = vld [vmem:[%s176 + $0x78] sm:$0xff]
        %v252 = vld [vmem:[%s176 + $0x80] sm:$0xff]
        %v253 = vld [vmem:[%s176 + $0x88] sm:$0xff]
        %v254 = vld [vmem:[%s176 + $0x90] sm:$0xff]
        %v255 = vld [vmem:[%s176 + $0x98] sm:$0xff]
        %v256 = vld [vmem:[%s176 + $0xa0] sm:$0xff]
        %v257 = vld [vmem:[%s176 + $0xa8] sm:$0xff]
        %v258 = vld [vmem:[%s176 + $0xb0] sm:$0xff]
        %v259 = vld [vmem:[%s176 + $0xb8] sm:$0xff]
        %v260 = vld [vmem:[%s176 + $0xc0] sm:$0xff]
        %v261 = vld [vmem:[%s176 + $0xc8] sm:$0xff]
        %v262 = vld [vmem:[%s176 + $0xd0] sm:$0xff]
        %v263 = vld [vmem:[%s176 + $0xd8] sm:$0xff]
        %v264 = vld [vmem:[%s176 + $0xe0] sm:$0xff]
        %v265 = vld [vmem:[%s176 + $0xe8] sm:$0xff]
        %v266 = vld [vmem:[%s176 + $0xf0] sm:$0xff]
        %v267 = vld [vmem:[%s176 + $0xf8] sm:$0xff]
        %v268 = vld [vmem:[%s176 + $0x100] sm:$0xff]
        %v269 = vld [vmem:[%s176 + $0x108] sm:$0xff]
        %v270 = vld [vmem:[%s176 + $0x110] sm:$0xff]
        %v271 = vld [vmem:[%s176 + $0x118] sm:$0xff]
        %v272 = vld [vmem:[%s176 + $0x120] sm:$0xff]
        %v273 = vld [vmem:[%s176 + $0x128] sm:$0xff]
        %v274 = vld [vmem:[%s176 + $0x130] sm:$0xff]
        %v275 = vld [vmem:[%s176 + $0x138] sm:$0xff]
        %v276 = vld [vmem:[%s176 + $0x140] sm:$0xff]
        %v277 = vld [vmem:[%s176 + $0x148] sm:$0xff]
        %v278 = vld [vmem:[%s176 + $0x150] sm:$0xff]
        %v279 = vld [vmem:[%s176 + $0x158] sm:$0xff]
        %v280 = vld [vmem:[%s176 + $0x160] sm:$0xff]
        %v281 = vld [vmem:[%s176 + $0x168] sm:$0xff]
        %v282 = vld [vmem:[%s176 + $0x170] sm:$0xff]
        %v283 = vld [vmem:[%s176 + $0x178] sm:$0xff]
        %v284 = vld [vmem:[%s176 + $0x180] sm:$0xff]
        %v285 = vld [vmem:[%s176 + $0x188] sm:$0xff]
        %v286 = vld [vmem:[%s176 + $0x190] sm:$0xff]
        %v287 = vld [vmem:[%s176 + $0x198] sm:$0xff]
        %v288 = vld [vmem:[%s176 + $0x1a0] sm:$0xff]
        %v289 = vld [vmem:[%s176 + $0x1a8] sm:$0xff]
        %v290 = vld [vmem:[%s176 + $0x1b0] sm:$0xff]
        %v291 = vld [vmem:[%s176 + $0x1b8] sm:$0xff]
        %v292 = vld [vmem:[%s176 + $0x1c0] sm:$0xff]
        %v293 = vld [vmem:[%s176 + $0x1c8] sm:$0xff]
        %v294 = vld [vmem:[%s176 + $0x1d0] sm:$0xff]
        %v295 = vld [vmem:[%s176 + $0x1d8] sm:$0xff]
        %v296 = vld [vmem:[%s176 + $0x1e0] sm:$0xff]
        %v297 = vld [vmem:[%s176 + $0x1e8] sm:$0xff]
        %v298 = vld [vmem:[%s176 + $0x1f0] sm:$0xff]
        %v299 = vld [vmem:[%s176 + $0x1f8] sm:$0xff]
        %v300 = vld [vmem:[#allocation2] sm:$0xff]
        %v301 = vld [vmem:[#allocation2 + $0x8] sm:$0xff]
        %v302 = vld [vmem:[#allocation2 + $0x10] sm:$0xff]
        %v303 = vld [vmem:[#allocation2 + $0x18] sm:$0xff]
        %v304 = vld [vmem:[#allocation2 + $0x30] sm:$0xff]
        %v305 = vld [vmem:[#allocation2 + $0x38] sm:$0xff]
        %v306 = vld [vmem:[#allocation2 + $0x40] sm:$0xff]
        %v307 = vld [vmem:[#allocation2 + $0x48] sm:$0xff]
        %v308 = vld [vmem:[#allocation6] sm:$0xff]
        %v309 = vld [vmem:[#allocation6 + $0x8] sm:$0xff]
        %v310 = vld [vmem:[#allocation6 + $0x10] sm:$0xff]
        %v311 = vld [vmem:[#allocation6 + $0x18] sm:$0xff]
        %v312 = vld [vmem:[#allocation6 + $0x20] sm:$0xff]
        %v313 = vld [vmem:[#allocation6 + $0x28] sm:$0xff]
        %v314 = vld [vmem:[#allocation6 + $0x30] sm:$0xff]
        %v315 = vld [vmem:[#allocation6 + $0x38] sm:$0xff]
        %v316 = vld [vmem:[#allocation6 + $0x40] sm:$0xff]
        %v317 = vld [vmem:[#allocation6 + $0x48] sm:$0xff]
        %v318 = vld [vmem:[#allocation6 + $0x50] sm:$0xff]
        %v319 = vld [vmem:[#allocation6 + $0x58] sm:$0xff]
        %v320 = vld [vmem:[#allocation6 + $0x60] sm:$0xff]
        %v321 = vld [vmem:[#allocation6 + $0x68] sm:$0xff]
        %v322 = vld [vmem:[#allocation6 + $0x70] sm:$0xff]
        %v323 = vld [vmem:[#allocation6 + $0x78] sm:$0xff]
        %v324 = vld [vmem:[#allocation6 + $0x80] sm:$0xff]
        %v325 = vld [vmem:[#allocation6 + $0x88] sm:$0xff]
        %v326 = vld [vmem:[#allocation6 + $0x90] sm:$0xff]
        %v327 = vld [vmem:[#allocation6 + $0x98] sm:$0xff]
        %v328 = vld [vmem:[#allocation6 + $0xa0] sm:$0xff]
        %v329 = vld [vmem:[#allocation6 + $0xa8] sm:$0xff]
        %v330 = vld [vmem:[#allocation6 + $0xb0] sm:$0xff]
        %v331 = vld [vmem:[#allocation6 + $0xb8] sm:$0xff]
        %v332 = vld [vmem:[#allocation6 + $0xc0] sm:$0xff]
        %v333 = vld [vmem:[#allocation6 + $0xc8] sm:$0xff]
        %v334 = vld [vmem:[#allocation6 + $0xd0] sm:$0xff]
        %v335 = vld [vmem:[#allocation6 + $0xd8] sm:$0xff]
        %v336 = vld [vmem:[#allocation6 + $0xe0] sm:$0xff]
        %v337 = vld [vmem:[#allocation6 + $0xe8] sm:$0xff]
        %v338 = vld [vmem:[#allocation6 + $0xf0] sm:$0xff]
        %v339 = vld [vmem:[#allocation6 + $0xf8] sm:$0xff]
        %v340 = vld [vmem:[#allocation6 + $0x100] sm:$0xff]
        %v341 = vld [vmem:[#allocation6 + $0x108] sm:$0xff]
        %v342 = vld [vmem:[#allocation6 + $0x110] sm:$0xff]
        %v343 = vld [vmem:[#allocation6 + $0x118] sm:$0xff]
        %v344 = vld [vmem:[#allocation6 + $0x120] sm:$0xff]
        %v345 = vld [vmem:[#allocation6 + $0x128] sm:$0xff]
        %v346 = vld [vmem:[#allocation6 + $0x130] sm:$0xff]
        %v347 = vld [vmem:[#allocation6 + $0x138] sm:$0xff]
        %v348 = vld [vmem:[#allocation6 + $0x140] sm:$0xff]
        %v349 = vld [vmem:[#allocation6 + $0x148] sm:$0xff]
        %v350 = vld [vmem:[#allocation6 + $0x150] sm:$0xff]
        %v351 = vld [vmem:[#allocation6 + $0x158] sm:$0xff]
        %v352 = vld [vmem:[#allocation6 + $0x160] sm:$0xff]
        %v353 = vld [vmem:[#allocation6 + $0x168] sm:$0xff]
        %v354 = vld [vmem:[#allocation6 + $0x170] sm:$0xff]
        %v355 = vld [vmem:[#allocation6 + $0x178] sm:$0xff]
        %v356 = vld [vmem:[#allocation6 + $0x180] sm:$0xff]
        %v357 = vld [vmem:[#allocation6 + $0x188] sm:$0xff]
        %v358 = vld [vmem:[#allocation6 + $0x190] sm:$0xff]
        %v359 = vld [vmem:[#allocation6 + $0x198] sm:$0xff]
        %v360 = vld [vmem:[#allocation6 + $0x1a0] sm:$0xff]
        %v361 = vld [vmem:[#allocation6 + $0x1a8] sm:$0xff]
        %v362 = vld [vmem:[#allocation6 + $0x1b0] sm:$0xff]
        %v363 = vld [vmem:[#allocation6 + $0x1b8] sm:$0xff]
        %v364 = vld [vmem:[#allocation6 + $0x1c0] sm:$0xff]
        %v365 = vld [vmem:[#allocation6 + $0x1c8] sm:$0xff]
        %v366 = vld [vmem:[#allocation6 + $0x1d0] sm:$0xff]
        %v367 = vld [vmem:[#allocation6 + $0x1d8] sm:$0xff]
        %v368 = vld [vmem:[#allocation6 + $0x1e0] sm:$0xff]
        %v369 = vld [vmem:[#allocation6 + $0x1e8] sm:$0xff]
        %v370 = vld [vmem:[#allocation6 + $0x1f0] sm:$0xff]
        %v371 = vld [vmem:[#allocation6 + $0x1f8] sm:$0xff]
        %v372 = vld [vmem:[#allocation6 + $0x200] sm:$0xff]
        %v373 = vld [vmem:[#allocation6 + $0x208] sm:$0xff]
        %v374 = vld [vmem:[#allocation6 + $0x210] sm:$0xff]
        %v375 = vld [vmem:[#allocation6 + $0x218] sm:$0xff]
        %v376 = vld [vmem:[#allocation6 + $0x220] sm:$0xff]
        %v377 = vld [vmem:[#allocation6 + $0x228] sm:$0xff]
        %v378 = vld [vmem:[#allocation6 + $0x230] sm:$0xff]
        %v379 = vld [vmem:[#allocation6 + $0x238] sm:$0xff]
        %v380 = vld [vmem:[#allocation6 + $0x240] sm:$0xff]
        %v381 = vld [vmem:[#allocation6 + $0x248] sm:$0xff]
        %v382 = vld [vmem:[#allocation6 + $0x250] sm:$0xff]
        %v383 = vld [vmem:[#allocation6 + $0x258] sm:$0xff]
        %v384 = vld [vmem:[#allocation6 + $0x260] sm:$0xff]
        %v385 = vld [vmem:[#allocation6 + $0x268] sm:$0xff]
        %v386 = vld [vmem:[#allocation6 + $0x270] sm:$0xff]
        %v387 = vld [vmem:[#allocation6 + $0x278] sm:$0xff]
        %v388 = vld [vmem:[#allocation6 + $0x280] sm:$0xff]
        %v389 = vld [vmem:[#allocation6 + $0x288] sm:$0xff]
        %v390 = vld [vmem:[#allocation6 + $0x290] sm:$0xff]
        %v391 = vld [vmem:[#allocation6 + $0x298] sm:$0xff]
        %v392 = vld [vmem:[#allocation6 + $0x2a0] sm:$0xff]
        %v393 = vld [vmem:[#allocation6 + $0x2a8] sm:$0xff]
        %v394 = vld [vmem:[#allocation6 + $0x2b0] sm:$0xff]
        %v395 = vld [vmem:[#allocation6 + $0x2b8] sm:$0xff]
        %v396 = vld [vmem:[#allocation6 + $0x2c0] sm:$0xff]
        %v397 = vld [vmem:[#allocation6 + $0x2c8] sm:$0xff]
        %v398 = vld [vmem:[#allocation6 + $0x2d0] sm:$0xff]
        %v399 = vld [vmem:[#allocation6 + $0x2d8] sm:$0xff]
        %v400 = vld [vmem:[#allocation6 + $0x2e0] sm:$0xff]
        %v401 = vld [vmem:[#allocation6 + $0x2e8] sm:$0xff]
        %v402 = vld [vmem:[#allocation6 + $0x2f0] sm:$0xff]
        %v403 = vld [vmem:[#allocation6 + $0x2f8] sm:$0xff]
        %v404 = vld [vmem:[#allocation6 + $0x300] sm:$0xff]
        %v405 = vld [vmem:[#allocation6 + $0x308] sm:$0xff]
        %v406 = vld [vmem:[#allocation6 + $0x310] sm:$0xff]
        %v407 = vld [vmem:[#allocation6 + $0x318] sm:$0xff]
        %v408 = vld [vmem:[#allocation6 + $0x320] sm:$0xff]
        %v409 = vld [vmem:[#allocation6 + $0x328] sm:$0xff]
        %v410 = vld [vmem:[#allocation6 + $0x330] sm:$0xff]
        %v411 = vld [vmem:[#allocation6 + $0x338] sm:$0xff]
        %v412 = vld [vmem:[#allocation6 + $0x340] sm:$0xff]
        %v413 = vld [vmem:[#allocation6 + $0x348] sm:$0xff]
        %v414 = vld [vmem:[#allocation6 + $0x350] sm:$0xff]
        %v415 = vld [vmem:[#allocation6 + $0x358] sm:$0xff]
        %v416 = vld [vmem:[#allocation6 + $0x360] sm:$0xff]
        %v417 = vld [vmem:[#allocation6 + $0x368] sm:$0xff]
        %v418 = vld [vmem:[#allocation6 + $0x370] sm:$0xff]
        %v419 = vld [vmem:[#allocation6 + $0x378] sm:$0xff]
        %v420 = vld [vmem:[#allocation6 + $0x380] sm:$0xff]
        %v421 = vld [vmem:[#allocation6 + $0x388] sm:$0xff]
        %v422 = vld [vmem:[#allocation6 + $0x390] sm:$0xff]
        %v423 = vld [vmem:[#allocation6 + $0x398] sm:$0xff]
        %v424 = vld [vmem:[#allocation6 + $0x3a0] sm:$0xff]
        %v425 = vld [vmem:[#allocation6 + $0x3a8] sm:$0xff]
        %v426 = vld [vmem:[#allocation6 + $0x3b0] sm:$0xff]
        %v427 = vld [vmem:[#allocation6 + $0x3b8] sm:$0xff]
        %v428 = vld [vmem:[#allocation6 + $0x3c0] sm:$0xff]
        %v429 = vld [vmem:[#allocation6 + $0x3c8] sm:$0xff]
        %v430 = vld [vmem:[#allocation6 + $0x3d0] sm:$0xff]
        %v431 = vld [vmem:[#allocation6 + $0x3d8] sm:$0xff]
        %v432 = vld [vmem:[#allocation6 + $0x3e0] sm:$0xff]
        %v433 = vld [vmem:[#allocation6 + $0x3e8] sm:$0xff]
        %v434 = vld [vmem:[#allocation6 + $0x3f0] sm:$0xff]
        %v435 = vld [vmem:[#allocation6 + $0x3f8] sm:$0xff]
        %v436 = vld [vmem:[#allocation6 + $0x400] sm:$0xff]
        %v437 = vld [vmem:[#allocation6 + $0x408] sm:$0xff]
        %v438 = vld [vmem:[#allocation6 + $0x410] sm:$0xff]
        %v439 = vld [vmem:[#allocation6 + $0x418] sm:$0xff]
        %v440 = vld [vmem:[#allocation6 + $0x420] sm:$0xff]
        %v441 = vld [vmem:[#allocation6 + $0x428] sm:$0xff]
        %v442 = vld [vmem:[#allocation6 + $0x430] sm:$0xff]
        %v443 = vld [vmem:[#allocation6 + $0x438] sm:$0xff]
        %v444 = vld [vmem:[#allocation6 + $0x440] sm:$0xff]
        %v445 = vld [vmem:[#allocation6 + $0x448] sm:$0xff]
        %v446 = vld [vmem:[#allocation6 + $0x450] sm:$0xff]
        %v447 = vld [vmem:[#allocation6 + $0x458] sm:$0xff]
        %v448 = vld [vmem:[#allocation6 + $0x460] sm:$0xff]
        %v449 = vld [vmem:[#allocation6 + $0x468] sm:$0xff]
        %v450 = vld [vmem:[#allocation6 + $0x470] sm:$0xff]
        %v451 = vld [vmem:[#allocation6 + $0x478] sm:$0xff]
        %v452 = vld [vmem:[#allocation6 + $0x480] sm:$0xff]
        %v453 = vld [vmem:[#allocation6 + $0x488] sm:$0xff]
        %v454 = vld [vmem:[#allocation6 + $0x490] sm:$0xff]
        %v455 = vld [vmem:[#allocation6 + $0x498] sm:$0xff]
        %v456 = vld [vmem:[#allocation6 + $0x4a0] sm:$0xff]
        %v457 = vld [vmem:[#allocation6 + $0x4a8] sm:$0xff]
        %v458 = vld [vmem:[#allocation6 + $0x4b0] sm:$0xff]
        %v459 = vld [vmem:[#allocation6 + $0x4b8] sm:$0xff]
        %v460 = vld [vmem:[#allocation6 + $0x4c0] sm:$0xff]
        %v461 = vld [vmem:[#allocation6 + $0x4c8] sm:$0xff]
        %v462 = vld [vmem:[#allocation6 + $0x4d0] sm:$0xff]
        %v463 = vld [vmem:[#allocation6 + $0x4d8] sm:$0xff]
        %v464 = vld [vmem:[#allocation6 + $0x4e0] sm:$0xff]
        %v465 = vld [vmem:[#allocation6 + $0x4e8] sm:$0xff]
        %v466 = vld [vmem:[#allocation6 + $0x4f0] sm:$0xff]
        %v467 = vld [vmem:[#allocation6 + $0x4f8] sm:$0xff]
        %v468 = vld [vmem:[#allocation6 + $0x500] sm:$0xff]
        %v469 = vld [vmem:[#allocation6 + $0x508] sm:$0xff]
        %v470 = vld [vmem:[#allocation6 + $0x510] sm:$0xff]
        %v471 = vld [vmem:[#allocation6 + $0x518] sm:$0xff]
        %v472 = vld [vmem:[#allocation6 + $0x520] sm:$0xff]
        %v473 = vld [vmem:[#allocation6 + $0x528] sm:$0xff]
        %v474 = vld [vmem:[#allocation6 + $0x530] sm:$0xff]
        %v475 = vld [vmem:[#allocation6 + $0x538] sm:$0xff]
        %v476 = vld [vmem:[#allocation6 + $0x540] sm:$0xff]
        %v477 = vld [vmem:[#allocation6 + $0x548] sm:$0xff]
        %v478 = vld [vmem:[#allocation6 + $0x550] sm:$0xff]
        %v479 = vld [vmem:[#allocation6 + $0x558] sm:$0xff]
        %v480 = vld [vmem:[#allocation6 + $0x560] sm:$0xff]
        %v481 = vld [vmem:[#allocation6 + $0x568] sm:$0xff]
        %v482 = vld [vmem:[#allocation6 + $0x570] sm:$0xff]
        %v483 = vld [vmem:[#allocation6 + $0x578] sm:$0xff]
        %v484 = vld [vmem:[#allocation6 + $0x580] sm:$0xff]
        %v485 = vld [vmem:[#allocation6 + $0x588] sm:$0xff]
        %v486 = vld [vmem:[#allocation6 + $0x590] sm:$0xff]
        %v487 = vld [vmem:[#allocation6 + $0x598] sm:$0xff]
        %v488 = vld [vmem:[#allocation6 + $0x5a0] sm:$0xff]
        %v489 = vld [vmem:[#allocation6 + $0x5a8] sm:$0xff]
        %v490 = vld [vmem:[#allocation6 + $0x5b0] sm:$0xff]
        %v491 = vld [vmem:[#allocation6 + $0x5b8] sm:$0xff]
        %v492 = vld [vmem:[#allocation6 + $0x5c0] sm:$0xff]
        %v493 = vld [vmem:[#allocation6 + $0x5c8] sm:$0xff]
        %v494 = vld [vmem:[#allocation6 + $0x5d0] sm:$0xff]
        %v495 = vld [vmem:[#allocation6 + $0x5d8] sm:$0xff]
        %v496 = vld [vmem:[#allocation6 + $0x5e0] sm:$0xff]
        %v497 = vld [vmem:[#allocation6 + $0x5e8] sm:$0xff]
        %v498 = vld [vmem:[#allocation6 + $0x5f0] sm:$0xff]
        %v499 = vld [vmem:[#allocation6 + $0x5f8] sm:$0xff]
        %v500 = vld [vmem:[#allocation6 + $0x600] sm:$0xff]
        %v501 = vld [vmem:[#allocation6 + $0x608] sm:$0xff]
        %v502 = vld [vmem:[#allocation6 + $0x610] sm:$0xff]
        %v503 = vld [vmem:[#allocation6 + $0x618] sm:$0xff]
        %v504 = vld [vmem:[#allocation6 + $0x620] sm:$0xff]
        %v505 = vld [vmem:[#allocation6 + $0x628] sm:$0xff]
        %v506 = vld [vmem:[#allocation6 + $0x630] sm:$0xff]
        %v507 = vld [vmem:[#allocation6 + $0x638] sm:$0xff]
        %v508 = vld [vmem:[#allocation6 + $0x640] sm:$0xff]
        %v509 = vld [vmem:[#allocation6 + $0x648] sm:$0xff]
        %v510 = vld [vmem:[#allocation6 + $0x650] sm:$0xff]
        %v511 = vld [vmem:[#allocation6 + $0x658] sm:$0xff]
        %v512 = vld [vmem:[#allocation6 + $0x660] sm:$0xff]
        %v513 = vld [vmem:[#allocation6 + $0x668] sm:$0xff]
        %v514 = vld [vmem:[#allocation6 + $0x670] sm:$0xff]
        %v515 = vld [vmem:[#allocation6 + $0x678] sm:$0xff]
        %v516 = vld [vmem:[#allocation6 + $0x680] sm:$0xff]
        %v517 = vld [vmem:[#allocation6 + $0x688] sm:$0xff]
        %v518 = vld [vmem:[#allocation6 + $0x690] sm:$0xff]
        %v519 = vld [vmem:[#allocation6 + $0x698] sm:$0xff]
        %v520 = vld [vmem:[#allocation6 + $0x6a0] sm:$0xff]
        %v521 = vld [vmem:[#allocation6 + $0x6a8] sm:$0xff]
        %v522 = vld [vmem:[#allocation6 + $0x6b0] sm:$0xff]
        %v523 = vld [vmem:[#allocation6 + $0x6b8] sm:$0xff]
        %v524 = vld [vmem:[#allocation6 + $0x6c0] sm:$0xff]
        %v525 = vld [vmem:[#allocation6 + $0x6c8] sm:$0xff]
        %v526 = vld [vmem:[#allocation6 + $0x6d0] sm:$0xff]
        %v527 = vld [vmem:[#allocation6 + $0x6d8] sm:$0xff]
        %v528 = vld [vmem:[#allocation6 + $0x6e0] sm:$0xff]
        %v529 = vld [vmem:[#allocation6 + $0x6e8] sm:$0xff]
        %v530 = vld [vmem:[#allocation6 + $0x6f0] sm:$0xff]
        %v531 = vld [vmem:[#allocation6 + $0x6f8] sm:$0xff]
        %v532 = vld [vmem:[#allocation6 + $0x700] sm:$0xff]
        %v533 = vld [vmem:[#allocation6 + $0x708] sm:$0xff]
        %v534 = vld [vmem:[#allocation6 + $0x710] sm:$0xff]
        %v535 = vld [vmem:[#allocation6 + $0x718] sm:$0xff]
        %v536 = vld [vmem:[#allocation6 + $0x720] sm:$0xff]
        %v537 = vld [vmem:[#allocation6 + $0x728] sm:$0xff]
        %v538 = vld [vmem:[#allocation6 + $0x730] sm:$0xff]
        %v539 = vld [vmem:[#allocation6 + $0x738] sm:$0xff]
        %v540 = vld [vmem:[#allocation6 + $0x740] sm:$0xff]
        %v541 = vld [vmem:[#allocation6 + $0x748] sm:$0xff]
        %v542 = vld [vmem:[#allocation6 + $0x750] sm:$0xff]
        %v543 = vld [vmem:[#allocation6 + $0x758] sm:$0xff]
        %v544 = vld [vmem:[#allocation6 + $0x760] sm:$0xff]
        %v545 = vld [vmem:[#allocation6 + $0x768] sm:$0xff]
        %v546 = vld [vmem:[#allocation6 + $0x770] sm:$0xff]
        %v547 = vld [vmem:[#allocation6 + $0x778] sm:$0xff]
        %v548 = vld [vmem:[#allocation6 + $0x780] sm:$0xff]
        %v549 = vld [vmem:[#allocation6 + $0x788] sm:$0xff]
        %v550 = vld [vmem:[#allocation6 + $0x790] sm:$0xff]
        %v551 = vld [vmem:[#allocation6 + $0x798] sm:$0xff]
        %v552 = vld [vmem:[#allocation6 + $0x7a0] sm:$0xff]
        %v553 = vld [vmem:[#allocation6 + $0x7a8] sm:$0xff]
        %v554 = vld [vmem:[#allocation6 + $0x7b0] sm:$0xff]
        %v555 = vld [vmem:[#allocation6 + $0x7b8] sm:$0xff]
        %v556 = vld [vmem:[#allocation6 + $0x7c0] sm:$0xff]
        %v557 = vld [vmem:[#allocation6 + $0x7c8] sm:$0xff]
        %v558 = vld [vmem:[#allocation6 + $0x7d0] sm:$0xff]
        %v559 = vld [vmem:[#allocation6 + $0x7d8] sm:$0xff]
        %v560 = vld [vmem:[#allocation6 + $0x7e0] sm:$0xff]
        %v561 = vld [vmem:[#allocation6 + $0x7e8] sm:$0xff]
        %v562 = vld [vmem:[#allocation6 + $0x7f0] sm:$0xff]
        %v563 = vld [vmem:[#allocation6 + $0x7f8] sm:$0xff]
        %v564 = vld [vmem:[#allocation6 + $0x800] sm:$0xff]
        %v565 = vld [vmem:[#allocation6 + $0x808] sm:$0xff]
        %v566 = vld [vmem:[#allocation6 + $0x810] sm:$0xff]
        %v567 = vld [vmem:[#allocation6 + $0x818] sm:$0xff]
        %v568 = vld [vmem:[#allocation6 + $0x820] sm:$0xff]
        %v569 = vld [vmem:[#allocation6 + $0x828] sm:$0xff]
        %v570 = vld [vmem:[#allocation6 + $0x830] sm:$0xff]
        %v571 = vld [vmem:[#allocation6 + $0x838] sm:$0xff]
        %v572 = vld [vmem:[#allocation6 + $0x840] sm:$0xff]
        %v573 = vld [vmem:[#allocation6 + $0x848] sm:$0xff]
        %v574 = vld [vmem:[#allocation6 + $0x850] sm:$0xff]
        %v575 = vld [vmem:[#allocation6 + $0x858] sm:$0xff]
        %v576 = vld [vmem:[#allocation6 + $0x860] sm:$0xff]
        %v577 = vld [vmem:[#allocation6 + $0x868] sm:$0xff]
        %v578 = vld [vmem:[#allocation6 + $0x870] sm:$0xff]
        %v579 = vld [vmem:[#allocation6 + $0x878] sm:$0xff]
        %v580 = vld [vmem:[#allocation6 + $0x880] sm:$0xff]
        %v581 = vld [vmem:[#allocation6 + $0x888] sm:$0xff]
        %v582 = vld [vmem:[#allocation6 + $0x890] sm:$0xff]
        %v583 = vld [vmem:[#allocation6 + $0x898] sm:$0xff]
        %v584 = vld [vmem:[#allocation6 + $0x8a0] sm:$0xff]
        %v585 = vld [vmem:[#allocation6 + $0x8a8] sm:$0xff]
        %v586 = vld [vmem:[#allocation6 + $0x8b0] sm:$0xff]
        %v587 = vld [vmem:[#allocation6 + $0x8b8] sm:$0xff]
        %v588 = vld [vmem:[#allocation6 + $0x8c0] sm:$0xff]
        %v589 = vld [vmem:[#allocation6 + $0x8c8] sm:$0xff]
        %v590 = vld [vmem:[#allocation6 + $0x8d0] sm:$0xff]
        %v591 = vld [vmem:[#allocation6 + $0x8d8] sm:$0xff]
        %v592 = vld [vmem:[#allocation6 + $0x8e0] sm:$0xff]
        %v593 = vld [vmem:[#allocation6 + $0x8e8] sm:$0xff]
        %v594 = vld [vmem:[#allocation6 + $0x8f0] sm:$0xff]
        %v595 = vld [vmem:[#allocation6 + $0x8f8] sm:$0xff]
        %v596 = vld [vmem:[#allocation6 + $0x900] sm:$0xff]
        %v597 = vld [vmem:[#allocation6 + $0x908] sm:$0xff]
        %v598 = vld [vmem:[#allocation6 + $0x910] sm:$0xff]
        %v599 = vld [vmem:[#allocation6 + $0x918] sm:$0xff]
        %v600 = vld [vmem:[#allocation6 + $0x920] sm:$0xff]
        %v601 = vld [vmem:[#allocation6 + $0x928] sm:$0xff]
        %v602 = vld [vmem:[#allocation6 + $0x930] sm:$0xff]
        %v603 = vld [vmem:[#allocation6 + $0x938] sm:$0xff]
        %v604 = vld [vmem:[#allocation6 + $0x940] sm:$0xff]
        %v605 = vld [vmem:[#allocation6 + $0x948] sm:$0xff]
        %v606 = vld [vmem:[#allocation6 + $0x950] sm:$0xff]
        %v607 = vld [vmem:[#allocation6 + $0x958] sm:$0xff]
        %v608 = vld [vmem:[#allocation6 + $0x960] sm:$0xff]
        %v609 = vld [vmem:[#allocation6 + $0x968] sm:$0xff]
        %v610 = vld [vmem:[#allocation6 + $0x970] sm:$0xff]
        %v611 = vld [vmem:[#allocation6 + $0x978] sm:$0xff]
        %v612 = vld [vmem:[#allocation6 + $0x980] sm:$0xff]
        %v613 = vld [vmem:[#allocation6 + $0x988] sm:$0xff]
        %v614 = vld [vmem:[#allocation6 + $0x990] sm:$0xff]
        %v615 = vld [vmem:[#allocation6 + $0x998] sm:$0xff]
        %v616 = vld [vmem:[#allocation6 + $0x9a0] sm:$0xff]
        %v617 = vld [vmem:[#allocation6 + $0x9a8] sm:$0xff]
        %v618 = vld [vmem:[#allocation6 + $0x9b0] sm:$0xff]
        %v619 = vld [vmem:[#allocation6 + $0x9b8] sm:$0xff]
        %v620 = vld [vmem:[#allocation6 + $0x9c0] sm:$0xff]
        %v621 = vld [vmem:[#allocation6 + $0x9c8] sm:$0xff]
        %v622 = vld [vmem:[#allocation6 + $0x9d0] sm:$0xff]
        %v623 = vld [vmem:[#allocation6 + $0x9d8] sm:$0xff]
        %v624 = vld [vmem:[#allocation6 + $0x9e0] sm:$0xff]
        %v625 = vld [vmem:[#allocation6 + $0x9e8] sm:$0xff]
        %v626 = vld [vmem:[#allocation6 + $0x9f0] sm:$0xff]
        %v627 = vld [vmem:[#allocation6 + $0x9f8] sm:$0xff]
        %v628 = vld [vmem:[#allocation6 + $0xa00] sm:$0xff]
        %v629 = vld [vmem:[#allocation6 + $0xa08] sm:$0xff]
        %v630 = vld [vmem:[#allocation6 + $0xa10] sm:$0xff]
        %v631 = vld [vmem:[#allocation6 + $0xa18] sm:$0xff]
        %v632 = vld [vmem:[#allocation6 + $0xa20] sm:$0xff]
        %v633 = vld [vmem:[#allocation6 + $0xa28] sm:$0xff]
        %v634 = vld [vmem:[#allocation6 + $0xa30] sm:$0xff]
        %v635 = vld [vmem:[#allocation6 + $0xa38] sm:$0xff]
        %v636 = vld [vmem:[#allocation6 + $0xa40] sm:$0xff]
        %v637 = vld [vmem:[#allocation6 + $0xa48] sm:$0xff]
        %v638 = vld [vmem:[#allocation6 + $0xa50] sm:$0xff]
        %v639 = vld [vmem:[#allocation6 + $0xa58] sm:$0xff]
        %v640 = vld [vmem:[#allocation6 + $0xa60] sm:$0xff]
        %v641 = vld [vmem:[#allocation6 + $0xa68] sm:$0xff]
        %v642 = vld [vmem:[#allocation6 + $0xa70] sm:$0xff]
        %v643 = vld [vmem:[#allocation6 + $0xa78] sm:$0xff]
        %v644 = vld [vmem:[#allocation6 + $0xa80] sm:$0xff]
        %v645 = vld [vmem:[#allocation6 + $0xa88] sm:$0xff]
        %v646 = vld [vmem:[#allocation6 + $0xa90] sm:$0xff]
        %v647 = vld [vmem:[#allocation6 + $0xa98] sm:$0xff]
        %v648 = vld [vmem:[#allocation6 + $0xaa0] sm:$0xff]
        %v649 = vld [vmem:[#allocation6 + $0xaa8] sm:$0xff]
        %v650 = vld [vmem:[#allocation6 + $0xab0] sm:$0xff]
        %v651 = vld [vmem:[#allocation6 + $0xab8] sm:$0xff]
        %v652 = vld [vmem:[#allocation6 + $0xac0] sm:$0xff]
        %v653 = vld [vmem:[#allocation6 + $0xac8] sm:$0xff]
        %v654 = vld [vmem:[#allocation6 + $0xad0] sm:$0xff]
        %v655 = vld [vmem:[#allocation6 + $0xad8] sm:$0xff]
        %v656 = vld [vmem:[#allocation6 + $0xae0] sm:$0xff]
        %v657 = vld [vmem:[#allocation6 + $0xae8] sm:$0xff]
        %v658 = vld [vmem:[#allocation6 + $0xaf0] sm:$0xff]
        %v659 = vld [vmem:[#allocation6 + $0xaf8] sm:$0xff]
        %v660 = vld [vmem:[#allocation6 + $0xb00] sm:$0xff]
        %v661 = vld [vmem:[#allocation6 + $0xb08] sm:$0xff]
        %v662 = vld [vmem:[#allocation6 + $0xb10] sm:$0xff]
        %v663 = vld [vmem:[#allocation6 + $0xb18] sm:$0xff]
        %v664 = vld [vmem:[#allocation6 + $0xb20] sm:$0xff]
        %v665 = vld [vmem:[#allocation6 + $0xb28] sm:$0xff]
        %v666 = vld [vmem:[#allocation6 + $0xb30] sm:$0xff]
        %v667 = vld [vmem:[#allocation6 + $0xb38] sm:$0xff]
        %v668 = vld [vmem:[#allocation6 + $0xb40] sm:$0xff]
        %v669 = vld [vmem:[#allocation6 + $0xb48] sm:$0xff]
        %v670 = vld [vmem:[#allocation6 + $0xb50] sm:$0xff]
        %v671 = vld [vmem:[#allocation6 + $0xb58] sm:$0xff]
        %v672 = vld [vmem:[#allocation6 + $0xb60] sm:$0xff]
        %v673 = vld [vmem:[#allocation6 + $0xb68] sm:$0xff]
        %v674 = vld [vmem:[#allocation6 + $0xb70] sm:$0xff]
        %v675 = vld [vmem:[#allocation6 + $0xb78] sm:$0xff]
        %v676 = vld [vmem:[#allocation6 + $0xb80] sm:$0xff]
        %v677 = vld [vmem:[#allocation6 + $0xb88] sm:$0xff]
        %v678 = vld [vmem:[#allocation6 + $0xb90] sm:$0xff]
        %v679 = vld [vmem:[#allocation6 + $0xb98] sm:$0xff]
        %v680 = vld [vmem:[#allocation6 + $0xba0] sm:$0xff]
        %v681 = vld [vmem:[#allocation6 + $0xba8] sm:$0xff]
        %v682 = vld [vmem:[#allocation6 + $0xbb0] sm:$0xff]
        %v683 = vld [vmem:[#allocation6 + $0xbb8] sm:$0xff]
        %v684 = vld [vmem:[#allocation6 + $0xbc0] sm:$0xff]
        %v685 = vld [vmem:[#allocation6 + $0xbc8] sm:$0xff]
        %v686 = vld [vmem:[#allocation6 + $0xbd0] sm:$0xff]
        %v687 = vld [vmem:[#allocation6 + $0xbd8] sm:$0xff]
        %v688 = vld [vmem:[#allocation6 + $0xbe0] sm:$0xff]
        %v689 = vld [vmem:[#allocation6 + $0xbe8] sm:$0xff]
        %v690 = vld [vmem:[#allocation6 + $0xbf0] sm:$0xff]
        %v691 = vld [vmem:[#allocation6 + $0xbf8] sm:$0xff]
        %v692 = vld [vmem:[#allocation6 + $0xc00] sm:$0xff]
        %v693 = vld [vmem:[#allocation6 + $0xc08] sm:$0xff]
        %v694 = vld [vmem:[#allocation6 + $0xc10] sm:$0xff]
        %v695 = vld [vmem:[#allocation6 + $0xc18] sm:$0xff]
        %v696 = vld [vmem:[#allocation6 + $0xc20] sm:$0xff]
        %v697 = vld [vmem:[#allocation6 + $0xc28] sm:$0xff]
        %v698 = vld [vmem:[#allocation6 + $0xc30] sm:$0xff]
        %v699 = vld [vmem:[#allocation6 + $0xc38] sm:$0xff]
        %v700 = vld [vmem:[#allocation6 + $0xc40] sm:$0xff]
        %v701 = vld [vmem:[#allocation6 + $0xc48] sm:$0xff]
        %v702 = vld [vmem:[#allocation6 + $0xc50] sm:$0xff]
        %v703 = vld [vmem:[#allocation6 + $0xc58] sm:$0xff]
        %v704 = vld [vmem:[#allocation6 + $0xc60] sm:$0xff]
        %v705 = vld [vmem:[#allocation6 + $0xc68] sm:$0xff]
        %v706 = vld [vmem:[#allocation6 + $0xc70] sm:$0xff]
        %v707 = vld [vmem:[#allocation6 + $0xc78] sm:$0xff]
        %v708 = vld [vmem:[#allocation6 + $0xc80] sm:$0xff]
        %v709 = vld [vmem:[#allocation6 + $0xc88] sm:$0xff]
        %v710 = vld [vmem:[#allocation6 + $0xc90] sm:$0xff]
        %v711 = vld [vmem:[#allocation6 + $0xc98] sm:$0xff]
        %v712 = vld [vmem:[#allocation6 + $0xca0] sm:$0xff]
        %v713 = vld [vmem:[#allocation6 + $0xca8] sm:$0xff]
        %v714 = vld [vmem:[#allocation6 + $0xcb0] sm:$0xff]
        %v715 = vld [vmem:[#allocation6 + $0xcb8] sm:$0xff]
        %v716 = vld [vmem:[#allocation6 + $0xcc0] sm:$0xff]
        %v717 = vld [vmem:[#allocation6 + $0xcc8] sm:$0xff]
        %v718 = vld [vmem:[#allocation6 + $0xcd0] sm:$0xff]
        %v719 = vld [vmem:[#allocation6 + $0xcd8] sm:$0xff]
        %v720 = vld [vmem:[#allocation6 + $0xce0] sm:$0xff]
        %v721 = vld [vmem:[#allocation6 + $0xce8] sm:$0xff]
        %v722 = vld [vmem:[#allocation6 + $0xcf0] sm:$0xff]
        %v723 = vld [vmem:[#allocation6 + $0xcf8] sm:$0xff]
        %v724 = vld [vmem:[#allocation6 + $0xd00] sm:$0xff]
        %v725 = vld [vmem:[#allocation6 + $0xd08] sm:$0xff]
        %v726 = vld [vmem:[#allocation6 + $0xd10] sm:$0xff]
        %v727 = vld [vmem:[#allocation6 + $0xd18] sm:$0xff]
        %v728 = vld [vmem:[#allocation6 + $0xd20] sm:$0xff]
        %v729 = vld [vmem:[#allocation6 + $0xd28] sm:$0xff]
        %v730 = vld [vmem:[#allocation6 + $0xd30] sm:$0xff]
        %v731 = vld [vmem:[#allocation6 + $0xd38] sm:$0xff]
        %v732 = vld [vmem:[#allocation6 + $0xd40] sm:$0xff]
        %v733 = vld [vmem:[#allocation6 + $0xd48] sm:$0xff]
        %v734 = vld [vmem:[#allocation6 + $0xd50] sm:$0xff]
        %v735 = vld [vmem:[#allocation6 + $0xd58] sm:$0xff]
        %v736 = vld [vmem:[#allocation6 + $0xd60] sm:$0xff]
        %v737 = vld [vmem:[#allocation6 + $0xd68] sm:$0xff]
        %v738 = vld [vmem:[#allocation6 + $0xd70] sm:$0xff]
        %v739 = vld [vmem:[#allocation6 + $0xd78] sm:$0xff]
        %v740 = vld [vmem:[#allocation6 + $0xd80] sm:$0xff]
        %v741 = vld [vmem:[#allocation6 + $0xd88] sm:$0xff]
        %v742 = vld [vmem:[#allocation6 + $0xd90] sm:$0xff]
        %v743 = vld [vmem:[#allocation6 + $0xd98] sm:$0xff]
        %v744 = vld [vmem:[#allocation6 + $0xda0] sm:$0xff]
        %v745 = vld [vmem:[#allocation6 + $0xda8] sm:$0xff]
        %v746 = vld [vmem:[#allocation6 + $0xdb0] sm:$0xff]
        %v747 = vld [vmem:[#allocation6 + $0xdb8] sm:$0xff]
        %v748 = vld [vmem:[#allocation6 + $0xdc0] sm:$0xff]
        %v749 = vld [vmem:[#allocation6 + $0xdc8] sm:$0xff]
        %v750 = vld [vmem:[#allocation6 + $0xdd0] sm:$0xff]
        %v751 = vld [vmem:[#allocation6 + $0xdd8] sm:$0xff]
        %v752 = vld [vmem:[#allocation6 + $0xde0] sm:$0xff]
        %v753 = vld [vmem:[#allocation6 + $0xde8] sm:$0xff]
        %v754 = vld [vmem:[#allocation6 + $0xdf0] sm:$0xff]
        %v755 = vld [vmem:[#allocation6 + $0xdf8] sm:$0xff]
        %v756 = vld [vmem:[#allocation6 + $0xe00] sm:$0xff]
        %v757 = vld [vmem:[#allocation6 + $0xe08] sm:$0xff]
        %v758 = vld [vmem:[#allocation6 + $0xe10] sm:$0xff]
        %v759 = vld [vmem:[#allocation6 + $0xe18] sm:$0xff]
        %v760 = vld [vmem:[#allocation6 + $0xe20] sm:$0xff]
        %v761 = vld [vmem:[#allocation6 + $0xe28] sm:$0xff]
        %v762 = vld [vmem:[#allocation6 + $0xe30] sm:$0xff]
        %v763 = vld [vmem:[#allocation6 + $0xe38] sm:$0xff]
        %v764 = vld [vmem:[#allocation6 + $0xe40] sm:$0xff]
        %v765 = vld [vmem:[#allocation6 + $0xe48] sm:$0xff]
        %v766 = vld [vmem:[#allocation6 + $0xe50] sm:$0xff]
        %v767 = vld [vmem:[#allocation6 + $0xe58] sm:$0xff]
        %v768 = vld [vmem:[#allocation6 + $0xe60] sm:$0xff]
        %v769 = vld [vmem:[#allocation6 + $0xe68] sm:$0xff]
        %v770 = vld [vmem:[#allocation6 + $0xe70] sm:$0xff]
        %v771 = vld [vmem:[#allocation6 + $0xe78] sm:$0xff]
        %v772 = vld [vmem:[#allocation6 + $0xe80] sm:$0xff]
        %v773 = vld [vmem:[#allocation6 + $0xe88] sm:$0xff]
        %v774 = vld [vmem:[#allocation6 + $0xe90] sm:$0xff]
        %v775 = vld [vmem:[#allocation6 + $0xe98] sm:$0xff]
        %v776 = vld [vmem:[#allocation6 + $0xea0] sm:$0xff]
        %v777 = vld [vmem:[#allocation6 + $0xea8] sm:$0xff]
        %v778 = vld [vmem:[#allocation6 + $0xeb0] sm:$0xff]
        %v779 = vld [vmem:[#allocation6 + $0xeb8] sm:$0xff]
        %v780 = vld [vmem:[#allocation6 + $0xec0] sm:$0xff]
        %v781 = vld [vmem:[#allocation6 + $0xec8] sm:$0xff]
        %v782 = vld [vmem:[#allocation6 + $0xed0] sm:$0xff]
        %v783 = vld [vmem:[#allocation6 + $0xed8] sm:$0xff]
        %v784 = vld [vmem:[#allocation6 + $0xee0] sm:$0xff]
        %v785 = vld [vmem:[#allocation6 + $0xee8] sm:$0xff]
        %v786 = vld [vmem:[#allocation6 + $0xef0] sm:$0xff]
        %v787 = vld [vmem:[#allocation6 + $0xef8] sm:$0xff]
        %v788 = vld [vmem:[#allocation6 + $0xf00] sm:$0xff]
        %v789 = vld [vmem:[#allocation6 + $0xf08] sm:$0xff]
        %v790 = vld [vmem:[#allocation6 + $0xf10] sm:$0xff]
        %v791 = vld [vmem:[#allocation6 + $0xf18] sm:$0xff]
        %v792 = vld [vmem:[#allocation6 + $0xf20] sm:$0xff]
        %v793 = vld [vmem:[#allocation6 + $0xf28] sm:$0xff]
        %v794 = vld [vmem:[#allocation6 + $0xf30] sm:$0xff]
        %v795 = vld [vmem:[#allocation6 + $0xf38] sm:$0xff]
        %v796 = vld [vmem:[#allocation6 + $0xf40] sm:$0xff]
        %v797 = vld [vmem:[#allocation6 + $0xf48] sm:$0xff]
        %v798 = vld [vmem:[#allocation6 + $0xf50] sm:$0xff]
        %v799 = vld [vmem:[#allocation6 + $0xf58] sm:$0xff]
        %v800 = vld [vmem:[#allocation6 + $0xf60] sm:$0xff]
        %v801 = vld [vmem:[#allocation6 + $0xf68] sm:$0xff]
        %v802 = vld [vmem:[#allocation6 + $0xf70] sm:$0xff]
        %v803 = vld [vmem:[#allocation6 + $0xf78] sm:$0xff]
        %v804 = vld [vmem:[#allocation6 + $0xf80] sm:$0xff]
        %v805 = vld [vmem:[#allocation6 + $0xf88] sm:$0xff]
        %v806 = vld [vmem:[#allocation6 + $0xf90] sm:$0xff]
        %v807 = vld [vmem:[#allocation6 + $0xf98] sm:$0xff]
        %v808 = vld [vmem:[#allocation6 + $0xfa0] sm:$0xff]
        %v809 = vld [vmem:[#allocation6 + $0xfa8] sm:$0xff]
        %v810 = vld [vmem:[#allocation6 + $0xfb0] sm:$0xff]
        %v811 = vld [vmem:[#allocation6 + $0xfb8] sm:$0xff]
        %v812 = vld [vmem:[#allocation6 + $0xfc0] sm:$0xff]
        %v813 = vld [vmem:[#allocation6 + $0xfc8] sm:$0xff]
        %v814 = vld [vmem:[#allocation6 + $0xfd0] sm:$0xff]
        %v815 = vld [vmem:[#allocation6 + $0xfd8] sm:$0xff]
        %v816 = vld [vmem:[#allocation6 + $0xfe0] sm:$0xff]
        %v817 = vld [vmem:[#allocation6 + $0xfe8] sm:$0xff]
        %v818 = vld [vmem:[#allocation6 + $0xff0] sm:$0xff]
        %v819 = vld [vmem:[#allocation6 + $0xff8] sm:$0xff]
        %v828 = vunpack.c.l.b16 %v300
        %v829 = vunpack.c.h.b16 %v300
        %v830 = vunpack.c.l.b16 %v301
        %v831 = vunpack.c.h.b16 %v301
        %v832 = vunpack.c.l.b16 %v302
        %v833 = vunpack.c.h.b16 %v302
        %v834 = vunpack.c.l.b16 %v303
        %v835 = vunpack.c.h.b16 %v303
        %v836 = vunpack.c.l.b16 %v304
        %v837 = vunpack.c.h.b16 %v304
        %v838 = vunpack.c.l.b16 %v305
        %v839 = vunpack.c.h.b16 %v305
        %v840 = vunpack.c.l.b16 %v306
        %v841 = vunpack.c.h.b16 %v306
        %v842 = vunpack.c.l.b16 %v307
        %v843 = vunpack.c.h.b16 %v307
        %v844 = vpack.c.b16 %v832, %v828
        %v845 = vpack.c.b16 %v833, %v829
        %v846 = vpack.c.b16 %v834, %v830
        %v847 = vpack.c.b16 %v835, %v831
        %v848 = vpack.c.b16 %v840, %v836
        %v849 = vpack.c.b16 %v841, %v837
        %v850 = vpack.c.b16 %v842, %v838
        %v851 = vpack.c.b16 %v843, %v839
        %v1372 = vunpack.c.l.b16 %v308
        %v1373 = vunpack.c.h.b16 %v308
        %v1374 = vunpack.c.l.b16 %v309
        %v1375 = vunpack.c.h.b16 %v309
        %v1376 = vunpack.c.l.b16 %v310
        %v1377 = vunpack.c.h.b16 %v310
        %v1378 = vunpack.c.l.b16 %v311
        %v1379 = vunpack.c.h.b16 %v311
        %v1380 = vunpack.c.l.b16 %v312
        %v1381 = vunpack.c.h.b16 %v312
        %v1382 = vunpack.c.l.b16 %v313
        %v1383 = vunpack.c.h.b16 %v313
        %v1384 = vunpack.c.l.b16 %v314
        %v1385 = vunpack.c.h.b16 %v314
        %v1386 = vunpack.c.l.b16 %v315
        %v1387 = vunpack.c.h.b16 %v315
        %v1388 = vunpack.c.l.b16 %v316
        %v1389 = vunpack.c.h.b16 %v316
        %v1390 = vunpack.c.l.b16 %v317
        %v1391 = vunpack.c.h.b16 %v317
        %v1392 = vunpack.c.l.b16 %v318
        %v1393 = vunpack.c.h.b16 %v318
        %v1394 = vunpack.c.l.b16 %v319
        %v1395 = vunpack.c.h.b16 %v319
        %v1396 = vunpack.c.l.b16 %v320
        %v1397 = vunpack.c.h.b16 %v320
        %v1398 = vunpack.c.l.b16 %v321
        %v1399 = vunpack.c.h.b16 %v321
        %v1400 = vunpack.c.l.b16 %v322
        %v1401 = vunpack.c.h.b16 %v322
        %v1402 = vunpack.c.l.b16 %v323
        %v1403 = vunpack.c.h.b16 %v323
        %v1404 = vunpack.c.l.b16 %v324
        %v1405 = vunpack.c.h.b16 %v324
        %v1406 = vunpack.c.l.b16 %v325
        %v1407 = vunpack.c.h.b16 %v325
        %v1408 = vunpack.c.l.b16 %v326
        %v1409 = vunpack.c.h.b16 %v326
        %v1410 = vunpack.c.l.b16 %v327
        %v1411 = vunpack.c.h.b16 %v327
        %v1412 = vunpack.c.l.b16 %v328
        %v1413 = vunpack.c.h.b16 %v328
        %v1414 = vunpack.c.l.b16 %v329
        %v1415 = vunpack.c.h.b16 %v329
        %v1416 = vunpack.c.l.b16 %v330
        %v1417 = vunpack.c.h.b16 %v330
        %v1418 = vunpack.c.l.b16 %v331
        %v1419 = vunpack.c.h.b16 %v331
        %v1420 = vunpack.c.l.b16 %v332
        %v1421 = vunpack.c.h.b16 %v332
        %v1422 = vunpack.c.l.b16 %v333
        %v1423 = vunpack.c.h.b16 %v333
        %v1424 = vunpack.c.l.b16 %v334
        %v1425 = vunpack.c.h.b16 %v334
        %v1426 = vunpack.c.l.b16 %v335
        %v1427 = vunpack.c.h.b16 %v335
        %v1428 = vunpack.c.l.b16 %v336
        %v1429 = vunpack.c.h.b16 %v336
        %v1430 = vunpack.c.l.b16 %v337
        %v1431 = vunpack.c.h.b16 %v337
        %v1432 = vunpack.c.l.b16 %v338
        %v1433 = vunpack.c.h.b16 %v338
        %v1434 = vunpack.c.l.b16 %v339
        %v1435 = vunpack.c.h.b16 %v339
        %v1436 = vunpack.c.l.b16 %v340
        %v1437 = vunpack.c.h.b16 %v340
        %v1438 = vunpack.c.l.b16 %v341
        %v1439 = vunpack.c.h.b16 %v341
        %v1440 = vunpack.c.l.b16 %v342
        %v1441 = vunpack.c.h.b16 %v342
        %v1442 = vunpack.c.l.b16 %v343
        %v1443 = vunpack.c.h.b16 %v343
        %v1444 = vunpack.c.l.b16 %v344
        %v1445 = vunpack.c.h.b16 %v344
        %v1446 = vunpack.c.l.b16 %v345
        %v1447 = vunpack.c.h.b16 %v345
        %v1448 = vunpack.c.l.b16 %v346
        %v1449 = vunpack.c.h.b16 %v346
        %v1450 = vunpack.c.l.b16 %v347
        %v1451 = vunpack.c.h.b16 %v347
        %v1452 = vunpack.c.l.b16 %v348
        %v1453 = vunpack.c.h.b16 %v348
        %v1454 = vunpack.c.l.b16 %v349
        %v1455 = vunpack.c.h.b16 %v349
        %v1456 = vunpack.c.l.b16 %v350
        %v1457 = vunpack.c.h.b16 %v350
        %v1458 = vunpack.c.l.b16 %v351
        %v1459 = vunpack.c.h.b16 %v351
        %v1460 = vunpack.c.l.b16 %v352
        %v1461 = vunpack.c.h.b16 %v352
        %v1462 = vunpack.c.l.b16 %v353
        %v1463 = vunpack.c.h.b16 %v353
        %v1464 = vunpack.c.l.b16 %v354
        %v1465 = vunpack.c.h.b16 %v354
        %v1466 = vunpack.c.l.b16 %v355
        %v1467 = vunpack.c.h.b16 %v355
        %v1468 = vunpack.c.l.b16 %v356
        %v1469 = vunpack.c.h.b16 %v356
        %v1470 = vunpack.c.l.b16 %v357
        %v1471 = vunpack.c.h.b16 %v357
        %v1472 = vunpack.c.l.b16 %v358
        %v1473 = vunpack.c.h.b16 %v358
        %v1474 = vunpack.c.l.b16 %v359
        %v1475 = vunpack.c.h.b16 %v359
        %v1476 = vunpack.c.l.b16 %v360
        %v1477 = vunpack.c.h.b16 %v360
        %v1478 = vunpack.c.l.b16 %v361
        %v1479 = vunpack.c.h.b16 %v361
        %v1480 = vunpack.c.l.b16 %v362
        %v1481 = vunpack.c.h.b16 %v362
        %v1482 = vunpack.c.l.b16 %v363
        %v1483 = vunpack.c.h.b16 %v363
        %v1484 = vunpack.c.l.b16 %v364
        %v1485 = vunpack.c.h.b16 %v364
        %v1486 = vunpack.c.l.b16 %v365
        %v1487 = vunpack.c.h.b16 %v365
        %v1488 = vunpack.c.l.b16 %v366
        %v1489 = vunpack.c.h.b16 %v366
        %v1490 = vunpack.c.l.b16 %v367
        %v1491 = vunpack.c.h.b16 %v367
        %v1492 = vunpack.c.l.b16 %v368
        %v1493 = vunpack.c.h.b16 %v368
        %v1494 = vunpack.c.l.b16 %v369
        %v1495 = vunpack.c.h.b16 %v369
        %v1496 = vunpack.c.l.b16 %v370
        %v1497 = vunpack.c.h.b16 %v370
        %v1498 = vunpack.c.l.b16 %v371
        %v1499 = vunpack.c.h.b16 %v371
        %v1500 = vunpack.c.l.b16 %v372
        %v1501 = vunpack.c.h.b16 %v372
        %v1502 = vunpack.c.l.b16 %v373
        %v1503 = vunpack.c.h.b16 %v373
        %v1504 = vunpack.c.l.b16 %v374
        %v1505 = vunpack.c.h.b16 %v374
        %v1506 = vunpack.c.l.b16 %v375
        %v1507 = vunpack.c.h.b16 %v375
        %v1508 = vunpack.c.l.b16 %v376
        %v1509 = vunpack.c.h.b16 %v376
        %v1510 = vunpack.c.l.b16 %v377
        %v1511 = vunpack.c.h.b16 %v377
        %v1512 = vunpack.c.l.b16 %v378
        %v1513 = vunpack.c.h.b16 %v378
        %v1514 = vunpack.c.l.b16 %v379
        %v1515 = vunpack.c.h.b16 %v379
        %v1516 = vunpack.c.l.b16 %v380
        %v1517 = vunpack.c.h.b16 %v380
        %v1518 = vunpack.c.l.b16 %v381
        %v1519 = vunpack.c.h.b16 %v381
        %v1520 = vunpack.c.l.b16 %v382
        %v1521 = vunpack.c.h.b16 %v382
        %v1522 = vunpack.c.l.b16 %v383
        %v1523 = vunpack.c.h.b16 %v383
        %v1524 = vunpack.c.l.b16 %v384
        %v1525 = vunpack.c.h.b16 %v384
        %v1526 = vunpack.c.l.b16 %v385
        %v1527 = vunpack.c.h.b16 %v385
        %v1528 = vunpack.c.l.b16 %v386
        %v1529 = vunpack.c.h.b16 %v386
        %v1530 = vunpack.c.l.b16 %v387
        %v1531 = vunpack.c.h.b16 %v387
        %v1532 = vunpack.c.l.b16 %v388
        %v1533 = vunpack.c.h.b16 %v388
        %v1534 = vunpack.c.l.b16 %v389
        %v1535 = vunpack.c.h.b16 %v389
        %v1536 = vunpack.c.l.b16 %v390
        %v1537 = vunpack.c.h.b16 %v390
        %v1538 = vunpack.c.l.b16 %v391
        %v1539 = vunpack.c.h.b16 %v391
        %v1540 = vunpack.c.l.b16 %v392
        %v1541 = vunpack.c.h.b16 %v392
        %v1542 = vunpack.c.l.b16 %v393
        %v1543 = vunpack.c.h.b16 %v393
        %v1544 = vunpack.c.l.b16 %v394
        %v1545 = vunpack.c.h.b16 %v394
        %v1546 = vunpack.c.l.b16 %v395
        %v1547 = vunpack.c.h.b16 %v395
        %v1548 = vunpack.c.l.b16 %v396
        %v1549 = vunpack.c.h.b16 %v396
        %v1550 = vunpack.c.l.b16 %v397
        %v1551 = vunpack.c.h.b16 %v397
        %v1552 = vunpack.c.l.b16 %v398
        %v1553 = vunpack.c.h.b16 %v398
        %v1554 = vunpack.c.l.b16 %v399
        %v1555 = vunpack.c.h.b16 %v399
        %v1556 = vunpack.c.l.b16 %v400
        %v1557 = vunpack.c.h.b16 %v400
        %v1558 = vunpack.c.l.b16 %v401
        %v1559 = vunpack.c.h.b16 %v401
        %v1560 = vunpack.c.l.b16 %v402
        %v1561 = vunpack.c.h.b16 %v402
        %v1562 = vunpack.c.l.b16 %v403
        %v1563 = vunpack.c.h.b16 %v403
        %v1564 = vunpack.c.l.b16 %v404
        %v1565 = vunpack.c.h.b16 %v404
        %v1566 = vunpack.c.l.b16 %v405
        %v1567 = vunpack.c.h.b16 %v405
        %v1568 = vunpack.c.l.b16 %v406
        %v1569 = vunpack.c.h.b16 %v406
        %v1570 = vunpack.c.l.b16 %v407
        %v1571 = vunpack.c.h.b16 %v407
        %v1572 = vunpack.c.l.b16 %v408
        %v1573 = vunpack.c.h.b16 %v408
        %v1574 = vunpack.c.l.b16 %v409
        %v1575 = vunpack.c.h.b16 %v409
        %v1576 = vunpack.c.l.b16 %v410
        %v1577 = vunpack.c.h.b16 %v410
        %v1578 = vunpack.c.l.b16 %v411
        %v1579 = vunpack.c.h.b16 %v411
        %v1580 = vunpack.c.l.b16 %v412
        %v1581 = vunpack.c.h.b16 %v412
        %v1582 = vunpack.c.l.b16 %v413
        %v1583 = vunpack.c.h.b16 %v413
        %v1584 = vunpack.c.l.b16 %v414
        %v1585 = vunpack.c.h.b16 %v414
        %v1586 = vunpack.c.l.b16 %v415
        %v1587 = vunpack.c.h.b16 %v415
        %v1588 = vunpack.c.l.b16 %v416
        %v1589 = vunpack.c.h.b16 %v416
        %v1590 = vunpack.c.l.b16 %v417
        %v1591 = vunpack.c.h.b16 %v417
        %v1592 = vunpack.c.l.b16 %v418
        %v1593 = vunpack.c.h.b16 %v418
        %v1594 = vunpack.c.l.b16 %v419
        %v1595 = vunpack.c.h.b16 %v419
        %v1596 = vunpack.c.l.b16 %v420
        %v1597 = vunpack.c.h.b16 %v420
        %v1598 = vunpack.c.l.b16 %v421
        %v1599 = vunpack.c.h.b16 %v421
        %v1600 = vunpack.c.l.b16 %v422
        %v1601 = vunpack.c.h.b16 %v422
        %v1602 = vunpack.c.l.b16 %v423
        %v1603 = vunpack.c.h.b16 %v423
        %v1604 = vunpack.c.l.b16 %v424
        %v1605 = vunpack.c.h.b16 %v424
        %v1606 = vunpack.c.l.b16 %v425
        %v1607 = vunpack.c.h.b16 %v425
        %v1608 = vunpack.c.l.b16 %v426
        %v1609 = vunpack.c.h.b16 %v426
        %v1610 = vunpack.c.l.b16 %v427
        %v1611 = vunpack.c.h.b16 %v427
        %v1612 = vunpack.c.l.b16 %v428
        %v1613 = vunpack.c.h.b16 %v428
        %v1614 = vunpack.c.l.b16 %v429
        %v1615 = vunpack.c.h.b16 %v429
        %v1616 = vunpack.c.l.b16 %v430
        %v1617 = vunpack.c.h.b16 %v430
        %v1618 = vunpack.c.l.b16 %v431
        %v1619 = vunpack.c.h.b16 %v431
        %v1620 = vunpack.c.l.b16 %v432
        %v1621 = vunpack.c.h.b16 %v432
        %v1622 = vunpack.c.l.b16 %v433
        %v1623 = vunpack.c.h.b16 %v433
        %v1624 = vunpack.c.l.b16 %v434
        %v1625 = vunpack.c.h.b16 %v434
        %v1626 = vunpack.c.l.b16 %v435
        %v1627 = vunpack.c.h.b16 %v435
        %v1628 = vunpack.c.l.b16 %v436
        %v1629 = vunpack.c.h.b16 %v436
        %v1630 = vunpack.c.l.b16 %v437
        %v1631 = vunpack.c.h.b16 %v437
        %v1632 = vunpack.c.l.b16 %v438
        %v1633 = vunpack.c.h.b16 %v438
        %v1634 = vunpack.c.l.b16 %v439
        %v1635 = vunpack.c.h.b16 %v439
        %v1636 = vunpack.c.l.b16 %v440
        %v1637 = vunpack.c.h.b16 %v440
        %v1638 = vunpack.c.l.b16 %v441
        %v1639 = vunpack.c.h.b16 %v441
        %v1640 = vunpack.c.l.b16 %v442
        %v1641 = vunpack.c.h.b16 %v442
        %v1642 = vunpack.c.l.b16 %v443
        %v1643 = vunpack.c.h.b16 %v443
        %v1644 = vunpack.c.l.b16 %v444
        %v1645 = vunpack.c.h.b16 %v444
        %v1646 = vunpack.c.l.b16 %v445
        %v1647 = vunpack.c.h.b16 %v445
        %v1648 = vunpack.c.l.b16 %v446
        %v1649 = vunpack.c.h.b16 %v446
        %v1650 = vunpack.c.l.b16 %v447
        %v1651 = vunpack.c.h.b16 %v447
        %v1652 = vunpack.c.l.b16 %v448
        %v1653 = vunpack.c.h.b16 %v448
        %v1654 = vunpack.c.l.b16 %v449
        %v1655 = vunpack.c.h.b16 %v449
        %v1656 = vunpack.c.l.b16 %v450
        %v1657 = vunpack.c.h.b16 %v450
        %v1658 = vunpack.c.l.b16 %v451
        %v1659 = vunpack.c.h.b16 %v451
        %v1660 = vunpack.c.l.b16 %v452
        %v1661 = vunpack.c.h.b16 %v452
        %v1662 = vunpack.c.l.b16 %v453
        %v1663 = vunpack.c.h.b16 %v453
        %v1664 = vunpack.c.l.b16 %v454
        %v1665 = vunpack.c.h.b16 %v454
        %v1666 = vunpack.c.l.b16 %v455
        %v1667 = vunpack.c.h.b16 %v455
        %v1668 = vunpack.c.l.b16 %v456
        %v1669 = vunpack.c.h.b16 %v456
        %v1670 = vunpack.c.l.b16 %v457
        %v1671 = vunpack.c.h.b16 %v457
        %v1672 = vunpack.c.l.b16 %v458
        %v1673 = vunpack.c.h.b16 %v458
        %v1674 = vunpack.c.l.b16 %v459
        %v1675 = vunpack.c.h.b16 %v459
        %v1676 = vunpack.c.l.b16 %v460
        %v1677 = vunpack.c.h.b16 %v460
        %v1678 = vunpack.c.l.b16 %v461
        %v1679 = vunpack.c.h.b16 %v461
        %v1680 = vunpack.c.l.b16 %v462
        %v1681 = vunpack.c.h.b16 %v462
        %v1682 = vunpack.c.l.b16 %v463
        %v1683 = vunpack.c.h.b16 %v463
        %v1684 = vunpack.c.l.b16 %v464
        %v1685 = vunpack.c.h.b16 %v464
        %v1686 = vunpack.c.l.b16 %v465
        %v1687 = vunpack.c.h.b16 %v465
        %v1688 = vunpack.c.l.b16 %v466
        %v1689 = vunpack.c.h.b16 %v466
        %v1690 = vunpack.c.l.b16 %v467
        %v1691 = vunpack.c.h.b16 %v467
        %v1692 = vunpack.c.l.b16 %v468
        %v1693 = vunpack.c.h.b16 %v468
        %v1694 = vunpack.c.l.b16 %v469
        %v1695 = vunpack.c.h.b16 %v469
        %v1696 = vunpack.c.l.b16 %v470
        %v1697 = vunpack.c.h.b16 %v470
        %v1698 = vunpack.c.l.b16 %v471
        %v1699 = vunpack.c.h.b16 %v471
        %v1700 = vunpack.c.l.b16 %v472
        %v1701 = vunpack.c.h.b16 %v472
        %v1702 = vunpack.c.l.b16 %v473
        %v1703 = vunpack.c.h.b16 %v473
        %v1704 = vunpack.c.l.b16 %v474
        %v1705 = vunpack.c.h.b16 %v474
        %v1706 = vunpack.c.l.b16 %v475
        %v1707 = vunpack.c.h.b16 %v475
        %v1708 = vunpack.c.l.b16 %v476
        %v1709 = vunpack.c.h.b16 %v476
        %v1710 = vunpack.c.l.b16 %v477
        %v1711 = vunpack.c.h.b16 %v477
        %v1712 = vunpack.c.l.b16 %v478
        %v1713 = vunpack.c.h.b16 %v478
        %v1714 = vunpack.c.l.b16 %v479
        %v1715 = vunpack.c.h.b16 %v479
        %v1716 = vunpack.c.l.b16 %v480
        %v1717 = vunpack.c.h.b16 %v480
        %v1718 = vunpack.c.l.b16 %v481
        %v1719 = vunpack.c.h.b16 %v481
        %v1720 = vunpack.c.l.b16 %v482
        %v1721 = vunpack.c.h.b16 %v482
        %v1722 = vunpack.c.l.b16 %v483
        %v1723 = vunpack.c.h.b16 %v483
        %v1724 = vunpack.c.l.b16 %v484
        %v1725 = vunpack.c.h.b16 %v484
        %v1726 = vunpack.c.l.b16 %v485
        %v1727 = vunpack.c.h.b16 %v485
        %v1728 = vunpack.c.l.b16 %v486
        %v1729 = vunpack.c.h.b16 %v486
        %v1730 = vunpack.c.l.b16 %v487
        %v1731 = vunpack.c.h.b16 %v487
        %v1732 = vunpack.c.l.b16 %v488
        %v1733 = vunpack.c.h.b16 %v488
        %v1734 = vunpack.c.l.b16 %v489
        %v1735 = vunpack.c.h.b16 %v489
        %v1736 = vunpack.c.l.b16 %v490
        %v1737 = vunpack.c.h.b16 %v490
        %v1738 = vunpack.c.l.b16 %v491
        %v1739 = vunpack.c.h.b16 %v491
        %v1740 = vunpack.c.l.b16 %v492
        %v1741 = vunpack.c.h.b16 %v492
        %v1742 = vunpack.c.l.b16 %v493
        %v1743 = vunpack.c.h.b16 %v493
        %v1744 = vunpack.c.l.b16 %v494
        %v1745 = vunpack.c.h.b16 %v494
        %v1746 = vunpack.c.l.b16 %v495
        %v1747 = vunpack.c.h.b16 %v495
        %v1748 = vunpack.c.l.b16 %v496
        %v1749 = vunpack.c.h.b16 %v496
        %v1750 = vunpack.c.l.b16 %v497
        %v1751 = vunpack.c.h.b16 %v497
        %v1752 = vunpack.c.l.b16 %v498
        %v1753 = vunpack.c.h.b16 %v498
        %v1754 = vunpack.c.l.b16 %v499
        %v1755 = vunpack.c.h.b16 %v499
        %v1756 = vunpack.c.l.b16 %v500
        %v1757 = vunpack.c.h.b16 %v500
        %v1758 = vunpack.c.l.b16 %v501
        %v1759 = vunpack.c.h.b16 %v501
        %v1760 = vunpack.c.l.b16 %v502
        %v1761 = vunpack.c.h.b16 %v502
        %v1762 = vunpack.c.l.b16 %v503
        %v1763 = vunpack.c.h.b16 %v503
        %v1764 = vunpack.c.l.b16 %v504
        %v1765 = vunpack.c.h.b16 %v504
        %v1766 = vunpack.c.l.b16 %v505
        %v1767 = vunpack.c.h.b16 %v505
        %v1768 = vunpack.c.l.b16 %v506
        %v1769 = vunpack.c.h.b16 %v506
        %v1770 = vunpack.c.l.b16 %v507
        %v1771 = vunpack.c.h.b16 %v507
        %v1772 = vunpack.c.l.b16 %v508
        %v1773 = vunpack.c.h.b16 %v508
        %v1774 = vunpack.c.l.b16 %v509
        %v1775 = vunpack.c.h.b16 %v509
        %v1776 = vunpack.c.l.b16 %v510
        %v1777 = vunpack.c.h.b16 %v510
        %v1778 = vunpack.c.l.b16 %v511
        %v1779 = vunpack.c.h.b16 %v511
        %v1780 = vunpack.c.l.b16 %v512
        %v1781 = vunpack.c.h.b16 %v512
        %v1782 = vunpack.c.l.b16 %v513
        %v1783 = vunpack.c.h.b16 %v513
        %v1784 = vunpack.c.l.b16 %v514
        %v1785 = vunpack.c.h.b16 %v514
        %v1786 = vunpack.c.l.b16 %v515
        %v1787 = vunpack.c.h.b16 %v515
        %v1788 = vunpack.c.l.b16 %v516
        %v1789 = vunpack.c.h.b16 %v516
        %v1790 = vunpack.c.l.b16 %v517
        %v1791 = vunpack.c.h.b16 %v517
        %v1792 = vunpack.c.l.b16 %v518
        %v1793 = vunpack.c.h.b16 %v518
        %v1794 = vunpack.c.l.b16 %v519
        %v1795 = vunpack.c.h.b16 %v519
        %v1796 = vunpack.c.l.b16 %v520
        %v1797 = vunpack.c.h.b16 %v520
        %v1798 = vunpack.c.l.b16 %v521
        %v1799 = vunpack.c.h.b16 %v521
        %v1800 = vunpack.c.l.b16 %v522
        %v1801 = vunpack.c.h.b16 %v522
        %v1802 = vunpack.c.l.b16 %v523
        %v1803 = vunpack.c.h.b16 %v523
        %v1804 = vunpack.c.l.b16 %v524
        %v1805 = vunpack.c.h.b16 %v524
        %v1806 = vunpack.c.l.b16 %v525
        %v1807 = vunpack.c.h.b16 %v525
        %v1808 = vunpack.c.l.b16 %v526
        %v1809 = vunpack.c.h.b16 %v526
        %v1810 = vunpack.c.l.b16 %v527
        %v1811 = vunpack.c.h.b16 %v527
        %v1812 = vunpack.c.l.b16 %v528
        %v1813 = vunpack.c.h.b16 %v528
        %v1814 = vunpack.c.l.b16 %v529
        %v1815 = vunpack.c.h.b16 %v529
        %v1816 = vunpack.c.l.b16 %v530
        %v1817 = vunpack.c.h.b16 %v530
        %v1818 = vunpack.c.l.b16 %v531
        %v1819 = vunpack.c.h.b16 %v531
        %v1820 = vunpack.c.l.b16 %v532
        %v1821 = vunpack.c.h.b16 %v532
        %v1822 = vunpack.c.l.b16 %v533
        %v1823 = vunpack.c.h.b16 %v533
        %v1824 = vunpack.c.l.b16 %v534
        %v1825 = vunpack.c.h.b16 %v534
        %v1826 = vunpack.c.l.b16 %v535
        %v1827 = vunpack.c.h.b16 %v535
        %v1828 = vunpack.c.l.b16 %v536
        %v1829 = vunpack.c.h.b16 %v536
        %v1830 = vunpack.c.l.b16 %v537
        %v1831 = vunpack.c.h.b16 %v537
        %v1832 = vunpack.c.l.b16 %v538
        %v1833 = vunpack.c.h.b16 %v538
        %v1834 = vunpack.c.l.b16 %v539
        %v1835 = vunpack.c.h.b16 %v539
        %v1836 = vunpack.c.l.b16 %v540
        %v1837 = vunpack.c.h.b16 %v540
        %v1838 = vunpack.c.l.b16 %v541
        %v1839 = vunpack.c.h.b16 %v541
        %v1840 = vunpack.c.l.b16 %v542
        %v1841 = vunpack.c.h.b16 %v542
        %v1842 = vunpack.c.l.b16 %v543
        %v1843 = vunpack.c.h.b16 %v543
        %v1844 = vunpack.c.l.b16 %v544
        %v1845 = vunpack.c.h.b16 %v544
        %v1846 = vunpack.c.l.b16 %v545
        %v1847 = vunpack.c.h.b16 %v545
        %v1848 = vunpack.c.l.b16 %v546
        %v1849 = vunpack.c.h.b16 %v546
        %v1850 = vunpack.c.l.b16 %v547
        %v1851 = vunpack.c.h.b16 %v547
        %v1852 = vunpack.c.l.b16 %v548
        %v1853 = vunpack.c.h.b16 %v548
        %v1854 = vunpack.c.l.b16 %v549
        %v1855 = vunpack.c.h.b16 %v549
        %v1856 = vunpack.c.l.b16 %v550
        %v1857 = vunpack.c.h.b16 %v550
        %v1858 = vunpack.c.l.b16 %v551
        %v1859 = vunpack.c.h.b16 %v551
        %v1860 = vunpack.c.l.b16 %v552
        %v1861 = vunpack.c.h.b16 %v552
        %v1862 = vunpack.c.l.b16 %v553
        %v1863 = vunpack.c.h.b16 %v553
        %v1864 = vunpack.c.l.b16 %v554
        %v1865 = vunpack.c.h.b16 %v554
        %v1866 = vunpack.c.l.b16 %v555
        %v1867 = vunpack.c.h.b16 %v555
        %v1868 = vunpack.c.l.b16 %v556
        %v1869 = vunpack.c.h.b16 %v556
        %v1870 = vunpack.c.l.b16 %v557
        %v1871 = vunpack.c.h.b16 %v557
        %v1872 = vunpack.c.l.b16 %v558
        %v1873 = vunpack.c.h.b16 %v558
        %v1874 = vunpack.c.l.b16 %v559
        %v1875 = vunpack.c.h.b16 %v559
        %v1876 = vunpack.c.l.b16 %v560
        %v1877 = vunpack.c.h.b16 %v560
        %v1878 = vunpack.c.l.b16 %v561
        %v1879 = vunpack.c.h.b16 %v561
        %v1880 = vunpack.c.l.b16 %v562
        %v1881 = vunpack.c.h.b16 %v562
        %v1882 = vunpack.c.l.b16 %v563
        %v1883 = vunpack.c.h.b16 %v563
        %v1884 = vunpack.c.l.b16 %v564
        %v1885 = vunpack.c.h.b16 %v564
        %v1886 = vunpack.c.l.b16 %v565
        %v1887 = vunpack.c.h.b16 %v565
        %v1888 = vunpack.c.l.b16 %v566
        %v1889 = vunpack.c.h.b16 %v566
        %v1890 = vunpack.c.l.b16 %v567
        %v1891 = vunpack.c.h.b16 %v567
        %v1892 = vunpack.c.l.b16 %v568
        %v1893 = vunpack.c.h.b16 %v568
        %v1894 = vunpack.c.l.b16 %v569
        %v1895 = vunpack.c.h.b16 %v569
        %v1896 = vunpack.c.l.b16 %v570
        %v1897 = vunpack.c.h.b16 %v570
        %v1898 = vunpack.c.l.b16 %v571
        %v1899 = vunpack.c.h.b16 %v571
        %v1900 = vunpack.c.l.b16 %v572
        %v1901 = vunpack.c.h.b16 %v572
        %v1902 = vunpack.c.l.b16 %v573
        %v1903 = vunpack.c.h.b16 %v573
        %v1904 = vunpack.c.l.b16 %v574
        %v1905 = vunpack.c.h.b16 %v574
        %v1906 = vunpack.c.l.b16 %v575
        %v1907 = vunpack.c.h.b16 %v575
        %v1908 = vunpack.c.l.b16 %v576
        %v1909 = vunpack.c.h.b16 %v576
        %v1910 = vunpack.c.l.b16 %v577
        %v1911 = vunpack.c.h.b16 %v577
        %v1912 = vunpack.c.l.b16 %v578
        %v1913 = vunpack.c.h.b16 %v578
        %v1914 = vunpack.c.l.b16 %v579
        %v1915 = vunpack.c.h.b16 %v579
        %v1916 = vunpack.c.l.b16 %v580
        %v1917 = vunpack.c.h.b16 %v580
        %v1918 = vunpack.c.l.b16 %v581
        %v1919 = vunpack.c.h.b16 %v581
        %v1920 = vunpack.c.l.b16 %v582
        %v1921 = vunpack.c.h.b16 %v582
        %v1922 = vunpack.c.l.b16 %v583
        %v1923 = vunpack.c.h.b16 %v583
        %v1924 = vunpack.c.l.b16 %v584
        %v1925 = vunpack.c.h.b16 %v584
        %v1926 = vunpack.c.l.b16 %v585
        %v1927 = vunpack.c.h.b16 %v585
        %v1928 = vunpack.c.l.b16 %v586
        %v1929 = vunpack.c.h.b16 %v586
        %v1930 = vunpack.c.l.b16 %v587
        %v1931 = vunpack.c.h.b16 %v587
        %v1932 = vunpack.c.l.b16 %v588
        %v1933 = vunpack.c.h.b16 %v588
        %v1934 = vunpack.c.l.b16 %v589
        %v1935 = vunpack.c.h.b16 %v589
        %v1936 = vunpack.c.l.b16 %v590
        %v1937 = vunpack.c.h.b16 %v590
        %v1938 = vunpack.c.l.b16 %v591
        %v1939 = vunpack.c.h.b16 %v591
        %v1940 = vunpack.c.l.b16 %v592
        %v1941 = vunpack.c.h.b16 %v592
        %v1942 = vunpack.c.l.b16 %v593
        %v1943 = vunpack.c.h.b16 %v593
        %v1944 = vunpack.c.l.b16 %v594
        %v1945 = vunpack.c.h.b16 %v594
        %v1946 = vunpack.c.l.b16 %v595
        %v1947 = vunpack.c.h.b16 %v595
        %v1948 = vunpack.c.l.b16 %v596
        %v1949 = vunpack.c.h.b16 %v596
        %v1950 = vunpack.c.l.b16 %v597
        %v1951 = vunpack.c.h.b16 %v597
        %v1952 = vunpack.c.l.b16 %v598
        %v1953 = vunpack.c.h.b16 %v598
        %v1954 = vunpack.c.l.b16 %v599
        %v1955 = vunpack.c.h.b16 %v599
        %v1956 = vunpack.c.l.b16 %v600
        %v1957 = vunpack.c.h.b16 %v600
        %v1958 = vunpack.c.l.b16 %v601
        %v1959 = vunpack.c.h.b16 %v601
        %v1960 = vunpack.c.l.b16 %v602
        %v1961 = vunpack.c.h.b16 %v602
        %v1962 = vunpack.c.l.b16 %v603
        %v1963 = vunpack.c.h.b16 %v603
        %v1964 = vunpack.c.l.b16 %v604
        %v1965 = vunpack.c.h.b16 %v604
        %v1966 = vunpack.c.l.b16 %v605
        %v1967 = vunpack.c.h.b16 %v605
        %v1968 = vunpack.c.l.b16 %v606
        %v1969 = vunpack.c.h.b16 %v606
        %v1970 = vunpack.c.l.b16 %v607
        %v1971 = vunpack.c.h.b16 %v607
        %v1972 = vunpack.c.l.b16 %v608
        %v1973 = vunpack.c.h.b16 %v608
        %v1974 = vunpack.c.l.b16 %v609
        %v1975 = vunpack.c.h.b16 %v609
        %v1976 = vunpack.c.l.b16 %v610
        %v1977 = vunpack.c.h.b16 %v610
        %v1978 = vunpack.c.l.b16 %v611
        %v1979 = vunpack.c.h.b16 %v611
        %v1980 = vunpack.c.l.b16 %v612
        %v1981 = vunpack.c.h.b16 %v612
        %v1982 = vunpack.c.l.b16 %v613
        %v1983 = vunpack.c.h.b16 %v613
        %v1984 = vunpack.c.l.b16 %v614
        %v1985 = vunpack.c.h.b16 %v614
        %v1986 = vunpack.c.l.b16 %v615
        %v1987 = vunpack.c.h.b16 %v615
        %v1988 = vunpack.c.l.b16 %v616
        %v1989 = vunpack.c.h.b16 %v616
        %v1990 = vunpack.c.l.b16 %v617
        %v1991 = vunpack.c.h.b16 %v617
        %v1992 = vunpack.c.l.b16 %v618
        %v1993 = vunpack.c.h.b16 %v618
        %v1994 = vunpack.c.l.b16 %v619
        %v1995 = vunpack.c.h.b16 %v619
        %v1996 = vunpack.c.l.b16 %v620
        %v1997 = vunpack.c.h.b16 %v620
        %v1998 = vunpack.c.l.b16 %v621
        %v1999 = vunpack.c.h.b16 %v621
        %v2000 = vunpack.c.l.b16 %v622
        %v2001 = vunpack.c.h.b16 %v622
        %v2002 = vunpack.c.l.b16 %v623
        %v2003 = vunpack.c.h.b16 %v623
        %v2004 = vunpack.c.l.b16 %v624
        %v2005 = vunpack.c.h.b16 %v624
        %v2006 = vunpack.c.l.b16 %v625
        %v2007 = vunpack.c.h.b16 %v625
        %v2008 = vunpack.c.l.b16 %v626
        %v2009 = vunpack.c.h.b16 %v626
        %v2010 = vunpack.c.l.b16 %v627
        %v2011 = vunpack.c.h.b16 %v627
        %v2012 = vunpack.c.l.b16 %v628
        %v2013 = vunpack.c.h.b16 %v628
        %v2014 = vunpack.c.l.b16 %v629
        %v2015 = vunpack.c.h.b16 %v629
        %v2016 = vunpack.c.l.b16 %v630
        %v2017 = vunpack.c.h.b16 %v630
        %v2018 = vunpack.c.l.b16 %v631
        %v2019 = vunpack.c.h.b16 %v631
        %v2020 = vunpack.c.l.b16 %v632
        %v2021 = vunpack.c.h.b16 %v632
        %v2022 = vunpack.c.l.b16 %v633
        %v2023 = vunpack.c.h.b16 %v633
        %v2024 = vunpack.c.l.b16 %v634
        %v2025 = vunpack.c.h.b16 %v634
        %v2026 = vunpack.c.l.b16 %v635
        %v2027 = vunpack.c.h.b16 %v635
        %v2028 = vunpack.c.l.b16 %v636
        %v2029 = vunpack.c.h.b16 %v636
        %v2030 = vunpack.c.l.b16 %v637
        %v2031 = vunpack.c.h.b16 %v637
        %v2032 = vunpack.c.l.b16 %v638
        %v2033 = vunpack.c.h.b16 %v638
        %v2034 = vunpack.c.l.b16 %v639
        %v2035 = vunpack.c.h.b16 %v639
        %v2036 = vunpack.c.l.b16 %v640
        %v2037 = vunpack.c.h.b16 %v640
        %v2038 = vunpack.c.l.b16 %v641
        %v2039 = vunpack.c.h.b16 %v641
        %v2040 = vunpack.c.l.b16 %v642
        %v2041 = vunpack.c.h.b16 %v642
        %v2042 = vunpack.c.l.b16 %v643
        %v2043 = vunpack.c.h.b16 %v643
        %v2044 = vunpack.c.l.b16 %v644
        %v2045 = vunpack.c.h.b16 %v644
        %v2046 = vunpack.c.l.b16 %v645
        %v2047 = vunpack.c.h.b16 %v645
        %v2048 = vunpack.c.l.b16 %v646
        %v2049 = vunpack.c.h.b16 %v646
        %v2050 = vunpack.c.l.b16 %v647
        %v2051 = vunpack.c.h.b16 %v647
        %v2052 = vunpack.c.l.b16 %v648
        %v2053 = vunpack.c.h.b16 %v648
        %v2054 = vunpack.c.l.b16 %v649
        %v2055 = vunpack.c.h.b16 %v649
        %v2056 = vunpack.c.l.b16 %v650
        %v2057 = vunpack.c.h.b16 %v650
        %v2058 = vunpack.c.l.b16 %v651
        %v2059 = vunpack.c.h.b16 %v651
        %v2060 = vunpack.c.l.b16 %v652
        %v2061 = vunpack.c.h.b16 %v652
        %v2062 = vunpack.c.l.b16 %v653
        %v2063 = vunpack.c.h.b16 %v653
        %v2064 = vunpack.c.l.b16 %v654
        %v2065 = vunpack.c.h.b16 %v654
        %v2066 = vunpack.c.l.b16 %v655
        %v2067 = vunpack.c.h.b16 %v655
        %v2068 = vunpack.c.l.b16 %v656
        %v2069 = vunpack.c.h.b16 %v656
        %v2070 = vunpack.c.l.b16 %v657
        %v2071 = vunpack.c.h.b16 %v657
        %v2072 = vunpack.c.l.b16 %v658
        %v2073 = vunpack.c.h.b16 %v658
        %v2074 = vunpack.c.l.b16 %v659
        %v2075 = vunpack.c.h.b16 %v659
        %v2076 = vunpack.c.l.b16 %v660
        %v2077 = vunpack.c.h.b16 %v660
        %v2078 = vunpack.c.l.b16 %v661
        %v2079 = vunpack.c.h.b16 %v661
        %v2080 = vunpack.c.l.b16 %v662
        %v2081 = vunpack.c.h.b16 %v662
        %v2082 = vunpack.c.l.b16 %v663
        %v2083 = vunpack.c.h.b16 %v663
        %v2084 = vunpack.c.l.b16 %v664
        %v2085 = vunpack.c.h.b16 %v664
        %v2086 = vunpack.c.l.b16 %v665
        %v2087 = vunpack.c.h.b16 %v665
        %v2088 = vunpack.c.l.b16 %v666
        %v2089 = vunpack.c.h.b16 %v666
        %v2090 = vunpack.c.l.b16 %v667
        %v2091 = vunpack.c.h.b16 %v667
        %v2092 = vunpack.c.l.b16 %v668
        %v2093 = vunpack.c.h.b16 %v668
        %v2094 = vunpack.c.l.b16 %v669
        %v2095 = vunpack.c.h.b16 %v669
        %v2096 = vunpack.c.l.b16 %v670
        %v2097 = vunpack.c.h.b16 %v670
        %v2098 = vunpack.c.l.b16 %v671
        %v2099 = vunpack.c.h.b16 %v671
        %v2100 = vunpack.c.l.b16 %v672
        %v2101 = vunpack.c.h.b16 %v672
        %v2102 = vunpack.c.l.b16 %v673
        %v2103 = vunpack.c.h.b16 %v673
        %v2104 = vunpack.c.l.b16 %v674
        %v2105 = vunpack.c.h.b16 %v674
        %v2106 = vunpack.c.l.b16 %v675
        %v2107 = vunpack.c.h.b16 %v675
        %v2108 = vunpack.c.l.b16 %v676
        %v2109 = vunpack.c.h.b16 %v676
        %v2110 = vunpack.c.l.b16 %v677
        %v2111 = vunpack.c.h.b16 %v677
        %v2112 = vunpack.c.l.b16 %v678
        %v2113 = vunpack.c.h.b16 %v678
        %v2114 = vunpack.c.l.b16 %v679
        %v2115 = vunpack.c.h.b16 %v679
        %v2116 = vunpack.c.l.b16 %v680
        %v2117 = vunpack.c.h.b16 %v680
        %v2118 = vunpack.c.l.b16 %v681
        %v2119 = vunpack.c.h.b16 %v681
        %v2120 = vunpack.c.l.b16 %v682
        %v2121 = vunpack.c.h.b16 %v682
        %v2122 = vunpack.c.l.b16 %v683
        %v2123 = vunpack.c.h.b16 %v683
        %v2124 = vunpack.c.l.b16 %v684
        %v2125 = vunpack.c.h.b16 %v684
        %v2126 = vunpack.c.l.b16 %v685
        %v2127 = vunpack.c.h.b16 %v685
        %v2128 = vunpack.c.l.b16 %v686
        %v2129 = vunpack.c.h.b16 %v686
        %v2130 = vunpack.c.l.b16 %v687
        %v2131 = vunpack.c.h.b16 %v687
        %v2132 = vunpack.c.l.b16 %v688
        %v2133 = vunpack.c.h.b16 %v688
        %v2134 = vunpack.c.l.b16 %v689
        %v2135 = vunpack.c.h.b16 %v689
        %v2136 = vunpack.c.l.b16 %v690
        %v2137 = vunpack.c.h.b16 %v690
        %v2138 = vunpack.c.l.b16 %v691
        %v2139 = vunpack.c.h.b16 %v691
        %v2140 = vunpack.c.l.b16 %v692
        %v2141 = vunpack.c.h.b16 %v692
        %v2142 = vunpack.c.l.b16 %v693
        %v2143 = vunpack.c.h.b16 %v693
        %v2144 = vunpack.c.l.b16 %v694
        %v2145 = vunpack.c.h.b16 %v694
        %v2146 = vunpack.c.l.b16 %v695
        %v2147 = vunpack.c.h.b16 %v695
        %v2148 = vunpack.c.l.b16 %v696
        %v2149 = vunpack.c.h.b16 %v696
        %v2150 = vunpack.c.l.b16 %v697
        %v2151 = vunpack.c.h.b16 %v697
        %v2152 = vunpack.c.l.b16 %v698
        %v2153 = vunpack.c.h.b16 %v698
        %v2154 = vunpack.c.l.b16 %v699
        %v2155 = vunpack.c.h.b16 %v699
        %v2156 = vunpack.c.l.b16 %v700
        %v2157 = vunpack.c.h.b16 %v700
        %v2158 = vunpack.c.l.b16 %v701
        %v2159 = vunpack.c.h.b16 %v701
        %v2160 = vunpack.c.l.b16 %v702
        %v2161 = vunpack.c.h.b16 %v702
        %v2162 = vunpack.c.l.b16 %v703
        %v2163 = vunpack.c.h.b16 %v703
        %v2164 = vunpack.c.l.b16 %v704
        %v2165 = vunpack.c.h.b16 %v704
        %v2166 = vunpack.c.l.b16 %v705
        %v2167 = vunpack.c.h.b16 %v705
        %v2168 = vunpack.c.l.b16 %v706
        %v2169 = vunpack.c.h.b16 %v706
        %v2170 = vunpack.c.l.b16 %v707
        %v2171 = vunpack.c.h.b16 %v707
        %v2172 = vunpack.c.l.b16 %v708
        %v2173 = vunpack.c.h.b16 %v708
        %v2174 = vunpack.c.l.b16 %v709
        %v2175 = vunpack.c.h.b16 %v709
        %v2176 = vunpack.c.l.b16 %v710
        %v2177 = vunpack.c.h.b16 %v710
        %v2178 = vunpack.c.l.b16 %v711
        %v2179 = vunpack.c.h.b16 %v711
        %v2180 = vunpack.c.l.b16 %v712
        %v2181 = vunpack.c.h.b16 %v712
        %v2182 = vunpack.c.l.b16 %v713
        %v2183 = vunpack.c.h.b16 %v713
        %v2184 = vunpack.c.l.b16 %v714
        %v2185 = vunpack.c.h.b16 %v714
        %v2186 = vunpack.c.l.b16 %v715
        %v2187 = vunpack.c.h.b16 %v715
        %v2188 = vunpack.c.l.b16 %v716
        %v2189 = vunpack.c.h.b16 %v716
        %v2190 = vunpack.c.l.b16 %v717
        %v2191 = vunpack.c.h.b16 %v717
        %v2192 = vunpack.c.l.b16 %v718
        %v2193 = vunpack.c.h.b16 %v718
        %v2194 = vunpack.c.l.b16 %v719
        %v2195 = vunpack.c.h.b16 %v719
        %v2196 = vunpack.c.l.b16 %v720
        %v2197 = vunpack.c.h.b16 %v720
        %v2198 = vunpack.c.l.b16 %v721
        %v2199 = vunpack.c.h.b16 %v721
        %v2200 = vunpack.c.l.b16 %v722
        %v2201 = vunpack.c.h.b16 %v722
        %v2202 = vunpack.c.l.b16 %v723
        %v2203 = vunpack.c.h.b16 %v723
        %v2204 = vunpack.c.l.b16 %v724
        %v2205 = vunpack.c.h.b16 %v724
        %v2206 = vunpack.c.l.b16 %v725
        %v2207 = vunpack.c.h.b16 %v725
        %v2208 = vunpack.c.l.b16 %v726
        %v2209 = vunpack.c.h.b16 %v726
        %v2210 = vunpack.c.l.b16 %v727
        %v2211 = vunpack.c.h.b16 %v727
        %v2212 = vunpack.c.l.b16 %v728
        %v2213 = vunpack.c.h.b16 %v728
        %v2214 = vunpack.c.l.b16 %v729
        %v2215 = vunpack.c.h.b16 %v729
        %v2216 = vunpack.c.l.b16 %v730
        %v2217 = vunpack.c.h.b16 %v730
        %v2218 = vunpack.c.l.b16 %v731
        %v2219 = vunpack.c.h.b16 %v731
        %v2220 = vunpack.c.l.b16 %v732
        %v2221 = vunpack.c.h.b16 %v732
        %v2222 = vunpack.c.l.b16 %v733
        %v2223 = vunpack.c.h.b16 %v733
        %v2224 = vunpack.c.l.b16 %v734
        %v2225 = vunpack.c.h.b16 %v734
        %v2226 = vunpack.c.l.b16 %v735
        %v2227 = vunpack.c.h.b16 %v735
        %v2228 = vunpack.c.l.b16 %v736
        %v2229 = vunpack.c.h.b16 %v736
        %v2230 = vunpack.c.l.b16 %v737
        %v2231 = vunpack.c.h.b16 %v737
        %v2232 = vunpack.c.l.b16 %v738
        %v2233 = vunpack.c.h.b16 %v738
        %v2234 = vunpack.c.l.b16 %v739
        %v2235 = vunpack.c.h.b16 %v739
        %v2236 = vunpack.c.l.b16 %v740
        %v2237 = vunpack.c.h.b16 %v740
        %v2238 = vunpack.c.l.b16 %v741
        %v2239 = vunpack.c.h.b16 %v741
        %v2240 = vunpack.c.l.b16 %v742
        %v2241 = vunpack.c.h.b16 %v742
        %v2242 = vunpack.c.l.b16 %v743
        %v2243 = vunpack.c.h.b16 %v743
        %v2244 = vunpack.c.l.b16 %v744
        %v2245 = vunpack.c.h.b16 %v744
        %v2246 = vunpack.c.l.b16 %v745
        %v2247 = vunpack.c.h.b16 %v745
        %v2248 = vunpack.c.l.b16 %v746
        %v2249 = vunpack.c.h.b16 %v746
        %v2250 = vunpack.c.l.b16 %v747
        %v2251 = vunpack.c.h.b16 %v747
        %v2252 = vunpack.c.l.b16 %v748
        %v2253 = vunpack.c.h.b16 %v748
        %v2254 = vunpack.c.l.b16 %v749
        %v2255 = vunpack.c.h.b16 %v749
        %v2256 = vunpack.c.l.b16 %v750
        %v2257 = vunpack.c.h.b16 %v750
        %v2258 = vunpack.c.l.b16 %v751
        %v2259 = vunpack.c.h.b16 %v751
        %v2260 = vunpack.c.l.b16 %v752
        %v2261 = vunpack.c.h.b16 %v752
        %v2262 = vunpack.c.l.b16 %v753
        %v2263 = vunpack.c.h.b16 %v753
        %v2264 = vunpack.c.l.b16 %v754
        %v2265 = vunpack.c.h.b16 %v754
        %v2266 = vunpack.c.l.b16 %v755
        %v2267 = vunpack.c.h.b16 %v755
        %v2268 = vunpack.c.l.b16 %v756
        %v2269 = vunpack.c.h.b16 %v756
        %v2270 = vunpack.c.l.b16 %v757
        %v2271 = vunpack.c.h.b16 %v757
        %v2272 = vunpack.c.l.b16 %v758
        %v2273 = vunpack.c.h.b16 %v758
        %v2274 = vunpack.c.l.b16 %v759
        %v2275 = vunpack.c.h.b16 %v759
        %v2276 = vunpack.c.l.b16 %v760
        %v2277 = vunpack.c.h.b16 %v760
        %v2278 = vunpack.c.l.b16 %v761
        %v2279 = vunpack.c.h.b16 %v761
        %v2280 = vunpack.c.l.b16 %v762
        %v2281 = vunpack.c.h.b16 %v762
        %v2282 = vunpack.c.l.b16 %v763
        %v2283 = vunpack.c.h.b16 %v763
        %v2284 = vunpack.c.l.b16 %v764
        %v2285 = vunpack.c.h.b16 %v764
        %v2286 = vunpack.c.l.b16 %v765
        %v2287 = vunpack.c.h.b16 %v765
        %v2288 = vunpack.c.l.b16 %v766
        %v2289 = vunpack.c.h.b16 %v766
        %v2290 = vunpack.c.l.b16 %v767
        %v2291 = vunpack.c.h.b16 %v767
        %v2292 = vunpack.c.l.b16 %v768
        %v2293 = vunpack.c.h.b16 %v768
        %v2294 = vunpack.c.l.b16 %v769
        %v2295 = vunpack.c.h.b16 %v769
        %v2296 = vunpack.c.l.b16 %v770
        %v2297 = vunpack.c.h.b16 %v770
        %v2298 = vunpack.c.l.b16 %v771
        %v2299 = vunpack.c.h.b16 %v771
        %v2300 = vunpack.c.l.b16 %v772
        %v2301 = vunpack.c.h.b16 %v772
        %v2302 = vunpack.c.l.b16 %v773
        %v2303 = vunpack.c.h.b16 %v773
        %v2304 = vunpack.c.l.b16 %v774
        %v2305 = vunpack.c.h.b16 %v774
        %v2306 = vunpack.c.l.b16 %v775
        %v2307 = vunpack.c.h.b16 %v775
        %v2308 = vunpack.c.l.b16 %v776
        %v2309 = vunpack.c.h.b16 %v776
        %v2310 = vunpack.c.l.b16 %v777
        %v2311 = vunpack.c.h.b16 %v777
        %v2312 = vunpack.c.l.b16 %v778
        %v2313 = vunpack.c.h.b16 %v778
        %v2314 = vunpack.c.l.b16 %v779
        %v2315 = vunpack.c.h.b16 %v779
        %v2316 = vunpack.c.l.b16 %v780
        %v2317 = vunpack.c.h.b16 %v780
        %v2318 = vunpack.c.l.b16 %v781
        %v2319 = vunpack.c.h.b16 %v781
        %v2320 = vunpack.c.l.b16 %v782
        %v2321 = vunpack.c.h.b16 %v782
        %v2322 = vunpack.c.l.b16 %v783
        %v2323 = vunpack.c.h.b16 %v783
        %v2324 = vunpack.c.l.b16 %v784
        %v2325 = vunpack.c.h.b16 %v784
        %v2326 = vunpack.c.l.b16 %v785
        %v2327 = vunpack.c.h.b16 %v785
        %v2328 = vunpack.c.l.b16 %v786
        %v2329 = vunpack.c.h.b16 %v786
        %v2330 = vunpack.c.l.b16 %v787
        %v2331 = vunpack.c.h.b16 %v787
        %v2332 = vunpack.c.l.b16 %v788
        %v2333 = vunpack.c.h.b16 %v788
        %v2334 = vunpack.c.l.b16 %v789
        %v2335 = vunpack.c.h.b16 %v789
        %v2336 = vunpack.c.l.b16 %v790
        %v2337 = vunpack.c.h.b16 %v790
        %v2338 = vunpack.c.l.b16 %v791
        %v2339 = vunpack.c.h.b16 %v791
        %v2340 = vunpack.c.l.b16 %v792
        %v2341 = vunpack.c.h.b16 %v792
        %v2342 = vunpack.c.l.b16 %v793
        %v2343 = vunpack.c.h.b16 %v793
        %v2344 = vunpack.c.l.b16 %v794
        %v2345 = vunpack.c.h.b16 %v794
        %v2346 = vunpack.c.l.b16 %v795
        %v2347 = vunpack.c.h.b16 %v795
        %v2348 = vunpack.c.l.b16 %v796
        %v2349 = vunpack.c.h.b16 %v796
        %v2350 = vunpack.c.l.b16 %v797
        %v2351 = vunpack.c.h.b16 %v797
        %v2352 = vunpack.c.l.b16 %v798
        %v2353 = vunpack.c.h.b16 %v798
        %v2354 = vunpack.c.l.b16 %v799
        %v2355 = vunpack.c.h.b16 %v799
        %v2356 = vunpack.c.l.b16 %v800
        %v2357 = vunpack.c.h.b16 %v800
        %v2358 = vunpack.c.l.b16 %v801
        %v2359 = vunpack.c.h.b16 %v801
        %v2360 = vunpack.c.l.b16 %v802
        %v2361 = vunpack.c.h.b16 %v802
        %v2362 = vunpack.c.l.b16 %v803
        %v2363 = vunpack.c.h.b16 %v803
        %v2364 = vunpack.c.l.b16 %v804
        %v2365 = vunpack.c.h.b16 %v804
        %v2366 = vunpack.c.l.b16 %v805
        %v2367 = vunpack.c.h.b16 %v805
        %v2368 = vunpack.c.l.b16 %v806
        %v2369 = vunpack.c.h.b16 %v806
        %v2370 = vunpack.c.l.b16 %v807
        %v2371 = vunpack.c.h.b16 %v807
        %v2372 = vunpack.c.l.b16 %v808
        %v2373 = vunpack.c.h.b16 %v808
        %v2374 = vunpack.c.l.b16 %v809
        %v2375 = vunpack.c.h.b16 %v809
        %v2376 = vunpack.c.l.b16 %v810
        %v2377 = vunpack.c.h.b16 %v810
        %v2378 = vunpack.c.l.b16 %v811
        %v2379 = vunpack.c.h.b16 %v811
        %v2380 = vunpack.c.l.b16 %v812
        %v2381 = vunpack.c.h.b16 %v812
        %v2382 = vunpack.c.l.b16 %v813
        %v2383 = vunpack.c.h.b16 %v813
        %v2384 = vunpack.c.l.b16 %v814
        %v2385 = vunpack.c.h.b16 %v814
        %v2386 = vunpack.c.l.b16 %v815
        %v2387 = vunpack.c.h.b16 %v815
        %v2388 = vunpack.c.l.b16 %v816
        %v2389 = vunpack.c.h.b16 %v816
        %v2390 = vunpack.c.l.b16 %v817
        %v2391 = vunpack.c.h.b16 %v817
        %v2392 = vunpack.c.l.b16 %v818
        %v2393 = vunpack.c.h.b16 %v818
        %v2394 = vunpack.c.l.b16 %v819
        %v2395 = vunpack.c.h.b16 %v819
        %v2396 = vpack.c.b16 %v1388, %v1372
        %v2397 = vpack.c.b16 %v1389, %v1373
        %v2398 = vpack.c.b16 %v1390, %v1374
        %v2399 = vpack.c.b16 %v1391, %v1375
        %v2400 = vpack.c.b16 %v1392, %v1376
        %v2401 = vpack.c.b16 %v1393, %v1377
        %v2402 = vpack.c.b16 %v1394, %v1378
        %v2403 = vpack.c.b16 %v1395, %v1379
        %v2404 = vpack.c.b16 %v1396, %v1380
        %v2405 = vpack.c.b16 %v1397, %v1381
        %v2406 = vpack.c.b16 %v1398, %v1382
        %v2407 = vpack.c.b16 %v1399, %v1383
        %v2408 = vpack.c.b16 %v1400, %v1384
        %v2409 = vpack.c.b16 %v1401, %v1385
        %v2410 = vpack.c.b16 %v1402, %v1386
        %v2411 = vpack.c.b16 %v1403, %v1387
        %v2412 = vpack.c.b16 %v1420, %v1404
        %v2413 = vpack.c.b16 %v1421, %v1405
        %v2414 = vpack.c.b16 %v1422, %v1406
        %v2415 = vpack.c.b16 %v1423, %v1407
        %v2416 = vpack.c.b16 %v1424, %v1408
        %v2417 = vpack.c.b16 %v1425, %v1409
        %v2418 = vpack.c.b16 %v1426, %v1410
        %v2419 = vpack.c.b16 %v1427, %v1411
        %v2420 = vpack.c.b16 %v1428, %v1412
        %v2421 = vpack.c.b16 %v1429, %v1413
        %v2422 = vpack.c.b16 %v1430, %v1414
        %v2423 = vpack.c.b16 %v1431, %v1415
        %v2424 = vpack.c.b16 %v1432, %v1416
        %v2425 = vpack.c.b16 %v1433, %v1417
        %v2426 = vpack.c.b16 %v1434, %v1418
        %v2427 = vpack.c.b16 %v1435, %v1419
        %v2428 = vpack.c.b16 %v1452, %v1436
        %v2429 = vpack.c.b16 %v1453, %v1437
        %v2430 = vpack.c.b16 %v1454, %v1438
        %v2431 = vpack.c.b16 %v1455, %v1439
        %v2432 = vpack.c.b16 %v1456, %v1440
        %v2433 = vpack.c.b16 %v1457, %v1441
        %v2434 = vpack.c.b16 %v1458, %v1442
        %v2435 = vpack.c.b16 %v1459, %v1443
        %v2436 = vpack.c.b16 %v1460, %v1444
        %v2437 = vpack.c.b16 %v1461, %v1445
        %v2438 = vpack.c.b16 %v1462, %v1446
        %v2439 = vpack.c.b16 %v1463, %v1447
        %v2440 = vpack.c.b16 %v1464, %v1448
        %v2441 = vpack.c.b16 %v1465, %v1449
        %v2442 = vpack.c.b16 %v1466, %v1450
        %v2443 = vpack.c.b16 %v1467, %v1451
        %v2444 = vpack.c.b16 %v1484, %v1468
        %v2445 = vpack.c.b16 %v1485, %v1469
        %v2446 = vpack.c.b16 %v1486, %v1470
        %v2447 = vpack.c.b16 %v1487, %v1471
        %v2448 = vpack.c.b16 %v1488, %v1472
        %v2449 = vpack.c.b16 %v1489, %v1473
        %v2450 = vpack.c.b16 %v1490, %v1474
        %v2451 = vpack.c.b16 %v1491, %v1475
        %v2452 = vpack.c.b16 %v1492, %v1476
        %v2453 = vpack.c.b16 %v1493, %v1477
        %v2454 = vpack.c.b16 %v1494, %v1478
        %v2455 = vpack.c.b16 %v1495, %v1479
        %v2456 = vpack.c.b16 %v1496, %v1480
        %v2457 = vpack.c.b16 %v1497, %v1481
        %v2458 = vpack.c.b16 %v1498, %v1482
        %v2459 = vpack.c.b16 %v1499, %v1483
        %v2460 = vpack.c.b16 %v1516, %v1500
        %v2461 = vpack.c.b16 %v1517, %v1501
        %v2462 = vpack.c.b16 %v1518, %v1502
        %v2463 = vpack.c.b16 %v1519, %v1503
        %v2464 = vpack.c.b16 %v1520, %v1504
        %v2465 = vpack.c.b16 %v1521, %v1505
        %v2466 = vpack.c.b16 %v1522, %v1506
        %v2467 = vpack.c.b16 %v1523, %v1507
        %v2468 = vpack.c.b16 %v1524, %v1508
        %v2469 = vpack.c.b16 %v1525, %v1509
        %v2470 = vpack.c.b16 %v1526, %v1510
        %v2471 = vpack.c.b16 %v1527, %v1511
        %v2472 = vpack.c.b16 %v1528, %v1512
        %v2473 = vpack.c.b16 %v1529, %v1513
        %v2474 = vpack.c.b16 %v1530, %v1514
        %v2475 = vpack.c.b16 %v1531, %v1515
        %v2476 = vpack.c.b16 %v1548, %v1532
        %v2477 = vpack.c.b16 %v1549, %v1533
        %v2478 = vpack.c.b16 %v1550, %v1534
        %v2479 = vpack.c.b16 %v1551, %v1535
        %v2480 = vpack.c.b16 %v1552, %v1536
        %v2481 = vpack.c.b16 %v1553, %v1537
        %v2482 = vpack.c.b16 %v1554, %v1538
        %v2483 = vpack.c.b16 %v1555, %v1539
        %v2484 = vpack.c.b16 %v1556, %v1540
        %v2485 = vpack.c.b16 %v1557, %v1541
        %v2486 = vpack.c.b16 %v1558, %v1542
        %v2487 = vpack.c.b16 %v1559, %v1543
        %v2488 = vpack.c.b16 %v1560, %v1544
        %v2489 = vpack.c.b16 %v1561, %v1545
        %v2490 = vpack.c.b16 %v1562, %v1546
        %v2491 = vpack.c.b16 %v1563, %v1547
        %v2492 = vpack.c.b16 %v1580, %v1564
        %v2493 = vpack.c.b16 %v1581, %v1565
        %v2494 = vpack.c.b16 %v1582, %v1566
        %v2495 = vpack.c.b16 %v1583, %v1567
        %v2496 = vpack.c.b16 %v1584, %v1568
        %v2497 = vpack.c.b16 %v1585, %v1569
        %v2498 = vpack.c.b16 %v1586, %v1570
        %v2499 = vpack.c.b16 %v1587, %v1571
        %v2500 = vpack.c.b16 %v1588, %v1572
        %v2501 = vpack.c.b16 %v1589, %v1573
        %v2502 = vpack.c.b16 %v1590, %v1574
        %v2503 = vpack.c.b16 %v1591, %v1575
        %v2504 = vpack.c.b16 %v1592, %v1576
        %v2505 = vpack.c.b16 %v1593, %v1577
        %v2506 = vpack.c.b16 %v1594, %v1578
        %v2507 = vpack.c.b16 %v1595, %v1579
        %v2508 = vpack.c.b16 %v1612, %v1596
        %v2509 = vpack.c.b16 %v1613, %v1597
        %v2510 = vpack.c.b16 %v1614, %v1598
        %v2511 = vpack.c.b16 %v1615, %v1599
        %v2512 = vpack.c.b16 %v1616, %v1600
        %v2513 = vpack.c.b16 %v1617, %v1601
        %v2514 = vpack.c.b16 %v1618, %v1602
        %v2515 = vpack.c.b16 %v1619, %v1603
        %v2516 = vpack.c.b16 %v1620, %v1604
        %v2517 = vpack.c.b16 %v1621, %v1605
        %v2518 = vpack.c.b16 %v1622, %v1606
        %v2519 = vpack.c.b16 %v1623, %v1607
        %v2520 = vpack.c.b16 %v1624, %v1608
        %v2521 = vpack.c.b16 %v1625, %v1609
        %v2522 = vpack.c.b16 %v1626, %v1610
        %v2523 = vpack.c.b16 %v1627, %v1611
        %v2524 = vpack.c.b16 %v1644, %v1628
        %v2525 = vpack.c.b16 %v1645, %v1629
        %v2526 = vpack.c.b16 %v1646, %v1630
        %v2527 = vpack.c.b16 %v1647, %v1631
        %v2528 = vpack.c.b16 %v1648, %v1632
        %v2529 = vpack.c.b16 %v1649, %v1633
        %v2530 = vpack.c.b16 %v1650, %v1634
        %v2531 = vpack.c.b16 %v1651, %v1635
        %v2532 = vpack.c.b16 %v1652, %v1636
        %v2533 = vpack.c.b16 %v1653, %v1637
        %v2534 = vpack.c.b16 %v1654, %v1638
        %v2535 = vpack.c.b16 %v1655, %v1639
        %v2536 = vpack.c.b16 %v1656, %v1640
        %v2537 = vpack.c.b16 %v1657, %v1641
        %v2538 = vpack.c.b16 %v1658, %v1642
        %v2539 = vpack.c.b16 %v1659, %v1643
        %v2540 = vpack.c.b16 %v1676, %v1660
        %v2541 = vpack.c.b16 %v1677, %v1661
        %v2542 = vpack.c.b16 %v1678, %v1662
        %v2543 = vpack.c.b16 %v1679, %v1663
        %v2544 = vpack.c.b16 %v1680, %v1664
        %v2545 = vpack.c.b16 %v1681, %v1665
        %v2546 = vpack.c.b16 %v1682, %v1666
        %v2547 = vpack.c.b16 %v1683, %v1667
        %v2548 = vpack.c.b16 %v1684, %v1668
        %v2549 = vpack.c.b16 %v1685, %v1669
        %v2550 = vpack.c.b16 %v1686, %v1670
        %v2551 = vpack.c.b16 %v1687, %v1671
        %v2552 = vpack.c.b16 %v1688, %v1672
        %v2553 = vpack.c.b16 %v1689, %v1673
        %v2554 = vpack.c.b16 %v1690, %v1674
        %v2555 = vpack.c.b16 %v1691, %v1675
        %v2556 = vpack.c.b16 %v1708, %v1692
        %v2557 = vpack.c.b16 %v1709, %v1693
        %v2558 = vpack.c.b16 %v1710, %v1694
        %v2559 = vpack.c.b16 %v1711, %v1695
        %v2560 = vpack.c.b16 %v1712, %v1696
        %v2561 = vpack.c.b16 %v1713, %v1697
        %v2562 = vpack.c.b16 %v1714, %v1698
        %v2563 = vpack.c.b16 %v1715, %v1699
        %v2564 = vpack.c.b16 %v1716, %v1700
        %v2565 = vpack.c.b16 %v1717, %v1701
        %v2566 = vpack.c.b16 %v1718, %v1702
        %v2567 = vpack.c.b16 %v1719, %v1703
        %v2568 = vpack.c.b16 %v1720, %v1704
        %v2569 = vpack.c.b16 %v1721, %v1705
        %v2570 = vpack.c.b16 %v1722, %v1706
        %v2571 = vpack.c.b16 %v1723, %v1707
        %v2572 = vpack.c.b16 %v1740, %v1724
        %v2573 = vpack.c.b16 %v1741, %v1725
        %v2574 = vpack.c.b16 %v1742, %v1726
        %v2575 = vpack.c.b16 %v1743, %v1727
        %v2576 = vpack.c.b16 %v1744, %v1728
        %v2577 = vpack.c.b16 %v1745, %v1729
        %v2578 = vpack.c.b16 %v1746, %v1730
        %v2579 = vpack.c.b16 %v1747, %v1731
        %v2580 = vpack.c.b16 %v1748, %v1732
        %v2581 = vpack.c.b16 %v1749, %v1733
        %v2582 = vpack.c.b16 %v1750, %v1734
        %v2583 = vpack.c.b16 %v1751, %v1735
        %v2584 = vpack.c.b16 %v1752, %v1736
        %v2585 = vpack.c.b16 %v1753, %v1737
        %v2586 = vpack.c.b16 %v1754, %v1738
        %v2587 = vpack.c.b16 %v1755, %v1739
        %v2588 = vpack.c.b16 %v1772, %v1756
        %v2589 = vpack.c.b16 %v1773, %v1757
        %v2590 = vpack.c.b16 %v1774, %v1758
        %v2591 = vpack.c.b16 %v1775, %v1759
        %v2592 = vpack.c.b16 %v1776, %v1760
        %v2593 = vpack.c.b16 %v1777, %v1761
        %v2594 = vpack.c.b16 %v1778, %v1762
        %v2595 = vpack.c.b16 %v1779, %v1763
        %v2596 = vpack.c.b16 %v1780, %v1764
        %v2597 = vpack.c.b16 %v1781, %v1765
        %v2598 = vpack.c.b16 %v1782, %v1766
        %v2599 = vpack.c.b16 %v1783, %v1767
        %v2600 = vpack.c.b16 %v1784, %v1768
        %v2601 = vpack.c.b16 %v1785, %v1769
        %v2602 = vpack.c.b16 %v1786, %v1770
        %v2603 = vpack.c.b16 %v1787, %v1771
        %v2604 = vpack.c.b16 %v1804, %v1788
        %v2605 = vpack.c.b16 %v1805, %v1789
        %v2606 = vpack.c.b16 %v1806, %v1790
        %v2607 = vpack.c.b16 %v1807, %v1791
        %v2608 = vpack.c.b16 %v1808, %v1792
        %v2609 = vpack.c.b16 %v1809, %v1793
        %v2610 = vpack.c.b16 %v1810, %v1794
        %v2611 = vpack.c.b16 %v1811, %v1795
        %v2612 = vpack.c.b16 %v1812, %v1796
        %v2613 = vpack.c.b16 %v1813, %v1797
        %v2614 = vpack.c.b16 %v1814, %v1798
        %v2615 = vpack.c.b16 %v1815, %v1799
        %v2616 = vpack.c.b16 %v1816, %v1800
        %v2617 = vpack.c.b16 %v1817, %v1801
        %v2618 = vpack.c.b16 %v1818, %v1802
        %v2619 = vpack.c.b16 %v1819, %v1803
        %v2620 = vpack.c.b16 %v1836, %v1820
        %v2621 = vpack.c.b16 %v1837, %v1821
        %v2622 = vpack.c.b16 %v1838, %v1822
        %v2623 = vpack.c.b16 %v1839, %v1823
        %v2624 = vpack.c.b16 %v1840, %v1824
        %v2625 = vpack.c.b16 %v1841, %v1825
        %v2626 = vpack.c.b16 %v1842, %v1826
        %v2627 = vpack.c.b16 %v1843, %v1827
        %v2628 = vpack.c.b16 %v1844, %v1828
        %v2629 = vpack.c.b16 %v1845, %v1829
        %v2630 = vpack.c.b16 %v1846, %v1830
        %v2631 = vpack.c.b16 %v1847, %v1831
        %v2632 = vpack.c.b16 %v1848, %v1832
        %v2633 = vpack.c.b16 %v1849, %v1833
        %v2634 = vpack.c.b16 %v1850, %v1834
        %v2635 = vpack.c.b16 %v1851, %v1835
        %v2636 = vpack.c.b16 %v1868, %v1852
        %v2637 = vpack.c.b16 %v1869, %v1853
        %v2638 = vpack.c.b16 %v1870, %v1854
        %v2639 = vpack.c.b16 %v1871, %v1855
        %v2640 = vpack.c.b16 %v1872, %v1856
        %v2641 = vpack.c.b16 %v1873, %v1857
        %v2642 = vpack.c.b16 %v1874, %v1858
        %v2643 = vpack.c.b16 %v1875, %v1859
        %v2644 = vpack.c.b16 %v1876, %v1860
        %v2645 = vpack.c.b16 %v1877, %v1861
        %v2646 = vpack.c.b16 %v1878, %v1862
        %v2647 = vpack.c.b16 %v1879, %v1863
        %v2648 = vpack.c.b16 %v1880, %v1864
        %v2649 = vpack.c.b16 %v1881, %v1865
        %v2650 = vpack.c.b16 %v1882, %v1866
        %v2651 = vpack.c.b16 %v1883, %v1867
        %v2652 = vpack.c.b16 %v1900, %v1884
        %v2653 = vpack.c.b16 %v1901, %v1885
        %v2654 = vpack.c.b16 %v1902, %v1886
        %v2655 = vpack.c.b16 %v1903, %v1887
        %v2656 = vpack.c.b16 %v1904, %v1888
        %v2657 = vpack.c.b16 %v1905, %v1889
        %v2658 = vpack.c.b16 %v1906, %v1890
        %v2659 = vpack.c.b16 %v1907, %v1891
        %v2660 = vpack.c.b16 %v1908, %v1892
        %v2661 = vpack.c.b16 %v1909, %v1893
        %v2662 = vpack.c.b16 %v1910, %v1894
        %v2663 = vpack.c.b16 %v1911, %v1895
        %v2664 = vpack.c.b16 %v1912, %v1896
        %v2665 = vpack.c.b16 %v1913, %v1897
        %v2666 = vpack.c.b16 %v1914, %v1898
        %v2667 = vpack.c.b16 %v1915, %v1899
        %v2668 = vpack.c.b16 %v1932, %v1916
        %v2669 = vpack.c.b16 %v1933, %v1917
        %v2670 = vpack.c.b16 %v1934, %v1918
        %v2671 = vpack.c.b16 %v1935, %v1919
        %v2672 = vpack.c.b16 %v1936, %v1920
        %v2673 = vpack.c.b16 %v1937, %v1921
        %v2674 = vpack.c.b16 %v1938, %v1922
        %v2675 = vpack.c.b16 %v1939, %v1923
        %v2676 = vpack.c.b16 %v1940, %v1924
        %v2677 = vpack.c.b16 %v1941, %v1925
        %v2678 = vpack.c.b16 %v1942, %v1926
        %v2679 = vpack.c.b16 %v1943, %v1927
        %v2680 = vpack.c.b16 %v1944, %v1928
        %v2681 = vpack.c.b16 %v1945, %v1929
        %v2682 = vpack.c.b16 %v1946, %v1930
        %v2683 = vpack.c.b16 %v1947, %v1931
        %v2684 = vpack.c.b16 %v1964, %v1948
        %v2685 = vpack.c.b16 %v1965, %v1949
        %v2686 = vpack.c.b16 %v1966, %v1950
        %v2687 = vpack.c.b16 %v1967, %v1951
        %v2688 = vpack.c.b16 %v1968, %v1952
        %v2689 = vpack.c.b16 %v1969, %v1953
        %v2690 = vpack.c.b16 %v1970, %v1954
        %v2691 = vpack.c.b16 %v1971, %v1955
        %v2692 = vpack.c.b16 %v1972, %v1956
        %v2693 = vpack.c.b16 %v1973, %v1957
        %v2694 = vpack.c.b16 %v1974, %v1958
        %v2695 = vpack.c.b16 %v1975, %v1959
        %v2696 = vpack.c.b16 %v1976, %v1960
        %v2697 = vpack.c.b16 %v1977, %v1961
        %v2698 = vpack.c.b16 %v1978, %v1962
        %v2699 = vpack.c.b16 %v1979, %v1963
        %v2700 = vpack.c.b16 %v1996, %v1980
        %v2701 = vpack.c.b16 %v1997, %v1981
        %v2702 = vpack.c.b16 %v1998, %v1982
        %v2703 = vpack.c.b16 %v1999, %v1983
        %v2704 = vpack.c.b16 %v2000, %v1984
        %v2705 = vpack.c.b16 %v2001, %v1985
        %v2706 = vpack.c.b16 %v2002, %v1986
        %v2707 = vpack.c.b16 %v2003, %v1987
        %v2708 = vpack.c.b16 %v2004, %v1988
        %v2709 = vpack.c.b16 %v2005, %v1989
        %v2710 = vpack.c.b16 %v2006, %v1990
        %v2711 = vpack.c.b16 %v2007, %v1991
        %v2712 = vpack.c.b16 %v2008, %v1992
        %v2713 = vpack.c.b16 %v2009, %v1993
        %v2714 = vpack.c.b16 %v2010, %v1994
        %v2715 = vpack.c.b16 %v2011, %v1995
        %v2716 = vpack.c.b16 %v2028, %v2012
        %v2717 = vpack.c.b16 %v2029, %v2013
        %v2718 = vpack.c.b16 %v2030, %v2014
        %v2719 = vpack.c.b16 %v2031, %v2015
        %v2720 = vpack.c.b16 %v2032, %v2016
        %v2721 = vpack.c.b16 %v2033, %v2017
        %v2722 = vpack.c.b16 %v2034, %v2018
        %v2723 = vpack.c.b16 %v2035, %v2019
        %v2724 = vpack.c.b16 %v2036, %v2020
        %v2725 = vpack.c.b16 %v2037, %v2021
        %v2726 = vpack.c.b16 %v2038, %v2022
        %v2727 = vpack.c.b16 %v2039, %v2023
        %v2728 = vpack.c.b16 %v2040, %v2024
        %v2729 = vpack.c.b16 %v2041, %v2025
        %v2730 = vpack.c.b16 %v2042, %v2026
        %v2731 = vpack.c.b16 %v2043, %v2027
        %v2732 = vpack.c.b16 %v2060, %v2044
        %v2733 = vpack.c.b16 %v2061, %v2045
        %v2734 = vpack.c.b16 %v2062, %v2046
        %v2735 = vpack.c.b16 %v2063, %v2047
        %v2736 = vpack.c.b16 %v2064, %v2048
        %v2737 = vpack.c.b16 %v2065, %v2049
        %v2738 = vpack.c.b16 %v2066, %v2050
        %v2739 = vpack.c.b16 %v2067, %v2051
        %v2740 = vpack.c.b16 %v2068, %v2052
        %v2741 = vpack.c.b16 %v2069, %v2053
        %v2742 = vpack.c.b16 %v2070, %v2054
        %v2743 = vpack.c.b16 %v2071, %v2055
        %v2744 = vpack.c.b16 %v2072, %v2056
        %v2745 = vpack.c.b16 %v2073, %v2057
        %v2746 = vpack.c.b16 %v2074, %v2058
        %v2747 = vpack.c.b16 %v2075, %v2059
        %v2748 = vpack.c.b16 %v2092, %v2076
        %v2749 = vpack.c.b16 %v2093, %v2077
        %v2750 = vpack.c.b16 %v2094, %v2078
        %v2751 = vpack.c.b16 %v2095, %v2079
        %v2752 = vpack.c.b16 %v2096, %v2080
        %v2753 = vpack.c.b16 %v2097, %v2081
        %v2754 = vpack.c.b16 %v2098, %v2082
        %v2755 = vpack.c.b16 %v2099, %v2083
        %v2756 = vpack.c.b16 %v2100, %v2084
        %v2757 = vpack.c.b16 %v2101, %v2085
        %v2758 = vpack.c.b16 %v2102, %v2086
        %v2759 = vpack.c.b16 %v2103, %v2087
        %v2760 = vpack.c.b16 %v2104, %v2088
        %v2761 = vpack.c.b16 %v2105, %v2089
        %v2762 = vpack.c.b16 %v2106, %v2090
        %v2763 = vpack.c.b16 %v2107, %v2091
        %v2764 = vpack.c.b16 %v2124, %v2108
        %v2765 = vpack.c.b16 %v2125, %v2109
        %v2766 = vpack.c.b16 %v2126, %v2110
        %v2767 = vpack.c.b16 %v2127, %v2111
        %v2768 = vpack.c.b16 %v2128, %v2112
        %v2769 = vpack.c.b16 %v2129, %v2113
        %v2770 = vpack.c.b16 %v2130, %v2114
        %v2771 = vpack.c.b16 %v2131, %v2115
        %v2772 = vpack.c.b16 %v2132, %v2116
        %v2773 = vpack.c.b16 %v2133, %v2117
        %v2774 = vpack.c.b16 %v2134, %v2118
        %v2775 = vpack.c.b16 %v2135, %v2119
        %v2776 = vpack.c.b16 %v2136, %v2120
        %v2777 = vpack.c.b16 %v2137, %v2121
        %v2778 = vpack.c.b16 %v2138, %v2122
        %v2779 = vpack.c.b16 %v2139, %v2123
        %v2780 = vpack.c.b16 %v2156, %v2140
        %v2781 = vpack.c.b16 %v2157, %v2141
        %v2782 = vpack.c.b16 %v2158, %v2142
        %v2783 = vpack.c.b16 %v2159, %v2143
        %v2784 = vpack.c.b16 %v2160, %v2144
        %v2785 = vpack.c.b16 %v2161, %v2145
        %v2786 = vpack.c.b16 %v2162, %v2146
        %v2787 = vpack.c.b16 %v2163, %v2147
        %v2788 = vpack.c.b16 %v2164, %v2148
        %v2789 = vpack.c.b16 %v2165, %v2149
        %v2790 = vpack.c.b16 %v2166, %v2150
        %v2791 = vpack.c.b16 %v2167, %v2151
        %v2792 = vpack.c.b16 %v2168, %v2152
        %v2793 = vpack.c.b16 %v2169, %v2153
        %v2794 = vpack.c.b16 %v2170, %v2154
        %v2795 = vpack.c.b16 %v2171, %v2155
        %v2796 = vpack.c.b16 %v2188, %v2172
        %v2797 = vpack.c.b16 %v2189, %v2173
        %v2798 = vpack.c.b16 %v2190, %v2174
        %v2799 = vpack.c.b16 %v2191, %v2175
        %v2800 = vpack.c.b16 %v2192, %v2176
        %v2801 = vpack.c.b16 %v2193, %v2177
        %v2802 = vpack.c.b16 %v2194, %v2178
        %v2803 = vpack.c.b16 %v2195, %v2179
        %v2804 = vpack.c.b16 %v2196, %v2180
        %v2805 = vpack.c.b16 %v2197, %v2181
        %v2806 = vpack.c.b16 %v2198, %v2182
        %v2807 = vpack.c.b16 %v2199, %v2183
        %v2808 = vpack.c.b16 %v2200, %v2184
        %v2809 = vpack.c.b16 %v2201, %v2185
        %v2810 = vpack.c.b16 %v2202, %v2186
        %v2811 = vpack.c.b16 %v2203, %v2187
        %v2812 = vpack.c.b16 %v2220, %v2204
        %v2813 = vpack.c.b16 %v2221, %v2205
        %v2814 = vpack.c.b16 %v2222, %v2206
        %v2815 = vpack.c.b16 %v2223, %v2207
        %v2816 = vpack.c.b16 %v2224, %v2208
        %v2817 = vpack.c.b16 %v2225, %v2209
        %v2818 = vpack.c.b16 %v2226, %v2210
        %v2819 = vpack.c.b16 %v2227, %v2211
        %v2820 = vpack.c.b16 %v2228, %v2212
        %v2821 = vpack.c.b16 %v2229, %v2213
        %v2822 = vpack.c.b16 %v2230, %v2214
        %v2823 = vpack.c.b16 %v2231, %v2215
        %v2824 = vpack.c.b16 %v2232, %v2216
        %v2825 = vpack.c.b16 %v2233, %v2217
        %v2826 = vpack.c.b16 %v2234, %v2218
        %v2827 = vpack.c.b16 %v2235, %v2219
        %v2828 = vpack.c.b16 %v2252, %v2236
        %v2829 = vpack.c.b16 %v2253, %v2237
        %v2830 = vpack.c.b16 %v2254, %v2238
        %v2831 = vpack.c.b16 %v2255, %v2239
        %v2832 = vpack.c.b16 %v2256, %v2240
        %v2833 = vpack.c.b16 %v2257, %v2241
        %v2834 = vpack.c.b16 %v2258, %v2242
        %v2835 = vpack.c.b16 %v2259, %v2243
        %v2836 = vpack.c.b16 %v2260, %v2244
        %v2837 = vpack.c.b16 %v2261, %v2245
        %v2838 = vpack.c.b16 %v2262, %v2246
        %v2839 = vpack.c.b16 %v2263, %v2247
        %v2840 = vpack.c.b16 %v2264, %v2248
        %v2841 = vpack.c.b16 %v2265, %v2249
        %v2842 = vpack.c.b16 %v2266, %v2250
        %v2843 = vpack.c.b16 %v2267, %v2251
        %v2844 = vpack.c.b16 %v2284, %v2268
        %v2845 = vpack.c.b16 %v2285, %v2269
        %v2846 = vpack.c.b16 %v2286, %v2270
        %v2847 = vpack.c.b16 %v2287, %v2271
        %v2848 = vpack.c.b16 %v2288, %v2272
        %v2849 = vpack.c.b16 %v2289, %v2273
        %v2850 = vpack.c.b16 %v2290, %v2274
        %v2851 = vpack.c.b16 %v2291, %v2275
        %v2852 = vpack.c.b16 %v2292, %v2276
        %v2853 = vpack.c.b16 %v2293, %v2277
        %v2854 = vpack.c.b16 %v2294, %v2278
        %v2855 = vpack.c.b16 %v2295, %v2279
        %v2856 = vpack.c.b16 %v2296, %v2280
        %v2857 = vpack.c.b16 %v2297, %v2281
        %v2858 = vpack.c.b16 %v2298, %v2282
        %v2859 = vpack.c.b16 %v2299, %v2283
        %v2860 = vpack.c.b16 %v2316, %v2300
        %v2861 = vpack.c.b16 %v2317, %v2301
        %v2862 = vpack.c.b16 %v2318, %v2302
        %v2863 = vpack.c.b16 %v2319, %v2303
        %v2864 = vpack.c.b16 %v2320, %v2304
        %v2865 = vpack.c.b16 %v2321, %v2305
        %v2866 = vpack.c.b16 %v2322, %v2306
        %v2867 = vpack.c.b16 %v2323, %v2307
        %v2868 = vpack.c.b16 %v2324, %v2308
        %v2869 = vpack.c.b16 %v2325, %v2309
        %v2870 = vpack.c.b16 %v2326, %v2310
        %v2871 = vpack.c.b16 %v2327, %v2311
        %v2872 = vpack.c.b16 %v2328, %v2312
        %v2873 = vpack.c.b16 %v2329, %v2313
        %v2874 = vpack.c.b16 %v2330, %v2314
        %v2875 = vpack.c.b16 %v2331, %v2315
        %v2876 = vpack.c.b16 %v2348, %v2332
        %v2877 = vpack.c.b16 %v2349, %v2333
        %v2878 = vpack.c.b16 %v2350, %v2334
        %v2879 = vpack.c.b16 %v2351, %v2335
        %v2880 = vpack.c.b16 %v2352, %v2336
        %v2881 = vpack.c.b16 %v2353, %v2337
        %v2882 = vpack.c.b16 %v2354, %v2338
        %v2883 = vpack.c.b16 %v2355, %v2339
        %v2884 = vpack.c.b16 %v2356, %v2340
        %v2885 = vpack.c.b16 %v2357, %v2341
        %v2886 = vpack.c.b16 %v2358, %v2342
        %v2887 = vpack.c.b16 %v2359, %v2343
        %v2888 = vpack.c.b16 %v2360, %v2344
        %v2889 = vpack.c.b16 %v2361, %v2345
        %v2890 = vpack.c.b16 %v2362, %v2346
        %v2891 = vpack.c.b16 %v2363, %v2347
        %v2892 = vpack.c.b16 %v2380, %v2364
        %v2893 = vpack.c.b16 %v2381, %v2365
        %v2894 = vpack.c.b16 %v2382, %v2366
        %v2895 = vpack.c.b16 %v2383, %v2367
        %v2896 = vpack.c.b16 %v2384, %v2368
        %v2897 = vpack.c.b16 %v2385, %v2369
        %v2898 = vpack.c.b16 %v2386, %v2370
        %v2899 = vpack.c.b16 %v2387, %v2371
        %v2900 = vpack.c.b16 %v2388, %v2372
        %v2901 = vpack.c.b16 %v2389, %v2373
        %v2902 = vpack.c.b16 %v2390, %v2374
        %v2903 = vpack.c.b16 %v2391, %v2375
        %v2904 = vpack.c.b16 %v2392, %v2376
        %v2905 = vpack.c.b16 %v2393, %v2377
        %v2906 = vpack.c.b16 %v2394, %v2378
        %v2907 = vpack.c.b16 %v2395, %v2379
        %3420 = vmatprep.subr.bf16.mxu0 %v2397
        %3421 = vmatpush1.bf16.msra.mxu0 %v2396
        %3422 = vmatprep.subr.bf16.mxu0 %v2413
        %3423 = vmatpush1.bf16.msra.mxu0 %v2412
        %3424 = vmatprep.subr.bf16.mxu0 %v2429
        %3425 = vmatpush1.bf16.msra.mxu0 %v2428
        %3426 = vmatprep.subr.bf16.mxu0 %v2445
        %3427 = vmatpush1.bf16.msra.mxu0 %v2444
        %3428 = vmatprep.subr.bf16.mxu0 %v2461
        %3429 = vmatpush1.bf16.msra.mxu0 %v2460
        %3430 = vmatprep.subr.bf16.mxu0 %v2477
        %3431 = vmatpush1.bf16.msra.mxu0 %v2476
        %3432 = vmatprep.subr.bf16.mxu0 %v2493
        %3433 = vmatpush1.bf16.msra.mxu0 %v2492
        %3434 = vmatprep.subr.bf16.mxu0 %v2509
        %3435 = vmatpush1.bf16.msra.mxu0 %v2508
        %3436 = vmatprep.subr.bf16.mxu0 %v2525
        %3437 = vmatpush1.bf16.msra.mxu0 %v2524
        %3438 = vmatprep.subr.bf16.mxu0 %v2541
        %3439 = vmatpush1.bf16.msra.mxu0 %v2540
        %3440 = vmatprep.subr.bf16.mxu0 %v2557
        %3441 = vmatpush1.bf16.msra.mxu0 %v2556
        %3442 = vmatprep.subr.bf16.mxu0 %v2573
        %3443 = vmatpush1.bf16.msra.mxu0 %v2572
        %3444 = vmatprep.subr.bf16.mxu0 %v2589
        %3445 = vmatpush1.bf16.msra.mxu0 %v2588
        %3446 = vmatprep.subr.bf16.mxu0 %v2605
        %3447 = vmatpush1.bf16.msra.mxu0 %v2604
        %3448 = vmatprep.subr.bf16.mxu0 %v2621
        %3449 = vmatpush1.bf16.msra.mxu0 %v2620
        %3450 = vmatprep.subr.bf16.mxu0 %v2637
        %3451 = vmatpush1.bf16.msra.mxu0 %v2636
        %3452 = vmatprep.mubr.bf16.mxu0 %v845
        %3453 = vmatmul.mubr.bf16.gmra.mrb[0].mxu0 %v844
        %v3454 = vpop.f32.mrb[0].mxu0
        %v3455 = vadd.f32 0.0, %v3454
        %v3456 = vpop.f32.mrb[0].mxu0
        %v3457 = vadd.f32 0.0, %v3456
        %v3458 = vpop.f32.mrb[0].mxu0
        %v3459 = vadd.f32 0.0, %v3458
        %v3460 = vpop.f32.mrb[0].mxu0
        %v3461 = vadd.f32 0.0, %v3460
        %3462 = vmatprep.mubr.bf16.mxu0 %v849
        %3463 = vmatmul.mubr.bf16.gmra.mrb[0].mxu0 %v848
        %v3464 = vpop.f32.mrb[0].mxu0
        %v3465 = vadd.f32 0.0, %v3464
        %v3466 = vpop.f32.mrb[0].mxu0
        %v3467 = vadd.f32 0.0, %v3466
        %v3468 = vpop.f32.mrb[0].mxu0
        %v3469 = vadd.f32 0.0, %v3468
        %v3470 = vpop.f32.mrb[0].mxu0
        %v3471 = vadd.f32 0.0, %v3470
        %3472 = vdwg.mxu0
        %3473 = vmatprep.subr.bf16.mxu0 %v2653
        %3474 = vmatpush1.bf16.msra.mxu0 %v2652
        %3475 = vmatprep.subr.bf16.mxu0 %v2669
        %3476 = vmatpush1.bf16.msra.mxu0 %v2668
        %3477 = vmatprep.subr.bf16.mxu0 %v2685
        %3478 = vmatpush1.bf16.msra.mxu0 %v2684
        %3479 = vmatprep.subr.bf16.mxu0 %v2701
        %3480 = vmatpush1.bf16.msra.mxu0 %v2700
        %3481 = vmatprep.subr.bf16.mxu0 %v2717
        %3482 = vmatpush1.bf16.msra.mxu0 %v2716
        %3483 = vmatprep.subr.bf16.mxu0 %v2733
        %3484 = vmatpush1.bf16.msra.mxu0 %v2732
        %3485 = vmatprep.subr.bf16.mxu0 %v2749
        %3486 = vmatpush1.bf16.msra.mxu0 %v2748
        %3487 = vmatprep.subr.bf16.mxu0 %v2765
        %3488 = vmatpush1.bf16.msra.mxu0 %v2764
        %3489 = vmatprep.subr.bf16.mxu0 %v2781
        %3490 = vmatpush1.bf16.msra.mxu0 %v2780
        %3491 = vmatprep.subr.bf16.mxu0 %v2797
        %3492 = vmatpush1.bf16.msra.mxu0 %v2796
        %3493 = vmatprep.subr.bf16.mxu0 %v2813
        %3494 = vmatpush1.bf16.msra.mxu0 %v2812
        %3495 = vmatprep.subr.bf16.mxu0 %v2829
        %3496 = vmatpush1.bf16.msra.mxu0 %v2828
        %3497 = vmatprep.subr.bf16.mxu0 %v2845
        %3498 = vmatpush1.bf16.msra.mxu0 %v2844
        %3499 = vmatprep.subr.bf16.mxu0 %v2861
        %3500 = vmatpush1.bf16.msra.mxu0 %v2860
        %3501 = vmatprep.subr.bf16.mxu0 %v2877
        %3502 = vmatpush1.bf16.msra.mxu0 %v2876
        %3503 = vmatprep.subr.bf16.mxu0 %v2893
        %3504 = vmatpush1.bf16.msra.mxu0 %v2892
        %3505 = vmatprep.mubr.bf16.mxu0 %v847
        %3506 = vmatmul.mubr.bf16.gmra.mrb[0].mxu0 %v846
        %v3507 = vpop.f32.mrb[0].mxu0
        %v3508 = vadd.f32 %v3455, %v3507
        %v3509 = vpop.f32.mrb[0].mxu0
        %v3510 = vadd.f32 %v3457, %v3509
        %v3511 = vpop.f32.mrb[0].mxu0
        %v3512 = vadd.f32 %v3459, %v3511
        %v3513 = vpop.f32.mrb[0].mxu0
        %v3514 = vadd.f32 %v3461, %v3513
        %3515 = vmatprep.mubr.bf16.mxu0 %v851
        %3516 = vmatmul.mubr.bf16.gmra.mrb[0].mxu0 %v850
        %v3517 = vpop.f32.mrb[0].mxu0
        %v3518 = vadd.f32 %v3465, %v3517
        %v3519 = vpop.f32.mrb[0].mxu0
        %v3520 = vadd.f32 %v3467, %v3519
        %v3521 = vpop.f32.mrb[0].mxu0
        %v3522 = vadd.f32 %v3469, %v3521
        %v3523 = vpop.f32.mrb[0].mxu0
        %v3524 = vadd.f32 %v3471, %v3523
        %3525 = vdwg.mxu0
        %3526 = vmatprep.subr.bf16.mxu0 %v2399
        %3527 = vmatpush1.bf16.msra.mxu0 %v2398
        %3528 = vmatprep.subr.bf16.mxu0 %v2415
        %3529 = vmatpush1.bf16.msra.mxu0 %v2414
        %3530 = vmatprep.subr.bf16.mxu0 %v2431
        %3531 = vmatpush1.bf16.msra.mxu0 %v2430
        %3532 = vmatprep.subr.bf16.mxu0 %v2447
        %3533 = vmatpush1.bf16.msra.mxu0 %v2446
        %3534 = vmatprep.subr.bf16.mxu0 %v2463
        %3535 = vmatpush1.bf16.msra.mxu0 %v2462
        %3536 = vmatprep.subr.bf16.mxu0 %v2479
        %3537 = vmatpush1.bf16.msra.mxu0 %v2478
        %3538 = vmatprep.subr.bf16.mxu0 %v2495
        %3539 = vmatpush1.bf16.msra.mxu0 %v2494
        %3540 = vmatprep.subr.bf16.mxu0 %v2511
        %3541 = vmatpush1.bf16.msra.mxu0 %v2510
        %3542 = vmatprep.subr.bf16.mxu0 %v2527
        %3543 = vmatpush1.bf16.msra.mxu0 %v2526
        %3544 = vmatprep.subr.bf16.mxu0 %v2543
        %3545 = vmatpush1.bf16.msra.mxu0 %v2542
        %3546 = vmatprep.subr.bf16.mxu0 %v2559
        %3547 = vmatpush1.bf16.msra.mxu0 %v2558
        %3548 = vmatprep.subr.bf16.mxu0 %v2575
        %3549 = vmatpush1.bf16.msra.mxu0 %v2574
        %3550 = vmatprep.subr.bf16.mxu0 %v2591
        %3551 = vmatpush1.bf16.msra.mxu0 %v2590
        %3552 = vmatprep.subr.bf16.mxu0 %v2607
        %3553 = vmatpush1.bf16.msra.mxu0 %v2606
        %3554 = vmatprep.subr.bf16.mxu0 %v2623
        %3555 = vmatpush1.bf16.msra.mxu0 %v2622
        %3556 = vmatprep.subr.bf16.mxu0 %v2639
        %3557 = vmatpush1.bf16.msra.mxu0 %v2638
        %3558 = vmatprep.mubr.bf16.mxu0 %v845
        %3559 = vmatmul.mubr.bf16.gmra.mrb[0].mxu0 %v844
        %v3560 = vpop.f32.mrb[0].mxu0
        %v3561 = vadd.f32 0.0, %v3560
        %v3562 = vpop.f32.mrb[0].mxu0
        %v3563 = vadd.f32 0.0, %v3562
        %v3564 = vpop.f32.mrb[0].mxu0
        %v3565 = vadd.f32 0.0, %v3564
        %v3566 = vpop.f32.mrb[0].mxu0
        %v3567 = vadd.f32 0.0, %v3566
        %3568 = vmatprep.mubr.bf16.mxu0 %v849
        %3569 = vmatmul.mubr.bf16.gmra.mrb[0].mxu0 %v848
        %v3570 = vpop.f32.mrb[0].mxu0
        %v3571 = vadd.f32 0.0, %v3570
        %v3572 = vpop.f32.mrb[0].mxu0
        %v3573 = vadd.f32 0.0, %v3572
        %v3574 = vpop.f32.mrb[0].mxu0
        %v3575 = vadd.f32 0.0, %v3574
        %v3576 = vpop.f32.mrb[0].mxu0
        %v3577 = vadd.f32 0.0, %v3576
        %3578 = vdwg.mxu0
        %3579 = vmatprep.subr.bf16.mxu0 %v2655
        %3580 = vmatpush1.bf16.msra.mxu0 %v2654
        %3581 = vmatprep.subr.bf16.mxu0 %v2671
        %3582 = vmatpush1.bf16.msra.mxu0 %v2670
        %3583 = vmatprep.subr.bf16.mxu0 %v2687
        %3584 = vmatpush1.bf16.msra.mxu0 %v2686
        %3585 = vmatprep.subr.bf16.mxu0 %v2703
        %3586 = vmatpush1.bf16.msra.mxu0 %v2702
        %3587 = vmatprep.subr.bf16.mxu0 %v2719
        %3588 = vmatpush1.bf16.msra.mxu0 %v2718
        %3589 = vmatprep.subr.bf16.mxu0 %v2735
        %3590 = vmatpush1.bf16.msra.mxu0 %v2734
        %3591 = vmatprep.subr.bf16.mxu0 %v2751
        %3592 = vmatpush1.bf16.msra.mxu0 %v2750
        %3593 = vmatprep.subr.bf16.mxu0 %v2767
        %3594 = vmatpush1.bf16.msra.mxu0 %v2766
        %3595 = vmatprep.subr.bf16.mxu0 %v2783
        %3596 = vmatpush1.bf16.msra.mxu0 %v2782
        %3597 = vmatprep.subr.bf16.mxu0 %v2799
        %3598 = vmatpush1.bf16.msra.mxu0 %v2798
        %3599 = vmatprep.subr.bf16.mxu0 %v2815
        %3600 = vmatpush1.bf16.msra.mxu0 %v2814
        %3601 = vmatprep.subr.bf16.mxu0 %v2831
        %3602 = vmatpush1.bf16.msra.mxu0 %v2830
        %3603 = vmatprep.subr.bf16.mxu0 %v2847
        %3604 = vmatpush1.bf16.msra.mxu0 %v2846
        %3605 = vmatprep.subr.bf16.mxu0 %v2863
        %3606 = vmatpush1.bf16.msra.mxu0 %v2862
        %3607 = vmatprep.subr.bf16.mxu0 %v2879
        %3608 = vmatpush1.bf16.msra.mxu0 %v2878
        %3609 = vmatprep.subr.bf16.mxu0 %v2895
        %3610 = vmatpush1.bf16.msra.mxu0 %v2894
        %3611 = vmatprep.mubr.bf16.mxu0 %v847
        %3612 = vmatmul.mubr.bf16.gmra.mrb[0].mxu0 %v846
        %v3613 = vpop.f32.mrb[0].mxu0
        %v3614 = vadd.f32 %v3561, %v3613
        %v3615 = vpop.f32.mrb[0].mxu0
        %v3616 = vadd.f32 %v3563, %v3615
        %v3617 = vpop.f32.mrb[0].mxu0
        %v3618 = vadd.f32 %v3565, %v3617
        %v3619 = vpop.f32.mrb[0].mxu0
        %v3620 = vadd.f32 %v3567, %v3619
        %3621 = vmatprep.mubr.bf16.mxu0 %v851
        %3622 = vmatmul.mubr.bf16.gmra.mrb[0].mxu0 %v850
        %v3623 = vpop.f32.mrb[0].mxu0
        %v3624 = vadd.f32 %v3571, %v3623
        %v3625 = vpop.f32.mrb[0].mxu0
        %v3626 = vadd.f32 %v3573, %v3625
        %v3627 = vpop.f32.mrb[0].mxu0
        %v3628 = vadd.f32 %v3575, %v3627
        %v3629 = vpop.f32.mrb[0].mxu0
        %v3630 = vadd.f32 %v3577, %v3629
        %3631 = vdwg.mxu0
        %3632 = vmatprep.subr.bf16.mxu0 %v2401
        %3633 = vmatpush1.bf16.msra.mxu0 %v2400
        %3634 = vmatprep.subr.bf16.mxu0 %v2417
        %3635 = vmatpush1.bf16.msra.mxu0 %v2416
        %3636 = vmatprep.subr.bf16.mxu0 %v2433
        %3637 = vmatpush1.bf16.msra.mxu0 %v2432
        %3638 = vmatprep.subr.bf16.mxu0 %v2449
        %3639 = vmatpush1.bf16.msra.mxu0 %v2448
        %3640 = vmatprep.subr.bf16.mxu0 %v2465
        %3641 = vmatpush1.bf16.msra.mxu0 %v2464
        %3642 = vmatprep.subr.bf16.mxu0 %v2481
        %3643 = vmatpush1.bf16.msra.mxu0 %v2480
        %3644 = vmatprep.subr.bf16.mxu0 %v2497
        %3645 = vmatpush1.bf16.msra.mxu0 %v2496
        %3646 = vmatprep.subr.bf16.mxu0 %v2513
        %3647 = vmatpush1.bf16.msra.mxu0 %v2512
        %3648 = vmatprep.subr.bf16.mxu0 %v2529
        %3649 = vmatpush1.bf16.msra.mxu0 %v2528
        %3650 = vmatprep.subr.bf16.mxu0 %v2545
        %3651 = vmatpush1.bf16.msra.mxu0 %v2544
        %3652 = vmatprep.subr.bf16.mxu0 %v2561
        %3653 = vmatpush1.bf16.msra.mxu0 %v2560
        %3654 = vmatprep.subr.bf16.mxu0 %v2577
        %3655 = vmatpush1.bf16.msra.mxu0 %v2576
        %3656 = vmatprep.subr.bf16.mxu0 %v2593
        %3657 = vmatpush1.bf16.msra.mxu0 %v2592
        %3658 = vmatprep.subr.bf16.mxu0 %v2609
        %3659 = vmatpush1.bf16.msra.mxu0 %v2608
        %3660 = vmatprep.subr.bf16.mxu0 %v2625
        %3661 = vmatpush1.bf16.msra.mxu0 %v2624
        %3662 = vmatprep.subr.bf16.mxu0 %v2641
        %3663 = vmatpush1.bf16.msra.mxu0 %v2640
        %3664 = vmatprep.mubr.bf16.mxu0 %v845
        %3665 = vmatmul.mubr.bf16.gmra.mrb[0].mxu0 %v844
        %v3666 = vpop.f32.mrb[0].mxu0
        %v3667 = vadd.f32 0.0, %v3666
        %v3668 = vpop.f32.mrb[0].mxu0
        %v3669 = vadd.f32 0.0, %v3668
        %v3670 = vpop.f32.mrb[0].mxu0
        %v3671 = vadd.f32 0.0, %v3670
        %v3672 = vpop.f32.mrb[0].mxu0
        %v3673 = vadd.f32 0.0, %v3672
        %3674 = vmatprep.mubr.bf16.mxu0 %v849
        %3675 = vmatmul.mubr.bf16.gmra.mrb[0].mxu0 %v848
        %v3676 = vpop.f32.mrb[0].mxu0
        %v3677 = vadd.f32 0.0, %v3676
        %v3678 = vpop.f32.mrb[0].mxu0
        %v3679 = vadd.f32 0.0, %v3678
        %v3680 = vpop.f32.mrb[0].mxu0
        %v3681 = vadd.f32 0.0, %v3680
        %v3682 = vpop.f32.mrb[0].mxu0
        %v3683 = vadd.f32 0.0, %v3682
        %3684 = vdwg.mxu0
        %3685 = vmatprep.subr.bf16.mxu0 %v2657
        %3686 = vmatpush1.bf16.msra.mxu0 %v2656
        %3687 = vmatprep.subr.bf16.mxu0 %v2673
        %3688 = vmatpush1.bf16.msra.mxu0 %v2672
        %3689 = vmatprep.subr.bf16.mxu0 %v2689
        %3690 = vmatpush1.bf16.msra.mxu0 %v2688
        %3691 = vmatprep.subr.bf16.mxu0 %v2705
        %3692 = vmatpush1.bf16.msra.mxu0 %v2704
        %3693 = vmatprep.subr.bf16.mxu0 %v2721
        %3694 = vmatpush1.bf16.msra.mxu0 %v2720
        %3695 = vmatprep.subr.bf16.mxu0 %v2737
        %3696 = vmatpush1.bf16.msra.mxu0 %v2736
        %3697 = vmatprep.subr.bf16.mxu0 %v2753
        %3698 = vmatpush1.bf16.msra.mxu0 %v2752
        %3699 = vmatprep.subr.bf16.mxu0 %v2769
        %3700 = vmatpush1.bf16.msra.mxu0 %v2768
        %3701 = vmatprep.subr.bf16.mxu0 %v2785
        %3702 = vmatpush1.bf16.msra.mxu0 %v2784
        %3703 = vmatprep.subr.bf16.mxu0 %v2801
        %3704 = vmatpush1.bf16.msra.mxu0 %v2800
        %3705 = vmatprep.subr.bf16.mxu0 %v2817
        %3706 = vmatpush1.bf16.msra.mxu0 %v2816
        %3707 = vmatprep.subr.bf16.mxu0 %v2833
        %3708 = vmatpush1.bf16.msra.mxu0 %v2832
        %3709 = vmatprep.subr.bf16.mxu0 %v2849
        %3710 = vmatpush1.bf16.msra.mxu0 %v2848
        %3711 = vmatprep.subr.bf16.mxu0 %v2865
        %3712 = vmatpush1.bf16.msra.mxu0 %v2864
        %3713 = vmatprep.subr.bf16.mxu0 %v2881
        %3714 = vmatpush1.bf16.msra.mxu0 %v2880
        %3715 = vmatprep.subr.bf16.mxu0 %v2897
        %3716 = vmatpush1.bf16.msra.mxu0 %v2896
        %3717 = vmatprep.mubr.bf16.mxu0 %v847
        %3718 = vmatmul.mubr.bf16.gmra.mrb[0].mxu0 %v846
        %v3719 = vpop.f32.mrb[0].mxu0
        %v3720 = vadd.f32 %v3667, %v3719
        %v3721 = vpop.f32.mrb[0].mxu0
        %v3722 = vadd.f32 %v3669, %v3721
        %v3723 = vpop.f32.mrb[0].mxu0
        %v3724 = vadd.f32 %v3671, %v3723
        %v3725 = vpop.f32.mrb[0].mxu0
        %v3726 = vadd.f32 %v3673, %v3725
        %3727 = vmatprep.mubr.bf16.mxu0 %v851
        %3728 = vmatmul.mubr.bf16.gmra.mrb[0].mxu0 %v850
        %v3729 = vpop.f32.mrb[0].mxu0
        %v3730 = vadd.f32 %v3677, %v3729
        %v3731 = vpop.f32.mrb[0].mxu0
        %v3732 = vadd.f32 %v3679, %v3731
        %v3733 = vpop.f32.mrb[0].mxu0
        %v3734 = vadd.f32 %v3681, %v3733
        %v3735 = vpop.f32.mrb[0].mxu0
        %v3736 = vadd.f32 %v3683, %v3735
        %3737 = vdwg.mxu0
        %3738 = vmatprep.subr.bf16.mxu0 %v2403
        %3739 = vmatpush1.bf16.msra.mxu0 %v2402
        %3740 = vmatprep.subr.bf16.mxu0 %v2419
        %3741 = vmatpush1.bf16.msra.mxu0 %v2418
        %3742 = vmatprep.subr.bf16.mxu0 %v2435
        %3743 = vmatpush1.bf16.msra.mxu0 %v2434
        %3744 = vmatprep.subr.bf16.mxu0 %v2451
        %3745 = vmatpush1.bf16.msra.mxu0 %v2450
        %3746 = vmatprep.subr.bf16.mxu0 %v2467
        %3747 = vmatpush1.bf16.msra.mxu0 %v2466
        %3748 = vmatprep.subr.bf16.mxu0 %v2483
        %3749 = vmatpush1.bf16.msra.mxu0 %v2482
        %3750 = vmatprep.subr.bf16.mxu0 %v2499
        %3751 = vmatpush1.bf16.msra.mxu0 %v2498
        %3752 = vmatprep.subr.bf16.mxu0 %v2515
        %3753 = vmatpush1.bf16.msra.mxu0 %v2514
        %3754 = vmatprep.subr.bf16.mxu0 %v2531
        %3755 = vmatpush1.bf16.msra.mxu0 %v2530
        %3756 = vmatprep.subr.bf16.mxu0 %v2547
        %3757 = vmatpush1.bf16.msra.mxu0 %v2546
        %3758 = vmatprep.subr.bf16.mxu0 %v2563
        %3759 = vmatpush1.bf16.msra.mxu0 %v2562
        %3760 = vmatprep.subr.bf16.mxu0 %v2579
        %3761 = vmatpush1.bf16.msra.mxu0 %v2578
        %3762 = vmatprep.subr.bf16.mxu0 %v2595
        %3763 = vmatpush1.bf16.msra.mxu0 %v2594
        %3764 = vmatprep.subr.bf16.mxu0 %v2611
        %3765 = vmatpush1.bf16.msra.mxu0 %v2610
        %3766 = vmatprep.subr.bf16.mxu0 %v2627
        %3767 = vmatpush1.bf16.msra.mxu0 %v2626
        %3768 = vmatprep.subr.bf16.mxu0 %v2643
        %3769 = vmatpush1.bf16.msra.mxu0 %v2642
        %3770 = vmatprep.mubr.bf16.mxu0 %v845
        %3771 = vmatmul.mubr.bf16.gmra.mrb[0].mxu0 %v844
        %v3772 = vpop.f32.mrb[0].mxu0
        %v3773 = vadd.f32 0.0, %v3772
        %v3774 = vpop.f32.mrb[0].mxu0
        %v3775 = vadd.f32 0.0, %v3774
        %v3776 = vpop.f32.mrb[0].mxu0
        %v3777 = vadd.f32 0.0, %v3776
        %v3778 = vpop.f32.mrb[0].mxu0
        %v3779 = vadd.f32 0.0, %v3778
        %3780 = vmatprep.mubr.bf16.mxu0 %v849
        %3781 = vmatmul.mubr.bf16.gmra.mrb[0].mxu0 %v848
        %v3782 = vpop.f32.mrb[0].mxu0
        %v3783 = vadd.f32 0.0, %v3782
        %v3784 = vpop.f32.mrb[0].mxu0
        %v3785 = vadd.f32 0.0, %v3784
        %v3786 = vpop.f32.mrb[0].mxu0
        %v3787 = vadd.f32 0.0, %v3786
        %v3788 = vpop.f32.mrb[0].mxu0
        %v3789 = vadd.f32 0.0, %v3788
        %3790 = vdwg.mxu0
        %3791 = vmatprep.subr.bf16.mxu0 %v2659
        %3792 = vmatpush1.bf16.msra.mxu0 %v2658
        %3793 = vmatprep.subr.bf16.mxu0 %v2675
        %3794 = vmatpush1.bf16.msra.mxu0 %v2674
        %3795 = vmatprep.subr.bf16.mxu0 %v2691
        %3796 = vmatpush1.bf16.msra.mxu0 %v2690
        %3797 = vmatprep.subr.bf16.mxu0 %v2707
        %3798 = vmatpush1.bf16.msra.mxu0 %v2706
        %3799 = vmatprep.subr.bf16.mxu0 %v2723
        %3800 = vmatpush1.bf16.msra.mxu0 %v2722
        %3801 = vmatprep.subr.bf16.mxu0 %v2739
        %3802 = vmatpush1.bf16.msra.mxu0 %v2738
        %3803 = vmatprep.subr.bf16.mxu0 %v2755
        %3804 = vmatpush1.bf16.msra.mxu0 %v2754
        %3805 = vmatprep.subr.bf16.mxu0 %v2771
        %3806 = vmatpush1.bf16.msra.mxu0 %v2770
        %3807 = vmatprep.subr.bf16.mxu0 %v2787
        %3808 = vmatpush1.bf16.msra.mxu0 %v2786
        %3809 = vmatprep.subr.bf16.mxu0 %v2803
        %3810 = vmatpush1.bf16.msra.mxu0 %v2802
        %3811 = vmatprep.subr.bf16.mxu0 %v2819
        %3812 = vmatpush1.bf16.msra.mxu0 %v2818
        %3813 = vmatprep.subr.bf16.mxu0 %v2835
        %3814 = vmatpush1.bf16.msra.mxu0 %v2834
        %3815 = vmatprep.subr.bf16.mxu0 %v2851
        %3816 = vmatpush1.bf16.msra.mxu0 %v2850
        %3817 = vmatprep.subr.bf16.mxu0 %v2867
        %3818 = vmatpush1.bf16.msra.mxu0 %v2866
        %3819 = vmatprep.subr.bf16.mxu0 %v2883
        %3820 = vmatpush1.bf16.msra.mxu0 %v2882
        %3821 = vmatprep.subr.bf16.mxu0 %v2899
        %3822 = vmatpush1.bf16.msra.mxu0 %v2898
        %3823 = vmatprep.mubr.bf16.mxu0 %v847
        %3824 = vmatmul.mubr.bf16.gmra.mrb[0].mxu0 %v846
        %v3825 = vpop.f32.mrb[0].mxu0
        %v3826 = vadd.f32 %v3773, %v3825
        %v3827 = vpop.f32.mrb[0].mxu0
        %v3828 = vadd.f32 %v3775, %v3827
        %v3829 = vpop.f32.mrb[0].mxu0
        %v3830 = vadd.f32 %v3777, %v3829
        %v3831 = vpop.f32.mrb[0].mxu0
        %v3832 = vadd.f32 %v3779, %v3831
        %3833 = vmatprep.mubr.bf16.mxu0 %v851
        %3834 = vmatmul.mubr.bf16.gmra.mrb[0].mxu0 %v850
        %v3835 = vpop.f32.mrb[0].mxu0
        %v3836 = vadd.f32 %v3783, %v3835
        %v3837 = vpop.f32.mrb[0].mxu0
        %v3838 = vadd.f32 %v3785, %v3837
        %v3839 = vpop.f32.mrb[0].mxu0
        %v3840 = vadd.f32 %v3787, %v3839
        %v3841 = vpop.f32.mrb[0].mxu0
        %v3842 = vadd.f32 %v3789, %v3841
        %3843 = vdwg.mxu0
        %3844 = vmatprep.subr.bf16.mxu0 %v2405
        %3845 = vmatpush1.bf16.msra.mxu0 %v2404
        %3846 = vmatprep.subr.bf16.mxu0 %v2421
        %3847 = vmatpush1.bf16.msra.mxu0 %v2420
        %3848 = vmatprep.subr.bf16.mxu0 %v2437
        %3849 = vmatpush1.bf16.msra.mxu0 %v2436
        %3850 = vmatprep.subr.bf16.mxu0 %v2453
        %3851 = vmatpush1.bf16.msra.mxu0 %v2452
        %3852 = vmatprep.subr.bf16.mxu0 %v2469
        %3853 = vmatpush1.bf16.msra.mxu0 %v2468
        %3854 = vmatprep.subr.bf16.mxu0 %v2485
        %3855 = vmatpush1.bf16.msra.mxu0 %v2484
        %3856 = vmatprep.subr.bf16.mxu0 %v2501
        %3857 = vmatpush1.bf16.msra.mxu0 %v2500
        %3858 = vmatprep.subr.bf16.mxu0 %v2517
        %3859 = vmatpush1.bf16.msra.mxu0 %v2516
        %3860 = vmatprep.subr.bf16.mxu0 %v2533
        %3861 = vmatpush1.bf16.msra.mxu0 %v2532
        %3862 = vmatprep.subr.bf16.mxu0 %v2549
        %3863 = vmatpush1.bf16.msra.mxu0 %v2548
        %3864 = vmatprep.subr.bf16.mxu0 %v2565
        %3865 = vmatpush1.bf16.msra.mxu0 %v2564
        %3866 = vmatprep.subr.bf16.mxu0 %v2581
        %3867 = vmatpush1.bf16.msra.mxu0 %v2580
        %3868 = vmatprep.subr.bf16.mxu0 %v2597
        %3869 = vmatpush1.bf16.msra.mxu0 %v2596
        %3870 = vmatprep.subr.bf16.mxu0 %v2613
        %3871 = vmatpush1.bf16.msra.mxu0 %v2612
        %3872 = vmatprep.subr.bf16.mxu0 %v2629
        %3873 = vmatpush1.bf16.msra.mxu0 %v2628
        %3874 = vmatprep.subr.bf16.mxu0 %v2645
        %3875 = vmatpush1.bf16.msra.mxu0 %v2644
        %3876 = vmatprep.mubr.bf16.mxu0 %v845
        %3877 = vmatmul.mubr.bf16.gmra.mrb[0].mxu0 %v844
        %v3878 = vpop.f32.mrb[0].mxu0
        %v3879 = vadd.f32 0.0, %v3878
        %v3880 = vpop.f32.mrb[0].mxu0
        %v3881 = vadd.f32 0.0, %v3880
        %v3882 = vpop.f32.mrb[0].mxu0
        %v3883 = vadd.f32 0.0, %v3882
        %v3884 = vpop.f32.mrb[0].mxu0
        %v3885 = vadd.f32 0.0, %v3884
        %3886 = vmatprep.mubr.bf16.mxu0 %v849
        %3887 = vmatmul.mubr.bf16.gmra.mrb[0].mxu0 %v848
        %v3888 = vpop.f32.mrb[0].mxu0
        %v3889 = vadd.f32 0.0, %v3888
        %v3890 = vpop.f32.mrb[0].mxu0
        %v3891 = vadd.f32 0.0, %v3890
        %v3892 = vpop.f32.mrb[0].mxu0
        %v3893 = vadd.f32 0.0, %v3892
        %v3894 = vpop.f32.mrb[0].mxu0
        %v3895 = vadd.f32 0.0, %v3894
        %3896 = vdwg.mxu0
        %3897 = vmatprep.subr.bf16.mxu0 %v2661
        %3898 = vmatpush1.bf16.msra.mxu0 %v2660
        %3899 = vmatprep.subr.bf16.mxu0 %v2677
        %3900 = vmatpush1.bf16.msra.mxu0 %v2676
        %3901 = vmatprep.subr.bf16.mxu0 %v2693
        %3902 = vmatpush1.bf16.msra.mxu0 %v2692
        %3903 = vmatprep.subr.bf16.mxu0 %v2709
        %3904 = vmatpush1.bf16.msra.mxu0 %v2708
        %3905 = vmatprep.subr.bf16.mxu0 %v2725
        %3906 = vmatpush1.bf16.msra.mxu0 %v2724
        %3907 = vmatprep.subr.bf16.mxu0 %v2741
        %3908 = vmatpush1.bf16.msra.mxu0 %v2740
        %3909 = vmatprep.subr.bf16.mxu0 %v2757
        %3910 = vmatpush1.bf16.msra.mxu0 %v2756
        %3911 = vmatprep.subr.bf16.mxu0 %v2773
        %3912 = vmatpush1.bf16.msra.mxu0 %v2772
        %3913 = vmatprep.subr.bf16.mxu0 %v2789
        %3914 = vmatpush1.bf16.msra.mxu0 %v2788
        %3915 = vmatprep.subr.bf16.mxu0 %v2805
        %3916 = vmatpush1.bf16.msra.mxu0 %v2804
        %3917 = vmatprep.subr.bf16.mxu0 %v2821
        %3918 = vmatpush1.bf16.msra.mxu0 %v2820
        %3919 = vmatprep.subr.bf16.mxu0 %v2837
        %3920 = vmatpush1.bf16.msra.mxu0 %v2836
        %3921 = vmatprep.subr.bf16.mxu0 %v2853
        %3922 = vmatpush1.bf16.msra.mxu0 %v2852
        %3923 = vmatprep.subr.bf16.mxu0 %v2869
        %3924 = vmatpush1.bf16.msra.mxu0 %v2868
        %3925 = vmatprep.subr.bf16.mxu0 %v2885
        %3926 = vmatpush1.bf16.msra.mxu0 %v2884
        %3927 = vmatprep.subr.bf16.mxu0 %v2901
        %3928 = vmatpush1.bf16.msra.mxu0 %v2900
        %3929 = vmatprep.mubr.bf16.mxu0 %v847
        %3930 = vmatmul.mubr.bf16.gmra.mrb[0].mxu0 %v846
        %v3931 = vpop.f32.mrb[0].mxu0
        %v3932 = vadd.f32 %v3879, %v3931
        %v3933 = vpop.f32.mrb[0].mxu0
        %v3934 = vadd.f32 %v3881, %v3933
        %v3935 = vpop.f32.mrb[0].mxu0
        %v3936 = vadd.f32 %v3883, %v3935
        %v3937 = vpop.f32.mrb[0].mxu0
        %v3938 = vadd.f32 %v3885, %v3937
        %3939 = vmatprep.mubr.bf16.mxu0 %v851
        %3940 = vmatmul.mubr.bf16.gmra.mrb[0].mxu0 %v850
        %v3941 = vpop.f32.mrb[0].mxu0
        %v3942 = vadd.f32 %v3889, %v3941
        %v3943 = vpop.f32.mrb[0].mxu0
        %v3944 = vadd.f32 %v3891, %v3943
        %v3945 = vpop.f32.mrb[0].mxu0
        %v3946 = vadd.f32 %v3893, %v3945
        %v3947 = vpop.f32.mrb[0].mxu0
        %v3948 = vadd.f32 %v3895, %v3947
        %3949 = vdwg.mxu0
        %3950 = vmatprep.subr.bf16.mxu0 %v2407
        %3951 = vmatpush1.bf16.msra.mxu0 %v2406
        %3952 = vmatprep.subr.bf16.mxu0 %v2423
        %3953 = vmatpush1.bf16.msra.mxu0 %v2422
        %3954 = vmatprep.subr.bf16.mxu0 %v2439
        %3955 = vmatpush1.bf16.msra.mxu0 %v2438
        %3956 = vmatprep.subr.bf16.mxu0 %v2455
        %3957 = vmatpush1.bf16.msra.mxu0 %v2454
        %3958 = vmatprep.subr.bf16.mxu0 %v2471
        %3959 = vmatpush1.bf16.msra.mxu0 %v2470
        %3960 = vmatprep.subr.bf16.mxu0 %v2487
        %3961 = vmatpush1.bf16.msra.mxu0 %v2486
        %3962 = vmatprep.subr.bf16.mxu0 %v2503
        %3963 = vmatpush1.bf16.msra.mxu0 %v2502
        %3964 = vmatprep.subr.bf16.mxu0 %v2519
        %3965 = vmatpush1.bf16.msra.mxu0 %v2518
        %3966 = vmatprep.subr.bf16.mxu0 %v2535
        %3967 = vmatpush1.bf16.msra.mxu0 %v2534
        %3968 = vmatprep.subr.bf16.mxu0 %v2551
        %3969 = vmatpush1.bf16.msra.mxu0 %v2550
        %3970 = vmatprep.subr.bf16.mxu0 %v2567
        %3971 = vmatpush1.bf16.msra.mxu0 %v2566
        %3972 = vmatprep.subr.bf16.mxu0 %v2583
        %3973 = vmatpush1.bf16.msra.mxu0 %v2582
        %3974 = vmatprep.subr.bf16.mxu0 %v2599
        %3975 = vmatpush1.bf16.msra.mxu0 %v2598
        %3976 = vmatprep.subr.bf16.mxu0 %v2615
        %3977 = vmatpush1.bf16.msra.mxu0 %v2614
        %3978 = vmatprep.subr.bf16.mxu0 %v2631
        %3979 = vmatpush1.bf16.msra.mxu0 %v2630
        %3980 = vmatprep.subr.bf16.mxu0 %v2647
        %3981 = vmatpush1.bf16.msra.mxu0 %v2646
        %3982 = vmatprep.mubr.bf16.mxu0 %v845
        %3983 = vmatmul.mubr.bf16.gmra.mrb[0].mxu0 %v844
        %v3984 = vpop.f32.mrb[0].mxu0
        %v3985 = vadd.f32 0.0, %v3984
        %v3986 = vpop.f32.mrb[0].mxu0
        %v3987 = vadd.f32 0.0, %v3986
        %v3988 = vpop.f32.mrb[0].mxu0
        %v3989 = vadd.f32 0.0, %v3988
        %v3990 = vpop.f32.mrb[0].mxu0
        %v3991 = vadd.f32 0.0, %v3990
        %3992 = vmatprep.mubr.bf16.mxu0 %v849
        %3993 = vmatmul.mubr.bf16.gmra.mrb[0].mxu0 %v848
        %v3994 = vpop.f32.mrb[0].mxu0
        %v3995 = vadd.f32 0.0, %v3994
        %v3996 = vpop.f32.mrb[0].mxu0
        %v3997 = vadd.f32 0.0, %v3996
        %v3998 = vpop.f32.mrb[0].mxu0
        %v3999 = vadd.f32 0.0, %v3998
        %v4000 = vpop.f32.mrb[0].mxu0
        %v4001 = vadd.f32 0.0, %v4000
        %4002 = vdwg.mxu0
        %4003 = vmatprep.subr.bf16.mxu0 %v2663
        %4004 = vmatpush1.bf16.msra.mxu0 %v2662
        %4005 = vmatprep.subr.bf16.mxu0 %v2679
        %4006 = vmatpush1.bf16.msra.mxu0 %v2678
        %4007 = vmatprep.subr.bf16.mxu0 %v2695
        %4008 = vmatpush1.bf16.msra.mxu0 %v2694
        %4009 = vmatprep.subr.bf16.mxu0 %v2711
        %4010 = vmatpush1.bf16.msra.mxu0 %v2710
        %4011 = vmatprep.subr.bf16.mxu0 %v2727
        %4012 = vmatpush1.bf16.msra.mxu0 %v2726
        %4013 = vmatprep.subr.bf16.mxu0 %v2743
        %4014 = vmatpush1.bf16.msra.mxu0 %v2742
        %4015 = vmatprep.subr.bf16.mxu0 %v2759
        %4016 = vmatpush1.bf16.msra.mxu0 %v2758
        %4017 = vmatprep.subr.bf16.mxu0 %v2775
        %4018 = vmatpush1.bf16.msra.mxu0 %v2774
        %4019 = vmatprep.subr.bf16.mxu0 %v2791
        %4020 = vmatpush1.bf16.msra.mxu0 %v2790
        %4021 = vmatprep.subr.bf16.mxu0 %v2807
        %4022 = vmatpush1.bf16.msra.mxu0 %v2806
        %4023 = vmatprep.subr.bf16.mxu0 %v2823
        %4024 = vmatpush1.bf16.msra.mxu0 %v2822
        %4025 = vmatprep.subr.bf16.mxu0 %v2839
        %4026 = vmatpush1.bf16.msra.mxu0 %v2838
        %4027 = vmatprep.subr.bf16.mxu0 %v2855
        %4028 = vmatpush1.bf16.msra.mxu0 %v2854
        %4029 = vmatprep.subr.bf16.mxu0 %v2871
        %4030 = vmatpush1.bf16.msra.mxu0 %v2870
        %4031 = vmatprep.subr.bf16.mxu0 %v2887
        %4032 = vmatpush1.bf16.msra.mxu0 %v2886
        %4033 = vmatprep.subr.bf16.mxu0 %v2903
        %4034 = vmatpush1.bf16.msra.mxu0 %v2902
        %4035 = vmatprep.mubr.bf16.mxu0 %v847
        %4036 = vmatmul.mubr.bf16.gmra.mrb[0].mxu0 %v846
        %v4037 = vpop.f32.mrb[0].mxu0
        %v4038 = vadd.f32 %v3985, %v4037
        %v4039 = vpop.f32.mrb[0].mxu0
        %v4040 = vadd.f32 %v3987, %v4039
        %v4041 = vpop.f32.mrb[0].mxu0
        %v4042 = vadd.f32 %v3989, %v4041
        %v4043 = vpop.f32.mrb[0].mxu0
        %v4044 = vadd.f32 %v3991, %v4043
        %4045 = vmatprep.mubr.bf16.mxu0 %v851
        %4046 = vmatmul.mubr.bf16.gmra.mrb[0].mxu0 %v850
        %v4047 = vpop.f32.mrb[0].mxu0
        %v4048 = vadd.f32 %v3995, %v4047
        %v4049 = vpop.f32.mrb[0].mxu0
        %v4050 = vadd.f32 %v3997, %v4049
        %v4051 = vpop.f32.mrb[0].mxu0
        %v4052 = vadd.f32 %v3999, %v4051
        %v4053 = vpop.f32.mrb[0].mxu0
        %v4054 = vadd.f32 %v4001, %v4053
        %4055 = vdwg.mxu0
        %4056 = vmatprep.subr.bf16.mxu0 %v2409
        %4057 = vmatpush1.bf16.msra.mxu0 %v2408
        %4058 = vmatprep.subr.bf16.mxu0 %v2425
        %4059 = vmatpush1.bf16.msra.mxu0 %v2424
        %4060 = vmatprep.subr.bf16.mxu0 %v2441
        %4061 = vmatpush1.bf16.msra.mxu0 %v2440
        %4062 = vmatprep.subr.bf16.mxu0 %v2457
        %4063 = vmatpush1.bf16.msra.mxu0 %v2456
        %4064 = vmatprep.subr.bf16.mxu0 %v2473
        %4065 = vmatpush1.bf16.msra.mxu0 %v2472
        %4066 = vmatprep.subr.bf16.mxu0 %v2489
        %4067 = vmatpush1.bf16.msra.mxu0 %v2488
        %4068 = vmatprep.subr.bf16.mxu0 %v2505
        %4069 = vmatpush1.bf16.msra.mxu0 %v2504
        %4070 = vmatprep.subr.bf16.mxu0 %v2521
        %4071 = vmatpush1.bf16.msra.mxu0 %v2520
        %4072 = vmatprep.subr.bf16.mxu0 %v2537
        %4073 = vmatpush1.bf16.msra.mxu0 %v2536
        %4074 = vmatprep.subr.bf16.mxu0 %v2553
        %4075 = vmatpush1.bf16.msra.mxu0 %v2552
        %4076 = vmatprep.subr.bf16.mxu0 %v2569
        %4077 = vmatpush1.bf16.msra.mxu0 %v2568
        %4078 = vmatprep.subr.bf16.mxu0 %v2585
        %4079 = vmatpush1.bf16.msra.mxu0 %v2584
        %4080 = vmatprep.subr.bf16.mxu0 %v2601
        %4081 = vmatpush1.bf16.msra.mxu0 %v2600
        %4082 = vmatprep.subr.bf16.mxu0 %v2617
        %4083 = vmatpush1.bf16.msra.mxu0 %v2616
        %4084 = vmatprep.subr.bf16.mxu0 %v2633
        %4085 = vmatpush1.bf16.msra.mxu0 %v2632
        %4086 = vmatprep.subr.bf16.mxu0 %v2649
        %4087 = vmatpush1.bf16.msra.mxu0 %v2648
        %4088 = vmatprep.mubr.bf16.mxu0 %v845
        %4089 = vmatmul.mubr.bf16.gmra.mrb[0].mxu0 %v844
        %v4090 = vpop.f32.mrb[0].mxu0
        %v4091 = vadd.f32 0.0, %v4090
        %v4092 = vpop.f32.mrb[0].mxu0
        %v4093 = vadd.f32 0.0, %v4092
        %v4094 = vpop.f32.mrb[0].mxu0
        %v4095 = vadd.f32 0.0, %v4094
        %v4096 = vpop.f32.mrb[0].mxu0
        %v4097 = vadd.f32 0.0, %v4096
        %4098 = vmatprep.mubr.bf16.mxu0 %v849
        %4099 = vmatmul.mubr.bf16.gmra.mrb[0].mxu0 %v848
        %v4100 = vpop.f32.mrb[0].mxu0
        %v4101 = vadd.f32 0.0, %v4100
        %v4102 = vpop.f32.mrb[0].mxu0
        %v4103 = vadd.f32 0.0, %v4102
        %v4104 = vpop.f32.mrb[0].mxu0
        %v4105 = vadd.f32 0.0, %v4104
        %v4106 = vpop.f32.mrb[0].mxu0
        %v4107 = vadd.f32 0.0, %v4106
        %4108 = vdwg.mxu0
        %4109 = vmatprep.subr.bf16.mxu0 %v2665
        %4110 = vmatpush1.bf16.msra.mxu0 %v2664
        %4111 = vmatprep.subr.bf16.mxu0 %v2681
        %4112 = vmatpush1.bf16.msra.mxu0 %v2680
        %4113 = vmatprep.subr.bf16.mxu0 %v2697
        %4114 = vmatpush1.bf16.msra.mxu0 %v2696
        %4115 = vmatprep.subr.bf16.mxu0 %v2713
        %4116 = vmatpush1.bf16.msra.mxu0 %v2712
        %4117 = vmatprep.subr.bf16.mxu0 %v2729
        %4118 = vmatpush1.bf16.msra.mxu0 %v2728
        %4119 = vmatprep.subr.bf16.mxu0 %v2745
        %4120 = vmatpush1.bf16.msra.mxu0 %v2744
        %4121 = vmatprep.subr.bf16.mxu0 %v2761
        %4122 = vmatpush1.bf16.msra.mxu0 %v2760
        %4123 = vmatprep.subr.bf16.mxu0 %v2777
        %4124 = vmatpush1.bf16.msra.mxu0 %v2776
        %4125 = vmatprep.subr.bf16.mxu0 %v2793
        %4126 = vmatpush1.bf16.msra.mxu0 %v2792
        %4127 = vmatprep.subr.bf16.mxu0 %v2809
        %4128 = vmatpush1.bf16.msra.mxu0 %v2808
        %4129 = vmatprep.subr.bf16.mxu0 %v2825
        %4130 = vmatpush1.bf16.msra.mxu0 %v2824
        %4131 = vmatprep.subr.bf16.mxu0 %v2841
        %4132 = vmatpush1.bf16.msra.mxu0 %v2840
        %4133 = vmatprep.subr.bf16.mxu0 %v2857
        %4134 = vmatpush1.bf16.msra.mxu0 %v2856
        %4135 = vmatprep.subr.bf16.mxu0 %v2873
        %4136 = vmatpush1.bf16.msra.mxu0 %v2872
        %4137 = vmatprep.subr.bf16.mxu0 %v2889
        %4138 = vmatpush1.bf16.msra.mxu0 %v2888
        %4139 = vmatprep.subr.bf16.mxu0 %v2905
        %4140 = vmatpush1.bf16.msra.mxu0 %v2904
        %4141 = vmatprep.mubr.bf16.mxu0 %v847
        %4142 = vmatmul.mubr.bf16.gmra.mrb[0].mxu0 %v846
        %v4143 = vpop.f32.mrb[0].mxu0
        %v4144 = vadd.f32 %v4091, %v4143
        %v4145 = vpop.f32.mrb[0].mxu0
        %v4146 = vadd.f32 %v4093, %v4145
        %v4147 = vpop.f32.mrb[0].mxu0
        %v4148 = vadd.f32 %v4095, %v4147
        %v4149 = vpop.f32.mrb[0].mxu0
        %v4150 = vadd.f32 %v4097, %v4149
        %4151 = vmatprep.mubr.bf16.mxu0 %v851
        %4152 = vmatmul.mubr.bf16.gmra.mrb[0].mxu0 %v850
        %v4153 = vpop.f32.mrb[0].mxu0
        %v4154 = vadd.f32 %v4101, %v4153
        %v4155 = vpop.f32.mrb[0].mxu0
        %v4156 = vadd.f32 %v4103, %v4155
        %v4157 = vpop.f32.mrb[0].mxu0
        %v4158 = vadd.f32 %v4105, %v4157
        %v4159 = vpop.f32.mrb[0].mxu0
        %v4160 = vadd.f32 %v4107, %v4159
        %4161 = vdwg.mxu0
        %4162 = vmatprep.subr.bf16.mxu0 %v2411
        %4163 = vmatpush1.bf16.msra.mxu0 %v2410
        %4164 = vmatprep.subr.bf16.mxu0 %v2427
        %4165 = vmatpush1.bf16.msra.mxu0 %v2426
        %4166 = vmatprep.subr.bf16.mxu0 %v2443
        %4167 = vmatpush1.bf16.msra.mxu0 %v2442
        %4168 = vmatprep.subr.bf16.mxu0 %v2459
        %4169 = vmatpush1.bf16.msra.mxu0 %v2458
        %4170 = vmatprep.subr.bf16.mxu0 %v2475
        %4171 = vmatpush1.bf16.msra.mxu0 %v2474
        %4172 = vmatprep.subr.bf16.mxu0 %v2491
        %4173 = vmatpush1.bf16.msra.mxu0 %v2490
        %4174 = vmatprep.subr.bf16.mxu0 %v2507
        %4175 = vmatpush1.bf16.msra.mxu0 %v2506
        %4176 = vmatprep.subr.bf16.mxu0 %v2523
        %4177 = vmatpush1.bf16.msra.mxu0 %v2522
        %4178 = vmatprep.subr.bf16.mxu0 %v2539
        %4179 = vmatpush1.bf16.msra.mxu0 %v2538
        %4180 = vmatprep.subr.bf16.mxu0 %v2555
        %4181 = vmatpush1.bf16.msra.mxu0 %v2554
        %4182 = vmatprep.subr.bf16.mxu0 %v2571
        %4183 = vmatpush1.bf16.msra.mxu0 %v2570
        %4184 = vmatprep.subr.bf16.mxu0 %v2587
        %4185 = vmatpush1.bf16.msra.mxu0 %v2586
        %4186 = vmatprep.subr.bf16.mxu0 %v2603
        %4187 = vmatpush1.bf16.msra.mxu0 %v2602
        %4188 = vmatprep.subr.bf16.mxu0 %v2619
        %4189 = vmatpush1.bf16.msra.mxu0 %v2618
        %4190 = vmatprep.subr.bf16.mxu0 %v2635
        %4191 = vmatpush1.bf16.msra.mxu0 %v2634
        %4192 = vmatprep.subr.bf16.mxu0 %v2651
        %4193 = vmatpush1.bf16.msra.mxu0 %v2650
        %4194 = vmatprep.mubr.bf16.mxu0 %v845
        %4195 = vmatmul.mubr.bf16.gmra.mrb[0].mxu0 %v844
        %v4196 = vpop.f32.mrb[0].mxu0
        %v4197 = vadd.f32 0.0, %v4196
        %v4198 = vpop.f32.mrb[0].mxu0
        %v4199 = vadd.f32 0.0, %v4198
        %v4200 = vpop.f32.mrb[0].mxu0
        %v4201 = vadd.f32 0.0, %v4200
        %v4202 = vpop.f32.mrb[0].mxu0
        %v4203 = vadd.f32 0.0, %v4202
        %4204 = vmatprep.mubr.bf16.mxu0 %v849
        %4205 = vmatmul.mubr.bf16.gmra.mrb[0].mxu0 %v848
        %v4206 = vpop.f32.mrb[0].mxu0
        %v4207 = vadd.f32 0.0, %v4206
        %v4208 = vpop.f32.mrb[0].mxu0
        %v4209 = vadd.f32 0.0, %v4208
        %v4210 = vpop.f32.mrb[0].mxu0
        %v4211 = vadd.f32 0.0, %v4210
        %v4212 = vpop.f32.mrb[0].mxu0
        %v4213 = vadd.f32 0.0, %v4212
        %4214 = vdwg.mxu0
        %4215 = vmatprep.subr.bf16.mxu0 %v2667
        %4216 = vmatpush1.bf16.msra.mxu0 %v2666
        %4217 = vmatprep.subr.bf16.mxu0 %v2683
        %4218 = vmatpush1.bf16.msra.mxu0 %v2682
        %4219 = vmatprep.subr.bf16.mxu0 %v2699
        %4220 = vmatpush1.bf16.msra.mxu0 %v2698
        %4221 = vmatprep.subr.bf16.mxu0 %v2715
        %4222 = vmatpush1.bf16.msra.mxu0 %v2714
        %4223 = vmatprep.subr.bf16.mxu0 %v2731
        %4224 = vmatpush1.bf16.msra.mxu0 %v2730
        %4225 = vmatprep.subr.bf16.mxu0 %v2747
        %4226 = vmatpush1.bf16.msra.mxu0 %v2746
        %4227 = vmatprep.subr.bf16.mxu0 %v2763
        %4228 = vmatpush1.bf16.msra.mxu0 %v2762
        %4229 = vmatprep.subr.bf16.mxu0 %v2779
        %4230 = vmatpush1.bf16.msra.mxu0 %v2778
        %4231 = vmatprep.subr.bf16.mxu0 %v2795
        %4232 = vmatpush1.bf16.msra.mxu0 %v2794
        %4233 = vmatprep.subr.bf16.mxu0 %v2811
        %4234 = vmatpush1.bf16.msra.mxu0 %v2810
        %4235 = vmatprep.subr.bf16.mxu0 %v2827
        %4236 = vmatpush1.bf16.msra.mxu0 %v2826
        %4237 = vmatprep.subr.bf16.mxu0 %v2843
        %4238 = vmatpush1.bf16.msra.mxu0 %v2842
        %4239 = vmatprep.subr.bf16.mxu0 %v2859
        %4240 = vmatpush1.bf16.msra.mxu0 %v2858
        %4241 = vmatprep.subr.bf16.mxu0 %v2875
        %4242 = vmatpush1.bf16.msra.mxu0 %v2874
        %4243 = vmatprep.subr.bf16.mxu0 %v2891
        %4244 = vmatpush1.bf16.msra.mxu0 %v2890
        %4245 = vmatprep.subr.bf16.mxu0 %v2907
        %4246 = vmatpush1.bf16.msra.mxu0 %v2906
        %4247 = vmatprep.mubr.bf16.mxu0 %v847
        %4248 = vmatmul.mubr.bf16.gmra.mrb[0].mxu0 %v846
        %v4249 = vpop.f32.mrb[0].mxu0
        %v4250 = vadd.f32 %v4197, %v4249
        %v4251 = vpop.f32.mrb[0].mxu0
        %v4252 = vadd.f32 %v4199, %v4251
        %v4253 = vpop.f32.mrb[0].mxu0
        %v4254 = vadd.f32 %v4201, %v4253
        %v4255 = vpop.f32.mrb[0].mxu0
        %v4256 = vadd.f32 %v4203, %v4255
        %4257 = vmatprep.mubr.bf16.mxu0 %v851
        %4258 = vmatmul.mubr.bf16.gmra.mrb[0].mxu0 %v850
        %v4259 = vpop.f32.mrb[0].mxu0
        %v4260 = vadd.f32 %v4207, %v4259
        %v4261 = vpop.f32.mrb[0].mxu0
        %v4262 = vadd.f32 %v4209, %v4261
        %v4263 = vpop.f32.mrb[0].mxu0
        %v4264 = vadd.f32 %v4211, %v4263
        %v4265 = vpop.f32.mrb[0].mxu0
        %v4266 = vadd.f32 %v4213, %v4265
        %4267 = vdwg.mxu0
        %v4268 = vadd.f32 %v236, %v3508
        %v4269 = vadd.f32 %v237, %v3510
        %v4270 = vadd.f32 %v238, %v3614
        %v4271 = vadd.f32 %v239, %v3616
        %v4272 = vadd.f32 %v240, %v3720
        %v4273 = vadd.f32 %v241, %v3722
        %v4274 = vadd.f32 %v242, %v3826
        %v4275 = vadd.f32 %v243, %v3828
        %v4276 = vadd.f32 %v244, %v3932
        %v4277 = vadd.f32 %v245, %v3934
        %v4278 = vadd.f32 %v246, %v4038
        %v4279 = vadd.f32 %v247, %v4040
        %v4280 = vadd.f32 %v248, %v4144
        %v4281 = vadd.f32 %v249, %v4146
        %v4282 = vadd.f32 %v250, %v4250
        %v4283 = vadd.f32 %v251, %v4252
        %v4284 = vadd.f32 %v252, %v3512
        %v4285 = vadd.f32 %v253, %v3514
        %v4286 = vadd.f32 %v254, %v3618
        %v4287 = vadd.f32 %v255, %v3620
        %v4288 = vadd.f32 %v256, %v3724
        %v4289 = vadd.f32 %v257, %v3726
        %v4290 = vadd.f32 %v258, %v3830
        %v4291 = vadd.f32 %v259, %v3832
        %v4292 = vadd.f32 %v260, %v3936
        %v4293 = vadd.f32 %v261, %v3938
        %v4294 = vadd.f32 %v262, %v4042
        %v4295 = vadd.f32 %v263, %v4044
        %v4296 = vadd.f32 %v264, %v4148
        %v4297 = vadd.f32 %v265, %v4150
        %v4298 = vadd.f32 %v266, %v4254
        %v4299 = vadd.f32 %v267, %v4256
        %v4300 = vadd.f32 %v268, %v3518
        %v4301 = vadd.f32 %v269, %v3520
        %v4302 = vadd.f32 %v270, %v3624
        %v4303 = vadd.f32 %v271, %v3626
        %v4304 = vadd.f32 %v272, %v3730
        %v4305 = vadd.f32 %v273, %v3732
        %v4306 = vadd.f32 %v274, %v3836
        %v4307 = vadd.f32 %v275, %v3838
        %v4308 = vadd.f32 %v276, %v3942
        %v4309 = vadd.f32 %v277, %v3944
        %v4310 = vadd.f32 %v278, %v4048
        %v4311 = vadd.f32 %v279, %v4050
        %v4312 = vadd.f32 %v280, %v4154
        %v4313 = vadd.f32 %v281, %v4156
        %v4314 = vadd.f32 %v282, %v4260
        %v4315 = vadd.f32 %v283, %v4262
        %v4316 = vadd.f32 %v284, %v3522
        %v4317 = vadd.f32 %v285, %v3524
        %v4318 = vadd.f32 %v286, %v3628
        %v4319 = vadd.f32 %v287, %v3630
        %v4320 = vadd.f32 %v288, %v3734
        %v4321 = vadd.f32 %v289, %v3736
        %v4322 = vadd.f32 %v290, %v3840
        %v4323 = vadd.f32 %v291, %v3842
        %v4324 = vadd.f32 %v292, %v3946
        %v4325 = vadd.f32 %v293, %v3948
        %v4326 = vadd.f32 %v294, %v4052
        %v4327 = vadd.f32 %v295, %v4054
        %v4328 = vadd.f32 %v296, %v4158
        %v4329 = vadd.f32 %v297, %v4160
        %v4330 = vadd.f32 %v298, %v4264
        %v4331 = vadd.f32 %v299, %v4266
        %v4332 = vld [vmem:[#allocation2] sm:$0xff]
        %v4333 = vld [vmem:[#allocation2 + $0x8] sm:$0xff]
        %v4334 = vld [vmem:[#allocation2 + $0x10] sm:$0xff]
        %v4335 = vld [vmem:[#allocation2 + $0x18] sm:$0xff]
        %v4336 = vld [vmem:[#allocation2 + $0x20] sm:$0x11]
        %v4337 = vld [vmem:[#allocation2 + $0x28] sm:$0x11]
        %v4338 = vld [vmem:[#allocation2 + $0x30] sm:$0xff]
        %v4339 = vld [vmem:[#allocation2 + $0x38] sm:$0xff]
        %v4340 = vld [vmem:[#allocation2 + $0x40] sm:$0xff]
        %v4341 = vld [vmem:[#allocation2 + $0x48] sm:$0xff]
        %v4342 = vld [vmem:[#allocation2 + $0x50] sm:$0x11]
        %v4343 = vld [vmem:[#allocation2 + $0x58] sm:$0x11]
        %vm4344 = vsmask.f32 3328
        %vm4345 = vsmask.f32 7440
        %vm4346 = vmor %vm4344, %vm4345
        %v4348 = vshrl.u32 %v4332, 16
        %v4350 = vrot.slane %v4348, 4
        %v4351 = vshll.u32 %v4332, 16
        %v4353 = vrot.slane %v4351, 5
        %v4354 = vor.u32 %v4350, %v4353
        %v4355 = vrot.slane %v4354, 4
        %v4357 = vshll.u32 %v4334, 16
        %v4359 = vrot.slane %v4357, 5
        %v4360 = vsel %vm4346, %v4355, %v4359
        %v4362 = vshrl.u32 %v4333, 16
        %v4364 = vrot.slane %v4362, 4
        %v4365 = vshll.u32 %v4333, 16
        %v4367 = vrot.slane %v4365, 5
        %v4368 = vor.u32 %v4364, %v4367
        %v4369 = vrot.slane %v4368, 4
        %v4371 = vshll.u32 %v4335, 16
        %v4373 = vrot.slane %v4371, 5
        %v4374 = vsel %vm4346, %v4369, %v4373
        %v4375 = vshrl.u32 %v4334, 16
        %v4377 = vrot.slane %v4375, 4
        %v4378 = vor.u32 %v4377, %v4359
        %v4379 = vrot.slane %v4378, 4
        %v4381 = vshll.u32 %v4336, 16
        %v4383 = vrot.slane %v4381, 5
        %v4384 = vsel %vm4346, %v4379, %v4383
        %v4385 = vshrl.u32 %v4335, 16
        %v4387 = vrot.slane %v4385, 4
        %v4388 = vor.u32 %v4387, %v4373
        %v4389 = vrot.slane %v4388, 4
        %v4391 = vshll.u32 %v4337, 16
        %v4393 = vrot.slane %v4391, 5
        %v4394 = vsel %vm4346, %v4389, %v4393
        %v4396 = vshrl.u32 %v4338, 16
        %v4398 = vrot.slane %v4396, 4
        %v4399 = vshll.u32 %v4338, 16
        %v4401 = vrot.slane %v4399, 5
        %v4402 = vor.u32 %v4398, %v4401
        %v4403 = vrot.slane %v4402, 4
        %v4405 = vshll.u32 %v4340, 16
        %v4407 = vrot.slane %v4405, 5
        %v4408 = vsel %vm4346, %v4403, %v4407
        %v4410 = vshrl.u32 %v4339, 16
        %v4412 = vrot.slane %v4410, 4
        %v4413 = vshll.u32 %v4339, 16
        %v4415 = vrot.slane %v4413, 5
        %v4416 = vor.u32 %v4412, %v4415
        %v4417 = vrot.slane %v4416, 4
        %v4419 = vshll.u32 %v4341, 16
        %v4421 = vrot.slane %v4419, 5
        %v4422 = vsel %vm4346, %v4417, %v4421
        %v4423 = vshrl.u32 %v4340, 16
        %v4425 = vrot.slane %v4423, 4
        %v4426 = vor.u32 %v4425, %v4407
        %v4427 = vrot.slane %v4426, 4
        %v4429 = vshll.u32 %v4342, 16
        %v4431 = vrot.slane %v4429, 5
        %v4432 = vsel %vm4346, %v4427, %v4431
        %v4433 = vshrl.u32 %v4341, 16
        %v4435 = vrot.slane %v4433, 4
        %v4436 = vor.u32 %v4435, %v4421
        %v4437 = vrot.slane %v4436, 4
        %v4439 = vshll.u32 %v4343, 16
        %v4441 = vrot.slane %v4439, 5
        %v4442 = vsel %vm4346, %v4437, %v4441
        %s4443 = scalar_lea.vmem [#allocation6], 4096
        %v4444 = vld [vmem:[%s4443] sm:$0xff]
        %v4445 = vld [vmem:[%s4443 + $0x8] sm:$0xff]
        %v4446 = vld [vmem:[%s4443 + $0x10] sm:$0xff]
        %v4447 = vld [vmem:[%s4443 + $0x18] sm:$0xff]
        %v4448 = vld [vmem:[%s4443 + $0x20] sm:$0xff]
        %v4449 = vld [vmem:[%s4443 + $0x28] sm:$0xff]
        %v4450 = vld [vmem:[%s4443 + $0x30] sm:$0xff]
        %v4451 = vld [vmem:[%s4443 + $0x38] sm:$0xff]
        %v4452 = vld [vmem:[%s4443 + $0x40] sm:$0xff]
        %v4453 = vld [vmem:[%s4443 + $0x48] sm:$0xff]
        %v4454 = vld [vmem:[%s4443 + $0x50] sm:$0xff]
        %v4455 = vld [vmem:[%s4443 + $0x58] sm:$0xff]
        %v4456 = vld [vmem:[%s4443 + $0x60] sm:$0xff]
        %v4457 = vld [vmem:[%s4443 + $0x68] sm:$0xff]
        %v4458 = vld [vmem:[%s4443 + $0x70] sm:$0xff]
        %v4459 = vld [vmem:[%s4443 + $0x78] sm:$0xff]
        %v4460 = vld [vmem:[%s4443 + $0x80] sm:$0xff]
        %v4461 = vld [vmem:[%s4443 + $0x88] sm:$0xff]
        %v4462 = vld [vmem:[%s4443 + $0x90] sm:$0xff]
        %v4463 = vld [vmem:[%s4443 + $0x98] sm:$0xff]
        %v4464 = vld [vmem:[%s4443 + $0xa0] sm:$0xff]
        %v4465 = vld [vmem:[%s4443 + $0xa8] sm:$0xff]
        %v4466 = vld [vmem:[%s4443 + $0xb0] sm:$0xff]
        %v4467 = vld [vmem:[%s4443 + $0xb8] sm:$0xff]
        %v4468 = vld [vmem:[%s4443 + $0xc0] sm:$0xff]
        %v4469 = vld [vmem:[%s4443 + $0xc8] sm:$0xff]
        %v4470 = vld [vmem:[%s4443 + $0xd0] sm:$0xff]
        %v4471 = vld [vmem:[%s4443 + $0xd8] sm:$0xff]
        %v4472 = vld [vmem:[%s4443 + $0xe0] sm:$0xff]
        %v4473 = vld [vmem:[%s4443 + $0xe8] sm:$0xff]
        %v4474 = vld [vmem:[%s4443 + $0xf0] sm:$0xff]
        %v4475 = vld [vmem:[%s4443 + $0xf8] sm:$0xff]
        %v4476 = vld [vmem:[%s4443 + $0x100] sm:$0xff]
        %v4477 = vld [vmem:[%s4443 + $0x108] sm:$0xff]
        %v4478 = vld [vmem:[%s4443 + $0x110] sm:$0xff]
        %v4479 = vld [vmem:[%s4443 + $0x118] sm:$0xff]
        %v4480 = vld [vmem:[%s4443 + $0x120] sm:$0xff]
        %v4481 = vld [vmem:[%s4443 + $0x128] sm:$0xff]
        %v4482 = vld [vmem:[%s4443 + $0x130] sm:$0xff]
        %v4483 = vld [vmem:[%s4443 + $0x138] sm:$0xff]
        %v4484 = vld [vmem:[%s4443 + $0x140] sm:$0xff]
        %v4485 = vld [vmem:[%s4443 + $0x148] sm:$0xff]
        %v4486 = vld [vmem:[%s4443 + $0x150] sm:$0xff]
        %v4487 = vld [vmem:[%s4443 + $0x158] sm:$0xff]
        %v4488 = vld [vmem:[%s4443 + $0x160] sm:$0xff]
        %v4489 = vld [vmem:[%s4443 + $0x168] sm:$0xff]
        %v4490 = vld [vmem:[%s4443 + $0x170] sm:$0xff]
        %v4491 = vld [vmem:[%s4443 + $0x178] sm:$0xff]
        %v4492 = vld [vmem:[%s4443 + $0x180] sm:$0xff]
        %v4493 = vld [vmem:[%s4443 + $0x188] sm:$0xff]
        %v4494 = vld [vmem:[%s4443 + $0x190] sm:$0xff]
        %v4495 = vld [vmem:[%s4443 + $0x198] sm:$0xff]
        %v4496 = vld [vmem:[%s4443 + $0x1a0] sm:$0xff]
        %v4497 = vld [vmem:[%s4443 + $0x1a8] sm:$0xff]
        %v4498 = vld [vmem:[%s4443 + $0x1b0] sm:$0xff]
        %v4499 = vld [vmem:[%s4443 + $0x1b8] sm:$0xff]
        %v4500 = vld [vmem:[%s4443 + $0x1c0] sm:$0xff]
        %v4501 = vld [vmem:[%s4443 + $0x1c8] sm:$0xff]
        %v4502 = vld [vmem:[%s4443 + $0x1d0] sm:$0xff]
        %v4503 = vld [vmem:[%s4443 + $0x1d8] sm:$0xff]
        %v4504 = vld [vmem:[%s4443 + $0x1e0] sm:$0xff]
        %v4505 = vld [vmem:[%s4443 + $0x1e8] sm:$0xff]
        %v4506 = vld [vmem:[%s4443 + $0x1f0] sm:$0xff]
        %v4507 = vld [vmem:[%s4443 + $0x1f8] sm:$0xff]
        %v4508 = vld [vmem:[%s4443 + $0x200] sm:$0xff]
        %v4509 = vld [vmem:[%s4443 + $0x208] sm:$0xff]
        %v4510 = vld [vmem:[%s4443 + $0x210] sm:$0xff]
        %v4511 = vld [vmem:[%s4443 + $0x218] sm:$0xff]
        %v4512 = vld [vmem:[%s4443 + $0x220] sm:$0xff]
        %v4513 = vld [vmem:[%s4443 + $0x228] sm:$0xff]
        %v4514 = vld [vmem:[%s4443 + $0x230] sm:$0xff]
        %v4515 = vld [vmem:[%s4443 + $0x238] sm:$0xff]
        %v4516 = vld [vmem:[%s4443 + $0x240] sm:$0xff]
        %v4517 = vld [vmem:[%s4443 + $0x248] sm:$0xff]
        %v4518 = vld [vmem:[%s4443 + $0x250] sm:$0xff]
        %v4519 = vld [vmem:[%s4443 + $0x258] sm:$0xff]
        %v4520 = vld [vmem:[%s4443 + $0x260] sm:$0xff]
        %v4521 = vld [vmem:[%s4443 + $0x268] sm:$0xff]
        %v4522 = vld [vmem:[%s4443 + $0x270] sm:$0xff]
        %v4523 = vld [vmem:[%s4443 + $0x278] sm:$0xff]
        %v4524 = vld [vmem:[%s4443 + $0x280] sm:$0xff]
        %v4525 = vld [vmem:[%s4443 + $0x288] sm:$0xff]
        %v4526 = vld [vmem:[%s4443 + $0x290] sm:$0xff]
        %v4527 = vld [vmem:[%s4443 + $0x298] sm:$0xff]
        %v4528 = vld [vmem:[%s4443 + $0x2a0] sm:$0xff]
        %v4529 = vld [vmem:[%s4443 + $0x2a8] sm:$0xff]
        %v4530 = vld [vmem:[%s4443 + $0x2b0] sm:$0xff]
        %v4531 = vld [vmem:[%s4443 + $0x2b8] sm:$0xff]
        %v4532 = vld [vmem:[%s4443 + $0x2c0] sm:$0xff]
        %v4533 = vld [vmem:[%s4443 + $0x2c8] sm:$0xff]
        %v4534 = vld [vmem:[%s4443 + $0x2d0] sm:$0xff]
        %v4535 = vld [vmem:[%s4443 + $0x2d8] sm:$0xff]
        %v4536 = vld [vmem:[%s4443 + $0x2e0] sm:$0xff]
        %v4537 = vld [vmem:[%s4443 + $0x2e8] sm:$0xff]
        %v4538 = vld [vmem:[%s4443 + $0x2f0] sm:$0xff]
        %v4539 = vld [vmem:[%s4443 + $0x2f8] sm:$0xff]
        %v4540 = vld [vmem:[%s4443 + $0x300] sm:$0xff]
        %v4541 = vld [vmem:[%s4443 + $0x308] sm:$0xff]
        %v4542 = vld [vmem:[%s4443 + $0x310] sm:$0xff]
        %v4543 = vld [vmem:[%s4443 + $0x318] sm:$0xff]
        %v4544 = vld [vmem:[%s4443 + $0x320] sm:$0xff]
        %v4545 = vld [vmem:[%s4443 + $0x328] sm:$0xff]
        %v4546 = vld [vmem:[%s4443 + $0x330] sm:$0xff]
        %v4547 = vld [vmem:[%s4443 + $0x338] sm:$0xff]
        %v4548 = vld [vmem:[%s4443 + $0x340] sm:$0xff]
        %v4549 = vld [vmem:[%s4443 + $0x348] sm:$0xff]
        %v4550 = vld [vmem:[%s4443 + $0x350] sm:$0xff]
        %v4551 = vld [vmem:[%s4443 + $0x358] sm:$0xff]
        %v4552 = vld [vmem:[%s4443 + $0x360] sm:$0xff]
        %v4553 = vld [vmem:[%s4443 + $0x368] sm:$0xff]
        %v4554 = vld [vmem:[%s4443 + $0x370] sm:$0xff]
        %v4555 = vld [vmem:[%s4443 + $0x378] sm:$0xff]
        %v4556 = vld [vmem:[%s4443 + $0x380] sm:$0xff]
        %v4557 = vld [vmem:[%s4443 + $0x388] sm:$0xff]
        %v4558 = vld [vmem:[%s4443 + $0x390] sm:$0xff]
        %v4559 = vld [vmem:[%s4443 + $0x398] sm:$0xff]
        %v4560 = vld [vmem:[%s4443 + $0x3a0] sm:$0xff]
        %v4561 = vld [vmem:[%s4443 + $0x3a8] sm:$0xff]
        %v4562 = vld [vmem:[%s4443 + $0x3b0] sm:$0xff]
        %v4563 = vld [vmem:[%s4443 + $0x3b8] sm:$0xff]
        %v4564 = vld [vmem:[%s4443 + $0x3c0] sm:$0xff]
        %v4565 = vld [vmem:[%s4443 + $0x3c8] sm:$0xff]
        %v4566 = vld [vmem:[%s4443 + $0x3d0] sm:$0xff]
        %v4567 = vld [vmem:[%s4443 + $0x3d8] sm:$0xff]
        %v4568 = vld [vmem:[%s4443 + $0x3e0] sm:$0xff]
        %v4569 = vld [vmem:[%s4443 + $0x3e8] sm:$0xff]
        %v4570 = vld [vmem:[%s4443 + $0x3f0] sm:$0xff]
        %v4571 = vld [vmem:[%s4443 + $0x3f8] sm:$0xff]
        %v4572 = vld [vmem:[%s4443 + $0x400] sm:$0xff]
        %v4573 = vld [vmem:[%s4443 + $0x408] sm:$0xff]
        %v4574 = vld [vmem:[%s4443 + $0x410] sm:$0xff]
        %v4575 = vld [vmem:[%s4443 + $0x418] sm:$0xff]
        %v4576 = vld [vmem:[%s4443 + $0x420] sm:$0xff]
        %v4577 = vld [vmem:[%s4443 + $0x428] sm:$0xff]
        %v4578 = vld [vmem:[%s4443 + $0x430] sm:$0xff]
        %v4579 = vld [vmem:[%s4443 + $0x438] sm:$0xff]
        %v4580 = vld [vmem:[%s4443 + $0x440] sm:$0xff]
        %v4581 = vld [vmem:[%s4443 + $0x448] sm:$0xff]
        %v4582 = vld [vmem:[%s4443 + $0x450] sm:$0xff]
        %v4583 = vld [vmem:[%s4443 + $0x458] sm:$0xff]
        %v4584 = vld [vmem:[%s4443 + $0x460] sm:$0xff]
        %v4585 = vld [vmem:[%s4443 + $0x468] sm:$0xff]
        %v4586 = vld [vmem:[%s4443 + $0x470] sm:$0xff]
        %v4587 = vld [vmem:[%s4443 + $0x478] sm:$0xff]
        %v4588 = vld [vmem:[%s4443 + $0x480] sm:$0xff]
        %v4589 = vld [vmem:[%s4443 + $0x488] sm:$0xff]
        %v4590 = vld [vmem:[%s4443 + $0x490] sm:$0xff]
        %v4591 = vld [vmem:[%s4443 + $0x498] sm:$0xff]
        %v4592 = vld [vmem:[%s4443 + $0x4a0] sm:$0xff]
        %v4593 = vld [vmem:[%s4443 + $0x4a8] sm:$0xff]
        %v4594 = vld [vmem:[%s4443 + $0x4b0] sm:$0xff]
        %v4595 = vld [vmem:[%s4443 + $0x4b8] sm:$0xff]
        %v4596 = vld [vmem:[%s4443 + $0x4c0] sm:$0xff]
        %v4597 = vld [vmem:[%s4443 + $0x4c8] sm:$0xff]
        %v4598 = vld [vmem:[%s4443 + $0x4d0] sm:$0xff]
        %v4599 = vld [vmem:[%s4443 + $0x4d8] sm:$0xff]
        %v4600 = vld [vmem:[%s4443 + $0x4e0] sm:$0xff]
        %v4601 = vld [vmem:[%s4443 + $0x4e8] sm:$0xff]
        %v4602 = vld [vmem:[%s4443 + $0x4f0] sm:$0xff]
        %v4603 = vld [vmem:[%s4443 + $0x4f8] sm:$0xff]
        %v4604 = vld [vmem:[%s4443 + $0x500] sm:$0xff]
        %v4605 = vld [vmem:[%s4443 + $0x508] sm:$0xff]
        %v4606 = vld [vmem:[%s4443 + $0x510] sm:$0xff]
        %v4607 = vld [vmem:[%s4443 + $0x518] sm:$0xff]
        %v4608 = vld [vmem:[%s4443 + $0x520] sm:$0xff]
        %v4609 = vld [vmem:[%s4443 + $0x528] sm:$0xff]
        %v4610 = vld [vmem:[%s4443 + $0x530] sm:$0xff]
        %v4611 = vld [vmem:[%s4443 + $0x538] sm:$0xff]
        %v4612 = vld [vmem:[%s4443 + $0x540] sm:$0xff]
        %v4613 = vld [vmem:[%s4443 + $0x548] sm:$0xff]
        %v4614 = vld [vmem:[%s4443 + $0x550] sm:$0xff]
        %v4615 = vld [vmem:[%s4443 + $0x558] sm:$0xff]
        %v4616 = vld [vmem:[%s4443 + $0x560] sm:$0xff]
        %v4617 = vld [vmem:[%s4443 + $0x568] sm:$0xff]
        %v4618 = vld [vmem:[%s4443 + $0x570] sm:$0xff]
        %v4619 = vld [vmem:[%s4443 + $0x578] sm:$0xff]
        %v4620 = vld [vmem:[%s4443 + $0x580] sm:$0xff]
        %v4621 = vld [vmem:[%s4443 + $0x588] sm:$0xff]
        %v4622 = vld [vmem:[%s4443 + $0x590] sm:$0xff]
        %v4623 = vld [vmem:[%s4443 + $0x598] sm:$0xff]
        %v4624 = vld [vmem:[%s4443 + $0x5a0] sm:$0xff]
        %v4625 = vld [vmem:[%s4443 + $0x5a8] sm:$0xff]
        %v4626 = vld [vmem:[%s4443 + $0x5b0] sm:$0xff]
        %v4627 = vld [vmem:[%s4443 + $0x5b8] sm:$0xff]
        %v4628 = vld [vmem:[%s4443 + $0x5c0] sm:$0xff]
        %v4629 = vld [vmem:[%s4443 + $0x5c8] sm:$0xff]
        %v4630 = vld [vmem:[%s4443 + $0x5d0] sm:$0xff]
        %v4631 = vld [vmem:[%s4443 + $0x5d8] sm:$0xff]
        %v4632 = vld [vmem:[%s4443 + $0x5e0] sm:$0xff]
        %v4633 = vld [vmem:[%s4443 + $0x5e8] sm:$0xff]
        %v4634 = vld [vmem:[%s4443 + $0x5f0] sm:$0xff]
        %v4635 = vld [vmem:[%s4443 + $0x5f8] sm:$0xff]
        %v4636 = vld [vmem:[%s4443 + $0x600] sm:$0xff]
        %v4637 = vld [vmem:[%s4443 + $0x608] sm:$0xff]
        %v4638 = vld [vmem:[%s4443 + $0x610] sm:$0xff]
        %v4639 = vld [vmem:[%s4443 + $0x618] sm:$0xff]
        %v4640 = vld [vmem:[%s4443 + $0x620] sm:$0xff]
        %v4641 = vld [vmem:[%s4443 + $0x628] sm:$0xff]
        %v4642 = vld [vmem:[%s4443 + $0x630] sm:$0xff]
        %v4643 = vld [vmem:[%s4443 + $0x638] sm:$0xff]
        %v4644 = vld [vmem:[%s4443 + $0x640] sm:$0xff]
        %v4645 = vld [vmem:[%s4443 + $0x648] sm:$0xff]
        %v4646 = vld [vmem:[%s4443 + $0x650] sm:$0xff]
        %v4647 = vld [vmem:[%s4443 + $0x658] sm:$0xff]
        %v4648 = vld [vmem:[%s4443 + $0x660] sm:$0xff]
        %v4649 = vld [vmem:[%s4443 + $0x668] sm:$0xff]
        %v4650 = vld [vmem:[%s4443 + $0x670] sm:$0xff]
        %v4651 = vld [vmem:[%s4443 + $0x678] sm:$0xff]
        %v4652 = vld [vmem:[%s4443 + $0x680] sm:$0xff]
        %v4653 = vld [vmem:[%s4443 + $0x688] sm:$0xff]
        %v4654 = vld [vmem:[%s4443 + $0x690] sm:$0xff]
        %v4655 = vld [vmem:[%s4443 + $0x698] sm:$0xff]
        %v4656 = vld [vmem:[%s4443 + $0x6a0] sm:$0xff]
        %v4657 = vld [vmem:[%s4443 + $0x6a8] sm:$0xff]
        %v4658 = vld [vmem:[%s4443 + $0x6b0] sm:$0xff]
        %v4659 = vld [vmem:[%s4443 + $0x6b8] sm:$0xff]
        %v4660 = vld [vmem:[%s4443 + $0x6c0] sm:$0xff]
        %v4661 = vld [vmem:[%s4443 + $0x6c8] sm:$0xff]
        %v4662 = vld [vmem:[%s4443 + $0x6d0] sm:$0xff]
        %v4663 = vld [vmem:[%s4443 + $0x6d8] sm:$0xff]
        %v4664 = vld [vmem:[%s4443 + $0x6e0] sm:$0xff]
        %v4665 = vld [vmem:[%s4443 + $0x6e8] sm:$0xff]
        %v4666 = vld [vmem:[%s4443 + $0x6f0] sm:$0xff]
        %v4667 = vld [vmem:[%s4443 + $0x6f8] sm:$0xff]
        %v4668 = vld [vmem:[%s4443 + $0x700] sm:$0xff]
        %v4669 = vld [vmem:[%s4443 + $0x708] sm:$0xff]
        %v4670 = vld [vmem:[%s4443 + $0x710] sm:$0xff]
        %v4671 = vld [vmem:[%s4443 + $0x718] sm:$0xff]
        %v4672 = vld [vmem:[%s4443 + $0x720] sm:$0xff]
        %v4673 = vld [vmem:[%s4443 + $0x728] sm:$0xff]
        %v4674 = vld [vmem:[%s4443 + $0x730] sm:$0xff]
        %v4675 = vld [vmem:[%s4443 + $0x738] sm:$0xff]
        %v4676 = vld [vmem:[%s4443 + $0x740] sm:$0xff]
        %v4677 = vld [vmem:[%s4443 + $0x748] sm:$0xff]
        %v4678 = vld [vmem:[%s4443 + $0x750] sm:$0xff]
        %v4679 = vld [vmem:[%s4443 + $0x758] sm:$0xff]
        %v4680 = vld [vmem:[%s4443 + $0x760] sm:$0xff]
        %v4681 = vld [vmem:[%s4443 + $0x768] sm:$0xff]
        %v4682 = vld [vmem:[%s4443 + $0x770] sm:$0xff]
        %v4683 = vld [vmem:[%s4443 + $0x778] sm:$0xff]
        %v4684 = vld [vmem:[%s4443 + $0x780] sm:$0xff]
        %v4685 = vld [vmem:[%s4443 + $0x788] sm:$0xff]
        %v4686 = vld [vmem:[%s4443 + $0x790] sm:$0xff]
        %v4687 = vld [vmem:[%s4443 + $0x798] sm:$0xff]
        %v4688 = vld [vmem:[%s4443 + $0x7a0] sm:$0xff]
        %v4689 = vld [vmem:[%s4443 + $0x7a8] sm:$0xff]
        %v4690 = vld [vmem:[%s4443 + $0x7b0] sm:$0xff]
        %v4691 = vld [vmem:[%s4443 + $0x7b8] sm:$0xff]
        %v4692 = vld [vmem:[%s4443 + $0x7c0] sm:$0xff]
        %v4693 = vld [vmem:[%s4443 + $0x7c8] sm:$0xff]
        %v4694 = vld [vmem:[%s4443 + $0x7d0] sm:$0xff]
        %v4695 = vld [vmem:[%s4443 + $0x7d8] sm:$0xff]
        %v4696 = vld [vmem:[%s4443 + $0x7e0] sm:$0xff]
        %v4697 = vld [vmem:[%s4443 + $0x7e8] sm:$0xff]
        %v4698 = vld [vmem:[%s4443 + $0x7f0] sm:$0xff]
        %v4699 = vld [vmem:[%s4443 + $0x7f8] sm:$0xff]
        %v4700 = vld [vmem:[%s4443 + $0x800] sm:$0xff]
        %v4701 = vld [vmem:[%s4443 + $0x808] sm:$0xff]
        %v4702 = vld [vmem:[%s4443 + $0x810] sm:$0xff]
        %v4703 = vld [vmem:[%s4443 + $0x818] sm:$0xff]
        %v4704 = vld [vmem:[%s4443 + $0x820] sm:$0xff]
        %v4705 = vld [vmem:[%s4443 + $0x828] sm:$0xff]
        %v4706 = vld [vmem:[%s4443 + $0x830] sm:$0xff]
        %v4707 = vld [vmem:[%s4443 + $0x838] sm:$0xff]
        %v4708 = vld [vmem:[%s4443 + $0x840] sm:$0xff]
        %v4709 = vld [vmem:[%s4443 + $0x848] sm:$0xff]
        %v4710 = vld [vmem:[%s4443 + $0x850] sm:$0xff]
        %v4711 = vld [vmem:[%s4443 + $0x858] sm:$0xff]
        %v4712 = vld [vmem:[%s4443 + $0x860] sm:$0xff]
        %v4713 = vld [vmem:[%s4443 + $0x868] sm:$0xff]
        %v4714 = vld [vmem:[%s4443 + $0x870] sm:$0xff]
        %v4715 = vld [vmem:[%s4443 + $0x878] sm:$0xff]
        %v4716 = vld [vmem:[%s4443 + $0x880] sm:$0xff]
        %v4717 = vld [vmem:[%s4443 + $0x888] sm:$0xff]
        %v4718 = vld [vmem:[%s4443 + $0x890] sm:$0xff]
        %v4719 = vld [vmem:[%s4443 + $0x898] sm:$0xff]
        %v4720 = vld [vmem:[%s4443 + $0x8a0] sm:$0xff]
        %v4721 = vld [vmem:[%s4443 + $0x8a8] sm:$0xff]
        %v4722 = vld [vmem:[%s4443 + $0x8b0] sm:$0xff]
        %v4723 = vld [vmem:[%s4443 + $0x8b8] sm:$0xff]
        %v4724 = vld [vmem:[%s4443 + $0x8c0] sm:$0xff]
        %v4725 = vld [vmem:[%s4443 + $0x8c8] sm:$0xff]
        %v4726 = vld [vmem:[%s4443 + $0x8d0] sm:$0xff]
        %v4727 = vld [vmem:[%s4443 + $0x8d8] sm:$0xff]
        %v4728 = vld [vmem:[%s4443 + $0x8e0] sm:$0xff]
        %v4729 = vld [vmem:[%s4443 + $0x8e8] sm:$0xff]
        %v4730 = vld [vmem:[%s4443 + $0x8f0] sm:$0xff]
        %v4731 = vld [vmem:[%s4443 + $0x8f8] sm:$0xff]
        %v4732 = vld [vmem:[%s4443 + $0x900] sm:$0xff]
        %v4733 = vld [vmem:[%s4443 + $0x908] sm:$0xff]
        %v4734 = vld [vmem:[%s4443 + $0x910] sm:$0xff]
        %v4735 = vld [vmem:[%s4443 + $0x918] sm:$0xff]
        %v4736 = vld [vmem:[%s4443 + $0x920] sm:$0xff]
        %v4737 = vld [vmem:[%s4443 + $0x928] sm:$0xff]
        %v4738 = vld [vmem:[%s4443 + $0x930] sm:$0xff]
        %v4739 = vld [vmem:[%s4443 + $0x938] sm:$0xff]
        %v4740 = vld [vmem:[%s4443 + $0x940] sm:$0xff]
        %v4741 = vld [vmem:[%s4443 + $0x948] sm:$0xff]
        %v4742 = vld [vmem:[%s4443 + $0x950] sm:$0xff]
        %v4743 = vld [vmem:[%s4443 + $0x958] sm:$0xff]
        %v4744 = vld [vmem:[%s4443 + $0x960] sm:$0xff]
        %v4745 = vld [vmem:[%s4443 + $0x968] sm:$0xff]
        %v4746 = vld [vmem:[%s4443 + $0x970] sm:$0xff]
        %v4747 = vld [vmem:[%s4443 + $0x978] sm:$0xff]
        %v4748 = vld [vmem:[%s4443 + $0x980] sm:$0xff]
        %v4749 = vld [vmem:[%s4443 + $0x988] sm:$0xff]
        %v4750 = vld [vmem:[%s4443 + $0x990] sm:$0xff]
        %v4751 = vld [vmem:[%s4443 + $0x998] sm:$0xff]
        %v4752 = vld [vmem:[%s4443 + $0x9a0] sm:$0xff]
        %v4753 = vld [vmem:[%s4443 + $0x9a8] sm:$0xff]
        %v4754 = vld [vmem:[%s4443 + $0x9b0] sm:$0xff]
        %v4755 = vld [vmem:[%s4443 + $0x9b8] sm:$0xff]
        %v4756 = vld [vmem:[%s4443 + $0x9c0] sm:$0xff]
        %v4757 = vld [vmem:[%s4443 + $0x9c8] sm:$0xff]
        %v4758 = vld [vmem:[%s4443 + $0x9d0] sm:$0xff]
        %v4759 = vld [vmem:[%s4443 + $0x9d8] sm:$0xff]
        %v4760 = vld [vmem:[%s4443 + $0x9e0] sm:$0xff]
        %v4761 = vld [vmem:[%s4443 + $0x9e8] sm:$0xff]
        %v4762 = vld [vmem:[%s4443 + $0x9f0] sm:$0xff]
        %v4763 = vld [vmem:[%s4443 + $0x9f8] sm:$0xff]
        %v4764 = vld [vmem:[%s4443 + $0xa00] sm:$0xff]
        %v4765 = vld [vmem:[%s4443 + $0xa08] sm:$0xff]
        %v4766 = vld [vmem:[%s4443 + $0xa10] sm:$0xff]
        %v4767 = vld [vmem:[%s4443 + $0xa18] sm:$0xff]
        %v4768 = vld [vmem:[%s4443 + $0xa20] sm:$0xff]
        %v4769 = vld [vmem:[%s4443 + $0xa28] sm:$0xff]
        %v4770 = vld [vmem:[%s4443 + $0xa30] sm:$0xff]
        %v4771 = vld [vmem:[%s4443 + $0xa38] sm:$0xff]
        %v4772 = vld [vmem:[%s4443 + $0xa40] sm:$0xff]
        %v4773 = vld [vmem:[%s4443 + $0xa48] sm:$0xff]
        %v4774 = vld [vmem:[%s4443 + $0xa50] sm:$0xff]
        %v4775 = vld [vmem:[%s4443 + $0xa58] sm:$0xff]
        %v4776 = vld [vmem:[%s4443 + $0xa60] sm:$0xff]
        %v4777 = vld [vmem:[%s4443 + $0xa68] sm:$0xff]
        %v4778 = vld [vmem:[%s4443 + $0xa70] sm:$0xff]
        %v4779 = vld [vmem:[%s4443 + $0xa78] sm:$0xff]
        %v4780 = vld [vmem:[%s4443 + $0xa80] sm:$0xff]
        %v4781 = vld [vmem:[%s4443 + $0xa88] sm:$0xff]
        %v4782 = vld [vmem:[%s4443 + $0xa90] sm:$0xff]
        %v4783 = vld [vmem:[%s4443 + $0xa98] sm:$0xff]
        %v4784 = vld [vmem:[%s4443 + $0xaa0] sm:$0xff]
        %v4785 = vld [vmem:[%s4443 + $0xaa8] sm:$0xff]
        %v4786 = vld [vmem:[%s4443 + $0xab0] sm:$0xff]
        %v4787 = vld [vmem:[%s4443 + $0xab8] sm:$0xff]
        %v4788 = vld [vmem:[%s4443 + $0xac0] sm:$0xff]
        %v4789 = vld [vmem:[%s4443 + $0xac8] sm:$0xff]
        %v4790 = vld [vmem:[%s4443 + $0xad0] sm:$0xff]
        %v4791 = vld [vmem:[%s4443 + $0xad8] sm:$0xff]
        %v4792 = vld [vmem:[%s4443 + $0xae0] sm:$0xff]
        %v4793 = vld [vmem:[%s4443 + $0xae8] sm:$0xff]
        %v4794 = vld [vmem:[%s4443 + $0xaf0] sm:$0xff]
        %v4795 = vld [vmem:[%s4443 + $0xaf8] sm:$0xff]
        %v4796 = vld [vmem:[%s4443 + $0xb00] sm:$0xff]
        %v4797 = vld [vmem:[%s4443 + $0xb08] sm:$0xff]
        %v4798 = vld [vmem:[%s4443 + $0xb10] sm:$0xff]
        %v4799 = vld [vmem:[%s4443 + $0xb18] sm:$0xff]
        %v4800 = vld [vmem:[%s4443 + $0xb20] sm:$0xff]
        %v4801 = vld [vmem:[%s4443 + $0xb28] sm:$0xff]
        %v4802 = vld [vmem:[%s4443 + $0xb30] sm:$0xff]
        %v4803 = vld [vmem:[%s4443 + $0xb38] sm:$0xff]
        %v4804 = vld [vmem:[%s4443 + $0xb40] sm:$0xff]
        %v4805 = vld [vmem:[%s4443 + $0xb48] sm:$0xff]
        %v4806 = vld [vmem:[%s4443 + $0xb50] sm:$0xff]
        %v4807 = vld [vmem:[%s4443 + $0xb58] sm:$0xff]
        %v4808 = vld [vmem:[%s4443 + $0xb60] sm:$0xff]
        %v4809 = vld [vmem:[%s4443 + $0xb68] sm:$0xff]
        %v4810 = vld [vmem:[%s4443 + $0xb70] sm:$0xff]
        %v4811 = vld [vmem:[%s4443 + $0xb78] sm:$0xff]
        %v4812 = vld [vmem:[%s4443 + $0xb80] sm:$0xff]
        %v4813 = vld [vmem:[%s4443 + $0xb88] sm:$0xff]
        %v4814 = vld [vmem:[%s4443 + $0xb90] sm:$0xff]
        %v4815 = vld [vmem:[%s4443 + $0xb98] sm:$0xff]
        %v4816 = vld [vmem:[%s4443 + $0xba0] sm:$0xff]
        %v4817 = vld [vmem:[%s4443 + $0xba8] sm:$0xff]
        %v4818 = vld [vmem:[%s4443 + $0xbb0] sm:$0xff]
        %v4819 = vld [vmem:[%s4443 + $0xbb8] sm:$0xff]
        %v4820 = vld [vmem:[%s4443 + $0xbc0] sm:$0xff]
        %v4821 = vld [vmem:[%s4443 + $0xbc8] sm:$0xff]
        %v4822 = vld [vmem:[%s4443 + $0xbd0] sm:$0xff]
        %v4823 = vld [vmem:[%s4443 + $0xbd8] sm:$0xff]
        %v4824 = vld [vmem:[%s4443 + $0xbe0] sm:$0xff]
        %v4825 = vld [vmem:[%s4443 + $0xbe8] sm:$0xff]
        %v4826 = vld [vmem:[%s4443 + $0xbf0] sm:$0xff]
        %v4827 = vld [vmem:[%s4443 + $0xbf8] sm:$0xff]
        %v4828 = vld [vmem:[%s4443 + $0xc00] sm:$0xff]
        %v4829 = vld [vmem:[%s4443 + $0xc08] sm:$0xff]
        %v4830 = vld [vmem:[%s4443 + $0xc10] sm:$0xff]
        %v4831 = vld [vmem:[%s4443 + $0xc18] sm:$0xff]
        %v4832 = vld [vmem:[%s4443 + $0xc20] sm:$0xff]
        %v4833 = vld [vmem:[%s4443 + $0xc28] sm:$0xff]
        %v4834 = vld [vmem:[%s4443 + $0xc30] sm:$0xff]
        %v4835 = vld [vmem:[%s4443 + $0xc38] sm:$0xff]
        %v4836 = vld [vmem:[%s4443 + $0xc40] sm:$0xff]
        %v4837 = vld [vmem:[%s4443 + $0xc48] sm:$0xff]
        %v4838 = vld [vmem:[%s4443 + $0xc50] sm:$0xff]
        %v4839 = vld [vmem:[%s4443 + $0xc58] sm:$0xff]
        %v4840 = vld [vmem:[%s4443 + $0xc60] sm:$0xff]
        %v4841 = vld [vmem:[%s4443 + $0xc68] sm:$0xff]
        %v4842 = vld [vmem:[%s4443 + $0xc70] sm:$0xff]
        %v4843 = vld [vmem:[%s4443 + $0xc78] sm:$0xff]
        %v4844 = vld [vmem:[%s4443 + $0xc80] sm:$0xff]
        %v4845 = vld [vmem:[%s4443 + $0xc88] sm:$0xff]
        %v4846 = vld [vmem:[%s4443 + $0xc90] sm:$0xff]
        %v4847 = vld [vmem:[%s4443 + $0xc98] sm:$0xff]
        %v4848 = vld [vmem:[%s4443 + $0xca0] sm:$0xff]
        %v4849 = vld [vmem:[%s4443 + $0xca8] sm:$0xff]
        %v4850 = vld [vmem:[%s4443 + $0xcb0] sm:$0xff]
        %v4851 = vld [vmem:[%s4443 + $0xcb8] sm:$0xff]
        %v4852 = vld [vmem:[%s4443 + $0xcc0] sm:$0xff]
        %v4853 = vld [vmem:[%s4443 + $0xcc8] sm:$0xff]
        %v4854 = vld [vmem:[%s4443 + $0xcd0] sm:$0xff]
        %v4855 = vld [vmem:[%s4443 + $0xcd8] sm:$0xff]
        %v4856 = vld [vmem:[%s4443 + $0xce0] sm:$0xff]
        %v4857 = vld [vmem:[%s4443 + $0xce8] sm:$0xff]
        %v4858 = vld [vmem:[%s4443 + $0xcf0] sm:$0xff]
        %v4859 = vld [vmem:[%s4443 + $0xcf8] sm:$0xff]
        %v4860 = vld [vmem:[%s4443 + $0xd00] sm:$0xff]
        %v4861 = vld [vmem:[%s4443 + $0xd08] sm:$0xff]
        %v4862 = vld [vmem:[%s4443 + $0xd10] sm:$0xff]
        %v4863 = vld [vmem:[%s4443 + $0xd18] sm:$0xff]
        %v4864 = vld [vmem:[%s4443 + $0xd20] sm:$0xff]
        %v4865 = vld [vmem:[%s4443 + $0xd28] sm:$0xff]
        %v4866 = vld [vmem:[%s4443 + $0xd30] sm:$0xff]
        %v4867 = vld [vmem:[%s4443 + $0xd38] sm:$0xff]
        %v4868 = vld [vmem:[%s4443 + $0xd40] sm:$0xff]
        %v4869 = vld [vmem:[%s4443 + $0xd48] sm:$0xff]
        %v4870 = vld [vmem:[%s4443 + $0xd50] sm:$0xff]
        %v4871 = vld [vmem:[%s4443 + $0xd58] sm:$0xff]
        %v4872 = vld [vmem:[%s4443 + $0xd60] sm:$0xff]
        %v4873 = vld [vmem:[%s4443 + $0xd68] sm:$0xff]
        %v4874 = vld [vmem:[%s4443 + $0xd70] sm:$0xff]
        %v4875 = vld [vmem:[%s4443 + $0xd78] sm:$0xff]
        %v4876 = vld [vmem:[%s4443 + $0xd80] sm:$0xff]
        %v4877 = vld [vmem:[%s4443 + $0xd88] sm:$0xff]
        %v4878 = vld [vmem:[%s4443 + $0xd90] sm:$0xff]
        %v4879 = vld [vmem:[%s4443 + $0xd98] sm:$0xff]
        %v4880 = vld [vmem:[%s4443 + $0xda0] sm:$0xff]
        %v4881 = vld [vmem:[%s4443 + $0xda8] sm:$0xff]
        %v4882 = vld [vmem:[%s4443 + $0xdb0] sm:$0xff]
        %v4883 = vld [vmem:[%s4443 + $0xdb8] sm:$0xff]
        %v4884 = vld [vmem:[%s4443 + $0xdc0] sm:$0xff]
        %v4885 = vld [vmem:[%s4443 + $0xdc8] sm:$0xff]
        %v4886 = vld [vmem:[%s4443 + $0xdd0] sm:$0xff]
        %v4887 = vld [vmem:[%s4443 + $0xdd8] sm:$0xff]
        %v4888 = vld [vmem:[%s4443 + $0xde0] sm:$0xff]
        %v4889 = vld [vmem:[%s4443 + $0xde8] sm:$0xff]
        %v4890 = vld [vmem:[%s4443 + $0xdf0] sm:$0xff]
        %v4891 = vld [vmem:[%s4443 + $0xdf8] sm:$0xff]
        %v4892 = vld [vmem:[%s4443 + $0xe00] sm:$0xff]
        %v4893 = vld [vmem:[%s4443 + $0xe08] sm:$0xff]
        %v4894 = vld [vmem:[%s4443 + $0xe10] sm:$0xff]
        %v4895 = vld [vmem:[%s4443 + $0xe18] sm:$0xff]
        %v4896 = vld [vmem:[%s4443 + $0xe20] sm:$0xff]
        %v4897 = vld [vmem:[%s4443 + $0xe28] sm:$0xff]
        %v4898 = vld [vmem:[%s4443 + $0xe30] sm:$0xff]
        %v4899 = vld [vmem:[%s4443 + $0xe38] sm:$0xff]
        %v4900 = vld [vmem:[%s4443 + $0xe40] sm:$0xff]
        %v4901 = vld [vmem:[%s4443 + $0xe48] sm:$0xff]
        %v4902 = vld [vmem:[%s4443 + $0xe50] sm:$0xff]
        %v4903 = vld [vmem:[%s4443 + $0xe58] sm:$0xff]
        %v4904 = vld [vmem:[%s4443 + $0xe60] sm:$0xff]
        %v4905 = vld [vmem:[%s4443 + $0xe68] sm:$0xff]
        %v4906 = vld [vmem:[%s4443 + $0xe70] sm:$0xff]
        %v4907 = vld [vmem:[%s4443 + $0xe78] sm:$0xff]
        %v4908 = vld [vmem:[%s4443 + $0xe80] sm:$0xff]
        %v4909 = vld [vmem:[%s4443 + $0xe88] sm:$0xff]
        %v4910 = vld [vmem:[%s4443 + $0xe90] sm:$0xff]
        %v4911 = vld [vmem:[%s4443 + $0xe98] sm:$0xff]
        %v4912 = vld [vmem:[%s4443 + $0xea0] sm:$0xff]
        %v4913 = vld [vmem:[%s4443 + $0xea8] sm:$0xff]
        %v4914 = vld [vmem:[%s4443 + $0xeb0] sm:$0xff]
        %v4915 = vld [vmem:[%s4443 + $0xeb8] sm:$0xff]
        %v4916 = vld [vmem:[%s4443 + $0xec0] sm:$0xff]
        %v4917 = vld [vmem:[%s4443 + $0xec8] sm:$0xff]
        %v4918 = vld [vmem:[%s4443 + $0xed0] sm:$0xff]
        %v4919 = vld [vmem:[%s4443 + $0xed8] sm:$0xff]
        %v4920 = vld [vmem:[%s4443 + $0xee0] sm:$0xff]
        %v4921 = vld [vmem:[%s4443 + $0xee8] sm:$0xff]
        %v4922 = vld [vmem:[%s4443 + $0xef0] sm:$0xff]
        %v4923 = vld [vmem:[%s4443 + $0xef8] sm:$0xff]
        %v4924 = vld [vmem:[%s4443 + $0xf00] sm:$0xff]
        %v4925 = vld [vmem:[%s4443 + $0xf08] sm:$0xff]
        %v4926 = vld [vmem:[%s4443 + $0xf10] sm:$0xff]
        %v4927 = vld [vmem:[%s4443 + $0xf18] sm:$0xff]
        %v4928 = vld [vmem:[%s4443 + $0xf20] sm:$0xff]
        %v4929 = vld [vmem:[%s4443 + $0xf28] sm:$0xff]
        %v4930 = vld [vmem:[%s4443 + $0xf30] sm:$0xff]
        %v4931 = vld [vmem:[%s4443 + $0xf38] sm:$0xff]
        %v4932 = vld [vmem:[%s4443 + $0xf40] sm:$0xff]
        %v4933 = vld [vmem:[%s4443 + $0xf48] sm:$0xff]
        %v4934 = vld [vmem:[%s4443 + $0xf50] sm:$0xff]
        %v4935 = vld [vmem:[%s4443 + $0xf58] sm:$0xff]
        %v4936 = vld [vmem:[%s4443 + $0xf60] sm:$0xff]
        %v4937 = vld [vmem:[%s4443 + $0xf68] sm:$0xff]
        %v4938 = vld [vmem:[%s4443 + $0xf70] sm:$0xff]
        %v4939 = vld [vmem:[%s4443 + $0xf78] sm:$0xff]
        %v4940 = vld [vmem:[%s4443 + $0xf80] sm:$0xff]
        %v4941 = vld [vmem:[%s4443 + $0xf88] sm:$0xff]
        %v4942 = vld [vmem:[%s4443 + $0xf90] sm:$0xff]
        %v4943 = vld [vmem:[%s4443 + $0xf98] sm:$0xff]
        %v4944 = vld [vmem:[%s4443 + $0xfa0] sm:$0xff]
        %v4945 = vld [vmem:[%s4443 + $0xfa8] sm:$0xff]
        %v4946 = vld [vmem:[%s4443 + $0xfb0] sm:$0xff]
        %v4947 = vld [vmem:[%s4443 + $0xfb8] sm:$0xff]
        %v4948 = vld [vmem:[%s4443 + $0xfc0] sm:$0xff]
        %v4949 = vld [vmem:[%s4443 + $0xfc8] sm:$0xff]
        %v4950 = vld [vmem:[%s4443 + $0xfd0] sm:$0xff]
        %v4951 = vld [vmem:[%s4443 + $0xfd8] sm:$0xff]
        %v4952 = vld [vmem:[%s4443 + $0xfe0] sm:$0xff]
        %v4953 = vld [vmem:[%s4443 + $0xfe8] sm:$0xff]
        %v4954 = vld [vmem:[%s4443 + $0xff0] sm:$0xff]
        %v4955 = vld [vmem:[%s4443 + $0xff8] sm:$0xff]
        %v4956 = vunpack.c.l.b16 %v4360
        %v4957 = vunpack.c.h.b16 %v4360
        %v4958 = vunpack.c.l.b16 %v4374
        %v4959 = vunpack.c.h.b16 %v4374
        %v4960 = vunpack.c.l.b16 %v4384
        %v4961 = vunpack.c.h.b16 %v4384
        %v4962 = vunpack.c.l.b16 %v4394
        %v4963 = vunpack.c.h.b16 %v4394
        %v4964 = vunpack.c.l.b16 %v4408
        %v4965 = vunpack.c.h.b16 %v4408
        %v4966 = vunpack.c.l.b16 %v4422
        %v4967 = vunpack.c.h.b16 %v4422
        %v4968 = vunpack.c.l.b16 %v4432
        %v4969 = vunpack.c.h.b16 %v4432
        %v4970 = vunpack.c.l.b16 %v4442
        %v4971 = vunpack.c.h.b16 %v4442
        %v4972 = vpack.c.b16 %v4960, %v4956
        %v4973 = vpack.c.b16 %v4961, %v4957
        %v4974 = vpack.c.b16 %v4962, %v4958
        %v4975 = vpack.c.b16 %v4963, %v4959
        %v4976 = vpack.c.b16 %v4968, %v4964
        %v4977 = vpack.c.b16 %v4969, %v4965
        %v4978 = vpack.c.b16 %v4970, %v4966
        %v4979 = vpack.c.b16 %v4971, %v4967
        %v5500 = vunpack.c.l.b16 %v4444
        %v5501 = vunpack.c.h.b16 %v4444
        %v5502 = vunpack.c.l.b16 %v4445
        %v5503 = vunpack.c.h.b16 %v4445
        %v5504 = vunpack.c.l.b16 %v4446
        %v5505 = vunpack.c.h.b16 %v4446
        %v5506 = vunpack.c.l.b16 %v4447
        %v5507 = vunpack.c.h.b16 %v4447
        %v5508 = vunpack.c.l.b16 %v4448
        %v5509 = vunpack.c.h.b16 %v4448
        %v5510 = vunpack.c.l.b16 %v4449
        %v5511 = vunpack.c.h.b16 %v4449
        %v5512 = vunpack.c.l.b16 %v4450
        %v5513 = vunpack.c.h.b16 %v4450
        %v5514 = vunpack.c.l.b16 %v4451
        %v5515 = vunpack.c.h.b16 %v4451
        %v5516 = vunpack.c.l.b16 %v4452
        %v5517 = vunpack.c.h.b16 %v4452
        %v5518 = vunpack.c.l.b16 %v4453
        %v5519 = vunpack.c.h.b16 %v4453
        %v5520 = vunpack.c.l.b16 %v4454
        %v5521 = vunpack.c.h.b16 %v4454
        %v5522 = vunpack.c.l.b16 %v4455
        %v5523 = vunpack.c.h.b16 %v4455
        %v5524 = vunpack.c.l.b16 %v4456
        %v5525 = vunpack.c.h.b16 %v4456
        %v5526 = vunpack.c.l.b16 %v4457
        %v5527 = vunpack.c.h.b16 %v4457
        %v5528 = vunpack.c.l.b16 %v4458
        %v5529 = vunpack.c.h.b16 %v4458
        %v5530 = vunpack.c.l.b16 %v4459
        %v5531 = vunpack.c.h.b16 %v4459
        %v5532 = vunpack.c.l.b16 %v4460
        %v5533 = vunpack.c.h.b16 %v4460
        %v5534 = vunpack.c.l.b16 %v4461
        %v5535 = vunpack.c.h.b16 %v4461
        %v5536 = vunpack.c.l.b16 %v4462
        %v5537 = vunpack.c.h.b16 %v4462
        %v5538 = vunpack.c.l.b16 %v4463
        %v5539 = vunpack.c.h.b16 %v4463
        %v5540 = vunpack.c.l.b16 %v4464
        %v5541 = vunpack.c.h.b16 %v4464
        %v5542 = vunpack.c.l.b16 %v4465
        %v5543 = vunpack.c.h.b16 %v4465
        %v5544 = vunpack.c.l.b16 %v4466
        %v5545 = vunpack.c.h.b16 %v4466
        %v5546 = vunpack.c.l.b16 %v4467
        %v5547 = vunpack.c.h.b16 %v4467
        %v5548 = vunpack.c.l.b16 %v4468
        %v5549 = vunpack.c.h.b16 %v4468
        %v5550 = vunpack.c.l.b16 %v4469
        %v5551 = vunpack.c.h.b16 %v4469
        %v5552 = vunpack.c.l.b16 %v4470
        %v5553 = vunpack.c.h.b16 %v4470
        %v5554 = vunpack.c.l.b16 %v4471
        %v5555 = vunpack.c.h.b16 %v4471
        %v5556 = vunpack.c.l.b16 %v4472
        %v5557 = vunpack.c.h.b16 %v4472
        %v5558 = vunpack.c.l.b16 %v4473
        %v5559 = vunpack.c.h.b16 %v4473
        %v5560 = vunpack.c.l.b16 %v4474
        %v5561 = vunpack.c.h.b16 %v4474
        %v5562 = vunpack.c.l.b16 %v4475
        %v5563 = vunpack.c.h.b16 %v4475
        %v5564 = vunpack.c.l.b16 %v4476
        %v5565 = vunpack.c.h.b16 %v4476
        %v5566 = vunpack.c.l.b16 %v4477
        %v5567 = vunpack.c.h.b16 %v4477
        %v5568 = vunpack.c.l.b16 %v4478
        %v5569 = vunpack.c.h.b16 %v4478
        %v5570 = vunpack.c.l.b16 %v4479
        %v5571 = vunpack.c.h.b16 %v4479
        %v5572 = vunpack.c.l.b16 %v4480
        %v5573 = vunpack.c.h.b16 %v4480
        %v5574 = vunpack.c.l.b16 %v4481
        %v5575 = vunpack.c.h.b16 %v4481
        %v5576 = vunpack.c.l.b16 %v4482
        %v5577 = vunpack.c.h.b16 %v4482
        %v5578 = vunpack.c.l.b16 %v4483
        %v5579 = vunpack.c.h.b16 %v4483
        %v5580 = vunpack.c.l.b16 %v4484
        %v5581 = vunpack.c.h.b16 %v4484
        %v5582 = vunpack.c.l.b16 %v4485
        %v5583 = vunpack.c.h.b16 %v4485
        %v5584 = vunpack.c.l.b16 %v4486
        %v5585 = vunpack.c.h.b16 %v4486
        %v5586 = vunpack.c.l.b16 %v4487
        %v5587 = vunpack.c.h.b16 %v4487
        %v5588 = vunpack.c.l.b16 %v4488
        %v5589 = vunpack.c.h.b16 %v4488
        %v5590 = vunpack.c.l.b16 %v4489
        %v5591 = vunpack.c.h.b16 %v4489
        %v5592 = vunpack.c.l.b16 %v4490
        %v5593 = vunpack.c.h.b16 %v4490
        %v5594 = vunpack.c.l.b16 %v4491
        %v5595 = vunpack.c.h.b16 %v4491
        %v5596 = vunpack.c.l.b16 %v4492
        %v5597 = vunpack.c.h.b16 %v4492
        %v5598 = vunpack.c.l.b16 %v4493
        %v5599 = vunpack.c.h.b16 %v4493
        %v5600 = vunpack.c.l.b16 %v4494
        %v5601 = vunpack.c.h.b16 %v4494
        %v5602 = vunpack.c.l.b16 %v4495
        %v5603 = vunpack.c.h.b16 %v4495
        %v5604 = vunpack.c.l.b16 %v4496
        %v5605 = vunpack.c.h.b16 %v4496
        %v5606 = vunpack.c.l.b16 %v4497
        %v5607 = vunpack.c.h.b16 %v4497
        %v5608 = vunpack.c.l.b16 %v4498
        %v5609 = vunpack.c.h.b16 %v4498
        %v5610 = vunpack.c.l.b16 %v4499
        %v5611 = vunpack.c.h.b16 %v4499
        %v5612 = vunpack.c.l.b16 %v4500
        %v5613 = vunpack.c.h.b16 %v4500
        %v5614 = vunpack.c.l.b16 %v4501
        %v5615 = vunpack.c.h.b16 %v4501
        %v5616 = vunpack.c.l.b16 %v4502
        %v5617 = vunpack.c.h.b16 %v4502
        %v5618 = vunpack.c.l.b16 %v4503
        %v5619 = vunpack.c.h.b16 %v4503
        %v5620 = vunpack.c.l.b16 %v4504
        %v5621 = vunpack.c.h.b16 %v4504
        %v5622 = vunpack.c.l.b16 %v4505
        %v5623 = vunpack.c.h.b16 %v4505
        %v5624 = vunpack.c.l.b16 %v4506
        %v5625 = vunpack.c.h.b16 %v4506
        %v5626 = vunpack.c.l.b16 %v4507
        %v5627 = vunpack.c.h.b16 %v4507
        %v5628 = vunpack.c.l.b16 %v4508
        %v5629 = vunpack.c.h.b16 %v4508
        %v5630 = vunpack.c.l.b16 %v4509
        %v5631 = vunpack.c.h.b16 %v4509
        %v5632 = vunpack.c.l.b16 %v4510
        %v5633 = vunpack.c.h.b16 %v4510
        %v5634 = vunpack.c.l.b16 %v4511
        %v5635 = vunpack.c.h.b16 %v4511
        %v5636 = vunpack.c.l.b16 %v4512
        %v5637 = vunpack.c.h.b16 %v4512
        %v5638 = vunpack.c.l.b16 %v4513
        %v5639 = vunpack.c.h.b16 %v4513
        %v5640 = vunpack.c.l.b16 %v4514
        %v5641 = vunpack.c.h.b16 %v4514
        %v5642 = vunpack.c.l.b16 %v4515
        %v5643 = vunpack.c.h.b16 %v4515
        %v5644 = vunpack.c.l.b16 %v4516
        %v5645 = vunpack.c.h.b16 %v4516
        %v5646 = vunpack.c.l.b16 %v4517
        %v5647 = vunpack.c.h.b16 %v4517
        %v5648 = vunpack.c.l.b16 %v4518
        %v5649 = vunpack.c.h.b16 %v4518
        %v5650 = vunpack.c.l.b16 %v4519
        %v5651 = vunpack.c.h.b16 %v4519
        %v5652 = vunpack.c.l.b16 %v4520
        %v5653 = vunpack.c.h.b16 %v4520
        %v5654 = vunpack.c.l.b16 %v4521
        %v5655 = vunpack.c.h.b16 %v4521
        %v5656 = vunpack.c.l.b16 %v4522
        %v5657 = vunpack.c.h.b16 %v4522
        %v5658 = vunpack.c.l.b16 %v4523
        %v5659 = vunpack.c.h.b16 %v4523
        %v5660 = vunpack.c.l.b16 %v4524
        %v5661 = vunpack.c.h.b16 %v4524
        %v5662 = vunpack.c.l.b16 %v4525
        %v5663 = vunpack.c.h.b16 %v4525
        %v5664 = vunpack.c.l.b16 %v4526
        %v5665 = vunpack.c.h.b16 %v4526
        %v5666 = vunpack.c.l.b16 %v4527
        %v5667 = vunpack.c.h.b16 %v4527
        %v5668 = vunpack.c.l.b16 %v4528
        %v5669 = vunpack.c.h.b16 %v4528
        %v5670 = vunpack.c.l.b16 %v4529
        %v5671 = vunpack.c.h.b16 %v4529
        %v5672 = vunpack.c.l.b16 %v4530
        %v5673 = vunpack.c.h.b16 %v4530
        %v5674 = vunpack.c.l.b16 %v4531
        %v5675 = vunpack.c.h.b16 %v4531
        %v5676 = vunpack.c.l.b16 %v4532
        %v5677 = vunpack.c.h.b16 %v4532
        %v5678 = vunpack.c.l.b16 %v4533
        %v5679 = vunpack.c.h.b16 %v4533
        %v5680 = vunpack.c.l.b16 %v4534
        %v5681 = vunpack.c.h.b16 %v4534
        %v5682 = vunpack.c.l.b16 %v4535
        %v5683 = vunpack.c.h.b16 %v4535
        %v5684 = vunpack.c.l.b16 %v4536
        %v5685 = vunpack.c.h.b16 %v4536
        %v5686 = vunpack.c.l.b16 %v4537
        %v5687 = vunpack.c.h.b16 %v4537
        %v5688 = vunpack.c.l.b16 %v4538
        %v5689 = vunpack.c.h.b16 %v4538
        %v5690 = vunpack.c.l.b16 %v4539
        %v5691 = vunpack.c.h.b16 %v4539
        %v5692 = vunpack.c.l.b16 %v4540
        %v5693 = vunpack.c.h.b16 %v4540
        %v5694 = vunpack.c.l.b16 %v4541
        %v5695 = vunpack.c.h.b16 %v4541
        %v5696 = vunpack.c.l.b16 %v4542
        %v5697 = vunpack.c.h.b16 %v4542
        %v5698 = vunpack.c.l.b16 %v4543
        %v5699 = vunpack.c.h.b16 %v4543
        %v5700 = vunpack.c.l.b16 %v4544
        %v5701 = vunpack.c.h.b16 %v4544
        %v5702 = vunpack.c.l.b16 %v4545
        %v5703 = vunpack.c.h.b16 %v4545
        %v5704 = vunpack.c.l.b16 %v4546
        %v5705 = vunpack.c.h.b16 %v4546
        %v5706 = vunpack.c.l.b16 %v4547
        %v5707 = vunpack.c.h.b16 %v4547
        %v5708 = vunpack.c.l.b16 %v4548
        %v5709 = vunpack.c.h.b16 %v4548
        %v5710 = vunpack.c.l.b16 %v4549
        %v5711 = vunpack.c.h.b16 %v4549
        %v5712 = vunpack.c.l.b16 %v4550
        %v5713 = vunpack.c.h.b16 %v4550
        %v5714 = vunpack.c.l.b16 %v4551
        %v5715 = vunpack.c.h.b16 %v4551
        %v5716 = vunpack.c.l.b16 %v4552
        %v5717 = vunpack.c.h.b16 %v4552
        %v5718 = vunpack.c.l.b16 %v4553
        %v5719 = vunpack.c.h.b16 %v4553
        %v5720 = vunpack.c.l.b16 %v4554
        %v5721 = vunpack.c.h.b16 %v4554
        %v5722 = vunpack.c.l.b16 %v4555
        %v5723 = vunpack.c.h.b16 %v4555
        %v5724 = vunpack.c.l.b16 %v4556
        %v5725 = vunpack.c.h.b16 %v4556
        %v5726 = vunpack.c.l.b16 %v4557
        %v5727 = vunpack.c.h.b16 %v4557
        %v5728 = vunpack.c.l.b16 %v4558
        %v5729 = vunpack.c.h.b16 %v4558
        %v5730 = vunpack.c.l.b16 %v4559
        %v5731 = vunpack.c.h.b16 %v4559
        %v5732 = vunpack.c.l.b16 %v4560
        %v5733 = vunpack.c.h.b16 %v4560
        %v5734 = vunpack.c.l.b16 %v4561
        %v5735 = vunpack.c.h.b16 %v4561
        %v5736 = vunpack.c.l.b16 %v4562
        %v5737 = vunpack.c.h.b16 %v4562
        %v5738 = vunpack.c.l.b16 %v4563
        %v5739 = vunpack.c.h.b16 %v4563
        %v5740 = vunpack.c.l.b16 %v4564
        %v5741 = vunpack.c.h.b16 %v4564
        %v5742 = vunpack.c.l.b16 %v4565
        %v5743 = vunpack.c.h.b16 %v4565
        %v5744 = vunpack.c.l.b16 %v4566
        %v5745 = vunpack.c.h.b16 %v4566
        %v5746 = vunpack.c.l.b16 %v4567
        %v5747 = vunpack.c.h.b16 %v4567
        %v5748 = vunpack.c.l.b16 %v4568
        %v5749 = vunpack.c.h.b16 %v4568
        %v5750 = vunpack.c.l.b16 %v4569
        %v5751 = vunpack.c.h.b16 %v4569
        %v5752 = vunpack.c.l.b16 %v4570
        %v5753 = vunpack.c.h.b16 %v4570
        %v5754 = vunpack.c.l.b16 %v4571
        %v5755 = vunpack.c.h.b16 %v4571
        %v5756 = vunpack.c.l.b16 %v4572
        %v5757 = vunpack.c.h.b16 %v4572
        %v5758 = vunpack.c.l.b16 %v4573
        %v5759 = vunpack.c.h.b16 %v4573
        %v5760 = vunpack.c.l.b16 %v4574
        %v5761 = vunpack.c.h.b16 %v4574
        %v5762 = vunpack.c.l.b16 %v4575
        %v5763 = vunpack.c.h.b16 %v4575
        %v5764 = vunpack.c.l.b16 %v4576
        %v5765 = vunpack.c.h.b16 %v4576
        %v5766 = vunpack.c.l.b16 %v4577
        %v5767 = vunpack.c.h.b16 %v4577
        %v5768 = vunpack.c.l.b16 %v4578
        %v5769 = vunpack.c.h.b16 %v4578
        %v5770 = vunpack.c.l.b16 %v4579
        %v5771 = vunpack.c.h.b16 %v4579
        %v5772 = vunpack.c.l.b16 %v4580
        %v5773 = vunpack.c.h.b16 %v4580
        %v5774 = vunpack.c.l.b16 %v4581
        %v5775 = vunpack.c.h.b16 %v4581
        %v5776 = vunpack.c.l.b16 %v4582
        %v5777 = vunpack.c.h.b16 %v4582
        %v5778 = vunpack.c.l.b16 %v4583
        %v5779 = vunpack.c.h.b16 %v4583
        %v5780 = vunpack.c.l.b16 %v4584
        %v5781 = vunpack.c.h.b16 %v4584
        %v5782 = vunpack.c.l.b16 %v4585
        %v5783 = vunpack.c.h.b16 %v4585
        %v5784 = vunpack.c.l.b16 %v4586
        %v5785 = vunpack.c.h.b16 %v4586
        %v5786 = vunpack.c.l.b16 %v4587
        %v5787 = vunpack.c.h.b16 %v4587
        %v5788 = vunpack.c.l.b16 %v4588
        %v5789 = vunpack.c.h.b16 %v4588
        %v5790 = vunpack.c.l.b16 %v4589
        %v5791 = vunpack.c.h.b16 %v4589
        %v5792 = vunpack.c.l.b16 %v4590
        %v5793 = vunpack.c.h.b16 %v4590
        %v5794 = vunpack.c.l.b16 %v4591
        %v5795 = vunpack.c.h.b16 %v4591
        %v5796 = vunpack.c.l.b16 %v4592
        %v5797 = vunpack.c.h.b16 %v4592
        %v5798 = vunpack.c.l.b16 %v4593
        %v5799 = vunpack.c.h.b16 %v4593
        %v5800 = vunpack.c.l.b16 %v4594
        %v5801 = vunpack.c.h.b16 %v4594
        %v5802 = vunpack.c.l.b16 %v4595
        %v5803 = vunpack.c.h.b16 %v4595
        %v5804 = vunpack.c.l.b16 %v4596
        %v5805 = vunpack.c.h.b16 %v4596
        %v5806 = vunpack.c.l.b16 %v4597
        %v5807 = vunpack.c.h.b16 %v4597
        %v5808 = vunpack.c.l.b16 %v4598
        %v5809 = vunpack.c.h.b16 %v4598
        %v5810 = vunpack.c.l.b16 %v4599
        %v5811 = vunpack.c.h.b16 %v4599
        %v5812 = vunpack.c.l.b16 %v4600
        %v5813 = vunpack.c.h.b16 %v4600
        %v5814 = vunpack.c.l.b16 %v4601
        %v5815 = vunpack.c.h.b16 %v4601
        %v5816 = vunpack.c.l.b16 %v4602
        %v5817 = vunpack.c.h.b16 %v4602
        %v5818 = vunpack.c.l.b16 %v4603
        %v5819 = vunpack.c.h.b16 %v4603
        %v5820 = vunpack.c.l.b16 %v4604
        %v5821 = vunpack.c.h.b16 %v4604
        %v5822 = vunpack.c.l.b16 %v4605
        %v5823 = vunpack.c.h.b16 %v4605
        %v5824 = vunpack.c.l.b16 %v4606
        %v5825 = vunpack.c.h.b16 %v4606
        %v5826 = vunpack.c.l.b16 %v4607
        %v5827 = vunpack.c.h.b16 %v4607
        %v5828 = vunpack.c.l.b16 %v4608
        %v5829 = vunpack.c.h.b16 %v4608
        %v5830 = vunpack.c.l.b16 %v4609
        %v5831 = vunpack.c.h.b16 %v4609
        %v5832 = vunpack.c.l.b16 %v4610
        %v5833 = vunpack.c.h.b16 %v4610
        %v5834 = vunpack.c.l.b16 %v4611
        %v5835 = vunpack.c.h.b16 %v4611
        %v5836 = vunpack.c.l.b16 %v4612
        %v5837 = vunpack.c.h.b16 %v4612
        %v5838 = vunpack.c.l.b16 %v4613
        %v5839 = vunpack.c.h.b16 %v4613
        %v5840 = vunpack.c.l.b16 %v4614
        %v5841 = vunpack.c.h.b16 %v4614
        %v5842 = vunpack.c.l.b16 %v4615
        %v5843 = vunpack.c.h.b16 %v4615
        %v5844 = vunpack.c.l.b16 %v4616
        %v5845 = vunpack.c.h.b16 %v4616
        %v5846 = vunpack.c.l.b16 %v4617
        %v5847 = vunpack.c.h.b16 %v4617
        %v5848 = vunpack.c.l.b16 %v4618
        %v5849 = vunpack.c.h.b16 %v4618
        %v5850 = vunpack.c.l.b16 %v4619
        %v5851 = vunpack.c.h.b16 %v4619
        %v5852 = vunpack.c.l.b16 %v4620
        %v5853 = vunpack.c.h.b16 %v4620
        %v5854 = vunpack.c.l.b16 %v4621
        %v5855 = vunpack.c.h.b16 %v4621
        %v5856 = vunpack.c.l.b16 %v4622
        %v5857 = vunpack.c.h.b16 %v4622
        %v5858 = vunpack.c.l.b16 %v4623
        %v5859 = vunpack.c.h.b16 %v4623
        %v5860 = vunpack.c.l.b16 %v4624
        %v5861 = vunpack.c.h.b16 %v4624
        %v5862 = vunpack.c.l.b16 %v4625
        %v5863 = vunpack.c.h.b16 %v4625
        %v5864 = vunpack.c.l.b16 %v4626
        %v5865 = vunpack.c.h.b16 %v4626
        %v5866 = vunpack.c.l.b16 %v4627
        %v5867 = vunpack.c.h.b16 %v4627
        %v5868 = vunpack.c.l.b16 %v4628
        %v5869 = vunpack.c.h.b16 %v4628
        %v5870 = vunpack.c.l.b16 %v4629
        %v5871 = vunpack.c.h.b16 %v4629
        %v5872 = vunpack.c.l.b16 %v4630
        %v5873 = vunpack.c.h.b16 %v4630
        %v5874 = vunpack.c.l.b16 %v4631
        %v5875 = vunpack.c.h.b16 %v4631
        %v5876 = vunpack.c.l.b16 %v4632
        %v5877 = vunpack.c.h.b16 %v4632
        %v5878 = vunpack.c.l.b16 %v4633
        %v5879 = vunpack.c.h.b16 %v4633
        %v5880 = vunpack.c.l.b16 %v4634
        %v5881 = vunpack.c.h.b16 %v4634
        %v5882 = vunpack.c.l.b16 %v4635
        %v5883 = vunpack.c.h.b16 %v4635
        %v5884 = vunpack.c.l.b16 %v4636
        %v5885 = vunpack.c.h.b16 %v4636
        %v5886 = vunpack.c.l.b16 %v4637
        %v5887 = vunpack.c.h.b16 %v4637
        %v5888 = vunpack.c.l.b16 %v4638
        %v5889 = vunpack.c.h.b16 %v4638
        %v5890 = vunpack.c.l.b16 %v4639
        %v5891 = vunpack.c.h.b16 %v4639
        %v5892 = vunpack.c.l.b16 %v4640
        %v5893 = vunpack.c.h.b16 %v4640
        %v5894 = vunpack.c.l.b16 %v4641
        %v5895 = vunpack.c.h.b16 %v4641
        %v5896 = vunpack.c.l.b16 %v4642
        %v5897 = vunpack.c.h.b16 %v4642
        %v5898 = vunpack.c.l.b16 %v4643
        %v5899 = vunpack.c.h.b16 %v4643
        %v5900 = vunpack.c.l.b16 %v4644
        %v5901 = vunpack.c.h.b16 %v4644
        %v5902 = vunpack.c.l.b16 %v4645
        %v5903 = vunpack.c.h.b16 %v4645
        %v5904 = vunpack.c.l.b16 %v4646
        %v5905 = vunpack.c.h.b16 %v4646
        %v5906 = vunpack.c.l.b16 %v4647
        %v5907 = vunpack.c.h.b16 %v4647
        %v5908 = vunpack.c.l.b16 %v4648
        %v5909 = vunpack.c.h.b16 %v4648
        %v5910 = vunpack.c.l.b16 %v4649
        %v5911 = vunpack.c.h.b16 %v4649
        %v5912 = vunpack.c.l.b16 %v4650
        %v5913 = vunpack.c.h.b16 %v4650
        %v5914 = vunpack.c.l.b16 %v4651
        %v5915 = vunpack.c.h.b16 %v4651
        %v5916 = vunpack.c.l.b16 %v4652
        %v5917 = vunpack.c.h.b16 %v4652
        %v5918 = vunpack.c.l.b16 %v4653
        %v5919 = vunpack.c.h.b16 %v4653
        %v5920 = vunpack.c.l.b16 %v4654
        %v5921 = vunpack.c.h.b16 %v4654
        %v5922 = vunpack.c.l.b16 %v4655
        %v5923 = vunpack.c.h.b16 %v4655
        %v5924 = vunpack.c.l.b16 %v4656
        %v5925 = vunpack.c.h.b16 %v4656
        %v5926 = vunpack.c.l.b16 %v4657
        %v5927 = vunpack.c.h.b16 %v4657
        %v5928 = vunpack.c.l.b16 %v4658
        %v5929 = vunpack.c.h.b16 %v4658
        %v5930 = vunpack.c.l.b16 %v4659
        %v5931 = vunpack.c.h.b16 %v4659
        %v5932 = vunpack.c.l.b16 %v4660
        %v5933 = vunpack.c.h.b16 %v4660
        %v5934 = vunpack.c.l.b16 %v4661
        %v5935 = vunpack.c.h.b16 %v4661
        %v5936 = vunpack.c.l.b16 %v4662
        %v5937 = vunpack.c.h.b16 %v4662
        %v5938 = vunpack.c.l.b16 %v4663
        %v5939 = vunpack.c.h.b16 %v4663
        %v5940 = vunpack.c.l.b16 %v4664
        %v5941 = vunpack.c.h.b16 %v4664
        %v5942 = vunpack.c.l.b16 %v4665
        %v5943 = vunpack.c.h.b16 %v4665
        %v5944 = vunpack.c.l.b16 %v4666
        %v5945 = vunpack.c.h.b16 %v4666
        %v5946 = vunpack.c.l.b16 %v4667
        %v5947 = vunpack.c.h.b16 %v4667
        %v5948 = vunpack.c.l.b16 %v4668
        %v5949 = vunpack.c.h.b16 %v4668
        %v5950 = vunpack.c.l.b16 %v4669
        %v5951 = vunpack.c.h.b16 %v4669
        %v5952 = vunpack.c.l.b16 %v4670
        %v5953 = vunpack.c.h.b16 %v4670
        %v5954 = vunpack.c.l.b16 %v4671
        %v5955 = vunpack.c.h.b16 %v4671
        %v5956 = vunpack.c.l.b16 %v4672
        %v5957 = vunpack.c.h.b16 %v4672
        %v5958 = vunpack.c.l.b16 %v4673
        %v5959 = vunpack.c.h.b16 %v4673
        %v5960 = vunpack.c.l.b16 %v4674
        %v5961 = vunpack.c.h.b16 %v4674
        %v5962 = vunpack.c.l.b16 %v4675
        %v5963 = vunpack.c.h.b16 %v4675
        %v5964 = vunpack.c.l.b16 %v4676
        %v5965 = vunpack.c.h.b16 %v4676
        %v5966 = vunpack.c.l.b16 %v4677
        %v5967 = vunpack.c.h.b16 %v4677
        %v5968 = vunpack.c.l.b16 %v4678
        %v5969 = vunpack.c.h.b16 %v4678
        %v5970 = vunpack.c.l.b16 %v4679
        %v5971 = vunpack.c.h.b16 %v4679
        %v5972 = vunpack.c.l.b16 %v4680
        %v5973 = vunpack.c.h.b16 %v4680
        %v5974 = vunpack.c.l.b16 %v4681
        %v5975 = vunpack.c.h.b16 %v4681
        %v5976 = vunpack.c.l.b16 %v4682
        %v5977 = vunpack.c.h.b16 %v4682
        %v5978 = vunpack.c.l.b16 %v4683
        %v5979 = vunpack.c.h.b16 %v4683
        %v5980 = vunpack.c.l.b16 %v4684
        %v5981 = vunpack.c.h.b16 %v4684
        %v5982 = vunpack.c.l.b16 %v4685
        %v5983 = vunpack.c.h.b16 %v4685
        %v5984 = vunpack.c.l.b16 %v4686
        %v5985 = vunpack.c.h.b16 %v4686
        %v5986 = vunpack.c.l.b16 %v4687
        %v5987 = vunpack.c.h.b16 %v4687
        %v5988 = vunpack.c.l.b16 %v4688
        %v5989 = vunpack.c.h.b16 %v4688
        %v5990 = vunpack.c.l.b16 %v4689
        %v5991 = vunpack.c.h.b16 %v4689
        %v5992 = vunpack.c.l.b16 %v4690
        %v5993 = vunpack.c.h.b16 %v4690
        %v5994 = vunpack.c.l.b16 %v4691
        %v5995 = vunpack.c.h.b16 %v4691
        %v5996 = vunpack.c.l.b16 %v4692
        %v5997 = vunpack.c.h.b16 %v4692
        %v5998 = vunpack.c.l.b16 %v4693
        %v5999 = vunpack.c.h.b16 %v4693
        %v6000 = vunpack.c.l.b16 %v4694
        %v6001 = vunpack.c.h.b16 %v4694
        %v6002 = vunpack.c.l.b16 %v4695
        %v6003 = vunpack.c.h.b16 %v4695
        %v6004 = vunpack.c.l.b16 %v4696
        %v6005 = vunpack.c.h.b16 %v4696
        %v6006 = vunpack.c.l.b16 %v4697
        %v6007 = vunpack.c.h.b16 %v4697
        %v6008 = vunpack.c.l.b16 %v4698
        %v6009 = vunpack.c.h.b16 %v4698
        %v6010 = vunpack.c.l.b16 %v4699
        %v6011 = vunpack.c.h.b16 %v4699
        %v6012 = vunpack.c.l.b16 %v4700
        %v6013 = vunpack.c.h.b16 %v4700
        %v6014 = vunpack.c.l.b16 %v4701
        %v6015 = vunpack.c.h.b16 %v4701
        %v6016 = vunpack.c.l.b16 %v4702
        %v6017 = vunpack.c.h.b16 %v4702
        %v6018 = vunpack.c.l.b16 %v4703
        %v6019 = vunpack.c.h.b16 %v4703
        %v6020 = vunpack.c.l.b16 %v4704
        %v6021 = vunpack.c.h.b16 %v4704
        %v6022 = vunpack.c.l.b16 %v4705
        %v6023 = vunpack.c.h.b16 %v4705
        %v6024 = vunpack.c.l.b16 %v4706
        %v6025 = vunpack.c.h.b16 %v4706
        %v6026 = vunpack.c.l.b16 %v4707
        %v6027 = vunpack.c.h.b16 %v4707
        %v6028 = vunpack.c.l.b16 %v4708
        %v6029 = vunpack.c.h.b16 %v4708
        %v6030 = vunpack.c.l.b16 %v4709
        %v6031 = vunpack.c.h.b16 %v4709
        %v6032 = vunpack.c.l.b16 %v4710
        %v6033 = vunpack.c.h.b16 %v4710
        %v6034 = vunpack.c.l.b16 %v4711
        %v6035 = vunpack.c.h.b16 %v4711
        %v6036 = vunpack.c.l.b16 %v4712
        %v6037 = vunpack.c.h.b16 %v4712
        %v6038 = vunpack.c.l.b16 %v4713
        %v6039 = vunpack.c.h.b16 %v4713
        %v6040 = vunpack.c.l.b16 %v4714
        %v6041 = vunpack.c.h.b16 %v4714
        %v6042 = vunpack.c.l.b16 %v4715
        %v6043 = vunpack.c.h.b16 %v4715
        %v6044 = vunpack.c.l.b16 %v4716
        %v6045 = vunpack.c.h.b16 %v4716
        %v6046 = vunpack.c.l.b16 %v4717
        %v6047 = vunpack.c.h.b16 %v4717
        %v6048 = vunpack.c.l.b16 %v4718
        %v6049 = vunpack.c.h.b16 %v4718
        %v6050 = vunpack.c.l.b16 %v4719
        %v6051 = vunpack.c.h.b16 %v4719
        %v6052 = vunpack.c.l.b16 %v4720
        %v6053 = vunpack.c.h.b16 %v4720
        %v6054 = vunpack.c.l.b16 %v4721
        %v6055 = vunpack.c.h.b16 %v4721
        %v6056 = vunpack.c.l.b16 %v4722
        %v6057 = vunpack.c.h.b16 %v4722
        %v6058 = vunpack.c.l.b16 %v4723
        %v6059 = vunpack.c.h.b16 %v4723
        %v6060 = vunpack.c.l.b16 %v4724
        %v6061 = vunpack.c.h.b16 %v4724
        %v6062 = vunpack.c.l.b16 %v4725
        %v6063 = vunpack.c.h.b16 %v4725
        %v6064 = vunpack.c.l.b16 %v4726
        %v6065 = vunpack.c.h.b16 %v4726
        %v6066 = vunpack.c.l.b16 %v4727
        %v6067 = vunpack.c.h.b16 %v4727
        %v6068 = vunpack.c.l.b16 %v4728
        %v6069 = vunpack.c.h.b16 %v4728
        %v6070 = vunpack.c.l.b16 %v4729
        %v6071 = vunpack.c.h.b16 %v4729
        %v6072 = vunpack.c.l.b16 %v4730
        %v6073 = vunpack.c.h.b16 %v4730
        %v6074 = vunpack.c.l.b16 %v4731
        %v6075 = vunpack.c.h.b16 %v4731
        %v6076 = vunpack.c.l.b16 %v4732
        %v6077 = vunpack.c.h.b16 %v4732
        %v6078 = vunpack.c.l.b16 %v4733
        %v6079 = vunpack.c.h.b16 %v4733
        %v6080 = vunpack.c.l.b16 %v4734
        %v6081 = vunpack.c.h.b16 %v4734
        %v6082 = vunpack.c.l.b16 %v4735
        %v6083 = vunpack.c.h.b16 %v4735
        %v6084 = vunpack.c.l.b16 %v4736
        %v6085 = vunpack.c.h.b16 %v4736
        %v6086 = vunpack.c.l.b16 %v4737
        %v6087 = vunpack.c.h.b16 %v4737
        %v6088 = vunpack.c.l.b16 %v4738
        %v6089 = vunpack.c.h.b16 %v4738
        %v6090 = vunpack.c.l.b16 %v4739
        %v6091 = vunpack.c.h.b16 %v4739
        %v6092 = vunpack.c.l.b16 %v4740
        %v6093 = vunpack.c.h.b16 %v4740
        %v6094 = vunpack.c.l.b16 %v4741
        %v6095 = vunpack.c.h.b16 %v4741
        %v6096 = vunpack.c.l.b16 %v4742
        %v6097 = vunpack.c.h.b16 %v4742
        %v6098 = vunpack.c.l.b16 %v4743
        %v6099 = vunpack.c.h.b16 %v4743
        %v6100 = vunpack.c.l.b16 %v4744
        %v6101 = vunpack.c.h.b16 %v4744
        %v6102 = vunpack.c.l.b16 %v4745
        %v6103 = vunpack.c.h.b16 %v4745
        %v6104 = vunpack.c.l.b16 %v4746
        %v6105 = vunpack.c.h.b16 %v4746
        %v6106 = vunpack.c.l.b16 %v4747
        %v6107 = vunpack.c.h.b16 %v4747
        %v6108 = vunpack.c.l.b16 %v4748
        %v6109 = vunpack.c.h.b16 %v4748
        %v6110 = vunpack.c.l.b16 %v4749
        %v6111 = vunpack.c.h.b16 %v4749
        %v6112 = vunpack.c.l.b16 %v4750
        %v6113 = vunpack.c.h.b16 %v4750
        %v6114 = vunpack.c.l.b16 %v4751
        %v6115 = vunpack.c.h.b16 %v4751
        %v6116 = vunpack.c.l.b16 %v4752
        %v6117 = vunpack.c.h.b16 %v4752
        %v6118 = vunpack.c.l.b16 %v4753
        %v6119 = vunpack.c.h.b16 %v4753
        %v6120 = vunpack.c.l.b16 %v4754
        %v6121 = vunpack.c.h.b16 %v4754
        %v6122 = vunpack.c.l.b16 %v4755
        %v6123 = vunpack.c.h.b16 %v4755
        %v6124 = vunpack.c.l.b16 %v4756
        %v6125 = vunpack.c.h.b16 %v4756
        %v6126 = vunpack.c.l.b16 %v4757
        %v6127 = vunpack.c.h.b16 %v4757
        %v6128 = vunpack.c.l.b16 %v4758
        %v6129 = vunpack.c.h.b16 %v4758
        %v6130 = vunpack.c.l.b16 %v4759
        %v6131 = vunpack.c.h.b16 %v4759
        %v6132 = vunpack.c.l.b16 %v4760
        %v6133 = vunpack.c.h.b16 %v4760
        %v6134 = vunpack.c.l.b16 %v4761
        %v6135 = vunpack.c.h.b16 %v4761
        %v6136 = vunpack.c.l.b16 %v4762
        %v6137 = vunpack.c.h.b16 %v4762
        %v6138 = vunpack.c.l.b16 %v4763
        %v6139 = vunpack.c.h.b16 %v4763
        %v6140 = vunpack.c.l.b16 %v4764
        %v6141 = vunpack.c.h.b16 %v4764
        %v6142 = vunpack.c.l.b16 %v4765
        %v6143 = vunpack.c.h.b16 %v4765
        %v6144 = vunpack.c.l.b16 %v4766
        %v6145 = vunpack.c.h.b16 %v4766
        %v6146 = vunpack.c.l.b16 %v4767
        %v6147 = vunpack.c.h.b16 %v4767
        %v6148 = vunpack.c.l.b16 %v4768
        %v6149 = vunpack.c.h.b16 %v4768
        %v6150 = vunpack.c.l.b16 %v4769
        %v6151 = vunpack.c.h.b16 %v4769
        %v6152 = vunpack.c.l.b16 %v4770
        %v6153 = vunpack.c.h.b16 %v4770
        %v6154 = vunpack.c.l.b16 %v4771
        %v6155 = vunpack.c.h.b16 %v4771
        %v6156 = vunpack.c.l.b16 %v4772
        %v6157 = vunpack.c.h.b16 %v4772
        %v6158 = vunpack.c.l.b16 %v4773
        %v6159 = vunpack.c.h.b16 %v4773
        %v6160 = vunpack.c.l.b16 %v4774
        %v6161 = vunpack.c.h.b16 %v4774
        %v6162 = vunpack.c.l.b16 %v4775
        %v6163 = vunpack.c.h.b16 %v4775
        %v6164 = vunpack.c.l.b16 %v4776
        %v6165 = vunpack.c.h.b16 %v4776
        %v6166 = vunpack.c.l.b16 %v4777
        %v6167 = vunpack.c.h.b16 %v4777
        %v6168 = vunpack.c.l.b16 %v4778
        %v6169 = vunpack.c.h.b16 %v4778
        %v6170 = vunpack.c.l.b16 %v4779
        %v6171 = vunpack.c.h.b16 %v4779
        %v6172 = vunpack.c.l.b16 %v4780
        %v6173 = vunpack.c.h.b16 %v4780
        %v6174 = vunpack.c.l.b16 %v4781
        %v6175 = vunpack.c.h.b16 %v4781
        %v6176 = vunpack.c.l.b16 %v4782
        %v6177 = vunpack.c.h.b16 %v4782
        %v6178 = vunpack.c.l.b16 %v4783
        %v6179 = vunpack.c.h.b16 %v4783
        %v6180 = vunpack.c.l.b16 %v4784
        %v6181 = vunpack.c.h.b16 %v4784
        %v6182 = vunpack.c.l.b16 %v4785
        %v6183 = vunpack.c.h.b16 %v4785
        %v6184 = vunpack.c.l.b16 %v4786
        %v6185 = vunpack.c.h.b16 %v4786
        %v6186 = vunpack.c.l.b16 %v4787
        %v6187 = vunpack.c.h.b16 %v4787
        %v6188 = vunpack.c.l.b16 %v4788
        %v6189 = vunpack.c.h.b16 %v4788
        %v6190 = vunpack.c.l.b16 %v4789
        %v6191 = vunpack.c.h.b16 %v4789
        %v6192 = vunpack.c.l.b16 %v4790
        %v6193 = vunpack.c.h.b16 %v4790
        %v6194 = vunpack.c.l.b16 %v4791
        %v6195 = vunpack.c.h.b16 %v4791
        %v6196 = vunpack.c.l.b16 %v4792
        %v6197 = vunpack.c.h.b16 %v4792
        %v6198 = vunpack.c.l.b16 %v4793
        %v6199 = vunpack.c.h.b16 %v4793
        %v6200 = vunpack.c.l.b16 %v4794
        %v6201 = vunpack.c.h.b16 %v4794
        %v6202 = vunpack.c.l.b16 %v4795
        %v6203 = vunpack.c.h.b16 %v4795
        %v6204 = vunpack.c.l.b16 %v4796
        %v6205 = vunpack.c.h.b16 %v4796
        %v6206 = vunpack.c.l.b16 %v4797
        %v6207 = vunpack.c.h.b16 %v4797
        %v6208 = vunpack.c.l.b16 %v4798
        %v6209 = vunpack.c.h.b16 %v4798
        %v6210 = vunpack.c.l.b16 %v4799
        %v6211 = vunpack.c.h.b16 %v4799
        %v6212 = vunpack.c.l.b16 %v4800
        %v6213 = vunpack.c.h.b16 %v4800
        %v6214 = vunpack.c.l.b16 %v4801
        %v6215 = vunpack.c.h.b16 %v4801
        %v6216 = vunpack.c.l.b16 %v4802
        %v6217 = vunpack.c.h.b16 %v4802
        %v6218 = vunpack.c.l.b16 %v4803
        %v6219 = vunpack.c.h.b16 %v4803
        %v6220 = vunpack.c.l.b16 %v4804
        %v6221 = vunpack.c.h.b16 %v4804
        %v6222 = vunpack.c.l.b16 %v4805
        %v6223 = vunpack.c.h.b16 %v4805
        %v6224 = vunpack.c.l.b16 %v4806
        %v6225 = vunpack.c.h.b16 %v4806
        %v6226 = vunpack.c.l.b16 %v4807
        %v6227 = vunpack.c.h.b16 %v4807
        %v6228 = vunpack.c.l.b16 %v4808
        %v6229 = vunpack.c.h.b16 %v4808
        %v6230 = vunpack.c.l.b16 %v4809
        %v6231 = vunpack.c.h.b16 %v4809
        %v6232 = vunpack.c.l.b16 %v4810
        %v6233 = vunpack.c.h.b16 %v4810
        %v6234 = vunpack.c.l.b16 %v4811
        %v6235 = vunpack.c.h.b16 %v4811
        %v6236 = vunpack.c.l.b16 %v4812
        %v6237 = vunpack.c.h.b16 %v4812
        %v6238 = vunpack.c.l.b16 %v4813
        %v6239 = vunpack.c.h.b16 %v4813
        %v6240 = vunpack.c.l.b16 %v4814
        %v6241 = vunpack.c.h.b16 %v4814
        %v6242 = vunpack.c.l.b16 %v4815
        %v6243 = vunpack.c.h.b16 %v4815
        %v6244 = vunpack.c.l.b16 %v4816
        %v6245 = vunpack.c.h.b16 %v4816
        %v6246 = vunpack.c.l.b16 %v4817
        %v6247 = vunpack.c.h.b16 %v4817
        %v6248 = vunpack.c.l.b16 %v4818
        %v6249 = vunpack.c.h.b16 %v4818
        %v6250 = vunpack.c.l.b16 %v4819
        %v6251 = vunpack.c.h.b16 %v4819
        %v6252 = vunpack.c.l.b16 %v4820
        %v6253 = vunpack.c.h.b16 %v4820
        %v6254 = vunpack.c.l.b16 %v4821
        %v6255 = vunpack.c.h.b16 %v4821
        %v6256 = vunpack.c.l.b16 %v4822
        %v6257 = vunpack.c.h.b16 %v4822
        %v6258 = vunpack.c.l.b16 %v4823
        %v6259 = vunpack.c.h.b16 %v4823
        %v6260 = vunpack.c.l.b16 %v4824
        %v6261 = vunpack.c.h.b16 %v4824
        %v6262 = vunpack.c.l.b16 %v4825
        %v6263 = vunpack.c.h.b16 %v4825
        %v6264 = vunpack.c.l.b16 %v4826
        %v6265 = vunpack.c.h.b16 %v4826
        %v6266 = vunpack.c.l.b16 %v4827
        %v6267 = vunpack.c.h.b16 %v4827
        %v6268 = vunpack.c.l.b16 %v4828
        %v6269 = vunpack.c.h.b16 %v4828
        %v6270 = vunpack.c.l.b16 %v4829
        %v6271 = vunpack.c.h.b16 %v4829
        %v6272 = vunpack.c.l.b16 %v4830
        %v6273 = vunpack.c.h.b16 %v4830
        %v6274 = vunpack.c.l.b16 %v4831
        %v6275 = vunpack.c.h.b16 %v4831
        %v6276 = vunpack.c.l.b16 %v4832
        %v6277 = vunpack.c.h.b16 %v4832
        %v6278 = vunpack.c.l.b16 %v4833
        %v6279 = vunpack.c.h.b16 %v4833
        %v6280 = vunpack.c.l.b16 %v4834
        %v6281 = vunpack.c.h.b16 %v4834
        %v6282 = vunpack.c.l.b16 %v4835
        %v6283 = vunpack.c.h.b16 %v4835
        %v6284 = vunpack.c.l.b16 %v4836
        %v6285 = vunpack.c.h.b16 %v4836
        %v6286 = vunpack.c.l.b16 %v4837
        %v6287 = vunpack.c.h.b16 %v4837
        %v6288 = vunpack.c.l.b16 %v4838
        %v6289 = vunpack.c.h.b16 %v4838
        %v6290 = vunpack.c.l.b16 %v4839
        %v6291 = vunpack.c.h.b16 %v4839
        %v6292 = vunpack.c.l.b16 %v4840
        %v6293 = vunpack.c.h.b16 %v4840
        %v6294 = vunpack.c.l.b16 %v4841
        %v6295 = vunpack.c.h.b16 %v4841
        %v6296 = vunpack.c.l.b16 %v4842
        %v6297 = vunpack.c.h.b16 %v4842
        %v6298 = vunpack.c.l.b16 %v4843
        %v6299 = vunpack.c.h.b16 %v4843
        %v6300 = vunpack.c.l.b16 %v4844
        %v6301 = vunpack.c.h.b16 %v4844
        %v6302 = vunpack.c.l.b16 %v4845
        %v6303 = vunpack.c.h.b16 %v4845
        %v6304 = vunpack.c.l.b16 %v4846
        %v6305 = vunpack.c.h.b16 %v4846
        %v6306 = vunpack.c.l.b16 %v4847
        %v6307 = vunpack.c.h.b16 %v4847
        %v6308 = vunpack.c.l.b16 %v4848
        %v6309 = vunpack.c.h.b16 %v4848
        %v6310 = vunpack.c.l.b16 %v4849
        %v6311 = vunpack.c.h.b16 %v4849
        %v6312 = vunpack.c.l.b16 %v4850
        %v6313 = vunpack.c.h.b16 %v4850
        %v6314 = vunpack.c.l.b16 %v4851
        %v6315 = vunpack.c.h.b16 %v4851
        %v6316 = vunpack.c.l.b16 %v4852
        %v6317 = vunpack.c.h.b16 %v4852
        %v6318 = vunpack.c.l.b16 %v4853
        %v6319 = vunpack.c.h.b16 %v4853
        %v6320 = vunpack.c.l.b16 %v4854
        %v6321 = vunpack.c.h.b16 %v4854
        %v6322 = vunpack.c.l.b16 %v4855
        %v6323 = vunpack.c.h.b16 %v4855
        %v6324 = vunpack.c.l.b16 %v4856
        %v6325 = vunpack.c.h.b16 %v4856
        %v6326 = vunpack.c.l.b16 %v4857
        %v6327 = vunpack.c.h.b16 %v4857
        %v6328 = vunpack.c.l.b16 %v4858
        %v6329 = vunpack.c.h.b16 %v4858
        %v6330 = vunpack.c.l.b16 %v4859
        %v6331 = vunpack.c.h.b16 %v4859
        %v6332 = vunpack.c.l.b16 %v4860
        %v6333 = vunpack.c.h.b16 %v4860
        %v6334 = vunpack.c.l.b16 %v4861
        %v6335 = vunpack.c.h.b16 %v4861
        %v6336 = vunpack.c.l.b16 %v4862
        %v6337 = vunpack.c.h.b16 %v4862
        %v6338 = vunpack.c.l.b16 %v4863
        %v6339 = vunpack.c.h.b16 %v4863
        %v6340 = vunpack.c.l.b16 %v4864
        %v6341 = vunpack.c.h.b16 %v4864
        %v6342 = vunpack.c.l.b16 %v4865
        %v6343 = vunpack.c.h.b16 %v4865
        %v6344 = vunpack.c.l.b16 %v4866
        %v6345 = vunpack.c.h.b16 %v4866
        %v6346 = vunpack.c.l.b16 %v4867
        %v6347 = vunpack.c.h.b16 %v4867
        %v6348 = vunpack.c.l.b16 %v4868
        %v6349 = vunpack.c.h.b16 %v4868
        %v6350 = vunpack.c.l.b16 %v4869
        %v6351 = vunpack.c.h.b16 %v4869
        %v6352 = vunpack.c.l.b16 %v4870
        %v6353 = vunpack.c.h.b16 %v4870
        %v6354 = vunpack.c.l.b16 %v4871
        %v6355 = vunpack.c.h.b16 %v4871
        %v6356 = vunpack.c.l.b16 %v4872
        %v6357 = vunpack.c.h.b16 %v4872
        %v6358 = vunpack.c.l.b16 %v4873
        %v6359 = vunpack.c.h.b16 %v4873
        %v6360 = vunpack.c.l.b16 %v4874
        %v6361 = vunpack.c.h.b16 %v4874
        %v6362 = vunpack.c.l.b16 %v4875
        %v6363 = vunpack.c.h.b16 %v4875
        %v6364 = vunpack.c.l.b16 %v4876
        %v6365 = vunpack.c.h.b16 %v4876
        %v6366 = vunpack.c.l.b16 %v4877
        %v6367 = vunpack.c.h.b16 %v4877
        %v6368 = vunpack.c.l.b16 %v4878
        %v6369 = vunpack.c.h.b16 %v4878
        %v6370 = vunpack.c.l.b16 %v4879
        %v6371 = vunpack.c.h.b16 %v4879
        %v6372 = vunpack.c.l.b16 %v4880
        %v6373 = vunpack.c.h.b16 %v4880
        %v6374 = vunpack.c.l.b16 %v4881
        %v6375 = vunpack.c.h.b16 %v4881
        %v6376 = vunpack.c.l.b16 %v4882
        %v6377 = vunpack.c.h.b16 %v4882
        %v6378 = vunpack.c.l.b16 %v4883
        %v6379 = vunpack.c.h.b16 %v4883
        %v6380 = vunpack.c.l.b16 %v4884
        %v6381 = vunpack.c.h.b16 %v4884
        %v6382 = vunpack.c.l.b16 %v4885
        %v6383 = vunpack.c.h.b16 %v4885
        %v6384 = vunpack.c.l.b16 %v4886
        %v6385 = vunpack.c.h.b16 %v4886
        %v6386 = vunpack.c.l.b16 %v4887
        %v6387 = vunpack.c.h.b16 %v4887
        %v6388 = vunpack.c.l.b16 %v4888
        %v6389 = vunpack.c.h.b16 %v4888
        %v6390 = vunpack.c.l.b16 %v4889
        %v6391 = vunpack.c.h.b16 %v4889
        %v6392 = vunpack.c.l.b16 %v4890
        %v6393 = vunpack.c.h.b16 %v4890
        %v6394 = vunpack.c.l.b16 %v4891
        %v6395 = vunpack.c.h.b16 %v4891
        %v6396 = vunpack.c.l.b16 %v4892
        %v6397 = vunpack.c.h.b16 %v4892
        %v6398 = vunpack.c.l.b16 %v4893
        %v6399 = vunpack.c.h.b16 %v4893
        %v6400 = vunpack.c.l.b16 %v4894
        %v6401 = vunpack.c.h.b16 %v4894
        %v6402 = vunpack.c.l.b16 %v4895
        %v6403 = vunpack.c.h.b16 %v4895
        %v6404 = vunpack.c.l.b16 %v4896
        %v6405 = vunpack.c.h.b16 %v4896
        %v6406 = vunpack.c.l.b16 %v4897
        %v6407 = vunpack.c.h.b16 %v4897
        %v6408 = vunpack.c.l.b16 %v4898
        %v6409 = vunpack.c.h.b16 %v4898
        %v6410 = vunpack.c.l.b16 %v4899
        %v6411 = vunpack.c.h.b16 %v4899
        %v6412 = vunpack.c.l.b16 %v4900
        %v6413 = vunpack.c.h.b16 %v4900
        %v6414 = vunpack.c.l.b16 %v4901
        %v6415 = vunpack.c.h.b16 %v4901
        %v6416 = vunpack.c.l.b16 %v4902
        %v6417 = vunpack.c.h.b16 %v4902
        %v6418 = vunpack.c.l.b16 %v4903
        %v6419 = vunpack.c.h.b16 %v4903
        %v6420 = vunpack.c.l.b16 %v4904
        %v6421 = vunpack.c.h.b16 %v4904
        %v6422 = vunpack.c.l.b16 %v4905
        %v6423 = vunpack.c.h.b16 %v4905
        %v6424 = vunpack.c.l.b16 %v4906
        %v6425 = vunpack.c.h.b16 %v4906
        %v6426 = vunpack.c.l.b16 %v4907
        %v6427 = vunpack.c.h.b16 %v4907
        %v6428 = vunpack.c.l.b16 %v4908
        %v6429 = vunpack.c.h.b16 %v4908
        %v6430 = vunpack.c.l.b16 %v4909
        %v6431 = vunpack.c.h.b16 %v4909
        %v6432 = vunpack.c.l.b16 %v4910
        %v6433 = vunpack.c.h.b16 %v4910
        %v6434 = vunpack.c.l.b16 %v4911
        %v6435 = vunpack.c.h.b16 %v4911
        %v6436 = vunpack.c.l.b16 %v4912
        %v6437 = vunpack.c.h.b16 %v4912
        %v6438 = vunpack.c.l.b16 %v4913
        %v6439 = vunpack.c.h.b16 %v4913
        %v6440 = vunpack.c.l.b16 %v4914
        %v6441 = vunpack.c.h.b16 %v4914
        %v6442 = vunpack.c.l.b16 %v4915
        %v6443 = vunpack.c.h.b16 %v4915
        %v6444 = vunpack.c.l.b16 %v4916
        %v6445 = vunpack.c.h.b16 %v4916
        %v6446 = vunpack.c.l.b16 %v4917
        %v6447 = vunpack.c.h.b16 %v4917
        %v6448 = vunpack.c.l.b16 %v4918
        %v6449 = vunpack.c.h.b16 %v4918
        %v6450 = vunpack.c.l.b16 %v4919
        %v6451 = vunpack.c.h.b16 %v4919
        %v6452 = vunpack.c.l.b16 %v4920
        %v6453 = vunpack.c.h.b16 %v4920
        %v6454 = vunpack.c.l.b16 %v4921
        %v6455 = vunpack.c.h.b16 %v4921
        %v6456 = vunpack.c.l.b16 %v4922
        %v6457 = vunpack.c.h.b16 %v4922
        %v6458 = vunpack.c.l.b16 %v4923
        %v6459 = vunpack.c.h.b16 %v4923
        %v6460 = vunpack.c.l.b16 %v4924
        %v6461 = vunpack.c.h.b16 %v4924
        %v6462 = vunpack.c.l.b16 %v4925
        %v6463 = vunpack.c.h.b16 %v4925
        %v6464 = vunpack.c.l.b16 %v4926
        %v6465 = vunpack.c.h.b16 %v4926
        %v6466 = vunpack.c.l.b16 %v4927
        %v6467 = vunpack.c.h.b16 %v4927
        %v6468 = vunpack.c.l.b16 %v4928
        %v6469 = vunpack.c.h.b16 %v4928
        %v6470 = vunpack.c.l.b16 %v4929
        %v6471 = vunpack.c.h.b16 %v4929
        %v6472 = vunpack.c.l.b16 %v4930
        %v6473 = vunpack.c.h.b16 %v4930
        %v6474 = vunpack.c.l.b16 %v4931
        %v6475 = vunpack.c.h.b16 %v4931
        %v6476 = vunpack.c.l.b16 %v4932
        %v6477 = vunpack.c.h.b16 %v4932
        %v6478 = vunpack.c.l.b16 %v4933
        %v6479 = vunpack.c.h.b16 %v4933
        %v6480 = vunpack.c.l.b16 %v4934
        %v6481 = vunpack.c.h.b16 %v4934
        %v6482 = vunpack.c.l.b16 %v4935
        %v6483 = vunpack.c.h.b16 %v4935
        %v6484 = vunpack.c.l.b16 %v4936
        %v6485 = vunpack.c.h.b16 %v4936
        %v6486 = vunpack.c.l.b16 %v4937
        %v6487 = vunpack.c.h.b16 %v4937
        %v6488 = vunpack.c.l.b16 %v4938
        %v6489 = vunpack.c.h.b16 %v4938
        %v6490 = vunpack.c.l.b16 %v4939
        %v6491 = vunpack.c.h.b16 %v4939
        %v6492 = vunpack.c.l.b16 %v4940
        %v6493 = vunpack.c.h.b16 %v4940
        %v6494 = vunpack.c.l.b16 %v4941
        %v6495 = vunpack.c.h.b16 %v4941
        %v6496 = vunpack.c.l.b16 %v4942
        %v6497 = vunpack.c.h.b16 %v4942
        %v6498 = vunpack.c.l.b16 %v4943
        %v6499 = vunpack.c.h.b16 %v4943
        %v6500 = vunpack.c.l.b16 %v4944
        %v6501 = vunpack.c.h.b16 %v4944
        %v6502 = vunpack.c.l.b16 %v4945
        %v6503 = vunpack.c.h.b16 %v4945
        %v6504 = vunpack.c.l.b16 %v4946
        %v6505 = vunpack.c.h.b16 %v4946
        %v6506 = vunpack.c.l.b16 %v4947
        %v6507 = vunpack.c.h.b16 %v4947
        %v6508 = vunpack.c.l.b16 %v4948
        %v6509 = vunpack.c.h.b16 %v4948
        %v6510 = vunpack.c.l.b16 %v4949
        %v6511 = vunpack.c.h.b16 %v4949
        %v6512 = vunpack.c.l.b16 %v4950
        %v6513 = vunpack.c.h.b16 %v4950
        %v6514 = vunpack.c.l.b16 %v4951
        %v6515 = vunpack.c.h.b16 %v4951
        %v6516 = vunpack.c.l.b16 %v4952
        %v6517 = vunpack.c.h.b16 %v4952
        %v6518 = vunpack.c.l.b16 %v4953
        %v6519 = vunpack.c.h.b16 %v4953
        %v6520 = vunpack.c.l.b16 %v4954
        %v6521 = vunpack.c.h.b16 %v4954
        %v6522 = vunpack.c.l.b16 %v4955
        %v6523 = vunpack.c.h.b16 %v4955
        %v6524 = vpack.c.b16 %v5516, %v5500
        %v6525 = vpack.c.b16 %v5517, %v5501
        %v6526 = vpack.c.b16 %v5518, %v5502
        %v6527 = vpack.c.b16 %v5519, %v5503
        %v6528 = vpack.c.b16 %v5520, %v5504
        %v6529 = vpack.c.b16 %v5521, %v5505
        %v6530 = vpack.c.b16 %v5522, %v5506
        %v6531 = vpack.c.b16 %v5523, %v5507
        %v6532 = vpack.c.b16 %v5524, %v5508
        %v6533 = vpack.c.b16 %v5525, %v5509
        %v6534 = vpack.c.b16 %v5526, %v5510
        %v6535 = vpack.c.b16 %v5527, %v5511
        %v6536 = vpack.c.b16 %v5528, %v5512
        %v6537 = vpack.c.b16 %v5529, %v5513
        %v6538 = vpack.c.b16 %v5530, %v5514
        %v6539 = vpack.c.b16 %v5531, %v5515
        %v6540 = vpack.c.b16 %v5548, %v5532
        %v6541 = vpack.c.b16 %v5549, %v5533
        %v6542 = vpack.c.b16 %v5550, %v5534
        %v6543 = vpack.c.b16 %v5551, %v5535
        %v6544 = vpack.c.b16 %v5552, %v5536
        %v6545 = vpack.c.b16 %v5553, %v5537
        %v6546 = vpack.c.b16 %v5554, %v5538
        %v6547 = vpack.c.b16 %v5555, %v5539
        %v6548 = vpack.c.b16 %v5556, %v5540
        %v6549 = vpack.c.b16 %v5557, %v5541
        %v6550 = vpack.c.b16 %v5558, %v5542
        %v6551 = vpack.c.b16 %v5559, %v5543
        %v6552 = vpack.c.b16 %v5560, %v5544
        %v6553 = vpack.c.b16 %v5561, %v5545
        %v6554 = vpack.c.b16 %v5562, %v5546
        %v6555 = vpack.c.b16 %v5563, %v5547
        %v6556 = vpack.c.b16 %v5580, %v5564
        %v6557 = vpack.c.b16 %v5581, %v5565
        %v6558 = vpack.c.b16 %v5582, %v5566
        %v6559 = vpack.c.b16 %v5583, %v5567
        %v6560 = vpack.c.b16 %v5584, %v5568
        %v6561 = vpack.c.b16 %v5585, %v5569
        %v6562 = vpack.c.b16 %v5586, %v5570
        %v6563 = vpack.c.b16 %v5587, %v5571
        %v6564 = vpack.c.b16 %v5588, %v5572
        %v6565 = vpack.c.b16 %v5589, %v5573
        %v6566 = vpack.c.b16 %v5590, %v5574
        %v6567 = vpack.c.b16 %v5591, %v5575
        %v6568 = vpack.c.b16 %v5592, %v5576
        %v6569 = vpack.c.b16 %v5593, %v5577
        %v6570 = vpack.c.b16 %v5594, %v5578
        %v6571 = vpack.c.b16 %v5595, %v5579
        %v6572 = vpack.c.b16 %v5612, %v5596
        %v6573 = vpack.c.b16 %v5613, %v5597
        %v6574 = vpack.c.b16 %v5614, %v5598
        %v6575 = vpack.c.b16 %v5615, %v5599
        %v6576 = vpack.c.b16 %v5616, %v5600
        %v6577 = vpack.c.b16 %v5617, %v5601
        %v6578 = vpack.c.b16 %v5618, %v5602
        %v6579 = vpack.c.b16 %v5619, %v5603
        %v6580 = vpack.c.b16 %v5620, %v5604
        %v6581 = vpack.c.b16 %v5621, %v5605
        %v6582 = vpack.c.b16 %v5622, %v5606
        %v6583 = vpack.c.b16 %v5623, %v5607
        %v6584 = vpack.c.b16 %v5624, %v5608
        %v6585 = vpack.c.b16 %v5625, %v5609
        %v6586 = vpack.c.b16 %v5626, %v5610
        %v6587 = vpack.c.b16 %v5627, %v5611
        %v6588 = vpack.c.b16 %v5644, %v5628
        %v6589 = vpack.c.b16 %v5645, %v5629
        %v6590 = vpack.c.b16 %v5646, %v5630
        %v6591 = vpack.c.b16 %v5647, %v5631
        %v6592 = vpack.c.b16 %v5648, %v5632
        %v6593 = vpack.c.b16 %v5649, %v5633
        %v6594 = vpack.c.b16 %v5650, %v5634
        %v6595 = vpack.c.b16 %v5651, %v5635
        %v6596 = vpack.c.b16 %v5652, %v5636
        %v6597 = vpack.c.b16 %v5653, %v5637
        %v6598 = vpack.c.b16 %v5654, %v5638
        %v6599 = vpack.c.b16 %v5655, %v5639
        %v6600 = vpack.c.b16 %v5656, %v5640
        %v6601 = vpack.c.b16 %v5657, %v5641
        %v6602 = vpack.c.b16 %v5658, %v5642
        %v6603 = vpack.c.b16 %v5659, %v5643
        %v6604 = vpack.c.b16 %v5676, %v5660
        %v6605 = vpack.c.b16 %v5677, %v5661
        %v6606 = vpack.c.b16 %v5678, %v5662
        %v6607 = vpack.c.b16 %v5679, %v5663
        %v6608 = vpack.c.b16 %v5680, %v5664
        %v6609 = vpack.c.b16 %v5681, %v5665
        %v6610 = vpack.c.b16 %v5682, %v5666
        %v6611 = vpack.c.b16 %v5683, %v5667
        %v6612 = vpack.c.b16 %v5684, %v5668
        %v6613 = vpack.c.b16 %v5685, %v5669
        %v6614 = vpack.c.b16 %v5686, %v5670
        %v6615 = vpack.c.b16 %v5687, %v5671
        %v6616 = vpack.c.b16 %v5688, %v5672
        %v6617 = vpack.c.b16 %v5689, %v5673
        %v6618 = vpack.c.b16 %v5690, %v5674
        %v6619 = vpack.c.b16 %v5691, %v5675
        %v6620 = vpack.c.b16 %v5708, %v5692
        %v6621 = vpack.c.b16 %v5709, %v5693
        %v6622 = vpack.c.b16 %v5710, %v5694
        %v6623 = vpack.c.b16 %v5711, %v5695
        %v6624 = vpack.c.b16 %v5712, %v5696
        %v6625 = vpack.c.b16 %v5713, %v5697
        %v6626 = vpack.c.b16 %v5714, %v5698
        %v6627 = vpack.c.b16 %v5715, %v5699
        %v6628 = vpack.c.b16 %v5716, %v5700
        %v6629 = vpack.c.b16 %v5717, %v5701
        %v6630 = vpack.c.b16 %v5718, %v5702
        %v6631 = vpack.c.b16 %v5719, %v5703
        %v6632 = vpack.c.b16 %v5720, %v5704
        %v6633 = vpack.c.b16 %v5721, %v5705
        %v6634 = vpack.c.b16 %v5722, %v5706
        %v6635 = vpack.c.b16 %v5723, %v5707
        %v6636 = vpack.c.b16 %v5740, %v5724
        %v6637 = vpack.c.b16 %v5741, %v5725
        %v6638 = vpack.c.b16 %v5742, %v5726
        %v6639 = vpack.c.b16 %v5743, %v5727
        %v6640 = vpack.c.b16 %v5744, %v5728
        %v6641 = vpack.c.b16 %v5745, %v5729
        %v6642 = vpack.c.b16 %v5746, %v5730
        %v6643 = vpack.c.b16 %v5747, %v5731
        %v6644 = vpack.c.b16 %v5748, %v5732
        %v6645 = vpack.c.b16 %v5749, %v5733
        %v6646 = vpack.c.b16 %v5750, %v5734
        %v6647 = vpack.c.b16 %v5751, %v5735
        %v6648 = vpack.c.b16 %v5752, %v5736
        %v6649 = vpack.c.b16 %v5753, %v5737
        %v6650 = vpack.c.b16 %v5754, %v5738
        %v6651 = vpack.c.b16 %v5755, %v5739
        %v6652 = vpack.c.b16 %v5772, %v5756
        %v6653 = vpack.c.b16 %v5773, %v5757
        %v6654 = vpack.c.b16 %v5774, %v5758
        %v6655 = vpack.c.b16 %v5775, %v5759
        %v6656 = vpack.c.b16 %v5776, %v5760
        %v6657 = vpack.c.b16 %v5777, %v5761
        %v6658 = vpack.c.b16 %v5778, %v5762
        %v6659 = vpack.c.b16 %v5779, %v5763
        %v6660 = vpack.c.b16 %v5780, %v5764
        %v6661 = vpack.c.b16 %v5781, %v5765
        %v6662 = vpack.c.b16 %v5782, %v5766
        %v6663 = vpack.c.b16 %v5783, %v5767
        %v6664 = vpack.c.b16 %v5784, %v5768
        %v6665 = vpack.c.b16 %v5785, %v5769
        %v6666 = vpack.c.b16 %v5786, %v5770
        %v6667 = vpack.c.b16 %v5787, %v5771
        %v6668 = vpack.c.b16 %v5804, %v5788
        %v6669 = vpack.c.b16 %v5805, %v5789
        %v6670 = vpack.c.b16 %v5806, %v5790
        %v6671 = vpack.c.b16 %v5807, %v5791
        %v6672 = vpack.c.b16 %v5808, %v5792
        %v6673 = vpack.c.b16 %v5809, %v5793
        %v6674 = vpack.c.b16 %v5810, %v5794
        %v6675 = vpack.c.b16 %v5811, %v5795
        %v6676 = vpack.c.b16 %v5812, %v5796
        %v6677 = vpack.c.b16 %v5813, %v5797
        %v6678 = vpack.c.b16 %v5814, %v5798
        %v6679 = vpack.c.b16 %v5815, %v5799
        %v6680 = vpack.c.b16 %v5816, %v5800
        %v6681 = vpack.c.b16 %v5817, %v5801
        %v6682 = vpack.c.b16 %v5818, %v5802
        %v6683 = vpack.c.b16 %v5819, %v5803
        %v6684 = vpack.c.b16 %v5836, %v5820
        %v6685 = vpack.c.b16 %v5837, %v5821
        %v6686 = vpack.c.b16 %v5838, %v5822
        %v6687 = vpack.c.b16 %v5839, %v5823
        %v6688 = vpack.c.b16 %v5840, %v5824
        %v6689 = vpack.c.b16 %v5841, %v5825
        %v6690 = vpack.c.b16 %v5842, %v5826
        %v6691 = vpack.c.b16 %v5843, %v5827
        %v6692 = vpack.c.b16 %v5844, %v5828
        %v6693 = vpack.c.b16 %v5845, %v5829
        %v6694 = vpack.c.b16 %v5846, %v5830
        %v6695 = vpack.c.b16 %v5847, %v5831
        %v6696 = vpack.c.b16 %v5848, %v5832
        %v6697 = vpack.c.b16 %v5849, %v5833
        %v6698 = vpack.c.b16 %v5850, %v5834
        %v6699 = vpack.c.b16 %v5851, %v5835
        %v6700 = vpack.c.b16 %v5868, %v5852
        %v6701 = vpack.c.b16 %v5869, %v5853
        %v6702 = vpack.c.b16 %v5870, %v5854
        %v6703 = vpack.c.b16 %v5871, %v5855
        %v6704 = vpack.c.b16 %v5872, %v5856
        %v6705 = vpack.c.b16 %v5873, %v5857
        %v6706 = vpack.c.b16 %v5874, %v5858
        %v6707 = vpack.c.b16 %v5875, %v5859
        %v6708 = vpack.c.b16 %v5876, %v5860
        %v6709 = vpack.c.b16 %v5877, %v5861
        %v6710 = vpack.c.b16 %v5878, %v5862
        %v6711 = vpack.c.b16 %v5879, %v5863
        %v6712 = vpack.c.b16 %v5880, %v5864
        %v6713 = vpack.c.b16 %v5881, %v5865
        %v6714 = vpack.c.b16 %v5882, %v5866
        %v6715 = vpack.c.b16 %v5883, %v5867
        %v6716 = vpack.c.b16 %v5900, %v5884
        %v6717 = vpack.c.b16 %v5901, %v5885
        %v6718 = vpack.c.b16 %v5902, %v5886
        %v6719 = vpack.c.b16 %v5903, %v5887
        %v6720 = vpack.c.b16 %v5904, %v5888
        %v6721 = vpack.c.b16 %v5905, %v5889
        %v6722 = vpack.c.b16 %v5906, %v5890
        %v6723 = vpack.c.b16 %v5907, %v5891
        %v6724 = vpack.c.b16 %v5908, %v5892
        %v6725 = vpack.c.b16 %v5909, %v5893
        %v6726 = vpack.c.b16 %v5910, %v5894
        %v6727 = vpack.c.b16 %v5911, %v5895
        %v6728 = vpack.c.b16 %v5912, %v5896
        %v6729 = vpack.c.b16 %v5913, %v5897
        %v6730 = vpack.c.b16 %v5914, %v5898
        %v6731 = vpack.c.b16 %v5915, %v5899
        %v6732 = vpack.c.b16 %v5932, %v5916
        %v6733 = vpack.c.b16 %v5933, %v5917
        %v6734 = vpack.c.b16 %v5934, %v5918
        %v6735 = vpack.c.b16 %v5935, %v5919
        %v6736 = vpack.c.b16 %v5936, %v5920
        %v6737 = vpack.c.b16 %v5937, %v5921
        %v6738 = vpack.c.b16 %v5938, %v5922
        %v6739 = vpack.c.b16 %v5939, %v5923
        %v6740 = vpack.c.b16 %v5940, %v5924
        %v6741 = vpack.c.b16 %v5941, %v5925
        %v6742 = vpack.c.b16 %v5942, %v5926
        %v6743 = vpack.c.b16 %v5943, %v5927
        %v6744 = vpack.c.b16 %v5944, %v5928
        %v6745 = vpack.c.b16 %v5945, %v5929
        %v6746 = vpack.c.b16 %v5946, %v5930
        %v6747 = vpack.c.b16 %v5947, %v5931
        %v6748 = vpack.c.b16 %v5964, %v5948
        %v6749 = vpack.c.b16 %v5965, %v5949
        %v6750 = vpack.c.b16 %v5966, %v5950
        %v6751 = vpack.c.b16 %v5967, %v5951
        %v6752 = vpack.c.b16 %v5968, %v5952
        %v6753 = vpack.c.b16 %v5969, %v5953
        %v6754 = vpack.c.b16 %v5970, %v5954
        %v6755 = vpack.c.b16 %v5971, %v5955
        %v6756 = vpack.c.b16 %v5972, %v5956
        %v6757 = vpack.c.b16 %v5973, %v5957
        %v6758 = vpack.c.b16 %v5974, %v5958
        %v6759 = vpack.c.b16 %v5975, %v5959
        %v6760 = vpack.c.b16 %v5976, %v5960
        %v6761 = vpack.c.b16 %v5977, %v5961
        %v6762 = vpack.c.b16 %v5978, %v5962
        %v6763 = vpack.c.b16 %v5979, %v5963
        %v6764 = vpack.c.b16 %v5996, %v5980
        %v6765 = vpack.c.b16 %v5997, %v5981
        %v6766 = vpack.c.b16 %v5998, %v5982
        %v6767 = vpack.c.b16 %v5999, %v5983
        %v6768 = vpack.c.b16 %v6000, %v5984
        %v6769 = vpack.c.b16 %v6001, %v5985
        %v6770 = vpack.c.b16 %v6002, %v5986
        %v6771 = vpack.c.b16 %v6003, %v5987
        %v6772 = vpack.c.b16 %v6004, %v5988
        %v6773 = vpack.c.b16 %v6005, %v5989
        %v6774 = vpack.c.b16 %v6006, %v5990
        %v6775 = vpack.c.b16 %v6007, %v5991
        %v6776 = vpack.c.b16 %v6008, %v5992
        %v6777 = vpack.c.b16 %v6009, %v5993
        %v6778 = vpack.c.b16 %v6010, %v5994
        %v6779 = vpack.c.b16 %v6011, %v5995
        %v6780 = vpack.c.b16 %v6028, %v6012
        %v6781 = vpack.c.b16 %v6029, %v6013
        %v6782 = vpack.c.b16 %v6030, %v6014
        %v6783 = vpack.c.b16 %v6031, %v6015
        %v6784 = vpack.c.b16 %v6032, %v6016
        %v6785 = vpack.c.b16 %v6033, %v6017
        %v6786 = vpack.c.b16 %v6034, %v6018
        %v6787 = vpack.c.b16 %v6035, %v6019
        %v6788 = vpack.c.b16 %v6036, %v6020
        %v6789 = vpack.c.b16 %v6037, %v6021
        %v6790 = vpack.c.b16 %v6038, %v6022
        %v6791 = vpack.c.b16 %v6039, %v6023
        %v6792 = vpack.c.b16 %v6040, %v6024
        %v6793 = vpack.c.b16 %v6041, %v6025
        %v6794 = vpack.c.b16 %v6042, %v6026
        %v6795 = vpack.c.b16 %v6043, %v6027
        %v6796 = vpack.c.b16 %v6060, %v6044
        %v6797 = vpack.c.b16 %v6061, %v6045
        %v6798 = vpack.c.b16 %v6062, %v6046
        %v6799 = vpack.c.b16 %v6063, %v6047
        %v6800 = vpack.c.b16 %v6064, %v6048
        %v6801 = vpack.c.b16 %v6065, %v6049
        %v6802 = vpack.c.b16 %v6066, %v6050
        %v6803 = vpack.c.b16 %v6067, %v6051
        %v6804 = vpack.c.b16 %v6068, %v6052
        %v6805 = vpack.c.b16 %v6069, %v6053
        %v6806 = vpack.c.b16 %v6070, %v6054
        %v6807 = vpack.c.b16 %v6071, %v6055
        %v6808 = vpack.c.b16 %v6072, %v6056
        %v6809 = vpack.c.b16 %v6073, %v6057
        %v6810 = vpack.c.b16 %v6074, %v6058
        %v6811 = vpack.c.b16 %v6075, %v6059
        %v6812 = vpack.c.b16 %v6092, %v6076
        %v6813 = vpack.c.b16 %v6093, %v6077
        %v6814 = vpack.c.b16 %v6094, %v6078
        %v6815 = vpack.c.b16 %v6095, %v6079
        %v6816 = vpack.c.b16 %v6096, %v6080
        %v6817 = vpack.c.b16 %v6097, %v6081
        %v6818 = vpack.c.b16 %v6098, %v6082
        %v6819 = vpack.c.b16 %v6099, %v6083
        %v6820 = vpack.c.b16 %v6100, %v6084
        %v6821 = vpack.c.b16 %v6101, %v6085
        %v6822 = vpack.c.b16 %v6102, %v6086
        %v6823 = vpack.c.b16 %v6103, %v6087
        %v6824 = vpack.c.b16 %v6104, %v6088
        %v6825 = vpack.c.b16 %v6105, %v6089
        %v6826 = vpack.c.b16 %v6106, %v6090
        %v6827 = vpack.c.b16 %v6107, %v6091
        %v6828 = vpack.c.b16 %v6124, %v6108
        %v6829 = vpack.c.b16 %v6125, %v6109
        %v6830 = vpack.c.b16 %v6126, %v6110
        %v6831 = vpack.c.b16 %v6127, %v6111
        %v6832 = vpack.c.b16 %v6128, %v6112
        %v6833 = vpack.c.b16 %v6129, %v6113
        %v6834 = vpack.c.b16 %v6130, %v6114
        %v6835 = vpack.c.b16 %v6131, %v6115
        %v6836 = vpack.c.b16 %v6132, %v6116
        %v6837 = vpack.c.b16 %v6133, %v6117
        %v6838 = vpack.c.b16 %v6134, %v6118
        %v6839 = vpack.c.b16 %v6135, %v6119
        %v6840 = vpack.c.b16 %v6136, %v6120
        %v6841 = vpack.c.b16 %v6137, %v6121
        %v6842 = vpack.c.b16 %v6138, %v6122
        %v6843 = vpack.c.b16 %v6139, %v6123
        %v6844 = vpack.c.b16 %v6156, %v6140
        %v6845 = vpack.c.b16 %v6157, %v6141
        %v6846 = vpack.c.b16 %v6158, %v6142
        %v6847 = vpack.c.b16 %v6159, %v6143
        %v6848 = vpack.c.b16 %v6160, %v6144
        %v6849 = vpack.c.b16 %v6161, %v6145
        %v6850 = vpack.c.b16 %v6162, %v6146
        %v6851 = vpack.c.b16 %v6163, %v6147
        %v6852 = vpack.c.b16 %v6164, %v6148
        %v6853 = vpack.c.b16 %v6165, %v6149
        %v6854 = vpack.c.b16 %v6166, %v6150
        %v6855 = vpack.c.b16 %v6167, %v6151
        %v6856 = vpack.c.b16 %v6168, %v6152
        %v6857 = vpack.c.b16 %v6169, %v6153
        %v6858 = vpack.c.b16 %v6170, %v6154
        %v6859 = vpack.c.b16 %v6171, %v6155
        %v6860 = vpack.c.b16 %v6188, %v6172
        %v6861 = vpack.c.b16 %v6189, %v6173
        %v6862 = vpack.c.b16 %v6190, %v6174
        %v6863 = vpack.c.b16 %v6191, %v6175
        %v6864 = vpack.c.b16 %v6192, %v6176
        %v6865 = vpack.c.b16 %v6193, %v6177
        %v6866 = vpack.c.b16 %v6194, %v6178
        %v6867 = vpack.c.b16 %v6195, %v6179
        %v6868 = vpack.c.b16 %v6196, %v6180
        %v6869 = vpack.c.b16 %v6197, %v6181
        %v6870 = vpack.c.b16 %v6198, %v6182
        %v6871 = vpack.c.b16 %v6199, %v6183
        %v6872 = vpack.c.b16 %v6200, %v6184
        %v6873 = vpack.c.b16 %v6201, %v6185
        %v6874 = vpack.c.b16 %v6202, %v6186
        %v6875 = vpack.c.b16 %v6203, %v6187
        %v6876 = vpack.c.b16 %v6220, %v6204
        %v6877 = vpack.c.b16 %v6221, %v6205
        %v6878 = vpack.c.b16 %v6222, %v6206
        %v6879 = vpack.c.b16 %v6223, %v6207
        %v6880 = vpack.c.b16 %v6224, %v6208
        %v6881 = vpack.c.b16 %v6225, %v6209
        %v6882 = vpack.c.b16 %v6226, %v6210
        %v6883 = vpack.c.b16 %v6227, %v6211
        %v6884 = vpack.c.b16 %v6228, %v6212
        %v6885 = vpack.c.b16 %v6229, %v6213
        %v6886 = vpack.c.b16 %v6230, %v6214
        %v6887 = vpack.c.b16 %v6231, %v6215
        %v6888 = vpack.c.b16 %v6232, %v6216
        %v6889 = vpack.c.b16 %v6233, %v6217
        %v6890 = vpack.c.b16 %v6234, %v6218
        %v6891 = vpack.c.b16 %v6235, %v6219
        %v6892 = vpack.c.b16 %v6252, %v6236
        %v6893 = vpack.c.b16 %v6253, %v6237
        %v6894 = vpack.c.b16 %v6254, %v6238
        %v6895 = vpack.c.b16 %v6255, %v6239
        %v6896 = vpack.c.b16 %v6256, %v6240
        %v6897 = vpack.c.b16 %v6257, %v6241
        %v6898 = vpack.c.b16 %v6258, %v6242
        %v6899 = vpack.c.b16 %v6259, %v6243
        %v6900 = vpack.c.b16 %v6260, %v6244
        %v6901 = vpack.c.b16 %v6261, %v6245
        %v6902 = vpack.c.b16 %v6262, %v6246
        %v6903 = vpack.c.b16 %v6263, %v6247
        %v6904 = vpack.c.b16 %v6264, %v6248
        %v6905 = vpack.c.b16 %v6265, %v6249
        %v6906 = vpack.c.b16 %v6266, %v6250
        %v6907 = vpack.c.b16 %v6267, %v6251
        %v6908 = vpack.c.b16 %v6284, %v6268
        %v6909 = vpack.c.b16 %v6285, %v6269
        %v6910 = vpack.c.b16 %v6286, %v6270
        %v6911 = vpack.c.b16 %v6287, %v6271
        %v6912 = vpack.c.b16 %v6288, %v6272
        %v6913 = vpack.c.b16 %v6289, %v6273
        %v6914 = vpack.c.b16 %v6290, %v6274
        %v6915 = vpack.c.b16 %v6291, %v6275
        %v6916 = vpack.c.b16 %v6292, %v6276
        %v6917 = vpack.c.b16 %v6293, %v6277
        %v6918 = vpack.c.b16 %v6294, %v6278
        %v6919 = vpack.c.b16 %v6295, %v6279
        %v6920 = vpack.c.b16 %v6296, %v6280
        %v6921 = vpack.c.b16 %v6297, %v6281
        %v6922 = vpack.c.b16 %v6298, %v6282
        %v6923 = vpack.c.b16 %v6299, %v6283
        %v6924 = vpack.c.b16 %v6316, %v6300
        %v6925 = vpack.c.b16 %v6317, %v6301
        %v6926 = vpack.c.b16 %v6318, %v6302
        %v6927 = vpack.c.b16 %v6319, %v6303
        %v6928 = vpack.c.b16 %v6320, %v6304
        %v6929 = vpack.c.b16 %v6321, %v6305
        %v6930 = vpack.c.b16 %v6322, %v6306
        %v6931 = vpack.c.b16 %v6323, %v6307
        %v6932 = vpack.c.b16 %v6324, %v6308
        %v6933 = vpack.c.b16 %v6325, %v6309
        %v6934 = vpack.c.b16 %v6326, %v6310
        %v6935 = vpack.c.b16 %v6327, %v6311
        %v6936 = vpack.c.b16 %v6328, %v6312
        %v6937 = vpack.c.b16 %v6329, %v6313
        %v6938 = vpack.c.b16 %v6330, %v6314
        %v6939 = vpack.c.b16 %v6331, %v6315
        %v6940 = vpack.c.b16 %v6348, %v6332
        %v6941 = vpack.c.b16 %v6349, %v6333
        %v6942 = vpack.c.b16 %v6350, %v6334
        %v6943 = vpack.c.b16 %v6351, %v6335
        %v6944 = vpack.c.b16 %v6352, %v6336
        %v6945 = vpack.c.b16 %v6353, %v6337
        %v6946 = vpack.c.b16 %v6354, %v6338
        %v6947 = vpack.c.b16 %v6355, %v6339
        %v6948 = vpack.c.b16 %v6356, %v6340
        %v6949 = vpack.c.b16 %v6357, %v6341
        %v6950 = vpack.c.b16 %v6358, %v6342
        %v6951 = vpack.c.b16 %v6359, %v6343
        %v6952 = vpack.c.b16 %v6360, %v6344
        %v6953 = vpack.c.b16 %v6361, %v6345
        %v6954 = vpack.c.b16 %v6362, %v6346
        %v6955 = vpack.c.b16 %v6363, %v6347
        %v6956 = vpack.c.b16 %v6380, %v6364
        %v6957 = vpack.c.b16 %v6381, %v6365
        %v6958 = vpack.c.b16 %v6382, %v6366
        %v6959 = vpack.c.b16 %v6383, %v6367
        %v6960 = vpack.c.b16 %v6384, %v6368
        %v6961 = vpack.c.b16 %v6385, %v6369
        %v6962 = vpack.c.b16 %v6386, %v6370
        %v6963 = vpack.c.b16 %v6387, %v6371
        %v6964 = vpack.c.b16 %v6388, %v6372
        %v6965 = vpack.c.b16 %v6389, %v6373
        %v6966 = vpack.c.b16 %v6390, %v6374
        %v6967 = vpack.c.b16 %v6391, %v6375
        %v6968 = vpack.c.b16 %v6392, %v6376
        %v6969 = vpack.c.b16 %v6393, %v6377
        %v6970 = vpack.c.b16 %v6394, %v6378
        %v6971 = vpack.c.b16 %v6395, %v6379
        %v6972 = vpack.c.b16 %v6412, %v6396
        %v6973 = vpack.c.b16 %v6413, %v6397
        %v6974 = vpack.c.b16 %v6414, %v6398
        %v6975 = vpack.c.b16 %v6415, %v6399
        %v6976 = vpack.c.b16 %v6416, %v6400
        %v6977 = vpack.c.b16 %v6417, %v6401
        %v6978 = vpack.c.b16 %v6418, %v6402
        %v6979 = vpack.c.b16 %v6419, %v6403
        %v6980 = vpack.c.b16 %v6420, %v6404
        %v6981 = vpack.c.b16 %v6421, %v6405
        %v6982 = vpack.c.b16 %v6422, %v6406
        %v6983 = vpack.c.b16 %v6423, %v6407
        %v6984 = vpack.c.b16 %v6424, %v6408
        %v6985 = vpack.c.b16 %v6425, %v6409
        %v6986 = vpack.c.b16 %v6426, %v6410
        %v6987 = vpack.c.b16 %v6427, %v6411
        %v6988 = vpack.c.b16 %v6444, %v6428
        %v6989 = vpack.c.b16 %v6445, %v6429
        %v6990 = vpack.c.b16 %v6446, %v6430
        %v6991 = vpack.c.b16 %v6447, %v6431
        %v6992 = vpack.c.b16 %v6448, %v6432
        %v6993 = vpack.c.b16 %v6449, %v6433
        %v6994 = vpack.c.b16 %v6450, %v6434
        %v6995 = vpack.c.b16 %v6451, %v6435
        %v6996 = vpack.c.b16 %v6452, %v6436
        %v6997 = vpack.c.b16 %v6453, %v6437
        %v6998 = vpack.c.b16 %v6454, %v6438
        %v6999 = vpack.c.b16 %v6455, %v6439
        %v7000 = vpack.c.b16 %v6456, %v6440
        %v7001 = vpack.c.b16 %v6457, %v6441
        %v7002 = vpack.c.b16 %v6458, %v6442
        %v7003 = vpack.c.b16 %v6459, %v6443
        %v7004 = vpack.c.b16 %v6476, %v6460
        %v7005 = vpack.c.b16 %v6477, %v6461
        %v7006 = vpack.c.b16 %v6478, %v6462
        %v7007 = vpack.c.b16 %v6479, %v6463
        %v7008 = vpack.c.b16 %v6480, %v6464
        %v7009 = vpack.c.b16 %v6481, %v6465
        %v7010 = vpack.c.b16 %v6482, %v6466
        %v7011 = vpack.c.b16 %v6483, %v6467
        %v7012 = vpack.c.b16 %v6484, %v6468
        %v7013 = vpack.c.b16 %v6485, %v6469
        %v7014 = vpack.c.b16 %v6486, %v6470
        %v7015 = vpack.c.b16 %v6487, %v6471
        %v7016 = vpack.c.b16 %v6488, %v6472
        %v7017 = vpack.c.b16 %v6489, %v6473
        %v7018 = vpack.c.b16 %v6490, %v6474
        %v7019 = vpack.c.b16 %v6491, %v6475
        %v7020 = vpack.c.b16 %v6508, %v6492
        %v7021 = vpack.c.b16 %v6509, %v6493
        %v7022 = vpack.c.b16 %v6510, %v6494
        %v7023 = vpack.c.b16 %v6511, %v6495
        %v7024 = vpack.c.b16 %v6512, %v6496
        %v7025 = vpack.c.b16 %v6513, %v6497
        %v7026 = vpack.c.b16 %v6514, %v6498
        %v7027 = vpack.c.b16 %v6515, %v6499
        %v7028 = vpack.c.b16 %v6516, %v6500
        %v7029 = vpack.c.b16 %v6517, %v6501
        %v7030 = vpack.c.b16 %v6518, %v6502
        %v7031 = vpack.c.b16 %v6519, %v6503
        %v7032 = vpack.c.b16 %v6520, %v6504
        %v7033 = vpack.c.b16 %v6521, %v6505
        %v7034 = vpack.c.b16 %v6522, %v6506
        %v7035 = vpack.c.b16 %v6523, %v6507
        %7548 = vmatprep.subr.bf16.mxu0 %v6525
        %7549 = vmatpush1.bf16.msra.mxu0 %v6524
        %7550 = vmatprep.subr.bf16.mxu0 %v6541
        %7551 = vmatpush1.bf16.msra.mxu0 %v6540
        %7552 = vmatprep.subr.bf16.mxu0 %v6557
        %7553 = vmatpush1.bf16.msra.mxu0 %v6556
        %7554 = vmatprep.subr.bf16.mxu0 %v6573
        %7555 = vmatpush1.bf16.msra.mxu0 %v6572
        %7556 = vmatprep.subr.bf16.mxu0 %v6589
        %7557 = vmatpush1.bf16.msra.mxu0 %v6588
        %7558 = vmatprep.subr.bf16.mxu0 %v6605
        %7559 = vmatpush1.bf16.msra.mxu0 %v6604
        %7560 = vmatprep.subr.bf16.mxu0 %v6621
        %7561 = vmatpush1.bf16.msra.mxu0 %v6620
        %7562 = vmatprep.subr.bf16.mxu0 %v6637
        %7563 = vmatpush1.bf16.msra.mxu0 %v6636
        %7564 = vmatprep.subr.bf16.mxu0 %v6653
        %7565 = vmatpush1.bf16.msra.mxu0 %v6652
        %7566 = vmatprep.subr.bf16.mxu0 %v6669
        %7567 = vmatpush1.bf16.msra.mxu0 %v6668
        %7568 = vmatprep.subr.bf16.mxu0 %v6685
        %7569 = vmatpush1.bf16.msra.mxu0 %v6684
        %7570 = vmatprep.subr.bf16.mxu0 %v6701
        %7571 = vmatpush1.bf16.msra.mxu0 %v6700
        %7572 = vmatprep.subr.bf16.mxu0 %v6717
        %7573 = vmatpush1.bf16.msra.mxu0 %v6716
        %7574 = vmatprep.subr.bf16.mxu0 %v6733
        %7575 = vmatpush1.bf16.msra.mxu0 %v6732
        %7576 = vmatprep.subr.bf16.mxu0 %v6749
        %7577 = vmatpush1.bf16.msra.mxu0 %v6748
        %7578 = vmatprep.subr.bf16.mxu0 %v6765
        %7579 = vmatpush1.bf16.msra.mxu0 %v6764
        %7580 = vmatprep.mubr.bf16.mxu0 %v4973
        %7581 = vmatmul.mubr.bf16.gmra.mrb[0].mxu0 %v4972
        %v7582 = vpop.f32.mrb[0].mxu0
        %v7583 = vadd.f32 0.0, %v7582
        %v7584 = vpop.f32.mrb[0].mxu0
        %v7585 = vadd.f32 0.0, %v7584
        %v7586 = vpop.f32.mrb[0].mxu0
        %v7587 = vadd.f32 0.0, %v7586
        %v7588 = vpop.f32.mrb[0].mxu0
        %v7589 = vadd.f32 0.0, %v7588
        %7590 = vmatprep.mubr.bf16.mxu0 %v4977
        %7591 = vmatmul.mubr.bf16.gmra.mrb[0].mxu0 %v4976
        %v7592 = vpop.f32.mrb[0].mxu0
        %v7593 = vadd.f32 0.0, %v7592
        %v7594 = vpop.f32.mrb[0].mxu0
        %v7595 = vadd.f32 0.0, %v7594
        %v7596 = vpop.f32.mrb[0].mxu0
        %v7597 = vadd.f32 0.0, %v7596
        %v7598 = vpop.f32.mrb[0].mxu0
        %v7599 = vadd.f32 0.0, %v7598
        %7600 = vdwg.mxu0
        %7601 = vmatprep.subr.bf16.mxu0 %v6781
        %7602 = vmatpush1.bf16.msra.mxu0 %v6780
        %7603 = vmatprep.subr.bf16.mxu0 %v6797
        %7604 = vmatpush1.bf16.msra.mxu0 %v6796
        %7605 = vmatprep.subr.bf16.mxu0 %v6813
        %7606 = vmatpush1.bf16.msra.mxu0 %v6812
        %7607 = vmatprep.subr.bf16.mxu0 %v6829
        %7608 = vmatpush1.bf16.msra.mxu0 %v6828
        %7609 = vmatprep.subr.bf16.mxu0 %v6845
        %7610 = vmatpush1.bf16.msra.mxu0 %v6844
        %7611 = vmatprep.subr.bf16.mxu0 %v6861
        %7612 = vmatpush1.bf16.msra.mxu0 %v6860
        %7613 = vmatprep.subr.bf16.mxu0 %v6877
        %7614 = vmatpush1.bf16.msra.mxu0 %v6876
        %7615 = vmatprep.subr.bf16.mxu0 %v6893
        %7616 = vmatpush1.bf16.msra.mxu0 %v6892
        %7617 = vmatprep.subr.bf16.mxu0 %v6909
        %7618 = vmatpush1.bf16.msra.mxu0 %v6908
        %7619 = vmatprep.subr.bf16.mxu0 %v6925
        %7620 = vmatpush1.bf16.msra.mxu0 %v6924
        %7621 = vmatprep.subr.bf16.mxu0 %v6941
        %7622 = vmatpush1.bf16.msra.mxu0 %v6940
        %7623 = vmatprep.subr.bf16.mxu0 %v6957
        %7624 = vmatpush1.bf16.msra.mxu0 %v6956
        %7625 = vmatprep.subr.bf16.mxu0 %v6973
        %7626 = vmatpush1.bf16.msra.mxu0 %v6972
        %7627 = vmatprep.subr.bf16.mxu0 %v6989
        %7628 = vmatpush1.bf16.msra.mxu0 %v6988
        %7629 = vmatprep.subr.bf16.mxu0 %v7005
        %7630 = vmatpush1.bf16.msra.mxu0 %v7004
        %7631 = vmatprep.subr.bf16.mxu0 %v7021
        %7632 = vmatpush1.bf16.msra.mxu0 %v7020
        %7633 = vmatprep.mubr.bf16.mxu0 %v4975
        %7634 = vmatmul.mubr.bf16.gmra.mrb[0].mxu0 %v4974
        %v7635 = vpop.f32.mrb[0].mxu0
        %v7636 = vadd.f32 %v7583, %v7635
        %v7637 = vpop.f32.mrb[0].mxu0
        %v7638 = vadd.f32 %v7585, %v7637
        %v7639 = vpop.f32.mrb[0].mxu0
        %v7640 = vadd.f32 %v7587, %v7639
        %v7641 = vpop.f32.mrb[0].mxu0
        %v7642 = vadd.f32 %v7589, %v7641
        %7643 = vmatprep.mubr.bf16.mxu0 %v4979
        %7644 = vmatmul.mubr.bf16.gmra.mrb[0].mxu0 %v4978
        %v7645 = vpop.f32.mrb[0].mxu0
        %v7646 = vadd.f32 %v7593, %v7645
        %v7647 = vpop.f32.mrb[0].mxu0
        %v7648 = vadd.f32 %v7595, %v7647
        %v7649 = vpop.f32.mrb[0].mxu0
        %v7650 = vadd.f32 %v7597, %v7649
        %v7651 = vpop.f32.mrb[0].mxu0
        %v7652 = vadd.f32 %v7599, %v7651
        %7653 = vdwg.mxu0
        %7654 = vmatprep.subr.bf16.mxu0 %v6527
        %7655 = vmatpush1.bf16.msra.mxu0 %v6526
        %7656 = vmatprep.subr.bf16.mxu0 %v6543
        %7657 = vmatpush1.bf16.msra.mxu0 %v6542
        %7658 = vmatprep.subr.bf16.mxu0 %v6559
        %7659 = vmatpush1.bf16.msra.mxu0 %v6558
        %7660 = vmatprep.subr.bf16.mxu0 %v6575
        %7661 = vmatpush1.bf16.msra.mxu0 %v6574
        %7662 = vmatprep.subr.bf16.mxu0 %v6591
        %7663 = vmatpush1.bf16.msra.mxu0 %v6590
        %7664 = vmatprep.subr.bf16.mxu0 %v6607
        %7665 = vmatpush1.bf16.msra.mxu0 %v6606
        %7666 = vmatprep.subr.bf16.mxu0 %v6623
        %7667 = vmatpush1.bf16.msra.mxu0 %v6622
        %7668 = vmatprep.subr.bf16.mxu0 %v6639
        %7669 = vmatpush1.bf16.msra.mxu0 %v6638
        %7670 = vmatprep.subr.bf16.mxu0 %v6655
        %7671 = vmatpush1.bf16.msra.mxu0 %v6654
        %7672 = vmatprep.subr.bf16.mxu0 %v6671
        %7673 = vmatpush1.bf16.msra.mxu0 %v6670
        %7674 = vmatprep.subr.bf16.mxu0 %v6687
        %7675 = vmatpush1.bf16.msra.mxu0 %v6686
        %7676 = vmatprep.subr.bf16.mxu0 %v6703
        %7677 = vmatpush1.bf16.msra.mxu0 %v6702
        %7678 = vmatprep.subr.bf16.mxu0 %v6719
        %7679 = vmatpush1.bf16.msra.mxu0 %v6718
        %7680 = vmatprep.subr.bf16.mxu0 %v6735
        %7681 = vmatpush1.bf16.msra.mxu0 %v6734
        %7682 = vmatprep.subr.bf16.mxu0 %v6751
        %7683 = vmatpush1.bf16.msra.mxu0 %v6750
        %7684 = vmatprep.subr.bf16.mxu0 %v6767
        %7685 = vmatpush1.bf16.msra.mxu0 %v6766
        %7686 = vmatprep.mubr.bf16.mxu0 %v4973
        %7687 = vmatmul.mubr.bf16.gmra.mrb[0].mxu0 %v4972
        %v7688 = vpop.f32.mrb[0].mxu0
        %v7689 = vadd.f32 0.0, %v7688
        %v7690 = vpop.f32.mrb[0].mxu0
        %v7691 = vadd.f32 0.0, %v7690
        %v7692 = vpop.f32.mrb[0].mxu0
        %v7693 = vadd.f32 0.0, %v7692
        %v7694 = vpop.f32.mrb[0].mxu0
        %v7695 = vadd.f32 0.0, %v7694
        %7696 = vmatprep.mubr.bf16.mxu0 %v4977
        %7697 = vmatmul.mubr.bf16.gmra.mrb[0].mxu0 %v4976
        %v7698 = vpop.f32.mrb[0].mxu0
        %v7699 = vadd.f32 0.0, %v7698
        %v7700 = vpop.f32.mrb[0].mxu0
        %v7701 = vadd.f32 0.0, %v7700
        %v7702 = vpop.f32.mrb[0].mxu0
        %v7703 = vadd.f32 0.0, %v7702
        %v7704 = vpop.f32.mrb[0].mxu0
        %v7705 = vadd.f32 0.0, %v7704
        %7706 = vdwg.mxu0
        %7707 = vmatprep.subr.bf16.mxu0 %v6783
        %7708 = vmatpush1.bf16.msra.mxu0 %v6782
        %7709 = vmatprep.subr.bf16.mxu0 %v6799
        %7710 = vmatpush1.bf16.msra.mxu0 %v6798
        %7711 = vmatprep.subr.bf16.mxu0 %v6815
        %7712 = vmatpush1.bf16.msra.mxu0 %v6814
        %7713 = vmatprep.subr.bf16.mxu0 %v6831
        %7714 = vmatpush1.bf16.msra.mxu0 %v6830
        %7715 = vmatprep.subr.bf16.mxu0 %v6847
        %7716 = vmatpush1.bf16.msra.mxu0 %v6846
        %7717 = vmatprep.subr.bf16.mxu0 %v6863
        %7718 = vmatpush1.bf16.msra.mxu0 %v6862
        %7719 = vmatprep.subr.bf16.mxu0 %v6879
        %7720 = vmatpush1.bf16.msra.mxu0 %v6878
        %7721 = vmatprep.subr.bf16.mxu0 %v6895
        %7722 = vmatpush1.bf16.msra.mxu0 %v6894
        %7723 = vmatprep.subr.bf16.mxu0 %v6911
        %7724 = vmatpush1.bf16.msra.mxu0 %v6910
        %7725 = vmatprep.subr.bf16.mxu0 %v6927
        %7726 = vmatpush1.bf16.msra.mxu0 %v6926
        %7727 = vmatprep.subr.bf16.mxu0 %v6943
        %7728 = vmatpush1.bf16.msra.mxu0 %v6942
        %7729 = vmatprep.subr.bf16.mxu0 %v6959
        %7730 = vmatpush1.bf16.msra.mxu0 %v6958
        %7731 = vmatprep.subr.bf16.mxu0 %v6975
        %7732 = vmatpush1.bf16.msra.mxu0 %v6974
        %7733 = vmatprep.subr.bf16.mxu0 %v6991
        %7734 = vmatpush1.bf16.msra.mxu0 %v6990
        %7735 = vmatprep.subr.bf16.mxu0 %v7007
        %7736 = vmatpush1.bf16.msra.mxu0 %v7006
        %7737 = vmatprep.subr.bf16.mxu0 %v7023
        %7738 = vmatpush1.bf16.msra.mxu0 %v7022
        %7739 = vmatprep.mubr.bf16.mxu0 %v4975
        %7740 = vmatmul.mubr.bf16.gmra.mrb[0].mxu0 %v4974
        %v7741 = vpop.f32.mrb[0].mxu0
        %v7742 = vadd.f32 %v7689, %v7741
        %v7743 = vpop.f32.mrb[0].mxu0
        %v7744 = vadd.f32 %v7691, %v7743
        %v7745 = vpop.f32.mrb[0].mxu0
        %v7746 = vadd.f32 %v7693, %v7745
        %v7747 = vpop.f32.mrb[0].mxu0
        %v7748 = vadd.f32 %v7695, %v7747
        %7749 = vmatprep.mubr.bf16.mxu0 %v4979
        %7750 = vmatmul.mubr.bf16.gmra.mrb[0].mxu0 %v4978
        %v7751 = vpop.f32.mrb[0].mxu0
        %v7752 = vadd.f32 %v7699, %v7751
        %v7753 = vpop.f32.mrb[0].mxu0
        %v7754 = vadd.f32 %v7701, %v7753
        %v7755 = vpop.f32.mrb[0].mxu0
        %v7756 = vadd.f32 %v7703, %v7755
        %v7757 = vpop.f32.mrb[0].mxu0
        %v7758 = vadd.f32 %v7705, %v7757
        %7759 = vdwg.mxu0
        %7760 = vmatprep.subr.bf16.mxu0 %v6529
        %7761 = vmatpush1.bf16.msra.mxu0 %v6528
        %7762 = vmatprep.subr.bf16.mxu0 %v6545
        %7763 = vmatpush1.bf16.msra.mxu0 %v6544
        %7764 = vmatprep.subr.bf16.mxu0 %v6561
        %7765 = vmatpush1.bf16.msra.mxu0 %v6560
        %7766 = vmatprep.subr.bf16.mxu0 %v6577
        %7767 = vmatpush1.bf16.msra.mxu0 %v6576
        %7768 = vmatprep.subr.bf16.mxu0 %v6593
        %7769 = vmatpush1.bf16.msra.mxu0 %v6592
        %7770 = vmatprep.subr.bf16.mxu0 %v6609
        %7771 = vmatpush1.bf16.msra.mxu0 %v6608
        %7772 = vmatprep.subr.bf16.mxu0 %v6625
        %7773 = vmatpush1.bf16.msra.mxu0 %v6624
        %7774 = vmatprep.subr.bf16.mxu0 %v6641
        %7775 = vmatpush1.bf16.msra.mxu0 %v6640
        %7776 = vmatprep.subr.bf16.mxu0 %v6657
        %7777 = vmatpush1.bf16.msra.mxu0 %v6656
        %7778 = vmatprep.subr.bf16.mxu0 %v6673
        %7779 = vmatpush1.bf16.msra.mxu0 %v6672
        %7780 = vmatprep.subr.bf16.mxu0 %v6689
        %7781 = vmatpush1.bf16.msra.mxu0 %v6688
        %7782 = vmatprep.subr.bf16.mxu0 %v6705
        %7783 = vmatpush1.bf16.msra.mxu0 %v6704
        %7784 = vmatprep.subr.bf16.mxu0 %v6721
        %7785 = vmatpush1.bf16.msra.mxu0 %v6720
        %7786 = vmatprep.subr.bf16.mxu0 %v6737
        %7787 = vmatpush1.bf16.msra.mxu0 %v6736
        %7788 = vmatprep.subr.bf16.mxu0 %v6753
        %7789 = vmatpush1.bf16.msra.mxu0 %v6752
        %7790 = vmatprep.subr.bf16.mxu0 %v6769
        %7791 = vmatpush1.bf16.msra.mxu0 %v6768
        %7792 = vmatprep.mubr.bf16.mxu0 %v4973
        %7793 = vmatmul.mubr.bf16.gmra.mrb[0].mxu0 %v4972
        %v7794 = vpop.f32.mrb[0].mxu0
        %v7795 = vadd.f32 0.0, %v7794
        %v7796 = vpop.f32.mrb[0].mxu0
        %v7797 = vadd.f32 0.0, %v7796
        %v7798 = vpop.f32.mrb[0].mxu0
        %v7799 = vadd.f32 0.0, %v7798
        %v7800 = vpop.f32.mrb[0].mxu0
        %v7801 = vadd.f32 0.0, %v7800
        %7802 = vmatprep.mubr.bf16.mxu0 %v4977
        %7803 = vmatmul.mubr.bf16.gmra.mrb[0].mxu0 %v4976
        %v7804 = vpop.f32.mrb[0].mxu0
        %v7805 = vadd.f32 0.0, %v7804
        %v7806 = vpop.f32.mrb[0].mxu0
        %v7807 = vadd.f32 0.0, %v7806
        %v7808 = vpop.f32.mrb[0].mxu0
        %v7809 = vadd.f32 0.0, %v7808
        %v7810 = vpop.f32.mrb[0].mxu0
        %v7811 = vadd.f32 0.0, %v7810
        %7812 = vdwg.mxu0
        %7813 = vmatprep.subr.bf16.mxu0 %v6785
        %7814 = vmatpush1.bf16.msra.mxu0 %v6784
        %7815 = vmatprep.subr.bf16.mxu0 %v6801
        %7816 = vmatpush1.bf16.msra.mxu0 %v6800
        %7817 = vmatprep.subr.bf16.mxu0 %v6817
        %7818 = vmatpush1.bf16.msra.mxu0 %v6816
        %7819 = vmatprep.subr.bf16.mxu0 %v6833
        %7820 = vmatpush1.bf16.msra.mxu0 %v6832
        %7821 = vmatprep.subr.bf16.mxu0 %v6849
        %7822 = vmatpush1.bf16.msra.mxu0 %v6848
        %7823 = vmatprep.subr.bf16.mxu0 %v6865
        %7824 = vmatpush1.bf16.msra.mxu0 %v6864
        %7825 = vmatprep.subr.bf16.mxu0 %v6881
        %7826 = vmatpush1.bf16.msra.mxu0 %v6880
        %7827 = vmatprep.subr.bf16.mxu0 %v6897
        %7828 = vmatpush1.bf16.msra.mxu0 %v6896
        %7829 = vmatprep.subr.bf16.mxu0 %v6913
        %7830 = vmatpush1.bf16.msra.mxu0 %v6912
        %7831 = vmatprep.subr.bf16.mxu0 %v6929
        %7832 = vmatpush1.bf16.msra.mxu0 %v6928
        %7833 = vmatprep.subr.bf16.mxu0 %v6945
        %7834 = vmatpush1.bf16.msra.mxu0 %v6944
        %7835 = vmatprep.subr.bf16.mxu0 %v6961
        %7836 = vmatpush1.bf16.msra.mxu0 %v6960
        %7837 = vmatprep.subr.bf16.mxu0 %v6977
        %7838 = vmatpush1.bf16.msra.mxu0 %v6976
        %7839 = vmatprep.subr.bf16.mxu0 %v6993
        %7840 = vmatpush1.bf16.msra.mxu0 %v6992
        %7841 = vmatprep.subr.bf16.mxu0 %v7009
        %7842 = vmatpush1.bf16.msra.mxu0 %v7008
        %7843 = vmatprep.subr.bf16.mxu0 %v7025
        %7844 = vmatpush1.bf16.msra.mxu0 %v7024
        %7845 = vmatprep.mubr.bf16.mxu0 %v4975
        %7846 = vmatmul.mubr.bf16.gmra.mrb[0].mxu0 %v4974
        %v7847 = vpop.f32.mrb[0].mxu0
        %v7848 = vadd.f32 %v7795, %v7847
        %v7849 = vpop.f32.mrb[0].mxu0
        %v7850 = vadd.f32 %v7797, %v7849
        %v7851 = vpop.f32.mrb[0].mxu0
        %v7852 = vadd.f32 %v7799, %v7851
        %v7853 = vpop.f32.mrb[0].mxu0
        %v7854 = vadd.f32 %v7801, %v7853
        %7855 = vmatprep.mubr.bf16.mxu0 %v4979
        %7856 = vmatmul.mubr.bf16.gmra.mrb[0].mxu0 %v4978
        %v7857 = vpop.f32.mrb[0].mxu0
        %v7858 = vadd.f32 %v7805, %v7857
        %v7859 = vpop.f32.mrb[0].mxu0
        %v7860 = vadd.f32 %v7807, %v7859
        %v7861 = vpop.f32.mrb[0].mxu0
        %v7862 = vadd.f32 %v7809, %v7861
        %v7863 = vpop.f32.mrb[0].mxu0
        %v7864 = vadd.f32 %v7811, %v7863
        %7865 = vdwg.mxu0
        %7866 = vmatprep.subr.bf16.mxu0 %v6531
        %7867 = vmatpush1.bf16.msra.mxu0 %v6530
        %7868 = vmatprep.subr.bf16.mxu0 %v6547
        %7869 = vmatpush1.bf16.msra.mxu0 %v6546
        %7870 = vmatprep.subr.bf16.mxu0 %v6563
        %7871 = vmatpush1.bf16.msra.mxu0 %v6562
        %7872 = vmatprep.subr.bf16.mxu0 %v6579
        %7873 = vmatpush1.bf16.msra.mxu0 %v6578
        %7874 = vmatprep.subr.bf16.mxu0 %v6595
        %7875 = vmatpush1.bf16.msra.mxu0 %v6594
        %7876 = vmatprep.subr.bf16.mxu0 %v6611
        %7877 = vmatpush1.bf16.msra.mxu0 %v6610
        %7878 = vmatprep.subr.bf16.mxu0 %v6627
        %7879 = vmatpush1.bf16.msra.mxu0 %v6626
        %7880 = vmatprep.subr.bf16.mxu0 %v6643
        %7881 = vmatpush1.bf16.msra.mxu0 %v6642
        %7882 = vmatprep.subr.bf16.mxu0 %v6659
        %7883 = vmatpush1.bf16.msra.mxu0 %v6658
        %7884 = vmatprep.subr.bf16.mxu0 %v6675
        %7885 = vmatpush1.bf16.msra.mxu0 %v6674
        %7886 = vmatprep.subr.bf16.mxu0 %v6691
        %7887 = vmatpush1.bf16.msra.mxu0 %v6690
        %7888 = vmatprep.subr.bf16.mxu0 %v6707
        %7889 = vmatpush1.bf16.msra.mxu0 %v6706
        %7890 = vmatprep.subr.bf16.mxu0 %v6723
        %7891 = vmatpush1.bf16.msra.mxu0 %v6722
        %7892 = vmatprep.subr.bf16.mxu0 %v6739
        %7893 = vmatpush1.bf16.msra.mxu0 %v6738
        %7894 = vmatprep.subr.bf16.mxu0 %v6755
        %7895 = vmatpush1.bf16.msra.mxu0 %v6754
        %7896 = vmatprep.subr.bf16.mxu0 %v6771
        %7897 = vmatpush1.bf16.msra.mxu0 %v6770
        %7898 = vmatprep.mubr.bf16.mxu0 %v4973
        %7899 = vmatmul.mubr.bf16.gmra.mrb[0].mxu0 %v4972
        %v7900 = vpop.f32.mrb[0].mxu0
        %v7901 = vadd.f32 0.0, %v7900
        %v7902 = vpop.f32.mrb[0].mxu0
        %v7903 = vadd.f32 0.0, %v7902
        %v7904 = vpop.f32.mrb[0].mxu0
        %v7905 = vadd.f32 0.0, %v7904
        %v7906 = vpop.f32.mrb[0].mxu0
        %v7907 = vadd.f32 0.0, %v7906
        %7908 = vmatprep.mubr.bf16.mxu0 %v4977
        %7909 = vmatmul.mubr.bf16.gmra.mrb[0].mxu0 %v4976
        %v7910 = vpop.f32.mrb[0].mxu0
        %v7911 = vadd.f32 0.0, %v7910
        %v7912 = vpop.f32.mrb[0].mxu0
        %v7913 = vadd.f32 0.0, %v7912
        %v7914 = vpop.f32.mrb[0].mxu0
        %v7915 = vadd.f32 0.0, %v7914
        %v7916 = vpop.f32.mrb[0].mxu0
        %v7917 = vadd.f32 0.0, %v7916
        %7918 = vdwg.mxu0
        %7919 = vmatprep.subr.bf16.mxu0 %v6787
        %7920 = vmatpush1.bf16.msra.mxu0 %v6786
        %7921 = vmatprep.subr.bf16.mxu0 %v6803
        %7922 = vmatpush1.bf16.msra.mxu0 %v6802
        %7923 = vmatprep.subr.bf16.mxu0 %v6819
        %7924 = vmatpush1.bf16.msra.mxu0 %v6818
        %7925 = vmatprep.subr.bf16.mxu0 %v6835
        %7926 = vmatpush1.bf16.msra.mxu0 %v6834
        %7927 = vmatprep.subr.bf16.mxu0 %v6851
        %7928 = vmatpush1.bf16.msra.mxu0 %v6850
        %7929 = vmatprep.subr.bf16.mxu0 %v6867
        %7930 = vmatpush1.bf16.msra.mxu0 %v6866
        %7931 = vmatprep.subr.bf16.mxu0 %v6883
        %7932 = vmatpush1.bf16.msra.mxu0 %v6882
        %7933 = vmatprep.subr.bf16.mxu0 %v6899
        %7934 = vmatpush1.bf16.msra.mxu0 %v6898
        %7935 = vmatprep.subr.bf16.mxu0 %v6915
        %7936 = vmatpush1.bf16.msra.mxu0 %v6914
        %7937 = vmatprep.subr.bf16.mxu0 %v6931
        %7938 = vmatpush1.bf16.msra.mxu0 %v6930
        %7939 = vmatprep.subr.bf16.mxu0 %v6947
        %7940 = vmatpush1.bf16.msra.mxu0 %v6946
        %7941 = vmatprep.subr.bf16.mxu0 %v6963
        %7942 = vmatpush1.bf16.msra.mxu0 %v6962
        %7943 = vmatprep.subr.bf16.mxu0 %v6979
        %7944 = vmatpush1.bf16.msra.mxu0 %v6978
        %7945 = vmatprep.subr.bf16.mxu0 %v6995
        %7946 = vmatpush1.bf16.msra.mxu0 %v6994
        %7947 = vmatprep.subr.bf16.mxu0 %v7011
        %7948 = vmatpush1.bf16.msra.mxu0 %v7010
        %7949 = vmatprep.subr.bf16.mxu0 %v7027
        %7950 = vmatpush1.bf16.msra.mxu0 %v7026
        %7951 = vmatprep.mubr.bf16.mxu0 %v4975
        %7952 = vmatmul.mubr.bf16.gmra.mrb[0].mxu0 %v4974
        %v7953 = vpop.f32.mrb[0].mxu0
        %v7954 = vadd.f32 %v7901, %v7953
        %v7955 = vpop.f32.mrb[0].mxu0
        %v7956 = vadd.f32 %v7903, %v7955
        %v7957 = vpop.f32.mrb[0].mxu0
        %v7958 = vadd.f32 %v7905, %v7957
        %v7959 = vpop.f32.mrb[0].mxu0
        %v7960 = vadd.f32 %v7907, %v7959
        %7961 = vmatprep.mubr.bf16.mxu0 %v4979
        %7962 = vmatmul.mubr.bf16.gmra.mrb[0].mxu0 %v4978
        %v7963 = vpop.f32.mrb[0].mxu0
        %v7964 = vadd.f32 %v7911, %v7963
        %v7965 = vpop.f32.mrb[0].mxu0
        %v7966 = vadd.f32 %v7913, %v7965
        %v7967 = vpop.f32.mrb[0].mxu0
        %v7968 = vadd.f32 %v7915, %v7967
        %v7969 = vpop.f32.mrb[0].mxu0
        %v7970 = vadd.f32 %v7917, %v7969
        %7971 = vdwg.mxu0
        %7972 = vmatprep.subr.bf16.mxu0 %v6533
        %7973 = vmatpush1.bf16.msra.mxu0 %v6532
        %7974 = vmatprep.subr.bf16.mxu0 %v6549
        %7975 = vmatpush1.bf16.msra.mxu0 %v6548
        %7976 = vmatprep.subr.bf16.mxu0 %v6565
        %7977 = vmatpush1.bf16.msra.mxu0 %v6564
        %7978 = vmatprep.subr.bf16.mxu0 %v6581
        %7979 = vmatpush1.bf16.msra.mxu0 %v6580
        %7980 = vmatprep.subr.bf16.mxu0 %v6597
        %7981 = vmatpush1.bf16.msra.mxu0 %v6596
        %7982 = vmatprep.subr.bf16.mxu0 %v6613
        %7983 = vmatpush1.bf16.msra.mxu0 %v6612
        %7984 = vmatprep.subr.bf16.mxu0 %v6629
        %7985 = vmatpush1.bf16.msra.mxu0 %v6628
        %7986 = vmatprep.subr.bf16.mxu0 %v6645
        %7987 = vmatpush1.bf16.msra.mxu0 %v6644
        %7988 = vmatprep.subr.bf16.mxu0 %v6661
        %7989 = vmatpush1.bf16.msra.mxu0 %v6660
        %7990 = vmatprep.subr.bf16.mxu0 %v6677
        %7991 = vmatpush1.bf16.msra.mxu0 %v6676
        %7992 = vmatprep.subr.bf16.mxu0 %v6693
        %7993 = vmatpush1.bf16.msra.mxu0 %v6692
        %7994 = vmatprep.subr.bf16.mxu0 %v6709
        %7995 = vmatpush1.bf16.msra.mxu0 %v6708
        %7996 = vmatprep.subr.bf16.mxu0 %v6725
        %7997 = vmatpush1.bf16.msra.mxu0 %v6724
        %7998 = vmatprep.subr.bf16.mxu0 %v6741
        %7999 = vmatpush1.bf16.msra.mxu0 %v6740
        %8000 = vmatprep.subr.bf16.mxu0 %v6757
        %8001 = vmatpush1.bf16.msra.mxu0 %v6756
        %8002 = vmatprep.subr.bf16.mxu0 %v6773
        %8003 = vmatpush1.bf16.msra.mxu0 %v6772
        %8004 = vmatprep.mubr.bf16.mxu0 %v4973
        %8005 = vmatmul.mubr.bf16.gmra.mrb[0].mxu0 %v4972
        %v8006 = vpop.f32.mrb[0].mxu0
        %v8007 = vadd.f32 0.0, %v8006
        %v8008 = vpop.f32.mrb[0].mxu0
        %v8009 = vadd.f32 0.0, %v8008
        %v8010 = vpop.f32.mrb[0].mxu0
        %v8011 = vadd.f32 0.0, %v8010
        %v8012 = vpop.f32.mrb[0].mxu0
        %v8013 = vadd.f32 0.0, %v8012
        %8014 = vmatprep.mubr.bf16.mxu0 %v4977
        %8015 = vmatmul.mubr.bf16.gmra.mrb[0].mxu0 %v4976
        %v8016 = vpop.f32.mrb[0].mxu0
        %v8017 = vadd.f32 0.0, %v8016
        %v8018 = vpop.f32.mrb[0].mxu0
        %v8019 = vadd.f32 0.0, %v8018
        %v8020 = vpop.f32.mrb[0].mxu0
        %v8021 = vadd.f32 0.0, %v8020
        %v8022 = vpop.f32.mrb[0].mxu0
        %v8023 = vadd.f32 0.0, %v8022
        %8024 = vdwg.mxu0
        %8025 = vmatprep.subr.bf16.mxu0 %v6789
        %8026 = vmatpush1.bf16.msra.mxu0 %v6788
        %8027 = vmatprep.subr.bf16.mxu0 %v6805
        %8028 = vmatpush1.bf16.msra.mxu0 %v6804
        %8029 = vmatprep.subr.bf16.mxu0 %v6821
        %8030 = vmatpush1.bf16.msra.mxu0 %v6820
        %8031 = vmatprep.subr.bf16.mxu0 %v6837
        %8032 = vmatpush1.bf16.msra.mxu0 %v6836
        %8033 = vmatprep.subr.bf16.mxu0 %v6853
        %8034 = vmatpush1.bf16.msra.mxu0 %v6852
        %8035 = vmatprep.subr.bf16.mxu0 %v6869
        %8036 = vmatpush1.bf16.msra.mxu0 %v6868
        %8037 = vmatprep.subr.bf16.mxu0 %v6885
        %8038 = vmatpush1.bf16.msra.mxu0 %v6884
        %8039 = vmatprep.subr.bf16.mxu0 %v6901
        %8040 = vmatpush1.bf16.msra.mxu0 %v6900
        %8041 = vmatprep.subr.bf16.mxu0 %v6917
        %8042 = vmatpush1.bf16.msra.mxu0 %v6916
        %8043 = vmatprep.subr.bf16.mxu0 %v6933
        %8044 = vmatpush1.bf16.msra.mxu0 %v6932
        %8045 = vmatprep.subr.bf16.mxu0 %v6949
        %8046 = vmatpush1.bf16.msra.mxu0 %v6948
        %8047 = vmatprep.subr.bf16.mxu0 %v6965
        %8048 = vmatpush1.bf16.msra.mxu0 %v6964
        %8049 = vmatprep.subr.bf16.mxu0 %v6981
        %8050 = vmatpush1.bf16.msra.mxu0 %v6980
        %8051 = vmatprep.subr.bf16.mxu0 %v6997
        %8052 = vmatpush1.bf16.msra.mxu0 %v6996
        %8053 = vmatprep.subr.bf16.mxu0 %v7013
        %8054 = vmatpush1.bf16.msra.mxu0 %v7012
        %8055 = vmatprep.subr.bf16.mxu0 %v7029
        %8056 = vmatpush1.bf16.msra.mxu0 %v7028
        %8057 = vmatprep.mubr.bf16.mxu0 %v4975
        %8058 = vmatmul.mubr.bf16.gmra.mrb[0].mxu0 %v4974
        %v8059 = vpop.f32.mrb[0].mxu0
        %v8060 = vadd.f32 %v8007, %v8059
        %v8061 = vpop.f32.mrb[0].mxu0
        %v8062 = vadd.f32 %v8009, %v8061
        %v8063 = vpop.f32.mrb[0].mxu0
        %v8064 = vadd.f32 %v8011, %v8063
        %v8065 = vpop.f32.mrb[0].mxu0
        %v8066 = vadd.f32 %v8013, %v8065
        %8067 = vmatprep.mubr.bf16.mxu0 %v4979
        %8068 = vmatmul.mubr.bf16.gmra.mrb[0].mxu0 %v4978
        %v8069 = vpop.f32.mrb[0].mxu0
        %v8070 = vadd.f32 %v8017, %v8069
        %v8071 = vpop.f32.mrb[0].mxu0
        %v8072 = vadd.f32 %v8019, %v8071
        %v8073 = vpop.f32.mrb[0].mxu0
        %v8074 = vadd.f32 %v8021, %v8073
        %v8075 = vpop.f32.mrb[0].mxu0
        %v8076 = vadd.f32 %v8023, %v8075
        %8077 = vdwg.mxu0
        %8078 = vmatprep.subr.bf16.mxu0 %v6535
        %8079 = vmatpush1.bf16.msra.mxu0 %v6534
        %8080 = vmatprep.subr.bf16.mxu0 %v6551
        %8081 = vmatpush1.bf16.msra.mxu0 %v6550
        %8082 = vmatprep.subr.bf16.mxu0 %v6567
        %8083 = vmatpush1.bf16.msra.mxu0 %v6566
        %8084 = vmatprep.subr.bf16.mxu0 %v6583
        %8085 = vmatpush1.bf16.msra.mxu0 %v6582
        %8086 = vmatprep.subr.bf16.mxu0 %v6599
        %8087 = vmatpush1.bf16.msra.mxu0 %v6598
        %8088 = vmatprep.subr.bf16.mxu0 %v6615
        %8089 = vmatpush1.bf16.msra.mxu0 %v6614
        %8090 = vmatprep.subr.bf16.mxu0 %v6631
        %8091 = vmatpush1.bf16.msra.mxu0 %v6630
        %8092 = vmatprep.subr.bf16.mxu0 %v6647
        %8093 = vmatpush1.bf16.msra.mxu0 %v6646
        %8094 = vmatprep.subr.bf16.mxu0 %v6663
        %8095 = vmatpush1.bf16.msra.mxu0 %v6662
        %8096 = vmatprep.subr.bf16.mxu0 %v6679
        %8097 = vmatpush1.bf16.msra.mxu0 %v6678
        %8098 = vmatprep.subr.bf16.mxu0 %v6695
        %8099 = vmatpush1.bf16.msra.mxu0 %v6694
        %8100 = vmatprep.subr.bf16.mxu0 %v6711
        %8101 = vmatpush1.bf16.msra.mxu0 %v6710
        %8102 = vmatprep.subr.bf16.mxu0 %v6727
        %8103 = vmatpush1.bf16.msra.mxu0 %v6726
        %8104 = vmatprep.subr.bf16.mxu0 %v6743
        %8105 = vmatpush1.bf16.msra.mxu0 %v6742
        %8106 = vmatprep.subr.bf16.mxu0 %v6759
        %8107 = vmatpush1.bf16.msra.mxu0 %v6758
        %8108 = vmatprep.subr.bf16.mxu0 %v6775
        %8109 = vmatpush1.bf16.msra.mxu0 %v6774
        %8110 = vmatprep.mubr.bf16.mxu0 %v4973
        %8111 = vmatmul.mubr.bf16.gmra.mrb[0].mxu0 %v4972
        %v8112 = vpop.f32.mrb[0].mxu0
        %v8113 = vadd.f32 0.0, %v8112
        %v8114 = vpop.f32.mrb[0].mxu0
        %v8115 = vadd.f32 0.0, %v8114
        %v8116 = vpop.f32.mrb[0].mxu0
        %v8117 = vadd.f32 0.0, %v8116
        %v8118 = vpop.f32.mrb[0].mxu0
        %v8119 = vadd.f32 0.0, %v8118
        %8120 = vmatprep.mubr.bf16.mxu0 %v4977
        %8121 = vmatmul.mubr.bf16.gmra.mrb[0].mxu0 %v4976
        %v8122 = vpop.f32.mrb[0].mxu0
        %v8123 = vadd.f32 0.0, %v8122
        %v8124 = vpop.f32.mrb[0].mxu0
        %v8125 = vadd.f32 0.0, %v8124
        %v8126 = vpop.f32.mrb[0].mxu0
        %v8127 = vadd.f32 0.0, %v8126
        %v8128 = vpop.f32.mrb[0].mxu0
        %v8129 = vadd.f32 0.0, %v8128
        %8130 = vdwg.mxu0
        %8131 = vmatprep.subr.bf16.mxu0 %v6791
        %8132 = vmatpush1.bf16.msra.mxu0 %v6790
        %8133 = vmatprep.subr.bf16.mxu0 %v6807
        %8134 = vmatpush1.bf16.msra.mxu0 %v6806
        %8135 = vmatprep.subr.bf16.mxu0 %v6823
        %8136 = vmatpush1.bf16.msra.mxu0 %v6822
        %8137 = vmatprep.subr.bf16.mxu0 %v6839
        %8138 = vmatpush1.bf16.msra.mxu0 %v6838
        %8139 = vmatprep.subr.bf16.mxu0 %v6855
        %8140 = vmatpush1.bf16.msra.mxu0 %v6854
        %8141 = vmatprep.subr.bf16.mxu0 %v6871
        %8142 = vmatpush1.bf16.msra.mxu0 %v6870
        %8143 = vmatprep.subr.bf16.mxu0 %v6887
        %8144 = vmatpush1.bf16.msra.mxu0 %v6886
        %8145 = vmatprep.subr.bf16.mxu0 %v6903
        %8146 = vmatpush1.bf16.msra.mxu0 %v6902
        %8147 = vmatprep.subr.bf16.mxu0 %v6919
        %8148 = vmatpush1.bf16.msra.mxu0 %v6918
        %8149 = vmatprep.subr.bf16.mxu0 %v6935
        %8150 = vmatpush1.bf16.msra.mxu0 %v6934
        %8151 = vmatprep.subr.bf16.mxu0 %v6951
        %8152 = vmatpush1.bf16.msra.mxu0 %v6950
        %8153 = vmatprep.subr.bf16.mxu0 %v6967
        %8154 = vmatpush1.bf16.msra.mxu0 %v6966
        %8155 = vmatprep.subr.bf16.mxu0 %v6983
        %8156 = vmatpush1.bf16.msra.mxu0 %v6982
        %8157 = vmatprep.subr.bf16.mxu0 %v6999
        %8158 = vmatpush1.bf16.msra.mxu0 %v6998
        %8159 = vmatprep.subr.bf16.mxu0 %v7015
        %8160 = vmatpush1.bf16.msra.mxu0 %v7014
        %8161 = vmatprep.subr.bf16.mxu0 %v7031
        %8162 = vmatpush1.bf16.msra.mxu0 %v7030
        %8163 = vmatprep.mubr.bf16.mxu0 %v4975
        %8164 = vmatmul.mubr.bf16.gmra.mrb[0].mxu0 %v4974
        %v8165 = vpop.f32.mrb[0].mxu0
        %v8166 = vadd.f32 %v8113, %v8165
        %v8167 = vpop.f32.mrb[0].mxu0
        %v8168 = vadd.f32 %v8115, %v8167
        %v8169 = vpop.f32.mrb[0].mxu0
        %v8170 = vadd.f32 %v8117, %v8169
        %v8171 = vpop.f32.mrb[0].mxu0
        %v8172 = vadd.f32 %v8119, %v8171
        %8173 = vmatprep.mubr.bf16.mxu0 %v4979
        %8174 = vmatmul.mubr.bf16.gmra.mrb[0].mxu0 %v4978
        %v8175 = vpop.f32.mrb[0].mxu0
        %v8176 = vadd.f32 %v8123, %v8175
        %v8177 = vpop.f32.mrb[0].mxu0
        %v8178 = vadd.f32 %v8125, %v8177
        %v8179 = vpop.f32.mrb[0].mxu0
        %v8180 = vadd.f32 %v8127, %v8179
        %v8181 = vpop.f32.mrb[0].mxu0
        %v8182 = vadd.f32 %v8129, %v8181
        %8183 = vdwg.mxu0
        %8184 = vmatprep.subr.bf16.mxu0 %v6537
        %8185 = vmatpush1.bf16.msra.mxu0 %v6536
        %8186 = vmatprep.subr.bf16.mxu0 %v6553
        %8187 = vmatpush1.bf16.msra.mxu0 %v6552
        %8188 = vmatprep.subr.bf16.mxu0 %v6569
        %8189 = vmatpush1.bf16.msra.mxu0 %v6568
        %8190 = vmatprep.subr.bf16.mxu0 %v6585
        %8191 = vmatpush1.bf16.msra.mxu0 %v6584
        %8192 = vmatprep.subr.bf16.mxu0 %v6601
        %8193 = vmatpush1.bf16.msra.mxu0 %v6600
        %8194 = vmatprep.subr.bf16.mxu0 %v6617
        %8195 = vmatpush1.bf16.msra.mxu0 %v6616
        %8196 = vmatprep.subr.bf16.mxu0 %v6633
        %8197 = vmatpush1.bf16.msra.mxu0 %v6632
        %8198 = vmatprep.subr.bf16.mxu0 %v6649
        %8199 = vmatpush1.bf16.msra.mxu0 %v6648
        %8200 = vmatprep.subr.bf16.mxu0 %v6665
        %8201 = vmatpush1.bf16.msra.mxu0 %v6664
        %8202 = vmatprep.subr.bf16.mxu0 %v6681
        %8203 = vmatpush1.bf16.msra.mxu0 %v6680
        %8204 = vmatprep.subr.bf16.mxu0 %v6697
        %8205 = vmatpush1.bf16.msra.mxu0 %v6696
        %8206 = vmatprep.subr.bf16.mxu0 %v6713
        %8207 = vmatpush1.bf16.msra.mxu0 %v6712
        %8208 = vmatprep.subr.bf16.mxu0 %v6729
        %8209 = vmatpush1.bf16.msra.mxu0 %v6728
        %8210 = vmatprep.subr.bf16.mxu0 %v6745
        %8211 = vmatpush1.bf16.msra.mxu0 %v6744
        %8212 = vmatprep.subr.bf16.mxu0 %v6761
        %8213 = vmatpush1.bf16.msra.mxu0 %v6760
        %8214 = vmatprep.subr.bf16.mxu0 %v6777
        %8215 = vmatpush1.bf16.msra.mxu0 %v6776
        %8216 = vmatprep.mubr.bf16.mxu0 %v4973
        %8217 = vmatmul.mubr.bf16.gmra.mrb[0].mxu0 %v4972
        %v8218 = vpop.f32.mrb[0].mxu0
        %v8219 = vadd.f32 0.0, %v8218
        %v8220 = vpop.f32.mrb[0].mxu0
        %v8221 = vadd.f32 0.0, %v8220
        %v8222 = vpop.f32.mrb[0].mxu0
        %v8223 = vadd.f32 0.0, %v8222
        %v8224 = vpop.f32.mrb[0].mxu0
        %v8225 = vadd.f32 0.0, %v8224
        %8226 = vmatprep.mubr.bf16.mxu0 %v4977
        %8227 = vmatmul.mubr.bf16.gmra.mrb[0].mxu0 %v4976
        %v8228 = vpop.f32.mrb[0].mxu0
        %v8229 = vadd.f32 0.0, %v8228
        %v8230 = vpop.f32.mrb[0].mxu0
        %v8231 = vadd.f32 0.0, %v8230
        %v8232 = vpop.f32.mrb[0].mxu0
        %v8233 = vadd.f32 0.0, %v8232
        %v8234 = vpop.f32.mrb[0].mxu0
        %v8235 = vadd.f32 0.0, %v8234
        %8236 = vdwg.mxu0
        %8237 = vmatprep.subr.bf16.mxu0 %v6793
        %8238 = vmatpush1.bf16.msra.mxu0 %v6792
        %8239 = vmatprep.subr.bf16.mxu0 %v6809
        %8240 = vmatpush1.bf16.msra.mxu0 %v6808
        %8241 = vmatprep.subr.bf16.mxu0 %v6825
        %8242 = vmatpush1.bf16.msra.mxu0 %v6824
        %8243 = vmatprep.subr.bf16.mxu0 %v6841
        %8244 = vmatpush1.bf16.msra.mxu0 %v6840
        %8245 = vmatprep.subr.bf16.mxu0 %v6857
        %8246 = vmatpush1.bf16.msra.mxu0 %v6856
        %8247 = vmatprep.subr.bf16.mxu0 %v6873
        %8248 = vmatpush1.bf16.msra.mxu0 %v6872
        %8249 = vmatprep.subr.bf16.mxu0 %v6889
        %8250 = vmatpush1.bf16.msra.mxu0 %v6888
        %8251 = vmatprep.subr.bf16.mxu0 %v6905
        %8252 = vmatpush1.bf16.msra.mxu0 %v6904
        %8253 = vmatprep.subr.bf16.mxu0 %v6921
        %8254 = vmatpush1.bf16.msra.mxu0 %v6920
        %8255 = vmatprep.subr.bf16.mxu0 %v6937
        %8256 = vmatpush1.bf16.msra.mxu0 %v6936
        %8257 = vmatprep.subr.bf16.mxu0 %v6953
        %8258 = vmatpush1.bf16.msra.mxu0 %v6952
        %8259 = vmatprep.subr.bf16.mxu0 %v6969
        %8260 = vmatpush1.bf16.msra.mxu0 %v6968
        %8261 = vmatprep.subr.bf16.mxu0 %v6985
        %8262 = vmatpush1.bf16.msra.mxu0 %v6984
        %8263 = vmatprep.subr.bf16.mxu0 %v7001
        %8264 = vmatpush1.bf16.msra.mxu0 %v7000
        %8265 = vmatprep.subr.bf16.mxu0 %v7017
        %8266 = vmatpush1.bf16.msra.mxu0 %v7016
        %8267 = vmatprep.subr.bf16.mxu0 %v7033
        %8268 = vmatpush1.bf16.msra.mxu0 %v7032
        %8269 = vmatprep.mubr.bf16.mxu0 %v4975
        %8270 = vmatmul.mubr.bf16.gmra.mrb[0].mxu0 %v4974
        %v8271 = vpop.f32.mrb[0].mxu0
        %v8272 = vadd.f32 %v8219, %v8271
        %v8273 = vpop.f32.mrb[0].mxu0
        %v8274 = vadd.f32 %v8221, %v8273
        %v8275 = vpop.f32.mrb[0].mxu0
        %v8276 = vadd.f32 %v8223, %v8275
        %v8277 = vpop.f32.mrb[0].mxu0
        %v8278 = vadd.f32 %v8225, %v8277
        %8279 = vmatprep.mubr.bf16.mxu0 %v4979
        %8280 = vmatmul.mubr.bf16.gmra.mrb[0].mxu0 %v4978
        %v8281 = vpop.f32.mrb[0].mxu0
        %v8282 = vadd.f32 %v8229, %v8281
        %v8283 = vpop.f32.mrb[0].mxu0
        %v8284 = vadd.f32 %v8231, %v8283
        %v8285 = vpop.f32.mrb[0].mxu0
        %v8286 = vadd.f32 %v8233, %v8285
        %v8287 = vpop.f32.mrb[0].mxu0
        %v8288 = vadd.f32 %v8235, %v8287
        %8289 = vdwg.mxu0
        %8290 = vmatprep.subr.bf16.mxu0 %v6539
        %8291 = vmatpush1.bf16.msra.mxu0 %v6538
        %8292 = vmatprep.subr.bf16.mxu0 %v6555
        %8293 = vmatpush1.bf16.msra.mxu0 %v6554
        %8294 = vmatprep.subr.bf16.mxu0 %v6571
        %8295 = vmatpush1.bf16.msra.mxu0 %v6570
        %8296 = vmatprep.subr.bf16.mxu0 %v6587
        %8297 = vmatpush1.bf16.msra.mxu0 %v6586
        %8298 = vmatprep.subr.bf16.mxu0 %v6603
        %8299 = vmatpush1.bf16.msra.mxu0 %v6602
        %8300 = vmatprep.subr.bf16.mxu0 %v6619
        %8301 = vmatpush1.bf16.msra.mxu0 %v6618
        %8302 = vmatprep.subr.bf16.mxu0 %v6635
        %8303 = vmatpush1.bf16.msra.mxu0 %v6634
        %8304 = vmatprep.subr.bf16.mxu0 %v6651
        %8305 = vmatpush1.bf16.msra.mxu0 %v6650
        %8306 = vmatprep.subr.bf16.mxu0 %v6667
        %8307 = vmatpush1.bf16.msra.mxu0 %v6666
        %8308 = vmatprep.subr.bf16.mxu0 %v6683
        %8309 = vmatpush1.bf16.msra.mxu0 %v6682
        %8310 = vmatprep.subr.bf16.mxu0 %v6699
        %8311 = vmatpush1.bf16.msra.mxu0 %v6698
        %8312 = vmatprep.subr.bf16.mxu0 %v6715
        %8313 = vmatpush1.bf16.msra.mxu0 %v6714
        %8314 = vmatprep.subr.bf16.mxu0 %v6731
        %8315 = vmatpush1.bf16.msra.mxu0 %v6730
        %8316 = vmatprep.subr.bf16.mxu0 %v6747
        %8317 = vmatpush1.bf16.msra.mxu0 %v6746
        %8318 = vmatprep.subr.bf16.mxu0 %v6763
        %8319 = vmatpush1.bf16.msra.mxu0 %v6762
        %8320 = vmatprep.subr.bf16.mxu0 %v6779
        %8321 = vmatpush1.bf16.msra.mxu0 %v6778
        %8322 = vmatprep.mubr.bf16.mxu0 %v4973
        %8323 = vmatmul.mubr.bf16.gmra.mrb[0].mxu0 %v4972
        %v8324 = vpop.f32.mrb[0].mxu0
        %v8325 = vadd.f32 0.0, %v8324
        %v8326 = vpop.f32.mrb[0].mxu0
        %v8327 = vadd.f32 0.0, %v8326
        %v8328 = vpop.f32.mrb[0].mxu0
        %v8329 = vadd.f32 0.0, %v8328
        %v8330 = vpop.f32.mrb[0].mxu0
        %v8331 = vadd.f32 0.0, %v8330
        %8332 = vmatprep.mubr.bf16.mxu0 %v4977
        %8333 = vmatmul.mubr.bf16.gmra.mrb[0].mxu0 %v4976
        %v8334 = vpop.f32.mrb[0].mxu0
        %v8335 = vadd.f32 0.0, %v8334
        %v8336 = vpop.f32.mrb[0].mxu0
        %v8337 = vadd.f32 0.0, %v8336
        %v8338 = vpop.f32.mrb[0].mxu0
        %v8339 = vadd.f32 0.0, %v8338
        %v8340 = vpop.f32.mrb[0].mxu0
        %v8341 = vadd.f32 0.0, %v8340
        %8342 = vdwg.mxu0
        %8343 = vmatprep.subr.bf16.mxu0 %v6795
        %8344 = vmatpush1.bf16.msra.mxu0 %v6794
        %8345 = vmatprep.subr.bf16.mxu0 %v6811
        %8346 = vmatpush1.bf16.msra.mxu0 %v6810
        %8347 = vmatprep.subr.bf16.mxu0 %v6827
        %8348 = vmatpush1.bf16.msra.mxu0 %v6826
        %8349 = vmatprep.subr.bf16.mxu0 %v6843
        %8350 = vmatpush1.bf16.msra.mxu0 %v6842
        %8351 = vmatprep.subr.bf16.mxu0 %v6859
        %8352 = vmatpush1.bf16.msra.mxu0 %v6858
        %8353 = vmatprep.subr.bf16.mxu0 %v6875
        %8354 = vmatpush1.bf16.msra.mxu0 %v6874
        %8355 = vmatprep.subr.bf16.mxu0 %v6891
        %8356 = vmatpush1.bf16.msra.mxu0 %v6890
        %8357 = vmatprep.subr.bf16.mxu0 %v6907
        %8358 = vmatpush1.bf16.msra.mxu0 %v6906
        %8359 = vmatprep.subr.bf16.mxu0 %v6923
        %8360 = vmatpush1.bf16.msra.mxu0 %v6922
        %8361 = vmatprep.subr.bf16.mxu0 %v6939
        %8362 = vmatpush1.bf16.msra.mxu0 %v6938
        %8363 = vmatprep.subr.bf16.mxu0 %v6955
        %8364 = vmatpush1.bf16.msra.mxu0 %v6954
        %8365 = vmatprep.subr.bf16.mxu0 %v6971
        %8366 = vmatpush1.bf16.msra.mxu0 %v6970
        %8367 = vmatprep.subr.bf16.mxu0 %v6987
        %8368 = vmatpush1.bf16.msra.mxu0 %v6986
        %8369 = vmatprep.subr.bf16.mxu0 %v7003
        %8370 = vmatpush1.bf16.msra.mxu0 %v7002
        %8371 = vmatprep.subr.bf16.mxu0 %v7019
        %8372 = vmatpush1.bf16.msra.mxu0 %v7018
        %8373 = vmatprep.subr.bf16.mxu0 %v7035
        %8374 = vmatpush1.bf16.msra.mxu0 %v7034
        %8375 = vmatprep.mubr.bf16.mxu0 %v4975
        %8376 = vmatmul.mubr.bf16.gmra.mrb[0].mxu0 %v4974
        %v8377 = vpop.f32.mrb[0].mxu0
        %v8378 = vadd.f32 %v8325, %v8377
        %v8379 = vpop.f32.mrb[0].mxu0
        %v8380 = vadd.f32 %v8327, %v8379
        %v8381 = vpop.f32.mrb[0].mxu0
        %v8382 = vadd.f32 %v8329, %v8381
        %v8383 = vpop.f32.mrb[0].mxu0
        %v8384 = vadd.f32 %v8331, %v8383
        %8385 = vmatprep.mubr.bf16.mxu0 %v4979
        %8386 = vmatmul.mubr.bf16.gmra.mrb[0].mxu0 %v4978
        %v8387 = vpop.f32.mrb[0].mxu0
        %v8388 = vadd.f32 %v8335, %v8387
        %v8389 = vpop.f32.mrb[0].mxu0
        %v8390 = vadd.f32 %v8337, %v8389
        %v8391 = vpop.f32.mrb[0].mxu0
        %v8392 = vadd.f32 %v8339, %v8391
        %v8393 = vpop.f32.mrb[0].mxu0
        %v8394 = vadd.f32 %v8341, %v8393
        %8395 = vdwg.mxu0
        %v8396 = vadd.f32 %v4268, %v7636
        %v8397 = vadd.f32 %v4269, %v7638
        %v8398 = vadd.f32 %v4270, %v7742
        %v8399 = vadd.f32 %v4271, %v7744
        %v8400 = vadd.f32 %v4272, %v7848
        %v8401 = vadd.f32 %v4273, %v7850
        %v8402 = vadd.f32 %v4274, %v7954
        %v8403 = vadd.f32 %v4275, %v7956
        %v8404 = vadd.f32 %v4276, %v8060
        %v8405 = vadd.f32 %v4277, %v8062
        %v8406 = vadd.f32 %v4278, %v8166
        %v8407 = vadd.f32 %v4279, %v8168
        %v8408 = vadd.f32 %v4280, %v8272
        %v8409 = vadd.f32 %v4281, %v8274
        %v8410 = vadd.f32 %v4282, %v8378
        %v8411 = vadd.f32 %v4283, %v8380
        %v8412 = vadd.f32 %v4284, %v7640
        %v8413 = vadd.f32 %v4285, %v7642
        %v8414 = vadd.f32 %v4286, %v7746
        %v8415 = vadd.f32 %v4287, %v7748
        %v8416 = vadd.f32 %v4288, %v7852
        %v8417 = vadd.f32 %v4289, %v7854
        %v8418 = vadd.f32 %v4290, %v7958
        %v8419 = vadd.f32 %v4291, %v7960
        %v8420 = vadd.f32 %v4292, %v8064
        %v8421 = vadd.f32 %v4293, %v8066
        %v8422 = vadd.f32 %v4294, %v8170
        %v8423 = vadd.f32 %v4295, %v8172
        %v8424 = vadd.f32 %v4296, %v8276
        %v8425 = vadd.f32 %v4297, %v8278
        %v8426 = vadd.f32 %v4298, %v8382
        %v8427 = vadd.f32 %v4299, %v8384
        %v8428 = vadd.f32 %v4300, %v7646
        %v8429 = vadd.f32 %v4301, %v7648
        %v8430 = vadd.f32 %v4302, %v7752
        %v8431 = vadd.f32 %v4303, %v7754
        %v8432 = vadd.f32 %v4304, %v7858
        %v8433 = vadd.f32 %v4305, %v7860
        %v8434 = vadd.f32 %v4306, %v7964
        %v8435 = vadd.f32 %v4307, %v7966
        %v8436 = vadd.f32 %v4308, %v8070
        %v8437 = vadd.f32 %v4309, %v8072
        %v8438 = vadd.f32 %v4310, %v8176
        %v8439 = vadd.f32 %v4311, %v8178
        %v8440 = vadd.f32 %v4312, %v8282
        %v8441 = vadd.f32 %v4313, %v8284
        %v8442 = vadd.f32 %v4314, %v8388
        %v8443 = vadd.f32 %v4315, %v8390
        %v8444 = vadd.f32 %v4316, %v7650
        %v8445 = vadd.f32 %v4317, %v7652
        %v8446 = vadd.f32 %v4318, %v7756
        %v8447 = vadd.f32 %v4319, %v7758
        %v8448 = vadd.f32 %v4320, %v7862
        %v8449 = vadd.f32 %v4321, %v7864
        %v8450 = vadd.f32 %v4322, %v7968
        %v8451 = vadd.f32 %v4323, %v7970
        %v8452 = vadd.f32 %v4324, %v8074
        %v8453 = vadd.f32 %v4325, %v8076
        %v8454 = vadd.f32 %v4326, %v8180
        %v8455 = vadd.f32 %v4327, %v8182
        %v8456 = vadd.f32 %v4328, %v8286
        %v8457 = vadd.f32 %v4329, %v8288
        %v8458 = vadd.f32 %v4330, %v8392
        %v8459 = vadd.f32 %v4331, %v8394
        %v8460 = vld [vmem:[#allocation2] sm:$0xee]
        %v8461 = vld [vmem:[#allocation2 + $0x8] sm:$0xee]
        %v8462 = vld [vmem:[#allocation2 + $0x30] sm:$0xee]
        %v8463 = vld [vmem:[#allocation2 + $0x38] sm:$0xee]
        %vm8476 = vcmask 1042432
        %vm8477 = vcmask 1046532
        %vm8478 = vmor %vm8476, %vm8477
        %v8479 = vrot.slane %v8460, 5
        %v8480 = vrot.slane %v8479, 4
        %v8481 = vrot.slane %v4334, 5
        %v8482 = vsel %vm8478, %v8480, %v8481
        %v8483 = vrot.slane %v8461, 5
        %v8484 = vrot.slane %v8483, 4
        %v8485 = vrot.slane %v4335, 5
        %v8486 = vsel %vm8478, %v8484, %v8485
        %v8487 = vrot.slane %v8481, 4
        %v8488 = vrot.slane %v4336, 5
        %v8489 = vsel %vm8478, %v8487, %v8488
        %v8490 = vrot.slane %v8485, 4
        %v8491 = vrot.slane %v4337, 5
        %v8492 = vsel %vm8478, %v8490, %v8491
        %v8493 = vrot.slane %v8462, 5
        %v8494 = vrot.slane %v8493, 4
        %v8495 = vrot.slane %v4340, 5
        %v8496 = vsel %vm8478, %v8494, %v8495
        %v8497 = vrot.slane %v8463, 5
        %v8498 = vrot.slane %v8497, 4
        %v8499 = vrot.slane %v4341, 5
        %v8500 = vsel %vm8478, %v8498, %v8499
        %v8501 = vrot.slane %v8495, 4
        %v8502 = vrot.slane %v4342, 5
        %v8503 = vsel %vm8478, %v8501, %v8502
        %v8504 = vrot.slane %v8499, 4
        %v8505 = vrot.slane %v4343, 5
        %v8506 = vsel %vm8478, %v8504, %v8505
        %s8507 = scalar_lea.vmem [#allocation6], 8192
        %v8508 = vld [vmem:[%s8507] sm:$0xff]
        %v8509 = vld [vmem:[%s8507 + $0x8] sm:$0xff]
        %v8510 = vld [vmem:[%s8507 + $0x10] sm:$0xff]
        %v8511 = vld [vmem:[%s8507 + $0x18] sm:$0xff]
        %v8512 = vld [vmem:[%s8507 + $0x20] sm:$0xff]
        %v8513 = vld [vmem:[%s8507 + $0x28] sm:$0xff]
        %v8514 = vld [vmem:[%s8507 + $0x30] sm:$0xff]
        %v8515 = vld [vmem:[%s8507 + $0x38] sm:$0xff]
        %v8516 = vld [vmem:[%s8507 + $0x40] sm:$0xff]
        %v8517 = vld [vmem:[%s8507 + $0x48] sm:$0xff]
        %v8518 = vld [vmem:[%s8507 + $0x50] sm:$0xff]
        %v8519 = vld [vmem:[%s8507 + $0x58] sm:$0xff]
        %v8520 = vld [vmem:[%s8507 + $0x60] sm:$0xff]
        %v8521 = vld [vmem:[%s8507 + $0x68] sm:$0xff]
        %v8522 = vld [vmem:[%s8507 + $0x70] sm:$0xff]
        %v8523 = vld [vmem:[%s8507 + $0x78] sm:$0xff]
        %v8524 = vld [vmem:[%s8507 + $0x80] sm:$0xff]
        %v8525 = vld [vmem:[%s8507 + $0x88] sm:$0xff]
        %v8526 = vld [vmem:[%s8507 + $0x90] sm:$0xff]
        %v8527 = vld [vmem:[%s8507 + $0x98] sm:$0xff]
        %v8528 = vld [vmem:[%s8507 + $0xa0] sm:$0xff]
        %v8529 = vld [vmem:[%s8507 + $0xa8] sm:$0xff]
        %v8530 = vld [vmem:[%s8507 + $0xb0] sm:$0xff]
        %v8531 = vld [vmem:[%s8507 + $0xb8] sm:$0xff]
        %v8532 = vld [vmem:[%s8507 + $0xc0] sm:$0xff]
        %v8533 = vld [vmem:[%s8507 + $0xc8] sm:$0xff]
        %v8534 = vld [vmem:[%s8507 + $0xd0] sm:$0xff]
        %v8535 = vld [vmem:[%s8507 + $0xd8] sm:$0xff]
        %v8536 = vld [vmem:[%s8507 + $0xe0] sm:$0xff]
        %v8537 = vld [vmem:[%s8507 + $0xe8] sm:$0xff]
        %v8538 = vld [vmem:[%s8507 + $0xf0] sm:$0xff]
        %v8539 = vld [vmem:[%s8507 + $0xf8] sm:$0xff]
        %v8540 = vld [vmem:[%s8507 + $0x100] sm:$0xff]
        %v8541 = vld [vmem:[%s8507 + $0x108] sm:$0xff]
        %v8542 = vld [vmem:[%s8507 + $0x110] sm:$0xff]
        %v8543 = vld [vmem:[%s8507 + $0x118] sm:$0xff]
        %v8544 = vld [vmem:[%s8507 + $0x120] sm:$0xff]
        %v8545 = vld [vmem:[%s8507 + $0x128] sm:$0xff]
        %v8546 = vld [vmem:[%s8507 + $0x130] sm:$0xff]
        %v8547 = vld [vmem:[%s8507 + $0x138] sm:$0xff]
        %v8548 = vld [vmem:[%s8507 + $0x140] sm:$0xff]
        %v8549 = vld [vmem:[%s8507 + $0x148] sm:$0xff]
        %v8550 = vld [vmem:[%s8507 + $0x150] sm:$0xff]
        %v8551 = vld [vmem:[%s8507 + $0x158] sm:$0xff]
        %v8552 = vld [vmem:[%s8507 + $0x160] sm:$0xff]
        %v8553 = vld [vmem:[%s8507 + $0x168] sm:$0xff]
        %v8554 = vld [vmem:[%s8507 + $0x170] sm:$0xff]
        %v8555 = vld [vmem:[%s8507 + $0x178] sm:$0xff]
        %v8556 = vld [vmem:[%s8507 + $0x180] sm:$0xff]
        %v8557 = vld [vmem:[%s8507 + $0x188] sm:$0xff]
        %v8558 = vld [vmem:[%s8507 + $0x190] sm:$0xff]
        %v8559 = vld [vmem:[%s8507 + $0x198] sm:$0xff]
        %v8560 = vld [vmem:[%s8507 + $0x1a0] sm:$0xff]
        %v8561 = vld [vmem:[%s8507 + $0x1a8] sm:$0xff]
        %v8562 = vld [vmem:[%s8507 + $0x1b0] sm:$0xff]
        %v8563 = vld [vmem:[%s8507 + $0x1b8] sm:$0xff]
        %v8564 = vld [vmem:[%s8507 + $0x1c0] sm:$0xff]
        %v8565 = vld [vmem:[%s8507 + $0x1c8] sm:$0xff]
        %v8566 = vld [vmem:[%s8507 + $0x1d0] sm:$0xff]
        %v8567 = vld [vmem:[%s8507 + $0x1d8] sm:$0xff]
        %v8568 = vld [vmem:[%s8507 + $0x1e0] sm:$0xff]
        %v8569 = vld [vmem:[%s8507 + $0x1e8] sm:$0xff]
        %v8570 = vld [vmem:[%s8507 + $0x1f0] sm:$0xff]
        %v8571 = vld [vmem:[%s8507 + $0x1f8] sm:$0xff]
        %v8572 = vld [vmem:[%s8507 + $0x200] sm:$0xff]
        %v8573 = vld [vmem:[%s8507 + $0x208] sm:$0xff]
        %v8574 = vld [vmem:[%s8507 + $0x210] sm:$0xff]
        %v8575 = vld [vmem:[%s8507 + $0x218] sm:$0xff]
        %v8576 = vld [vmem:[%s8507 + $0x220] sm:$0xff]
        %v8577 = vld [vmem:[%s8507 + $0x228] sm:$0xff]
        %v8578 = vld [vmem:[%s8507 + $0x230] sm:$0xff]
        %v8579 = vld [vmem:[%s8507 + $0x238] sm:$0xff]
        %v8580 = vld [vmem:[%s8507 + $0x240] sm:$0xff]
        %v8581 = vld [vmem:[%s8507 + $0x248] sm:$0xff]
        %v8582 = vld [vmem:[%s8507 + $0x250] sm:$0xff]
        %v8583 = vld [vmem:[%s8507 + $0x258] sm:$0xff]
        %v8584 = vld [vmem:[%s8507 + $0x260] sm:$0xff]
        %v8585 = vld [vmem:[%s8507 + $0x268] sm:$0xff]
        %v8586 = vld [vmem:[%s8507 + $0x270] sm:$0xff]
        %v8587 = vld [vmem:[%s8507 + $0x278] sm:$0xff]
        %v8588 = vld [vmem:[%s8507 + $0x280] sm:$0xff]
        %v8589 = vld [vmem:[%s8507 + $0x288] sm:$0xff]
        %v8590 = vld [vmem:[%s8507 + $0x290] sm:$0xff]
        %v8591 = vld [vmem:[%s8507 + $0x298] sm:$0xff]
        %v8592 = vld [vmem:[%s8507 + $0x2a0] sm:$0xff]
        %v8593 = vld [vmem:[%s8507 + $0x2a8] sm:$0xff]
        %v8594 = vld [vmem:[%s8507 + $0x2b0] sm:$0xff]
        %v8595 = vld [vmem:[%s8507 + $0x2b8] sm:$0xff]
        %v8596 = vld [vmem:[%s8507 + $0x2c0] sm:$0xff]
        %v8597 = vld [vmem:[%s8507 + $0x2c8] sm:$0xff]
        %v8598 = vld [vmem:[%s8507 + $0x2d0] sm:$0xff]
        %v8599 = vld [vmem:[%s8507 + $0x2d8] sm:$0xff]
        %v8600 = vld [vmem:[%s8507 + $0x2e0] sm:$0xff]
        %v8601 = vld [vmem:[%s8507 + $0x2e8] sm:$0xff]
        %v8602 = vld [vmem:[%s8507 + $0x2f0] sm:$0xff]
        %v8603 = vld [vmem:[%s8507 + $0x2f8] sm:$0xff]
        %v8604 = vld [vmem:[%s8507 + $0x300] sm:$0xff]
        %v8605 = vld [vmem:[%s8507 + $0x308] sm:$0xff]
        %v8606 = vld [vmem:[%s8507 + $0x310] sm:$0xff]
        %v8607 = vld [vmem:[%s8507 + $0x318] sm:$0xff]
        %v8608 = vld [vmem:[%s8507 + $0x320] sm:$0xff]
        %v8609 = vld [vmem:[%s8507 + $0x328] sm:$0xff]
        %v8610 = vld [vmem:[%s8507 + $0x330] sm:$0xff]
        %v8611 = vld [vmem:[%s8507 + $0x338] sm:$0xff]
        %v8612 = vld [vmem:[%s8507 + $0x340] sm:$0xff]
        %v8613 = vld [vmem:[%s8507 + $0x348] sm:$0xff]
        %v8614 = vld [vmem:[%s8507 + $0x350] sm:$0xff]
        %v8615 = vld [vmem:[%s8507 + $0x358] sm:$0xff]
        %v8616 = vld [vmem:[%s8507 + $0x360] sm:$0xff]
        %v8617 = vld [vmem:[%s8507 + $0x368] sm:$0xff]
        %v8618 = vld [vmem:[%s8507 + $0x370] sm:$0xff]
        %v8619 = vld [vmem:[%s8507 + $0x378] sm:$0xff]
        %v8620 = vld [vmem:[%s8507 + $0x380] sm:$0xff]
        %v8621 = vld [vmem:[%s8507 + $0x388] sm:$0xff]
        %v8622 = vld [vmem:[%s8507 + $0x390] sm:$0xff]
        %v8623 = vld [vmem:[%s8507 + $0x398] sm:$0xff]
        %v8624 = vld [vmem:[%s8507 + $0x3a0] sm:$0xff]
        %v8625 = vld [vmem:[%s8507 + $0x3a8] sm:$0xff]
        %v8626 = vld [vmem:[%s8507 + $0x3b0] sm:$0xff]
        %v8627 = vld [vmem:[%s8507 + $0x3b8] sm:$0xff]
        %v8628 = vld [vmem:[%s8507 + $0x3c0] sm:$0xff]
        %v8629 = vld [vmem:[%s8507 + $0x3c8] sm:$0xff]
        %v8630 = vld [vmem:[%s8507 + $0x3d0] sm:$0xff]
        %v8631 = vld [vmem:[%s8507 + $0x3d8] sm:$0xff]
        %v8632 = vld [vmem:[%s8507 + $0x3e0] sm:$0xff]
        %v8633 = vld [vmem:[%s8507 + $0x3e8] sm:$0xff]
        %v8634 = vld [vmem:[%s8507 + $0x3f0] sm:$0xff]
        %v8635 = vld [vmem:[%s8507 + $0x3f8] sm:$0xff]
        %v8636 = vld [vmem:[%s8507 + $0x400] sm:$0xff]
        %v8637 = vld [vmem:[%s8507 + $0x408] sm:$0xff]
        %v8638 = vld [vmem:[%s8507 + $0x410] sm:$0xff]
        %v8639 = vld [vmem:[%s8507 + $0x418] sm:$0xff]
        %v8640 = vld [vmem:[%s8507 + $0x420] sm:$0xff]
        %v8641 = vld [vmem:[%s8507 + $0x428] sm:$0xff]
        %v8642 = vld [vmem:[%s8507 + $0x430] sm:$0xff]
        %v8643 = vld [vmem:[%s8507 + $0x438] sm:$0xff]
        %v8644 = vld [vmem:[%s8507 + $0x440] sm:$0xff]
        %v8645 = vld [vmem:[%s8507 + $0x448] sm:$0xff]
        %v8646 = vld [vmem:[%s8507 + $0x450] sm:$0xff]
        %v8647 = vld [vmem:[%s8507 + $0x458] sm:$0xff]
        %v8648 = vld [vmem:[%s8507 + $0x460] sm:$0xff]
        %v8649 = vld [vmem:[%s8507 + $0x468] sm:$0xff]
        %v8650 = vld [vmem:[%s8507 + $0x470] sm:$0xff]
        %v8651 = vld [vmem:[%s8507 + $0x478] sm:$0xff]
        %v8652 = vld [vmem:[%s8507 + $0x480] sm:$0xff]
        %v8653 = vld [vmem:[%s8507 + $0x488] sm:$0xff]
        %v8654 = vld [vmem:[%s8507 + $0x490] sm:$0xff]
        %v8655 = vld [vmem:[%s8507 + $0x498] sm:$0xff]
        %v8656 = vld [vmem:[%s8507 + $0x4a0] sm:$0xff]
        %v8657 = vld [vmem:[%s8507 + $0x4a8] sm:$0xff]
        %v8658 = vld [vmem:[%s8507 + $0x4b0] sm:$0xff]
        %v8659 = vld [vmem:[%s8507 + $0x4b8] sm:$0xff]
        %v8660 = vld [vmem:[%s8507 + $0x4c0] sm:$0xff]
        %v8661 = vld [vmem:[%s8507 + $0x4c8] sm:$0xff]
        %v8662 = vld [vmem:[%s8507 + $0x4d0] sm:$0xff]
        %v8663 = vld [vmem:[%s8507 + $0x4d8] sm:$0xff]
        %v8664 = vld [vmem:[%s8507 + $0x4e0] sm:$0xff]
        %v8665 = vld [vmem:[%s8507 + $0x4e8] sm:$0xff]
        %v8666 = vld [vmem:[%s8507 + $0x4f0] sm:$0xff]
        %v8667 = vld [vmem:[%s8507 + $0x4f8] sm:$0xff]
        %v8668 = vld [vmem:[%s8507 + $0x500] sm:$0xff]
        %v8669 = vld [vmem:[%s8507 + $0x508] sm:$0xff]
        %v8670 = vld [vmem:[%s8507 + $0x510] sm:$0xff]
        %v8671 = vld [vmem:[%s8507 + $0x518] sm:$0xff]
        %v8672 = vld [vmem:[%s8507 + $0x520] sm:$0xff]
        %v8673 = vld [vmem:[%s8507 + $0x528] sm:$0xff]
        %v8674 = vld [vmem:[%s8507 + $0x530] sm:$0xff]
        %v8675 = vld [vmem:[%s8507 + $0x538] sm:$0xff]
        %v8676 = vld [vmem:[%s8507 + $0x540] sm:$0xff]
        %v8677 = vld [vmem:[%s8507 + $0x548] sm:$0xff]
        %v8678 = vld [vmem:[%s8507 + $0x550] sm:$0xff]
        %v8679 = vld [vmem:[%s8507 + $0x558] sm:$0xff]
        %v8680 = vld [vmem:[%s8507 + $0x560] sm:$0xff]
        %v8681 = vld [vmem:[%s8507 + $0x568] sm:$0xff]
        %v8682 = vld [vmem:[%s8507 + $0x570] sm:$0xff]
        %v8683 = vld [vmem:[%s8507 + $0x578] sm:$0xff]
        %v8684 = vld [vmem:[%s8507 + $0x580] sm:$0xff]
        %v8685 = vld [vmem:[%s8507 + $0x588] sm:$0xff]
        %v8686 = vld [vmem:[%s8507 + $0x590] sm:$0xff]
        %v8687 = vld [vmem:[%s8507 + $0x598] sm:$0xff]
        %v8688 = vld [vmem:[%s8507 + $0x5a0] sm:$0xff]
        %v8689 = vld [vmem:[%s8507 + $0x5a8] sm:$0xff]
        %v8690 = vld [vmem:[%s8507 + $0x5b0] sm:$0xff]
        %v8691 = vld [vmem:[%s8507 + $0x5b8] sm:$0xff]
        %v8692 = vld [vmem:[%s8507 + $0x5c0] sm:$0xff]
        %v8693 = vld [vmem:[%s8507 + $0x5c8] sm:$0xff]
        %v8694 = vld [vmem:[%s8507 + $0x5d0] sm:$0xff]
        %v8695 = vld [vmem:[%s8507 + $0x5d8] sm:$0xff]
        %v8696 = vld [vmem:[%s8507 + $0x5e0] sm:$0xff]
        %v8697 = vld [vmem:[%s8507 + $0x5e8] sm:$0xff]
        %v8698 = vld [vmem:[%s8507 + $0x5f0] sm:$0xff]
        %v8699 = vld [vmem:[%s8507 + $0x5f8] sm:$0xff]
        %v8700 = vld [vmem:[%s8507 + $0x600] sm:$0xff]
        %v8701 = vld [vmem:[%s8507 + $0x608] sm:$0xff]
        %v8702 = vld [vmem:[%s8507 + $0x610] sm:$0xff]
        %v8703 = vld [vmem:[%s8507 + $0x618] sm:$0xff]
        %v8704 = vld [vmem:[%s8507 + $0x620] sm:$0xff]
        %v8705 = vld [vmem:[%s8507 + $0x628] sm:$0xff]
        %v8706 = vld [vmem:[%s8507 + $0x630] sm:$0xff]
        %v8707 = vld [vmem:[%s8507 + $0x638] sm:$0xff]
        %v8708 = vld [vmem:[%s8507 + $0x640] sm:$0xff]
        %v8709 = vld [vmem:[%s8507 + $0x648] sm:$0xff]
        %v8710 = vld [vmem:[%s8507 + $0x650] sm:$0xff]
        %v8711 = vld [vmem:[%s8507 + $0x658] sm:$0xff]
        %v8712 = vld [vmem:[%s8507 + $0x660] sm:$0xff]
        %v8713 = vld [vmem:[%s8507 + $0x668] sm:$0xff]
        %v8714 = vld [vmem:[%s8507 + $0x670] sm:$0xff]
        %v8715 = vld [vmem:[%s8507 + $0x678] sm:$0xff]
        %v8716 = vld [vmem:[%s8507 + $0x680] sm:$0xff]
        %v8717 = vld [vmem:[%s8507 + $0x688] sm:$0xff]
        %v8718 = vld [vmem:[%s8507 + $0x690] sm:$0xff]
        %v8719 = vld [vmem:[%s8507 + $0x698] sm:$0xff]
        %v8720 = vld [vmem:[%s8507 + $0x6a0] sm:$0xff]
        %v8721 = vld [vmem:[%s8507 + $0x6a8] sm:$0xff]
        %v8722 = vld [vmem:[%s8507 + $0x6b0] sm:$0xff]
        %v8723 = vld [vmem:[%s8507 + $0x6b8] sm:$0xff]
        %v8724 = vld [vmem:[%s8507 + $0x6c0] sm:$0xff]
        %v8725 = vld [vmem:[%s8507 + $0x6c8] sm:$0xff]
        %v8726 = vld [vmem:[%s8507 + $0x6d0] sm:$0xff]
        %v8727 = vld [vmem:[%s8507 + $0x6d8] sm:$0xff]
        %v8728 = vld [vmem:[%s8507 + $0x6e0] sm:$0xff]
        %v8729 = vld [vmem:[%s8507 + $0x6e8] sm:$0xff]
        %v8730 = vld [vmem:[%s8507 + $0x6f0] sm:$0xff]
        %v8731 = vld [vmem:[%s8507 + $0x6f8] sm:$0xff]
        %v8732 = vld [vmem:[%s8507 + $0x700] sm:$0xff]
        %v8733 = vld [vmem:[%s8507 + $0x708] sm:$0xff]
        %v8734 = vld [vmem:[%s8507 + $0x710] sm:$0xff]
        %v8735 = vld [vmem:[%s8507 + $0x718] sm:$0xff]
        %v8736 = vld [vmem:[%s8507 + $0x720] sm:$0xff]
        %v8737 = vld [vmem:[%s8507 + $0x728] sm:$0xff]
        %v8738 = vld [vmem:[%s8507 + $0x730] sm:$0xff]
        %v8739 = vld [vmem:[%s8507 + $0x738] sm:$0xff]
        %v8740 = vld [vmem:[%s8507 + $0x740] sm:$0xff]
        %v8741 = vld [vmem:[%s8507 + $0x748] sm:$0xff]
        %v8742 = vld [vmem:[%s8507 + $0x750] sm:$0xff]
        %v8743 = vld [vmem:[%s8507 + $0x758] sm:$0xff]
        %v8744 = vld [vmem:[%s8507 + $0x760] sm:$0xff]
        %v8745 = vld [vmem:[%s8507 + $0x768] sm:$0xff]
        %v8746 = vld [vmem:[%s8507 + $0x770] sm:$0xff]
        %v8747 = vld [vmem:[%s8507 + $0x778] sm:$0xff]
        %v8748 = vld [vmem:[%s8507 + $0x780] sm:$0xff]
        %v8749 = vld [vmem:[%s8507 + $0x788] sm:$0xff]
        %v8750 = vld [vmem:[%s8507 + $0x790] sm:$0xff]
        %v8751 = vld [vmem:[%s8507 + $0x798] sm:$0xff]
        %v8752 = vld [vmem:[%s8507 + $0x7a0] sm:$0xff]
        %v8753 = vld [vmem:[%s8507 + $0x7a8] sm:$0xff]
        %v8754 = vld [vmem:[%s8507 + $0x7b0] sm:$0xff]
        %v8755 = vld [vmem:[%s8507 + $0x7b8] sm:$0xff]
        %v8756 = vld [vmem:[%s8507 + $0x7c0] sm:$0xff]
        %v8757 = vld [vmem:[%s8507 + $0x7c8] sm:$0xff]
        %v8758 = vld [vmem:[%s8507 + $0x7d0] sm:$0xff]
        %v8759 = vld [vmem:[%s8507 + $0x7d8] sm:$0xff]
        %v8760 = vld [vmem:[%s8507 + $0x7e0] sm:$0xff]
        %v8761 = vld [vmem:[%s8507 + $0x7e8] sm:$0xff]
        %v8762 = vld [vmem:[%s8507 + $0x7f0] sm:$0xff]
        %v8763 = vld [vmem:[%s8507 + $0x7f8] sm:$0xff]
        %v8764 = vld [vmem:[%s8507 + $0x800] sm:$0xff]
        %v8765 = vld [vmem:[%s8507 + $0x808] sm:$0xff]
        %v8766 = vld [vmem:[%s8507 + $0x810] sm:$0xff]
        %v8767 = vld [vmem:[%s8507 + $0x818] sm:$0xff]
        %v8768 = vld [vmem:[%s8507 + $0x820] sm:$0xff]
        %v8769 = vld [vmem:[%s8507 + $0x828] sm:$0xff]
        %v8770 = vld [vmem:[%s8507 + $0x830] sm:$0xff]
        %v8771 = vld [vmem:[%s8507 + $0x838] sm:$0xff]
        %v8772 = vld [vmem:[%s8507 + $0x840] sm:$0xff]
        %v8773 = vld [vmem:[%s8507 + $0x848] sm:$0xff]
        %v8774 = vld [vmem:[%s8507 + $0x850] sm:$0xff]
        %v8775 = vld [vmem:[%s8507 + $0x858] sm:$0xff]
        %v8776 = vld [vmem:[%s8507 + $0x860] sm:$0xff]
        %v8777 = vld [vmem:[%s8507 + $0x868] sm:$0xff]
        %v8778 = vld [vmem:[%s8507 + $0x870] sm:$0xff]
        %v8779 = vld [vmem:[%s8507 + $0x878] sm:$0xff]
        %v8780 = vld [vmem:[%s8507 + $0x880] sm:$0xff]
        %v8781 = vld [vmem:[%s8507 + $0x888] sm:$0xff]
        %v8782 = vld [vmem:[%s8507 + $0x890] sm:$0xff]
        %v8783 = vld [vmem:[%s8507 + $0x898] sm:$0xff]
        %v8784 = vld [vmem:[%s8507 + $0x8a0] sm:$0xff]
        %v8785 = vld [vmem:[%s8507 + $0x8a8] sm:$0xff]
        %v8786 = vld [vmem:[%s8507 + $0x8b0] sm:$0xff]
        %v8787 = vld [vmem:[%s8507 + $0x8b8] sm:$0xff]
        %v8788 = vld [vmem:[%s8507 + $0x8c0] sm:$0xff]
        %v8789 = vld [vmem:[%s8507 + $0x8c8] sm:$0xff]
        %v8790 = vld [vmem:[%s8507 + $0x8d0] sm:$0xff]
        %v8791 = vld [vmem:[%s8507 + $0x8d8] sm:$0xff]
        %v8792 = vld [vmem:[%s8507 + $0x8e0] sm:$0xff]
        %v8793 = vld [vmem:[%s8507 + $0x8e8] sm:$0xff]
        %v8794 = vld [vmem:[%s8507 + $0x8f0] sm:$0xff]
        %v8795 = vld [vmem:[%s8507 + $0x8f8] sm:$0xff]
        %v8796 = vld [vmem:[%s8507 + $0x900] sm:$0xff]
        %v8797 = vld [vmem:[%s8507 + $0x908] sm:$0xff]
        %v8798 = vld [vmem:[%s8507 + $0x910] sm:$0xff]
        %v8799 = vld [vmem:[%s8507 + $0x918] sm:$0xff]
        %v8800 = vld [vmem:[%s8507 + $0x920] sm:$0xff]
        %v8801 = vld [vmem:[%s8507 + $0x928] sm:$0xff]
        %v8802 = vld [vmem:[%s8507 + $0x930] sm:$0xff]
        %v8803 = vld [vmem:[%s8507 + $0x938] sm:$0xff]
        %v8804 = vld [vmem:[%s8507 + $0x940] sm:$0xff]
        %v8805 = vld [vmem:[%s8507 + $0x948] sm:$0xff]
        %v8806 = vld [vmem:[%s8507 + $0x950] sm:$0xff]
        %v8807 = vld [vmem:[%s8507 + $0x958] sm:$0xff]
        %v8808 = vld [vmem:[%s8507 + $0x960] sm:$0xff]
        %v8809 = vld [vmem:[%s8507 + $0x968] sm:$0xff]
        %v8810 = vld [vmem:[%s8507 + $0x970] sm:$0xff]
        %v8811 = vld [vmem:[%s8507 + $0x978] sm:$0xff]
        %v8812 = vld [vmem:[%s8507 + $0x980] sm:$0xff]
        %v8813 = vld [vmem:[%s8507 + $0x988] sm:$0xff]
        %v8814 = vld [vmem:[%s8507 + $0x990] sm:$0xff]
        %v8815 = vld [vmem:[%s8507 + $0x998] sm:$0xff]
        %v8816 = vld [vmem:[%s8507 + $0x9a0] sm:$0xff]
        %v8817 = vld [vmem:[%s8507 + $0x9a8] sm:$0xff]
        %v8818 = vld [vmem:[%s8507 + $0x9b0] sm:$0xff]
        %v8819 = vld [vmem:[%s8507 + $0x9b8] sm:$0xff]
        %v8820 = vld [vmem:[%s8507 + $0x9c0] sm:$0xff]
        %v8821 = vld [vmem:[%s8507 + $0x9c8] sm:$0xff]
        %v8822 = vld [vmem:[%s8507 + $0x9d0] sm:$0xff]
        %v8823 = vld [vmem:[%s8507 + $0x9d8] sm:$0xff]
        %v8824 = vld [vmem:[%s8507 + $0x9e0] sm:$0xff]
        %v8825 = vld [vmem:[%s8507 + $0x9e8] sm:$0xff]
        %v8826 = vld [vmem:[%s8507 + $0x9f0] sm:$0xff]
        %v8827 = vld [vmem:[%s8507 + $0x9f8] sm:$0xff]
        %v8828 = vld [vmem:[%s8507 + $0xa00] sm:$0xff]
        %v8829 = vld [vmem:[%s8507 + $0xa08] sm:$0xff]
        %v8830 = vld [vmem:[%s8507 + $0xa10] sm:$0xff]
        %v8831 = vld [vmem:[%s8507 + $0xa18] sm:$0xff]
        %v8832 = vld [vmem:[%s8507 + $0xa20] sm:$0xff]
        %v8833 = vld [vmem:[%s8507 + $0xa28] sm:$0xff]
        %v8834 = vld [vmem:[%s8507 + $0xa30] sm:$0xff]
        %v8835 = vld [vmem:[%s8507 + $0xa38] sm:$0xff]
        %v8836 = vld [vmem:[%s8507 + $0xa40] sm:$0xff]
        %v8837 = vld [vmem:[%s8507 + $0xa48] sm:$0xff]
        %v8838 = vld [vmem:[%s8507 + $0xa50] sm:$0xff]
        %v8839 = vld [vmem:[%s8507 + $0xa58] sm:$0xff]
        %v8840 = vld [vmem:[%s8507 + $0xa60] sm:$0xff]
        %v8841 = vld [vmem:[%s8507 + $0xa68] sm:$0xff]
        %v8842 = vld [vmem:[%s8507 + $0xa70] sm:$0xff]
        %v8843 = vld [vmem:[%s8507 + $0xa78] sm:$0xff]
        %v8844 = vld [vmem:[%s8507 + $0xa80] sm:$0xff]
        %v8845 = vld [vmem:[%s8507 + $0xa88] sm:$0xff]
        %v8846 = vld [vmem:[%s8507 + $0xa90] sm:$0xff]
        %v8847 = vld [vmem:[%s8507 + $0xa98] sm:$0xff]
        %v8848 = vld [vmem:[%s8507 + $0xaa0] sm:$0xff]
        %v8849 = vld [vmem:[%s8507 + $0xaa8] sm:$0xff]
        %v8850 = vld [vmem:[%s8507 + $0xab0] sm:$0xff]
        %v8851 = vld [vmem:[%s8507 + $0xab8] sm:$0xff]
        %v8852 = vld [vmem:[%s8507 + $0xac0] sm:$0xff]
        %v8853 = vld [vmem:[%s8507 + $0xac8] sm:$0xff]
        %v8854 = vld [vmem:[%s8507 + $0xad0] sm:$0xff]
        %v8855 = vld [vmem:[%s8507 + $0xad8] sm:$0xff]
        %v8856 = vld [vmem:[%s8507 + $0xae0] sm:$0xff]
        %v8857 = vld [vmem:[%s8507 + $0xae8] sm:$0xff]
        %v8858 = vld [vmem:[%s8507 + $0xaf0] sm:$0xff]
        %v8859 = vld [vmem:[%s8507 + $0xaf8] sm:$0xff]
        %v8860 = vld [vmem:[%s8507 + $0xb00] sm:$0xff]
        %v8861 = vld [vmem:[%s8507 + $0xb08] sm:$0xff]
        %v8862 = vld [vmem:[%s8507 + $0xb10] sm:$0xff]
        %v8863 = vld [vmem:[%s8507 + $0xb18] sm:$0xff]
        %v8864 = vld [vmem:[%s8507 + $0xb20] sm:$0xff]
        %v8865 = vld [vmem:[%s8507 + $0xb28] sm:$0xff]
        %v8866 = vld [vmem:[%s8507 + $0xb30] sm:$0xff]
        %v8867 = vld [vmem:[%s8507 + $0xb38] sm:$0xff]
        %v8868 = vld [vmem:[%s8507 + $0xb40] sm:$0xff]
        %v8869 = vld [vmem:[%s8507 + $0xb48] sm:$0xff]
        %v8870 = vld [vmem:[%s8507 + $0xb50] sm:$0xff]
        %v8871 = vld [vmem:[%s8507 + $0xb58] sm:$0xff]
        %v8872 = vld [vmem:[%s8507 + $0xb60] sm:$0xff]
        %v8873 = vld [vmem:[%s8507 + $0xb68] sm:$0xff]
        %v8874 = vld [vmem:[%s8507 + $0xb70] sm:$0xff]
        %v8875 = vld [vmem:[%s8507 + $0xb78] sm:$0xff]
        %v8876 = vld [vmem:[%s8507 + $0xb80] sm:$0xff]
        %v8877 = vld [vmem:[%s8507 + $0xb88] sm:$0xff]
        %v8878 = vld [vmem:[%s8507 + $0xb90] sm:$0xff]
        %v8879 = vld [vmem:[%s8507 + $0xb98] sm:$0xff]
        %v8880 = vld [vmem:[%s8507 + $0xba0] sm:$0xff]
        %v8881 = vld [vmem:[%s8507 + $0xba8] sm:$0xff]
        %v8882 = vld [vmem:[%s8507 + $0xbb0] sm:$0xff]
        %v8883 = vld [vmem:[%s8507 + $0xbb8] sm:$0xff]
        %v8884 = vld [vmem:[%s8507 + $0xbc0] sm:$0xff]
        %v8885 = vld [vmem:[%s8507 + $0xbc8] sm:$0xff]
        %v8886 = vld [vmem:[%s8507 + $0xbd0] sm:$0xff]
        %v8887 = vld [vmem:[%s8507 + $0xbd8] sm:$0xff]
        %v8888 = vld [vmem:[%s8507 + $0xbe0] sm:$0xff]
        %v8889 = vld [vmem:[%s8507 + $0xbe8] sm:$0xff]
        %v8890 = vld [vmem:[%s8507 + $0xbf0] sm:$0xff]
        %v8891 = vld [vmem:[%s8507 + $0xbf8] sm:$0xff]
        %v8892 = vld [vmem:[%s8507 + $0xc00] sm:$0xff]
        %v8893 = vld [vmem:[%s8507 + $0xc08] sm:$0xff]
        %v8894 = vld [vmem:[%s8507 + $0xc10] sm:$0xff]
        %v8895 = vld [vmem:[%s8507 + $0xc18] sm:$0xff]
        %v8896 = vld [vmem:[%s8507 + $0xc20] sm:$0xff]
        %v8897 = vld [vmem:[%s8507 + $0xc28] sm:$0xff]
        %v8898 = vld [vmem:[%s8507 + $0xc30] sm:$0xff]
        %v8899 = vld [vmem:[%s8507 + $0xc38] sm:$0xff]
        %v8900 = vld [vmem:[%s8507 + $0xc40] sm:$0xff]
        %v8901 = vld [vmem:[%s8507 + $0xc48] sm:$0xff]
        %v8902 = vld [vmem:[%s8507 + $0xc50] sm:$0xff]
        %v8903 = vld [vmem:[%s8507 + $0xc58] sm:$0xff]
        %v8904 = vld [vmem:[%s8507 + $0xc60] sm:$0xff]
        %v8905 = vld [vmem:[%s8507 + $0xc68] sm:$0xff]
        %v8906 = vld [vmem:[%s8507 + $0xc70] sm:$0xff]
        %v8907 = vld [vmem:[%s8507 + $0xc78] sm:$0xff]
        %v8908 = vld [vmem:[%s8507 + $0xc80] sm:$0xff]
        %v8909 = vld [vmem:[%s8507 + $0xc88] sm:$0xff]
        %v8910 = vld [vmem:[%s8507 + $0xc90] sm:$0xff]
        %v8911 = vld [vmem:[%s8507 + $0xc98] sm:$0xff]
        %v8912 = vld [vmem:[%s8507 + $0xca0] sm:$0xff]
        %v8913 = vld [vmem:[%s8507 + $0xca8] sm:$0xff]
        %v8914 = vld [vmem:[%s8507 + $0xcb0] sm:$0xff]
        %v8915 = vld [vmem:[%s8507 + $0xcb8] sm:$0xff]
        %v8916 = vld [vmem:[%s8507 + $0xcc0] sm:$0xff]
        %v8917 = vld [vmem:[%s8507 + $0xcc8] sm:$0xff]
        %v8918 = vld [vmem:[%s8507 + $0xcd0] sm:$0xff]
        %v8919 = vld [vmem:[%s8507 + $0xcd8] sm:$0xff]
        %v8920 = vld [vmem:[%s8507 + $0xce0] sm:$0xff]
        %v8921 = vld [vmem:[%s8507 + $0xce8] sm:$0xff]
        %v8922 = vld [vmem:[%s8507 + $0xcf0] sm:$0xff]
        %v8923 = vld [vmem:[%s8507 + $0xcf8] sm:$0xff]
        %v8924 = vld [vmem:[%s8507 + $0xd00] sm:$0xff]
        %v8925 = vld [vmem:[%s8507 + $0xd08] sm:$0xff]
        %v8926 = vld [vmem:[%s8507 + $0xd10] sm:$0xff]
        %v8927 = vld [vmem:[%s8507 + $0xd18] sm:$0xff]
        %v8928 = vld [vmem:[%s8507 + $0xd20] sm:$0xff]
        %v8929 = vld [vmem:[%s8507 + $0xd28] sm:$0xff]
        %v8930 = vld [vmem:[%s8507 + $0xd30] sm:$0xff]
        %v8931 = vld [vmem:[%s8507 + $0xd38] sm:$0xff]
        %v8932 = vld [vmem:[%s8507 + $0xd40] sm:$0xff]
        %v8933 = vld [vmem:[%s8507 + $0xd48] sm:$0xff]
        %v8934 = vld [vmem:[%s8507 + $0xd50] sm:$0xff]
        %v8935 = vld [vmem:[%s8507 + $0xd58] sm:$0xff]
        %v8936 = vld [vmem:[%s8507 + $0xd60] sm:$0xff]
        %v8937 = vld [vmem:[%s8507 + $0xd68] sm:$0xff]
        %v8938 = vld [vmem:[%s8507 + $0xd70] sm:$0xff]
        %v8939 = vld [vmem:[%s8507 + $0xd78] sm:$0xff]
        %v8940 = vld [vmem:[%s8507 + $0xd80] sm:$0xff]
        %v8941 = vld [vmem:[%s8507 + $0xd88] sm:$0xff]
        %v8942 = vld [vmem:[%s8507 + $0xd90] sm:$0xff]
        %v8943 = vld [vmem:[%s8507 + $0xd98] sm:$0xff]
        %v8944 = vld [vmem:[%s8507 + $0xda0] sm:$0xff]
        %v8945 = vld [vmem:[%s8507 + $0xda8] sm:$0xff]
        %v8946 = vld [vmem:[%s8507 + $0xdb0] sm:$0xff]
        %v8947 = vld [vmem:[%s8507 + $0xdb8] sm:$0xff]
        %v8948 = vld [vmem:[%s8507 + $0xdc0] sm:$0xff]
        %v8949 = vld [vmem:[%s8507 + $0xdc8] sm:$0xff]
        %v8950 = vld [vmem:[%s8507 + $0xdd0] sm:$0xff]
        %v8951 = vld [vmem:[%s8507 + $0xdd8] sm:$0xff]
        %v8952 = vld [vmem:[%s8507 + $0xde0] sm:$0xff]
        %v8953 = vld [vmem:[%s8507 + $0xde8] sm:$0xff]
        %v8954 = vld [vmem:[%s8507 + $0xdf0] sm:$0xff]
        %v8955 = vld [vmem:[%s8507 + $0xdf8] sm:$0xff]
        %v8956 = vld [vmem:[%s8507 + $0xe00] sm:$0xff]
        %v8957 = vld [vmem:[%s8507 + $0xe08] sm:$0xff]
        %v8958 = vld [vmem:[%s8507 + $0xe10] sm:$0xff]
        %v8959 = vld [vmem:[%s8507 + $0xe18] sm:$0xff]
        %v8960 = vld [vmem:[%s8507 + $0xe20] sm:$0xff]
        %v8961 = vld [vmem:[%s8507 + $0xe28] sm:$0xff]
        %v8962 = vld [vmem:[%s8507 + $0xe30] sm:$0xff]
        %v8963 = vld [vmem:[%s8507 + $0xe38] sm:$0xff]
        %v8964 = vld [vmem:[%s8507 + $0xe40] sm:$0xff]
        %v8965 = vld [vmem:[%s8507 + $0xe48] sm:$0xff]
        %v8966 = vld [vmem:[%s8507 + $0xe50] sm:$0xff]
        %v8967 = vld [vmem:[%s8507 + $0xe58] sm:$0xff]
        %v8968 = vld [vmem:[%s8507 + $0xe60] sm:$0xff]
        %v8969 = vld [vmem:[%s8507 + $0xe68] sm:$0xff]
        %v8970 = vld [vmem:[%s8507 + $0xe70] sm:$0xff]
        %v8971 = vld [vmem:[%s8507 + $0xe78] sm:$0xff]
        %v8972 = vld [vmem:[%s8507 + $0xe80] sm:$0xff]
        %v8973 = vld [vmem:[%s8507 + $0xe88] sm:$0xff]
        %v8974 = vld [vmem:[%s8507 + $0xe90] sm:$0xff]
        %v8975 = vld [vmem:[%s8507 + $0xe98] sm:$0xff]
        %v8976 = vld [vmem:[%s8507 + $0xea0] sm:$0xff]
        %v8977 = vld [vmem:[%s8507 + $0xea8] sm:$0xff]
        %v8978 = vld [vmem:[%s8507 + $0xeb0] sm:$0xff]
        %v8979 = vld [vmem:[%s8507 + $0xeb8] sm:$0xff]
        %v8980 = vld [vmem:[%s8507 + $0xec0] sm:$0xff]
        %v8981 = vld [vmem:[%s8507 + $0xec8] sm:$0xff]
        %v8982 = vld [vmem:[%s8507 + $0xed0] sm:$0xff]
        %v8983 = vld [vmem:[%s8507 + $0xed8] sm:$0xff]
        %v8984 = vld [vmem:[%s8507 + $0xee0] sm:$0xff]
        %v8985 = vld [vmem:[%s8507 + $0xee8] sm:$0xff]
        %v8986 = vld [vmem:[%s8507 + $0xef0] sm:$0xff]
        %v8987 = vld [vmem:[%s8507 + $0xef8] sm:$0xff]
        %v8988 = vld [vmem:[%s8507 + $0xf00] sm:$0xff]
        %v8989 = vld [vmem:[%s8507 + $0xf08] sm:$0xff]
        %v8990 = vld [vmem:[%s8507 + $0xf10] sm:$0xff]
        %v8991 = vld [vmem:[%s8507 + $0xf18] sm:$0xff]
        %v8992 = vld [vmem:[%s8507 + $0xf20] sm:$0xff]
        %v8993 = vld [vmem:[%s8507 + $0xf28] sm:$0xff]
        %v8994 = vld [vmem:[%s8507 + $0xf30] sm:$0xff]
        %v8995 = vld [vmem:[%s8507 + $0xf38] sm:$0xff]
        %v8996 = vld [vmem:[%s8507 + $0xf40] sm:$0xff]
        %v8997 = vld [vmem:[%s8507 + $0xf48] sm:$0xff]
        %v8998 = vld [vmem:[%s8507 + $0xf50] sm:$0xff]
        %v8999 = vld [vmem:[%s8507 + $0xf58] sm:$0xff]
        %v9000 = vld [vmem:[%s8507 + $0xf60] sm:$0xff]
        %v9001 = vld [vmem:[%s8507 + $0xf68] sm:$0xff]
        %v9002 = vld [vmem:[%s8507 + $0xf70] sm:$0xff]
        %v9003 = vld [vmem:[%s8507 + $0xf78] sm:$0xff]
        %v9004 = vld [vmem:[%s8507 + $0xf80] sm:$0xff]
        %v9005 = vld [vmem:[%s8507 + $0xf88] sm:$0xff]
        %v9006 = vld [vmem:[%s8507 + $0xf90] sm:$0xff]
        %v9007 = vld [vmem:[%s8507 + $0xf98] sm:$0xff]
        %v9008 = vld [vmem:[%s8507 + $0xfa0] sm:$0xff]
        %v9009 = vld [vmem:[%s8507 + $0xfa8] sm:$0xff]
        %v9010 = vld [vmem:[%s8507 + $0xfb0] sm:$0xff]
        %v9011 = vld [vmem:[%s8507 + $0xfb8] sm:$0xff]
        %v9012 = vld [vmem:[%s8507 + $0xfc0] sm:$0xff]
        %v9013 = vld [vmem:[%s8507 + $0xfc8] sm:$0xff]
        %v9014 = vld [vmem:[%s8507 + $0xfd0] sm:$0xff]
        %v9015 = vld [vmem:[%s8507 + $0xfd8] sm:$0xff]
        %v9016 = vld [vmem:[%s8507 + $0xfe0] sm:$0xff]
        %v9017 = vld [vmem:[%s8507 + $0xfe8] sm:$0xff]
        %v9018 = vld [vmem:[%s8507 + $0xff0] sm:$0xff]
        %v9019 = vld [vmem:[%s8507 + $0xff8] sm:$0xff]
        %v9020 = vunpack.c.l.b16 %v8482
        %v9021 = vunpack.c.h.b16 %v8482
        %v9022 = vunpack.c.l.b16 %v8486
        %v9023 = vunpack.c.h.b16 %v8486
        %v9024 = vunpack.c.l.b16 %v8489
        %v9025 = vunpack.c.h.b16 %v8489
        %v9026 = vunpack.c.l.b16 %v8492
        %v9027 = vunpack.c.h.b16 %v8492
        %v9028 = vunpack.c.l.b16 %v8496
        %v9029 = vunpack.c.h.b16 %v8496
        %v9030 = vunpack.c.l.b16 %v8500
        %v9031 = vunpack.c.h.b16 %v8500
        %v9032 = vunpack.c.l.b16 %v8503
        %v9033 = vunpack.c.h.b16 %v8503
        %v9034 = vunpack.c.l.b16 %v8506
        %v9035 = vunpack.c.h.b16 %v8506
        %v9036 = vpack.c.b16 %v9024, %v9020
        %v9037 = vpack.c.b16 %v9025, %v9021
        %v9038 = vpack.c.b16 %v9026, %v9022
        %v9039 = vpack.c.b16 %v9027, %v9023
        %v9040 = vpack.c.b16 %v9032, %v9028
        %v9041 = vpack.c.b16 %v9033, %v9029
        %v9042 = vpack.c.b16 %v9034, %v9030
        %v9043 = vpack.c.b16 %v9035, %v9031
        %v9564 = vunpack.c.l.b16 %v8508
        %v9565 = vunpack.c.h.b16 %v8508
        %v9566 = vunpack.c.l.b16 %v8509
        %v9567 = vunpack.c.h.b16 %v8509
        %v9568 = vunpack.c.l.b16 %v8510
        %v9569 = vunpack.c.h.b16 %v8510
        %v9570 = vunpack.c.l.b16 %v8511
        %v9571 = vunpack.c.h.b16 %v8511
        %v9572 = vunpack.c.l.b16 %v8512
        %v9573 = vunpack.c.h.b16 %v8512
        %v9574 = vunpack.c.l.b16 %v8513
        %v9575 = vunpack.c.h.b16 %v8513
        %v9576 = vunpack.c.l.b16 %v8514
        %v9577 = vunpack.c.h.b16 %v8514
        %v9578 = vunpack.c.l.b16 %v8515
        %v9579 = vunpack.c.h.b16 %v8515
        %v9580 = vunpack.c.l.b16 %v8516
        %v9581 = vunpack.c.h.b16 %v8516
        %v9582 = vunpack.c.l.b16 %v8517
        %v9583 = vunpack.c.h.b16 %v8517
        %v9584 = vunpack.c.l.b16 %v8518
        %v9585 = vunpack.c.h.b16 %v8518
        %v9586 = vunpack.c.l.b16 %v8519
        %v9587 = vunpack.c.h.b16 %v8519
        %v9588 = vunpack.c.l.b16 %v8520
        %v9589 = vunpack.c.h.b16 %v8520
        %v9590 = vunpack.c.l.b16 %v8521
        %v9591 = vunpack.c.h.b16 %v8521
        %v9592 = vunpack.c.l.b16 %v8522
        %v9593 = vunpack.c.h.b16 %v8522
        %v9594 = vunpack.c.l.b16 %v8523
        %v9595 = vunpack.c.h.b16 %v8523
        %v9596 = vunpack.c.l.b16 %v8524
        %v9597 = vunpack.c.h.b16 %v8524
        %v9598 = vunpack.c.l.b16 %v8525
        %v9599 = vunpack.c.h.b16 %v8525
        %v9600 = vunpack.c.l.b16 %v8526
        %v9601 = vunpack.c.h.b16 %v8526
        %v9602 = vunpack.c.l.b16 %v8527
        %v9603 = vunpack.c.h.b16 %v8527
        %v9604 = vunpack.c.l.b16 %v8528
        %v9605 = vunpack.c.h.b16 %v8528
        %v9606 = vunpack.c.l.b16 %v8529
        %v9607 = vunpack.c.h.b16 %v8529
        %v9608 = vunpack.c.l.b16 %v8530
        %v9609 = vunpack.c.h.b16 %v8530
        %v9610 = vunpack.c.l.b16 %v8531
        %v9611 = vunpack.c.h.b16 %v8531
        %v9612 = vunpack.c.l.b16 %v8532
        %v9613 = vunpack.c.h.b16 %v8532
        %v9614 = vunpack.c.l.b16 %v8533
        %v9615 = vunpack.c.h.b16 %v8533
        %v9616 = vunpack.c.l.b16 %v8534
        %v9617 = vunpack.c.h.b16 %v8534
        %v9618 = vunpack.c.l.b16 %v8535
        %v9619 = vunpack.c.h.b16 %v8535
        %v9620 = vunpack.c.l.b16 %v8536
        %v9621 = vunpack.c.h.b16 %v8536
        %v9622 = vunpack.c.l.b16 %v8537
        %v9623 = vunpack.c.h.b16 %v8537
        %v9624 = vunpack.c.l.b16 %v8538
        %v9625 = vunpack.c.h.b16 %v8538
        %v9626 = vunpack.c.l.b16 %v8539
        %v9627 = vunpack.c.h.b16 %v8539
        %v9628 = vunpack.c.l.b16 %v8540
        %v9629 = vunpack.c.h.b16 %v8540
        %v9630 = vunpack.c.l.b16 %v8541
        %v9631 = vunpack.c.h.b16 %v8541
        %v9632 = vunpack.c.l.b16 %v8542
        %v9633 = vunpack.c.h.b16 %v8542
        %v9634 = vunpack.c.l.b16 %v8543
        %v9635 = vunpack.c.h.b16 %v8543
        %v9636 = vunpack.c.l.b16 %v8544
        %v9637 = vunpack.c.h.b16 %v8544
        %v9638 = vunpack.c.l.b16 %v8545
        %v9639 = vunpack.c.h.b16 %v8545
        %v9640 = vunpack.c.l.b16 %v8546
        %v9641 = vunpack.c.h.b16 %v8546
        %v9642 = vunpack.c.l.b16 %v8547
        %v9643 = vunpack.c.h.b16 %v8547
        %v9644 = vunpack.c.l.b16 %v8548
        %v9645 = vunpack.c.h.b16 %v8548
        %v9646 = vunpack.c.l.b16 %v8549
        %v9647 = vunpack.c.h.b16 %v8549
        %v9648 = vunpack.c.l.b16 %v8550
        %v9649 = vunpack.c.h.b16 %v8550
        %v9650 = vunpack.c.l.b16 %v8551
        %v9651 = vunpack.c.h.b16 %v8551
        %v9652 = vunpack.c.l.b16 %v8552
        %v9653 = vunpack.c.h.b16 %v8552
        %v9654 = vunpack.c.l.b16 %v8553
        %v9655 = vunpack.c.h.b16 %v8553
        %v9656 = vunpack.c.l.b16 %v8554
        %v9657 = vunpack.c.h.b16 %v8554
        %v9658 = vunpack.c.l.b16 %v8555
        %v9659 = vunpack.c.h.b16 %v8555
        %v9660 = vunpack.c.l.b16 %v8556
        %v9661 = vunpack.c.h.b16 %v8556
        %v9662 = vunpack.c.l.b16 %v8557
        %v9663 = vunpack.c.h.b16 %v8557
        %v9664 = vunpack.c.l.b16 %v8558
        %v9665 = vunpack.c.h.b16 %v8558
        %v9666 = vunpack.c.l.b16 %v8559
        %v9667 = vunpack.c.h.b16 %v8559
        %v9668 = vunpack.c.l.b16 %v8560
        %v9669 = vunpack.c.h.b16 %v8560
        %v9670 = vunpack.c.l.b16 %v8561
        %v9671 = vunpack.c.h.b16 %v8561
        %v9672 = vunpack.c.l.b16 %v8562
        %v9673 = vunpack.c.h.b16 %v8562
        %v9674 = vunpack.c.l.b16 %v8563
        %v9675 = vunpack.c.h.b16 %v8563
        %v9676 = vunpack.c.l.b16 %v8564
        %v9677 = vunpack.c.h.b16 %v8564
        %v9678 = vunpack.c.l.b16 %v8565
        %v9679 = vunpack.c.h.b16 %v8565
        %v9680 = vunpack.c.l.b16 %v8566
        %v9681 = vunpack.c.h.b16 %v8566
        %v9682 = vunpack.c.l.b16 %v8567
        %v9683 = vunpack.c.h.b16 %v8567
        %v9684 = vunpack.c.l.b16 %v8568
        %v9685 = vunpack.c.h.b16 %v8568
        %v9686 = vunpack.c.l.b16 %v8569
        %v9687 = vunpack.c.h.b16 %v8569
        %v9688 = vunpack.c.l.b16 %v8570
        %v9689 = vunpack.c.h.b16 %v8570
        %v9690 = vunpack.c.l.b16 %v8571
        %v9691 = vunpack.c.h.b16 %v8571
        %v9692 = vunpack.c.l.b16 %v8572
        %v9693 = vunpack.c.h.b16 %v8572
        %v9694 = vunpack.c.l.b16 %v8573
        %v9695 = vunpack.c.h.b16 %v8573
        %v9696 = vunpack.c.l.b16 %v8574
        %v9697 = vunpack.c.h.b16 %v8574
        %v9698 = vunpack.c.l.b16 %v8575
        %v9699 = vunpack.c.h.b16 %v8575
        %v9700 = vunpack.c.l.b16 %v8576
        %v9701 = vunpack.c.h.b16 %v8576
        %v9702 = vunpack.c.l.b16 %v8577
        %v9703 = vunpack.c.h.b16 %v8577
        %v9704 = vunpack.c.l.b16 %v8578
        %v9705 = vunpack.c.h.b16 %v8578
        %v9706 = vunpack.c.l.b16 %v8579
        %v9707 = vunpack.c.h.b16 %v8579
        %v9708 = vunpack.c.l.b16 %v8580
        %v9709 = vunpack.c.h.b16 %v8580
        %v9710 = vunpack.c.l.b16 %v8581
        %v9711 = vunpack.c.h.b16 %v8581
        %v9712 = vunpack.c.l.b16 %v8582
        %v9713 = vunpack.c.h.b16 %v8582
        %v9714 = vunpack.c.l.b16 %v8583
        %v9715 = vunpack.c.h.b16 %v8583
        %v9716 = vunpack.c.l.b16 %v8584
        %v9717 = vunpack.c.h.b16 %v8584
        %v9718 = vunpack.c.l.b16 %v8585
        %v9719 = vunpack.c.h.b16 %v8585
        %v9720 = vunpack.c.l.b16 %v8586
        %v9721 = vunpack.c.h.b16 %v8586
        %v9722 = vunpack.c.l.b16 %v8587
        %v9723 = vunpack.c.h.b16 %v8587
        %v9724 = vunpack.c.l.b16 %v8588
        %v9725 = vunpack.c.h.b16 %v8588
        %v9726 = vunpack.c.l.b16 %v8589
        %v9727 = vunpack.c.h.b16 %v8589
        %v9728 = vunpack.c.l.b16 %v8590
        %v9729 = vunpack.c.h.b16 %v8590
        %v9730 = vunpack.c.l.b16 %v8591
        %v9731 = vunpack.c.h.b16 %v8591
        %v9732 = vunpack.c.l.b16 %v8592
        %v9733 = vunpack.c.h.b16 %v8592
        %v9734 = vunpack.c.l.b16 %v8593
        %v9735 = vunpack.c.h.b16 %v8593
        %v9736 = vunpack.c.l.b16 %v8594
        %v9737 = vunpack.c.h.b16 %v8594
        %v9738 = vunpack.c.l.b16 %v8595
        %v9739 = vunpack.c.h.b16 %v8595
        %v9740 = vunpack.c.l.b16 %v8596
        %v9741 = vunpack.c.h.b16 %v8596
        %v9742 = vunpack.c.l.b16 %v8597
        %v9743 = vunpack.c.h.b16 %v8597
        %v9744 = vunpack.c.l.b16 %v8598
        %v9745 = vunpack.c.h.b16 %v8598
        %v9746 = vunpack.c.l.b16 %v8599
        %v9747 = vunpack.c.h.b16 %v8599
        %v9748 = vunpack.c.l.b16 %v8600
        %v9749 = vunpack.c.h.b16 %v8600
        %v9750 = vunpack.c.l.b16 %v8601
        %v9751 = vunpack.c.h.b16 %v8601
        %v9752 = vunpack.c.l.b16 %v8602
        %v9753 = vunpack.c.h.b16 %v8602
        %v9754 = vunpack.c.l.b16 %v8603
        %v9755 = vunpack.c.h.b16 %v8603
        %v9756 = vunpack.c.l.b16 %v8604
        %v9757 = vunpack.c.h.b16 %v8604
        %v9758 = vunpack.c.l.b16 %v8605
        %v9759 = vunpack.c.h.b16 %v8605
        %v9760 = vunpack.c.l.b16 %v8606
        %v9761 = vunpack.c.h.b16 %v8606
        %v9762 = vunpack.c.l.b16 %v8607
        %v9763 = vunpack.c.h.b16 %v8607
        %v9764 = vunpack.c.l.b16 %v8608
        %v9765 = vunpack.c.h.b16 %v8608
        %v9766 = vunpack.c.l.b16 %v8609
        %v9767 = vunpack.c.h.b16 %v8609
        %v9768 = vunpack.c.l.b16 %v8610
        %v9769 = vunpack.c.h.b16 %v8610
        %v9770 = vunpack.c.l.b16 %v8611
        %v9771 = vunpack.c.h.b16 %v8611
        %v9772 = vunpack.c.l.b16 %v8612
        %v9773 = vunpack.c.h.b16 %v8612
        %v9774 = vunpack.c.l.b16 %v8613
        %v9775 = vunpack.c.h.b16 %v8613
        %v9776 = vunpack.c.l.b16 %v8614
        %v9777 = vunpack.c.h.b16 %v8614
        %v9778 = vunpack.c.l.b16 %v8615
        %v9779 = vunpack.c.h.b16 %v8615
        %v9780 = vunpack.c.l.b16 %v8616
        %v9781 = vunpack.c.h.b16 %v8616
        %v9782 = vunpack.c.l.b16 %v8617
        %v9783 = vunpack.c.h.b16 %v8617
        %v9784 = vunpack.c.l.b16 %v8618
        %v9785 = vunpack.c.h.b16 %v8618
        %v9786 = vunpack.c.l.b16 %v8619
        %v9787 = vunpack.c.h.b16 %v8619
        %v9788 = vunpack.c.l.b16 %v8620
        %v9789 = vunpack.c.h.b16 %v8620
        %v9790 = vunpack.c.l.b16 %v8621
        %v9791 = vunpack.c.h.b16 %v8621
        %v9792 = vunpack.c.l.b16 %v8622
        %v9793 = vunpack.c.h.b16 %v8622
        %v9794 = vunpack.c.l.b16 %v8623
        %v9795 = vunpack.c.h.b16 %v8623
        %v9796 = vunpack.c.l.b16 %v8624
        %v9797 = vunpack.c.h.b16 %v8624
        %v9798 = vunpack.c.l.b16 %v8625
        %v9799 = vunpack.c.h.b16 %v8625
        %v9800 = vunpack.c.l.b16 %v8626
        %v9801 = vunpack.c.h.b16 %v8626
        %v9802 = vunpack.c.l.b16 %v8627
        %v9803 = vunpack.c.h.b16 %v8627
        %v9804 = vunpack.c.l.b16 %v8628
        %v9805 = vunpack.c.h.b16 %v8628
        %v9806 = vunpack.c.l.b16 %v8629
        %v9807 = vunpack.c.h.b16 %v8629
        %v9808 = vunpack.c.l.b16 %v8630
        %v9809 = vunpack.c.h.b16 %v8630
        %v9810 = vunpack.c.l.b16 %v8631
        %v9811 = vunpack.c.h.b16 %v8631
        %v9812 = vunpack.c.l.b16 %v8632
        %v9813 = vunpack.c.h.b16 %v8632
        %v9814 = vunpack.c.l.b16 %v8633
        %v9815 = vunpack.c.h.b16 %v8633
        %v9816 = vunpack.c.l.b16 %v8634
        %v9817 = vunpack.c.h.b16 %v8634
        %v9818 = vunpack.c.l.b16 %v8635
        %v9819 = vunpack.c.h.b16 %v8635
        %v9820 = vunpack.c.l.b16 %v8636
        %v9821 = vunpack.c.h.b16 %v8636
        %v9822 = vunpack.c.l.b16 %v8637
        %v9823 = vunpack.c.h.b16 %v8637
        %v9824 = vunpack.c.l.b16 %v8638
        %v9825 = vunpack.c.h.b16 %v8638
        %v9826 = vunpack.c.l.b16 %v8639
        %v9827 = vunpack.c.h.b16 %v8639
        %v9828 = vunpack.c.l.b16 %v8640
        %v9829 = vunpack.c.h.b16 %v8640
        %v9830 = vunpack.c.l.b16 %v8641
        %v9831 = vunpack.c.h.b16 %v8641
        %v9832 = vunpack.c.l.b16 %v8642
        %v9833 = vunpack.c.h.b16 %v8642
        %v9834 = vunpack.c.l.b16 %v8643
        %v9835 = vunpack.c.h.b16 %v8643
        %v9836 = vunpack.c.l.b16 %v8644
        %v9837 = vunpack.c.h.b16 %v8644
        %v9838 = vunpack.c.l.b16 %v8645
        %v9839 = vunpack.c.h.b16 %v8645
        %v9840 = vunpack.c.l.b16 %v8646
        %v9841 = vunpack.c.h.b16 %v8646
        %v9842 = vunpack.c.l.b16 %v8647
        %v9843 = vunpack.c.h.b16 %v8647
        %v9844 = vunpack.c.l.b16 %v8648
        %v9845 = vunpack.c.h.b16 %v8648
        %v9846 = vunpack.c.l.b16 %v8649
        %v9847 = vunpack.c.h.b16 %v8649
        %v9848 = vunpack.c.l.b16 %v8650
        %v9849 = vunpack.c.h.b16 %v8650
        %v9850 = vunpack.c.l.b16 %v8651
        %v9851 = vunpack.c.h.b16 %v8651
        %v9852 = vunpack.c.l.b16 %v8652
        %v9853 = vunpack.c.h.b16 %v8652
        %v9854 = vunpack.c.l.b16 %v8653
        %v9855 = vunpack.c.h.b16 %v8653
        %v9856 = vunpack.c.l.b16 %v8654
        %v9857 = vunpack.c.h.b16 %v8654
        %v9858 = vunpack.c.l.b16 %v8655
        %v9859 = vunpack.c.h.b16 %v8655
        %v9860 = vunpack.c.l.b16 %v8656
        %v9861 = vunpack.c.h.b16 %v8656
        %v9862 = vunpack.c.l.b16 %v8657
        %v9863 = vunpack.c.h.b16 %v8657
        %v9864 = vunpack.c.l.b16 %v8658
        %v9865 = vunpack.c.h.b16 %v8658
        %v9866 = vunpack.c.l.b16 %v8659
        %v9867 = vunpack.c.h.b16 %v8659
        %v9868 = vunpack.c.l.b16 %v8660
        %v9869 = vunpack.c.h.b16 %v8660
        %v9870 = vunpack.c.l.b16 %v8661
        %v9871 = vunpack.c.h.b16 %v8661
        %v9872 = vunpack.c.l.b16 %v8662
        %v9873 = vunpack.c.h.b16 %v8662
        %v9874 = vunpack.c.l.b16 %v8663
        %v9875 = vunpack.c.h.b16 %v8663
        %v9876 = vunpack.c.l.b16 %v8664
        %v9877 = vunpack.c.h.b16 %v8664
        %v9878 = vunpack.c.l.b16 %v8665
        %v9879 = vunpack.c.h.b16 %v8665
        %v9880 = vunpack.c.l.b16 %v8666
        %v9881 = vunpack.c.h.b16 %v8666
        %v9882 = vunpack.c.l.b16 %v8667
        %v9883 = vunpack.c.h.b16 %v8667
        %v9884 = vunpack.c.l.b16 %v8668
        %v9885 = vunpack.c.h.b16 %v8668
        %v9886 = vunpack.c.l.b16 %v8669
        %v9887 = vunpack.c.h.b16 %v8669
        %v9888 = vunpack.c.l.b16 %v8670
        %v9889 = vunpack.c.h.b16 %v8670
        %v9890 = vunpack.c.l.b16 %v8671
        %v9891 = vunpack.c.h.b16 %v8671
        %v9892 = vunpack.c.l.b16 %v8672
        %v9893 = vunpack.c.h.b16 %v8672
        %v9894 = vunpack.c.l.b16 %v8673
        %v9895 = vunpack.c.h.b16 %v8673
        %v9896 = vunpack.c.l.b16 %v8674
        %v9897 = vunpack.c.h.b16 %v8674
        %v9898 = vunpack.c.l.b16 %v8675
        %v9899 = vunpack.c.h.b16 %v8675
        %v9900 = vunpack.c.l.b16 %v8676
        %v9901 = vunpack.c.h.b16 %v8676
        %v9902 = vunpack.c.l.b16 %v8677
        %v9903 = vunpack.c.h.b16 %v8677
        %v9904 = vunpack.c.l.b16 %v8678
        %v9905 = vunpack.c.h.b16 %v8678
        %v9906 = vunpack.c.l.b16 %v8679
        %v9907 = vunpack.c.h.b16 %v8679
        %v9908 = vunpack.c.l.b16 %v8680
        %v9909 = vunpack.c.h.b16 %v8680
        %v9910 = vunpack.c.l.b16 %v8681
        %v9911 = vunpack.c.h.b16 %v8681
        %v9912 = vunpack.c.l.b16 %v8682
        %v9913 = vunpack.c.h.b16 %v8682
        %v9914 = vunpack.c.l.b16 %v8683
        %v9915 = vunpack.c.h.b16 %v8683
        %v9916 = vunpack.c.l.b16 %v8684
        %v9917 = vunpack.c.h.b16 %v8684
        %v9918 = vunpack.c.l.b16 %v8685
        %v9919 = vunpack.c.h.b16 %v8685
        %v9920 = vunpack.c.l.b16 %v8686
        %v9921 = vunpack.c.h.b16 %v8686
        %v9922 = vunpack.c.l.b16 %v8687
        %v9923 = vunpack.c.h.b16 %v8687
        %v9924 = vunpack.c.l.b16 %v8688
        %v9925 = vunpack.c.h.b16 %v8688
        %v9926 = vunpack.c.l.b16 %v8689
        %v9927 = vunpack.c.h.b16 %v8689
        %v9928 = vunpack.c.l.b16 %v8690
        %v9929 = vunpack.c.h.b16 %v8690
        %v9930 = vunpack.c.l.b16 %v8691
        %v9931 = vunpack.c.h.b16 %v8691
        %v9932 = vunpack.c.l.b16 %v8692
        %v9933 = vunpack.c.h.b16 %v8692
        %v9934 = vunpack.c.l.b16 %v8693
        %v9935 = vunpack.c.h.b16 %v8693
        %v9936 = vunpack.c.l.b16 %v8694
        %v9937 = vunpack.c.h.b16 %v8694
        %v9938 = vunpack.c.l.b16 %v8695
        %v9939 = vunpack.c.h.b16 %v8695
        %v9940 = vunpack.c.l.b16 %v8696
        %v9941 = vunpack.c.h.b16 %v8696
        %v9942 = vunpack.c.l.b16 %v8697
        %v9943 = vunpack.c.h.b16 %v8697
        %v9944 = vunpack.c.l.b16 %v8698
        %v9945 = vunpack.c.h.b16 %v8698
        %v9946 = vunpack.c.l.b16 %v8699
        %v9947 = vunpack.c.h.b16 %v8699
        %v9948 = vunpack.c.l.b16 %v8700
        %v9949 = vunpack.c.h.b16 %v8700
        %v9950 = vunpack.c.l.b16 %v8701
        %v9951 = vunpack.c.h.b16 %v8701
        %v9952 = vunpack.c.l.b16 %v8702
        %v9953 = vunpack.c.h.b16 %v8702
        %v9954 = vunpack.c.l.b16 %v8703
        %v9955 = vunpack.c.h.b16 %v8703
        %v9956 = vunpack.c.l.b16 %v8704
        %v9957 = vunpack.c.h.b16 %v8704
        %v9958 = vunpack.c.l.b16 %v8705
        %v9959 = vunpack.c.h.b16 %v8705
        %v9960 = vunpack.c.l.b16 %v8706
        %v9961 = vunpack.c.h.b16 %v8706
        %v9962 = vunpack.c.l.b16 %v8707
        %v9963 = vunpack.c.h.b16 %v8707
        %v9964 = vunpack.c.l.b16 %v8708
        %v9965 = vunpack.c.h.b16 %v8708
        %v9966 = vunpack.c.l.b16 %v8709
        %v9967 = vunpack.c.h.b16 %v8709
        %v9968 = vunpack.c.l.b16 %v8710
        %v9969 = vunpack.c.h.b16 %v8710
        %v9970 = vunpack.c.l.b16 %v8711
        %v9971 = vunpack.c.h.b16 %v8711
        %v9972 = vunpack.c.l.b16 %v8712
        %v9973 = vunpack.c.h.b16 %v8712
        %v9974 = vunpack.c.l.b16 %v8713
        %v9975 = vunpack.c.h.b16 %v8713
        %v9976 = vunpack.c.l.b16 %v8714
        %v9977 = vunpack.c.h.b16 %v8714
        %v9978 = vunpack.c.l.b16 %v8715
        %v9979 = vunpack.c.h.b16 %v8715
        %v9980 = vunpack.c.l.b16 %v8716
        %v9981 = vunpack.c.h.b16 %v8716
        %v9982 = vunpack.c.l.b16 %v8717
        %v9983 = vunpack.c.h.b16 %v8717
        %v9984 = vunpack.c.l.b16 %v8718
        %v9985 = vunpack.c.h.b16 %v8718
        %v9986 = vunpack.c.l.b16 %v8719
        %v9987 = vunpack.c.h.b16 %v8719
        %v9988 = vunpack.c.l.b16 %v8720
        %v9989 = vunpack.c.h.b16 %v8720
        %v9990 = vunpack.c.l.b16 %v8721
        %v9991 = vunpack.c.h.b16 %v8721
        %v9992 = vunpack.c.l.b16 %v8722
        %v9993 = vunpack.c.h.b16 %v8722
        %v9994 = vunpack.c.l.b16 %v8723
        %v9995 = vunpack.c.h.b16 %v8723
        %v9996 = vunpack.c.l.b16 %v8724
        %v9997 = vunpack.c.h.b16 %v8724
        %v9998 = vunpack.c.l.b16 %v8725
        %v9999 = vunpack.c.h.b16 %v8725
        %v10000 = vunpack.c.l.b16 %v8726
        %v10001 = vunpack.c.h.b16 %v8726
        %v10002 = vunpack.c.l.b16 %v8727
        %v10003 = vunpack.c.h.b16 %v8727
        %v10004 = vunpack.c.l.b16 %v8728
        %v10005 = vunpack.c.h.b16 %v8728
        %v10006 = vunpack.c.l.b16 %v8729
        %v10007 = vunpack.c.h.b16 %v8729
        %v10008 = vunpack.c.l.b16 %v8730
        %v10009 = vunpack.c.h.b16 %v8730
        %v10010 = vunpack.c.l.b16 %v8731
        %v10011 = vunpack.c.h.b16 %v8731
        %v10012 = vunpack.c.l.b16 %v8732
        %v10013 = vunpack.c.h.b16 %v8732
        %v10014 = vunpack.c.l.b16 %v8733
        %v10015 = vunpack.c.h.b16 %v8733
        %v10016 = vunpack.c.l.b16 %v8734
        %v10017 = vunpack.c.h.b16 %v8734
        %v10018 = vunpack.c.l.b16 %v8735
        %v10019 = vunpack.c.h.b16 %v8735
        %v10020 = vunpack.c.l.b16 %v8736
        %v10021 = vunpack.c.h.b16 %v8736
        %v10022 = vunpack.c.l.b16 %v8737
        %v10023 = vunpack.c.h.b16 %v8737
        %v10024 = vunpack.c.l.b16 %v8738
        %v10025 = vunpack.c.h.b16 %v8738
        %v10026 = vunpack.c.l.b16 %v8739
        %v10027 = vunpack.c.h.b16 %v8739
        %v10028 = vunpack.c.l.b16 %v8740
        %v10029 = vunpack.c.h.b16 %v8740
        %v10030 = vunpack.c.l.b16 %v8741
        %v10031 = vunpack.c.h.b16 %v8741
        %v10032 = vunpack.c.l.b16 %v8742
        %v10033 = vunpack.c.h.b16 %v8742
        %v10034 = vunpack.c.l.b16 %v8743
        %v10035 = vunpack.c.h.b16 %v8743
        %v10036 = vunpack.c.l.b16 %v8744
        %v10037 = vunpack.c.h.b16 %v8744
        %v10038 = vunpack.c.l.b16 %v8745
        %v10039 = vunpack.c.h.b16 %v8745
        %v10040 = vunpack.c.l.b16 %v8746
        %v10041 = vunpack.c.h.b16 %v8746
        %v10042 = vunpack.c.l.b16 %v8747
        %v10043 = vunpack.c.h.b16 %v8747
        %v10044 = vunpack.c.l.b16 %v8748
        %v10045 = vunpack.c.h.b16 %v8748
        %v10046 = vunpack.c.l.b16 %v8749
        %v10047 = vunpack.c.h.b16 %v8749
        %v10048 = vunpack.c.l.b16 %v8750
        %v10049 = vunpack.c.h.b16 %v8750
        %v10050 = vunpack.c.l.b16 %v8751
        %v10051 = vunpack.c.h.b16 %v8751
        %v10052 = vunpack.c.l.b16 %v8752
        %v10053 = vunpack.c.h.b16 %v8752
        %v10054 = vunpack.c.l.b16 %v8753
        %v10055 = vunpack.c.h.b16 %v8753
        %v10056 = vunpack.c.l.b16 %v8754
        %v10057 = vunpack.c.h.b16 %v8754
        %v10058 = vunpack.c.l.b16 %v8755
        %v10059 = vunpack.c.h.b16 %v8755
        %v10060 = vunpack.c.l.b16 %v8756
        %v10061 = vunpack.c.h.b16 %v8756
        %v10062 = vunpack.c.l.b16 %v8757
        %v10063 = vunpack.c.h.b16 %v8757
        %v10064 = vunpack.c.l.b16 %v8758
        %v10065 = vunpack.c.h.b16 %v8758
        %v10066 = vunpack.c.l.b16 %v8759
        %v10067 = vunpack.c.h.b16 %v8759
        %v10068 = vunpack.c.l.b16 %v8760
        %v10069 = vunpack.c.h.b16 %v8760
        %v10070 = vunpack.c.l.b16 %v8761
        %v10071 = vunpack.c.h.b16 %v8761
        %v10072 = vunpack.c.l.b16 %v8762
        %v10073 = vunpack.c.h.b16 %v8762
        %v10074 = vunpack.c.l.b16 %v8763
        %v10075 = vunpack.c.h.b16 %v8763
        %v10076 = vunpack.c.l.b16 %v8764
        %v10077 = vunpack.c.h.b16 %v8764
        %v10078 = vunpack.c.l.b16 %v8765
        %v10079 = vunpack.c.h.b16 %v8765
        %v10080 = vunpack.c.l.b16 %v8766
        %v10081 = vunpack.c.h.b16 %v8766
        %v10082 = vunpack.c.l.b16 %v8767
        %v10083 = vunpack.c.h.b16 %v8767
        %v10084 = vunpack.c.l.b16 %v8768
        %v10085 = vunpack.c.h.b16 %v8768
        %v10086 = vunpack.c.l.b16 %v8769
        %v10087 = vunpack.c.h.b16 %v8769
        %v10088 = vunpack.c.l.b16 %v8770
        %v10089 = vunpack.c.h.b16 %v8770
        %v10090 = vunpack.c.l.b16 %v8771
        %v10091 = vunpack.c.h.b16 %v8771
        %v10092 = vunpack.c.l.b16 %v8772
        %v10093 = vunpack.c.h.b16 %v8772
        %v10094 = vunpack.c.l.b16 %v8773
        %v10095 = vunpack.c.h.b16 %v8773
        %v10096 = vunpack.c.l.b16 %v8774
        %v10097 = vunpack.c.h.b16 %v8774
        %v10098 = vunpack.c.l.b16 %v8775
        %v10099 = vunpack.c.h.b16 %v8775
        %v10100 = vunpack.c.l.b16 %v8776
        %v10101 = vunpack.c.h.b16 %v8776
        %v10102 = vunpack.c.l.b16 %v8777
        %v10103 = vunpack.c.h.b16 %v8777
        %v10104 = vunpack.c.l.b16 %v8778
        %v10105 = vunpack.c.h.b16 %v8778
        %v10106 = vunpack.c.l.b16 %v8779
        %v10107 = vunpack.c.h.b16 %v8779
        %v10108 = vunpack.c.l.b16 %v8780
        %v10109 = vunpack.c.h.b16 %v8780
        %v10110 = vunpack.c.l.b16 %v8781
        %v10111 = vunpack.c.h.b16 %v8781
        %v10112 = vunpack.c.l.b16 %v8782
        %v10113 = vunpack.c.h.b16 %v8782
        %v10114 = vunpack.c.l.b16 %v8783
        %v10115 = vunpack.c.h.b16 %v8783
        %v10116 = vunpack.c.l.b16 %v8784
        %v10117 = vunpack.c.h.b16 %v8784
        %v10118 = vunpack.c.l.b16 %v8785
        %v10119 = vunpack.c.h.b16 %v8785
        %v10120 = vunpack.c.l.b16 %v8786
        %v10121 = vunpack.c.h.b16 %v8786
        %v10122 = vunpack.c.l.b16 %v8787
        %v10123 = vunpack.c.h.b16 %v8787
        %v10124 = vunpack.c.l.b16 %v8788
        %v10125 = vunpack.c.h.b16 %v8788
        %v10126 = vunpack.c.l.b16 %v8789
        %v10127 = vunpack.c.h.b16 %v8789
        %v10128 = vunpack.c.l.b16 %v8790
        %v10129 = vunpack.c.h.b16 %v8790
        %v10130 = vunpack.c.l.b16 %v8791
        %v10131 = vunpack.c.h.b16 %v8791
        %v10132 = vunpack.c.l.b16 %v8792
        %v10133 = vunpack.c.h.b16 %v8792
        %v10134 = vunpack.c.l.b16 %v8793
        %v10135 = vunpack.c.h.b16 %v8793
        %v10136 = vunpack.c.l.b16 %v8794
        %v10137 = vunpack.c.h.b16 %v8794
        %v10138 = vunpack.c.l.b16 %v8795
        %v10139 = vunpack.c.h.b16 %v8795
        %v10140 = vunpack.c.l.b16 %v8796
        %v10141 = vunpack.c.h.b16 %v8796
        %v10142 = vunpack.c.l.b16 %v8797
        %v10143 = vunpack.c.h.b16 %v8797
        %v10144 = vunpack.c.l.b16 %v8798
        %v10145 = vunpack.c.h.b16 %v8798
        %v10146 = vunpack.c.l.b16 %v8799
        %v10147 = vunpack.c.h.b16 %v8799
        %v10148 = vunpack.c.l.b16 %v8800
        %v10149 = vunpack.c.h.b16 %v8800
        %v10150 = vunpack.c.l.b16 %v8801
        %v10151 = vunpack.c.h.b16 %v8801
        %v10152 = vunpack.c.l.b16 %v8802
        %v10153 = vunpack.c.h.b16 %v8802
        %v10154 = vunpack.c.l.b16 %v8803
        %v10155 = vunpack.c.h.b16 %v8803
        %v10156 = vunpack.c.l.b16 %v8804
        %v10157 = vunpack.c.h.b16 %v8804
        %v10158 = vunpack.c.l.b16 %v8805
        %v10159 = vunpack.c.h.b16 %v8805
        %v10160 = vunpack.c.l.b16 %v8806
        %v10161 = vunpack.c.h.b16 %v8806
        %v10162 = vunpack.c.l.b16 %v8807
        %v10163 = vunpack.c.h.b16 %v8807
        %v10164 = vunpack.c.l.b16 %v8808
        %v10165 = vunpack.c.h.b16 %v8808
        %v10166 = vunpack.c.l.b16 %v8809
        %v10167 = vunpack.c.h.b16 %v8809
        %v10168 = vunpack.c.l.b16 %v8810
        %v10169 = vunpack.c.h.b16 %v8810
        %v10170 = vunpack.c.l.b16 %v8811
        %v10171 = vunpack.c.h.b16 %v8811
        %v10172 = vunpack.c.l.b16 %v8812
        %v10173 = vunpack.c.h.b16 %v8812
        %v10174 = vunpack.c.l.b16 %v8813
        %v10175 = vunpack.c.h.b16 %v8813
        %v10176 = vunpack.c.l.b16 %v8814
        %v10177 = vunpack.c.h.b16 %v8814
        %v10178 = vunpack.c.l.b16 %v8815
        %v10179 = vunpack.c.h.b16 %v8815
        %v10180 = vunpack.c.l.b16 %v8816
        %v10181 = vunpack.c.h.b16 %v8816
        %v10182 = vunpack.c.l.b16 %v8817
        %v10183 = vunpack.c.h.b16 %v8817
        %v10184 = vunpack.c.l.b16 %v8818
        %v10185 = vunpack.c.h.b16 %v8818
        %v10186 = vunpack.c.l.b16 %v8819
        %v10187 = vunpack.c.h.b16 %v8819
        %v10188 = vunpack.c.l.b16 %v8820
        %v10189 = vunpack.c.h.b16 %v8820
        %v10190 = vunpack.c.l.b16 %v8821
        %v10191 = vunpack.c.h.b16 %v8821
        %v10192 = vunpack.c.l.b16 %v8822
        %v10193 = vunpack.c.h.b16 %v8822
        %v10194 = vunpack.c.l.b16 %v8823
        %v10195 = vunpack.c.h.b16 %v8823
        %v10196 = vunpack.c.l.b16 %v8824
        %v10197 = vunpack.c.h.b16 %v8824
        %v10198 = vunpack.c.l.b16 %v8825
        %v10199 = vunpack.c.h.b16 %v8825
        %v10200 = vunpack.c.l.b16 %v8826
        %v10201 = vunpack.c.h.b16 %v8826
        %v10202 = vunpack.c.l.b16 %v8827
        %v10203 = vunpack.c.h.b16 %v8827
        %v10204 = vunpack.c.l.b16 %v8828
        %v10205 = vunpack.c.h.b16 %v8828
        %v10206 = vunpack.c.l.b16 %v8829
        %v10207 = vunpack.c.h.b16 %v8829
        %v10208 = vunpack.c.l.b16 %v8830
        %v10209 = vunpack.c.h.b16 %v8830
        %v10210 = vunpack.c.l.b16 %v8831
        %v10211 = vunpack.c.h.b16 %v8831
        %v10212 = vunpack.c.l.b16 %v8832
        %v10213 = vunpack.c.h.b16 %v8832
        %v10214 = vunpack.c.l.b16 %v8833
        %v10215 = vunpack.c.h.b16 %v8833
        %v10216 = vunpack.c.l.b16 %v8834
        %v10217 = vunpack.c.h.b16 %v8834
        %v10218 = vunpack.c.l.b16 %v8835
        %v10219 = vunpack.c.h.b16 %v8835
        %v10220 = vunpack.c.l.b16 %v8836
        %v10221 = vunpack.c.h.b16 %v8836
        %v10222 = vunpack.c.l.b16 %v8837
        %v10223 = vunpack.c.h.b16 %v8837
        %v10224 = vunpack.c.l.b16 %v8838
        %v10225 = vunpack.c.h.b16 %v8838
        %v10226 = vunpack.c.l.b16 %v8839
        %v10227 = vunpack.c.h.b16 %v8839
        %v10228 = vunpack.c.l.b16 %v8840
        %v10229 = vunpack.c.h.b16 %v8840
        %v10230 = vunpack.c.l.b16 %v8841
        %v10231 = vunpack.c.h.b16 %v8841
        %v10232 = vunpack.c.l.b16 %v8842
        %v10233 = vunpack.c.h.b16 %v8842
        %v10234 = vunpack.c.l.b16 %v8843
        %v10235 = vunpack.c.h.b16 %v8843
        %v10236 = vunpack.c.l.b16 %v8844
        %v10237 = vunpack.c.h.b16 %v8844
        %v10238 = vunpack.c.l.b16 %v8845
        %v10239 = vunpack.c.h.b16 %v8845
        %v10240 = vunpack.c.l.b16 %v8846
        %v10241 = vunpack.c.h.b16 %v8846
        %v10242 = vunpack.c.l.b16 %v8847
        %v10243 = vunpack.c.h.b16 %v8847
        %v10244 = vunpack.c.l.b16 %v8848
        %v10245 = vunpack.c.h.b16 %v8848
        %v10246 = vunpack.c.l.b16 %v8849
        %v10247 = vunpack.c.h.b16 %v8849
        %v10248 = vunpack.c.l.b16 %v8850
        %v10249 = vunpack.c.h.b16 %v8850
        %v10250 = vunpack.c.l.b16 %v8851
        %v10251 = vunpack.c.h.b16 %v8851
        %v10252 = vunpack.c.l.b16 %v8852
        %v10253 = vunpack.c.h.b16 %v8852
        %v10254 = vunpack.c.l.b16 %v8853
        %v10255 = vunpack.c.h.b16 %v8853
        %v10256 = vunpack.c.l.b16 %v8854
        %v10257 = vunpack.c.h.b16 %v8854
        %v10258 = vunpack.c.l.b16 %v8855
        %v10259 = vunpack.c.h.b16 %v8855
        %v10260 = vunpack.c.l.b16 %v8856
        %v10261 = vunpack.c.h.b16 %v8856
        %v10262 = vunpack.c.l.b16 %v8857
        %v10263 = vunpack.c.h.b16 %v8857
        %v10264 = vunpack.c.l.b16 %v8858
        %v10265 = vunpack.c.h.b16 %v8858
        %v10266 = vunpack.c.l.b16 %v8859
        %v10267 = vunpack.c.h.b16 %v8859
        %v10268 = vunpack.c.l.b16 %v8860
        %v10269 = vunpack.c.h.b16 %v8860
        %v10270 = vunpack.c.l.b16 %v8861
        %v10271 = vunpack.c.h.b16 %v8861
        %v10272 = vunpack.c.l.b16 %v8862
        %v10273 = vunpack.c.h.b16 %v8862
        %v10274 = vunpack.c.l.b16 %v8863
        %v10275 = vunpack.c.h.b16 %v8863
        %v10276 = vunpack.c.l.b16 %v8864
        %v10277 = vunpack.c.h.b16 %v8864
        %v10278 = vunpack.c.l.b16 %v8865
        %v10279 = vunpack.c.h.b16 %v8865
        %v10280 = vunpack.c.l.b16 %v8866
        %v10281 = vunpack.c.h.b16 %v8866
        %v10282 = vunpack.c.l.b16 %v8867
        %v10283 = vunpack.c.h.b16 %v8867
        %v10284 = vunpack.c.l.b16 %v8868
        %v10285 = vunpack.c.h.b16 %v8868
        %v10286 = vunpack.c.l.b16 %v8869
        %v10287 = vunpack.c.h.b16 %v8869
        %v10288 = vunpack.c.l.b16 %v8870
        %v10289 = vunpack.c.h.b16 %v8870
        %v10290 = vunpack.c.l.b16 %v8871
        %v10291 = vunpack.c.h.b16 %v8871
        %v10292 = vunpack.c.l.b16 %v8872
        %v10293 = vunpack.c.h.b16 %v8872
        %v10294 = vunpack.c.l.b16 %v8873
        %v10295 = vunpack.c.h.b16 %v8873
        %v10296 = vunpack.c.l.b16 %v8874
        %v10297 = vunpack.c.h.b16 %v8874
        %v10298 = vunpack.c.l.b16 %v8875
        %v10299 = vunpack.c.h.b16 %v8875
        %v10300 = vunpack.c.l.b16 %v8876
        %v10301 = vunpack.c.h.b16 %v8876
        %v10302 = vunpack.c.l.b16 %v8877
        %v10303 = vunpack.c.h.b16 %v8877
        %v10304 = vunpack.c.l.b16 %v8878
        %v10305 = vunpack.c.h.b16 %v8878
        %v10306 = vunpack.c.l.b16 %v8879
        %v10307 = vunpack.c.h.b16 %v8879
        %v10308 = vunpack.c.l.b16 %v8880
        %v10309 = vunpack.c.h.b16 %v8880
        %v10310 = vunpack.c.l.b16 %v8881
        %v10311 = vunpack.c.h.b16 %v8881
        %v10312 = vunpack.c.l.b16 %v8882
        %v10313 = vunpack.c.h.b16 %v8882
        %v10314 = vunpack.c.l.b16 %v8883
        %v10315 = vunpack.c.h.b16 %v8883
        %v10316 = vunpack.c.l.b16 %v8884
        %v10317 = vunpack.c.h.b16 %v8884
        %v10318 = vunpack.c.l.b16 %v8885
        %v10319 = vunpack.c.h.b16 %v8885
        %v10320 = vunpack.c.l.b16 %v8886
        %v10321 = vunpack.c.h.b16 %v8886
        %v10322 = vunpack.c.l.b16 %v8887
        %v10323 = vunpack.c.h.b16 %v8887
        %v10324 = vunpack.c.l.b16 %v8888
        %v10325 = vunpack.c.h.b16 %v8888
        %v10326 = vunpack.c.l.b16 %v8889
        %v10327 = vunpack.c.h.b16 %v8889
        %v10328 = vunpack.c.l.b16 %v8890
        %v10329 = vunpack.c.h.b16 %v8890
        %v10330 = vunpack.c.l.b16 %v8891
        %v10331 = vunpack.c.h.b16 %v8891
        %v10332 = vunpack.c.l.b16 %v8892
        %v10333 = vunpack.c.h.b16 %v8892
        %v10334 = vunpack.c.l.b16 %v8893
        %v10335 = vunpack.c.h.b16 %v8893
        %v10336 = vunpack.c.l.b16 %v8894
        %v10337 = vunpack.c.h.b16 %v8894
        %v10338 = vunpack.c.l.b16 %v8895
        %v10339 = vunpack.c.h.b16 %v8895
        %v10340 = vunpack.c.l.b16 %v8896
        %v10341 = vunpack.c.h.b16 %v8896
        %v10342 = vunpack.c.l.b16 %v8897
        %v10343 = vunpack.c.h.b16 %v8897
        %v10344 = vunpack.c.l.b16 %v8898
        %v10345 = vunpack.c.h.b16 %v8898
        %v10346 = vunpack.c.l.b16 %v8899
        %v10347 = vunpack.c.h.b16 %v8899
        %v10348 = vunpack.c.l.b16 %v8900
        %v10349 = vunpack.c.h.b16 %v8900
        %v10350 = vunpack.c.l.b16 %v8901
        %v10351 = vunpack.c.h.b16 %v8901
        %v10352 = vunpack.c.l.b16 %v8902
        %v10353 = vunpack.c.h.b16 %v8902
        %v10354 = vunpack.c.l.b16 %v8903
        %v10355 = vunpack.c.h.b16 %v8903
        %v10356 = vunpack.c.l.b16 %v8904
        %v10357 = vunpack.c.h.b16 %v8904
        %v10358 = vunpack.c.l.b16 %v8905
        %v10359 = vunpack.c.h.b16 %v8905
        %v10360 = vunpack.c.l.b16 %v8906
        %v10361 = vunpack.c.h.b16 %v8906
        %v10362 = vunpack.c.l.b16 %v8907
        %v10363 = vunpack.c.h.b16 %v8907
        %v10364 = vunpack.c.l.b16 %v8908
        %v10365 = vunpack.c.h.b16 %v8908
        %v10366 = vunpack.c.l.b16 %v8909
        %v10367 = vunpack.c.h.b16 %v8909
        %v10368 = vunpack.c.l.b16 %v8910
        %v10369 = vunpack.c.h.b16 %v8910
        %v10370 = vunpack.c.l.b16 %v8911
        %v10371 = vunpack.c.h.b16 %v8911
        %v10372 = vunpack.c.l.b16 %v8912
        %v10373 = vunpack.c.h.b16 %v8912
        %v10374 = vunpack.c.l.b16 %v8913
        %v10375 = vunpack.c.h.b16 %v8913
        %v10376 = vunpack.c.l.b16 %v8914
        %v10377 = vunpack.c.h.b16 %v8914
        %v10378 = vunpack.c.l.b16 %v8915
        %v10379 = vunpack.c.h.b16 %v8915
        %v10380 = vunpack.c.l.b16 %v8916
        %v10381 = vunpack.c.h.b16 %v8916
        %v10382 = vunpack.c.l.b16 %v8917
        %v10383 = vunpack.c.h.b16 %v8917
        %v10384 = vunpack.c.l.b16 %v8918
        %v10385 = vunpack.c.h.b16 %v8918
        %v10386 = vunpack.c.l.b16 %v8919
        %v10387 = vunpack.c.h.b16 %v8919
        %v10388 = vunpack.c.l.b16 %v8920
        %v10389 = vunpack.c.h.b16 %v8920
        %v10390 = vunpack.c.l.b16 %v8921
        %v10391 = vunpack.c.h.b16 %v8921
        %v10392 = vunpack.c.l.b16 %v8922
        %v10393 = vunpack.c.h.b16 %v8922
        %v10394 = vunpack.c.l.b16 %v8923
        %v10395 = vunpack.c.h.b16 %v8923
        %v10396 = vunpack.c.l.b16 %v8924
        %v10397 = vunpack.c.h.b16 %v8924
        %v10398 = vunpack.c.l.b16 %v8925
        %v10399 = vunpack.c.h.b16 %v8925
        %v10400 = vunpack.c.l.b16 %v8926
        %v10401 = vunpack.c.h.b16 %v8926
        %v10402 = vunpack.c.l.b16 %v8927
        %v10403 = vunpack.c.h.b16 %v8927
        %v10404 = vunpack.c.l.b16 %v8928
        %v10405 = vunpack.c.h.b16 %v8928
        %v10406 = vunpack.c.l.b16 %v8929
        %v10407 = vunpack.c.h.b16 %v8929
        %v10408 = vunpack.c.l.b16 %v8930
        %v10409 = vunpack.c.h.b16 %v8930
        %v10410 = vunpack.c.l.b16 %v8931
        %v10411 = vunpack.c.h.b16 %v8931
        %v10412 = vunpack.c.l.b16 %v8932
        %v10413 = vunpack.c.h.b16 %v8932
        %v10414 = vunpack.c.l.b16 %v8933
        %v10415 = vunpack.c.h.b16 %v8933
        %v10416 = vunpack.c.l.b16 %v8934
        %v10417 = vunpack.c.h.b16 %v8934
        %v10418 = vunpack.c.l.b16 %v8935
        %v10419 = vunpack.c.h.b16 %v8935
        %v10420 = vunpack.c.l.b16 %v8936
        %v10421 = vunpack.c.h.b16 %v8936
        %v10422 = vunpack.c.l.b16 %v8937
        %v10423 = vunpack.c.h.b16 %v8937
        %v10424 = vunpack.c.l.b16 %v8938
        %v10425 = vunpack.c.h.b16 %v8938
        %v10426 = vunpack.c.l.b16 %v8939
        %v10427 = vunpack.c.h.b16 %v8939
        %v10428 = vunpack.c.l.b16 %v8940
        %v10429 = vunpack.c.h.b16 %v8940
        %v10430 = vunpack.c.l.b16 %v8941
        %v10431 = vunpack.c.h.b16 %v8941
        %v10432 = vunpack.c.l.b16 %v8942
        %v10433 = vunpack.c.h.b16 %v8942
        %v10434 = vunpack.c.l.b16 %v8943
        %v10435 = vunpack.c.h.b16 %v8943
        %v10436 = vunpack.c.l.b16 %v8944
        %v10437 = vunpack.c.h.b16 %v8944
        %v10438 = vunpack.c.l.b16 %v8945
        %v10439 = vunpack.c.h.b16 %v8945
        %v10440 = vunpack.c.l.b16 %v8946
        %v10441 = vunpack.c.h.b16 %v8946
        %v10442 = vunpack.c.l.b16 %v8947
        %v10443 = vunpack.c.h.b16 %v8947
        %v10444 = vunpack.c.l.b16 %v8948
        %v10445 = vunpack.c.h.b16 %v8948
        %v10446 = vunpack.c.l.b16 %v8949
        %v10447 = vunpack.c.h.b16 %v8949
        %v10448 = vunpack.c.l.b16 %v8950
        %v10449 = vunpack.c.h.b16 %v8950
        %v10450 = vunpack.c.l.b16 %v8951
        %v10451 = vunpack.c.h.b16 %v8951
        %v10452 = vunpack.c.l.b16 %v8952
        %v10453 = vunpack.c.h.b16 %v8952
        %v10454 = vunpack.c.l.b16 %v8953
        %v10455 = vunpack.c.h.b16 %v8953
        %v10456 = vunpack.c.l.b16 %v8954
        %v10457 = vunpack.c.h.b16 %v8954
        %v10458 = vunpack.c.l.b16 %v8955
        %v10459 = vunpack.c.h.b16 %v8955
        %v10460 = vunpack.c.l.b16 %v8956
        %v10461 = vunpack.c.h.b16 %v8956
        %v10462 = vunpack.c.l.b16 %v8957
        %v10463 = vunpack.c.h.b16 %v8957
        %v10464 = vunpack.c.l.b16 %v8958
        %v10465 = vunpack.c.h.b16 %v8958
        %v10466 = vunpack.c.l.b16 %v8959
        %v10467 = vunpack.c.h.b16 %v8959
        %v10468 = vunpack.c.l.b16 %v8960
        %v10469 = vunpack.c.h.b16 %v8960
        %v10470 = vunpack.c.l.b16 %v8961
        %v10471 = vunpack.c.h.b16 %v8961
        %v10472 = vunpack.c.l.b16 %v8962
        %v10473 = vunpack.c.h.b16 %v8962
        %v10474 = vunpack.c.l.b16 %v8963
        %v10475 = vunpack.c.h.b16 %v8963
        %v10476 = vunpack.c.l.b16 %v8964
        %v10477 = vunpack.c.h.b16 %v8964
        %v10478 = vunpack.c.l.b16 %v8965
        %v10479 = vunpack.c.h.b16 %v8965
        %v10480 = vunpack.c.l.b16 %v8966
        %v10481 = vunpack.c.h.b16 %v8966
        %v10482 = vunpack.c.l.b16 %v8967
        %v10483 = vunpack.c.h.b16 %v8967
        %v10484 = vunpack.c.l.b16 %v8968
        %v10485 = vunpack.c.h.b16 %v8968
        %v10486 = vunpack.c.l.b16 %v8969
        %v10487 = vunpack.c.h.b16 %v8969
        %v10488 = vunpack.c.l.b16 %v8970
        %v10489 = vunpack.c.h.b16 %v8970
        %v10490 = vunpack.c.l.b16 %v8971
        %v10491 = vunpack.c.h.b16 %v8971
        %v10492 = vunpack.c.l.b16 %v8972
        %v10493 = vunpack.c.h.b16 %v8972
        %v10494 = vunpack.c.l.b16 %v8973
        %v10495 = vunpack.c.h.b16 %v8973
        %v10496 = vunpack.c.l.b16 %v8974
        %v10497 = vunpack.c.h.b16 %v8974
        %v10498 = vunpack.c.l.b16 %v8975
        %v10499 = vunpack.c.h.b16 %v8975
        %v10500 = vunpack.c.l.b16 %v8976
        %v10501 = vunpack.c.h.b16 %v8976
        %v10502 = vunpack.c.l.b16 %v8977
        %v10503 = vunpack.c.h.b16 %v8977
        %v10504 = vunpack.c.l.b16 %v8978
        %v10505 = vunpack.c.h.b16 %v8978
        %v10506 = vunpack.c.l.b16 %v8979
        %v10507 = vunpack.c.h.b16 %v8979
        %v10508 = vunpack.c.l.b16 %v8980
        %v10509 = vunpack.c.h.b16 %v8980
        %v10510 = vunpack.c.l.b16 %v8981
        %v10511 = vunpack.c.h.b16 %v8981
        %v10512 = vunpack.c.l.b16 %v8982
        %v10513 = vunpack.c.h.b16 %v8982
        %v10514 = vunpack.c.l.b16 %v8983
        %v10515 = vunpack.c.h.b16 %v8983
        %v10516 = vunpack.c.l.b16 %v8984
        %v10517 = vunpack.c.h.b16 %v8984
        %v10518 = vunpack.c.l.b16 %v8985
        %v10519 = vunpack.c.h.b16 %v8985
        %v10520 = vunpack.c.l.b16 %v8986
        %v10521 = vunpack.c.h.b16 %v8986
        %v10522 = vunpack.c.l.b16 %v8987
        %v10523 = vunpack.c.h.b16 %v8987
        %v10524 = vunpack.c.l.b16 %v8988
        %v10525 = vunpack.c.h.b16 %v8988
        %v10526 = vunpack.c.l.b16 %v8989
        %v10527 = vunpack.c.h.b16 %v8989
        %v10528 = vunpack.c.l.b16 %v8990
        %v10529 = vunpack.c.h.b16 %v8990
        %v10530 = vunpack.c.l.b16 %v8991
        %v10531 = vunpack.c.h.b16 %v8991
        %v10532 = vunpack.c.l.b16 %v8992
        %v10533 = vunpack.c.h.b16 %v8992
        %v10534 = vunpack.c.l.b16 %v8993
        %v10535 = vunpack.c.h.b16 %v8993
        %v10536 = vunpack.c.l.b16 %v8994
        %v10537 = vunpack.c.h.b16 %v8994
        %v10538 = vunpack.c.l.b16 %v8995
        %v10539 = vunpack.c.h.b16 %v8995
        %v10540 = vunpack.c.l.b16 %v8996
        %v10541 = vunpack.c.h.b16 %v8996
        %v10542 = vunpack.c.l.b16 %v8997
        %v10543 = vunpack.c.h.b16 %v8997
        %v10544 = vunpack.c.l.b16 %v8998
        %v10545 = vunpack.c.h.b16 %v8998
        %v10546 = vunpack.c.l.b16 %v8999
        %v10547 = vunpack.c.h.b16 %v8999
        %v10548 = vunpack.c.l.b16 %v9000
        %v10549 = vunpack.c.h.b16 %v9000
        %v10550 = vunpack.c.l.b16 %v9001
        %v10551 = vunpack.c.h.b16 %v9001
        %v10552 = vunpack.c.l.b16 %v9002
        %v10553 = vunpack.c.h.b16 %v9002
        %v10554 = vunpack.c.l.b16 %v9003
        %v10555 = vunpack.c.h.b16 %v9003
        %v10556 = vunpack.c.l.b16 %v9004
        %v10557 = vunpack.c.h.b16 %v9004
        %v10558 = vunpack.c.l.b16 %v9005
        %v10559 = vunpack.c.h.b16 %v9005
        %v10560 = vunpack.c.l.b16 %v9006
        %v10561 = vunpack.c.h.b16 %v9006
        %v10562 = vunpack.c.l.b16 %v9007
        %v10563 = vunpack.c.h.b16 %v9007
        %v10564 = vunpack.c.l.b16 %v9008
        %v10565 = vunpack.c.h.b16 %v9008
        %v10566 = vunpack.c.l.b16 %v9009
        %v10567 = vunpack.c.h.b16 %v9009
        %v10568 = vunpack.c.l.b16 %v9010
        %v10569 = vunpack.c.h.b16 %v9010
        %v10570 = vunpack.c.l.b16 %v9011
        %v10571 = vunpack.c.h.b16 %v9011
        %v10572 = vunpack.c.l.b16 %v9012
        %v10573 = vunpack.c.h.b16 %v9012
        %v10574 = vunpack.c.l.b16 %v9013
        %v10575 = vunpack.c.h.b16 %v9013
        %v10576 = vunpack.c.l.b16 %v9014
        %v10577 = vunpack.c.h.b16 %v9014
        %v10578 = vunpack.c.l.b16 %v9015
        %v10579 = vunpack.c.h.b16 %v9015
        %v10580 = vunpack.c.l.b16 %v9016
        %v10581 = vunpack.c.h.b16 %v9016
        %v10582 = vunpack.c.l.b16 %v9017
        %v10583 = vunpack.c.h.b16 %v9017
        %v10584 = vunpack.c.l.b16 %v9018
        %v10585 = vunpack.c.h.b16 %v9018
        %v10586 = vunpack.c.l.b16 %v9019
        %v10587 = vunpack.c.h.b16 %v9019
        %v10588 = vpack.c.b16 %v9580, %v9564
        %v10589 = vpack.c.b16 %v9581, %v9565
        %v10590 = vpack.c.b16 %v9582, %v9566
        %v10591 = vpack.c.b16 %v9583, %v9567
        %v10592 = vpack.c.b16 %v9584, %v9568
        %v10593 = vpack.c.b16 %v9585, %v9569
        %v10594 = vpack.c.b16 %v9586, %v9570
        %v10595 = vpack.c.b16 %v9587, %v9571
        %v10596 = vpack.c.b16 %v9588, %v9572
        %v10597 = vpack.c.b16 %v9589, %v9573
        %v10598 = vpack.c.b16 %v9590, %v9574
        %v10599 = vpack.c.b16 %v9591, %v9575
        %v10600 = vpack.c.b16 %v9592, %v9576
        %v10601 = vpack.c.b16 %v9593, %v9577
        %v10602 = vpack.c.b16 %v9594, %v9578
        %v10603 = vpack.c.b16 %v9595, %v9579
        %v10604 = vpack.c.b16 %v9612, %v9596
        %v10605 = vpack.c.b16 %v9613, %v9597
        %v10606 = vpack.c.b16 %v9614, %v9598
        %v10607 = vpack.c.b16 %v9615, %v9599
        %v10608 = vpack.c.b16 %v9616, %v9600
        %v10609 = vpack.c.b16 %v9617, %v9601
        %v10610 = vpack.c.b16 %v9618, %v9602
        %v10611 = vpack.c.b16 %v9619, %v9603
        %v10612 = vpack.c.b16 %v9620, %v9604
        %v10613 = vpack.c.b16 %v9621, %v9605
        %v10614 = vpack.c.b16 %v9622, %v9606
        %v10615 = vpack.c.b16 %v9623, %v9607
        %v10616 = vpack.c.b16 %v9624, %v9608
        %v10617 = vpack.c.b16 %v9625, %v9609
        %v10618 = vpack.c.b16 %v9626, %v9610
        %v10619 = vpack.c.b16 %v9627, %v9611
        %v10620 = vpack.c.b16 %v9644, %v9628
        %v10621 = vpack.c.b16 %v9645, %v9629
        %v10622 = vpack.c.b16 %v9646, %v9630
        %v10623 = vpack.c.b16 %v9647, %v9631
        %v10624 = vpack.c.b16 %v9648, %v9632
        %v10625 = vpack.c.b16 %v9649, %v9633
        %v10626 = vpack.c.b16 %v9650, %v9634
        %v10627 = vpack.c.b16 %v9651, %v9635
        %v10628 = vpack.c.b16 %v9652, %v9636
        %v10629 = vpack.c.b16 %v9653, %v9637
        %v10630 = vpack.c.b16 %v9654, %v9638
        %v10631 = vpack.c.b16 %v9655, %v9639
        %v10632 = vpack.c.b16 %v9656, %v9640
        %v10633 = vpack.c.b16 %v9657, %v9641
        %v10634 = vpack.c.b16 %v9658, %v9642
        %v10635 = vpack.c.b16 %v9659, %v9643
        %v10636 = vpack.c.b16 %v9676, %v9660
        %v10637 = vpack.c.b16 %v9677, %v9661
        %v10638 = vpack.c.b16 %v9678, %v9662
        %v10639 = vpack.c.b16 %v9679, %v9663
        %v10640 = vpack.c.b16 %v9680, %v9664
        %v10641 = vpack.c.b16 %v9681, %v9665
        %v10642 = vpack.c.b16 %v9682, %v9666
        %v10643 = vpack.c.b16 %v9683, %v9667
        %v10644 = vpack.c.b16 %v9684, %v9668
        %v10645 = vpack.c.b16 %v9685, %v9669
        %v10646 = vpack.c.b16 %v9686, %v9670
        %v10647 = vpack.c.b16 %v9687, %v9671
        %v10648 = vpack.c.b16 %v9688, %v9672
        %v10649 = vpack.c.b16 %v9689, %v9673
        %v10650 = vpack.c.b16 %v9690, %v9674
        %v10651 = vpack.c.b16 %v9691, %v9675
        %v10652 = vpack.c.b16 %v9708, %v9692
        %v10653 = vpack.c.b16 %v9709, %v9693
        %v10654 = vpack.c.b16 %v9710, %v9694
        %v10655 = vpack.c.b16 %v9711, %v9695
        %v10656 = vpack.c.b16 %v9712, %v9696
        %v10657 = vpack.c.b16 %v9713, %v9697
        %v10658 = vpack.c.b16 %v9714, %v9698
        %v10659 = vpack.c.b16 %v9715, %v9699
        %v10660 = vpack.c.b16 %v9716, %v9700
        %v10661 = vpack.c.b16 %v9717, %v9701
        %v10662 = vpack.c.b16 %v9718, %v9702
        %v10663 = vpack.c.b16 %v9719, %v9703
        %v10664 = vpack.c.b16 %v9720, %v9704
        %v10665 = vpack.c.b16 %v9721, %v9705
        %v10666 = vpack.c.b16 %v9722, %v9706
        %v10667 = vpack.c.b16 %v9723, %v9707
        %v10668 = vpack.c.b16 %v9740, %v9724
        %v10669 = vpack.c.b16 %v9741, %v9725
        %v10670 = vpack.c.b16 %v9742, %v9726
        %v10671 = vpack.c.b16 %v9743, %v9727
        %v10672 = vpack.c.b16 %v9744, %v9728
        %v10673 = vpack.c.b16 %v9745, %v9729
        %v10674 = vpack.c.b16 %v9746, %v9730
        %v10675 = vpack.c.b16 %v9747, %v9731
        %v10676 = vpack.c.b16 %v9748, %v9732
        %v10677 = vpack.c.b16 %v9749, %v9733
        %v10678 = vpack.c.b16 %v9750, %v9734
        %v10679 = vpack.c.b16 %v9751, %v9735
        %v10680 = vpack.c.b16 %v9752, %v9736
        %v10681 = vpack.c.b16 %v9753, %v9737
        %v10682 = vpack.c.b16 %v9754, %v9738
        %v10683 = vpack.c.b16 %v9755, %v9739
        %v10684 = vpack.c.b16 %v9772, %v9756
        %v10685 = vpack.c.b16 %v9773, %v9757
        %v10686 = vpack.c.b16 %v9774, %v9758
        %v10687 = vpack.c.b16 %v9775, %v9759
        %v10688 = vpack.c.b16 %v9776, %v9760
        %v10689 = vpack.c.b16 %v9777, %v9761
        %v10690 = vpack.c.b16 %v9778, %v9762
        %v10691 = vpack.c.b16 %v9779, %v9763
        %v10692 = vpack.c.b16 %v9780, %v9764
        %v10693 = vpack.c.b16 %v9781, %v9765
        %v10694 = vpack.c.b16 %v9782, %v9766
        %v10695 = vpack.c.b16 %v9783, %v9767
        %v10696 = vpack.c.b16 %v9784, %v9768
        %v10697 = vpack.c.b16 %v9785, %v9769
        %v10698 = vpack.c.b16 %v9786, %v9770
        %v10699 = vpack.c.b16 %v9787, %v9771
        %v10700 = vpack.c.b16 %v9804, %v9788
        %v10701 = vpack.c.b16 %v9805, %v9789
        %v10702 = vpack.c.b16 %v9806, %v9790
        %v10703 = vpack.c.b16 %v9807, %v9791
        %v10704 = vpack.c.b16 %v9808, %v9792
        %v10705 = vpack.c.b16 %v9809, %v9793
        %v10706 = vpack.c.b16 %v9810, %v9794
        %v10707 = vpack.c.b16 %v9811, %v9795
        %v10708 = vpack.c.b16 %v9812, %v9796
        %v10709 = vpack.c.b16 %v9813, %v9797
        %v10710 = vpack.c.b16 %v9814, %v9798
        %v10711 = vpack.c.b16 %v9815, %v9799
        %v10712 = vpack.c.b16 %v9816, %v9800
        %v10713 = vpack.c.b16 %v9817, %v9801
        %v10714 = vpack.c.b16 %v9818, %v9802
        %v10715 = vpack.c.b16 %v9819, %v9803
        %v10716 = vpack.c.b16 %v9836, %v9820
        %v10717 = vpack.c.b16 %v9837, %v9821
        %v10718 = vpack.c.b16 %v9838, %v9822
        %v10719 = vpack.c.b16 %v9839, %v9823
        %v10720 = vpack.c.b16 %v9840, %v9824
        %v10721 = vpack.c.b16 %v9841, %v9825
        %v10722 = vpack.c.b16 %v9842, %v9826
        %v10723 = vpack.c.b16 %v9843, %v9827
        %v10724 = vpack.c.b16 %v9844, %v9828
        %v10725 = vpack.c.b16 %v9845, %v9829
        %v10726 = vpack.c.b16 %v9846, %v9830
        %v10727 = vpack.c.b16 %v9847, %v9831
        %v10728 = vpack.c.b16 %v9848, %v9832
        %v10729 = vpack.c.b16 %v9849, %v9833
        %v10730 = vpack.c.b16 %v9850, %v9834
        %v10731 = vpack.c.b16 %v9851, %v9835
        %v10732 = vpack.c.b16 %v9868, %v9852
        %v10733 = vpack.c.b16 %v9869, %v9853
        %v10734 = vpack.c.b16 %v9870, %v9854
        %v10735 = vpack.c.b16 %v9871, %v9855
        %v10736 = vpack.c.b16 %v9872, %v9856
        %v10737 = vpack.c.b16 %v9873, %v9857
        %v10738 = vpack.c.b16 %v9874, %v9858
        %v10739 = vpack.c.b16 %v9875, %v9859
        %v10740 = vpack.c.b16 %v9876, %v9860
        %v10741 = vpack.c.b16 %v9877, %v9861
        %v10742 = vpack.c.b16 %v9878, %v9862
        %v10743 = vpack.c.b16 %v9879, %v9863
        %v10744 = vpack.c.b16 %v9880, %v9864
        %v10745 = vpack.c.b16 %v9881, %v9865
        %v10746 = vpack.c.b16 %v9882, %v9866
        %v10747 = vpack.c.b16 %v9883, %v9867
        %v10748 = vpack.c.b16 %v9900, %v9884
        %v10749 = vpack.c.b16 %v9901, %v9885
        %v10750 = vpack.c.b16 %v9902, %v9886
        %v10751 = vpack.c.b16 %v9903, %v9887
        %v10752 = vpack.c.b16 %v9904, %v9888
        %v10753 = vpack.c.b16 %v9905, %v9889
        %v10754 = vpack.c.b16 %v9906, %v9890
        %v10755 = vpack.c.b16 %v9907, %v9891
        %v10756 = vpack.c.b16 %v9908, %v9892
        %v10757 = vpack.c.b16 %v9909, %v9893
        %v10758 = vpack.c.b16 %v9910, %v9894
        %v10759 = vpack.c.b16 %v9911, %v9895
        %v10760 = vpack.c.b16 %v9912, %v9896
        %v10761 = vpack.c.b16 %v9913, %v9897
        %v10762 = vpack.c.b16 %v9914, %v9898
        %v10763 = vpack.c.b16 %v9915, %v9899
        %v10764 = vpack.c.b16 %v9932, %v9916
        %v10765 = vpack.c.b16 %v9933, %v9917
        %v10766 = vpack.c.b16 %v9934, %v9918
        %v10767 = vpack.c.b16 %v9935, %v9919
        %v10768 = vpack.c.b16 %v9936, %v9920
        %v10769 = vpack.c.b16 %v9937, %v9921
        %v10770 = vpack.c.b16 %v9938, %v9922
        %v10771 = vpack.c.b16 %v9939, %v9923
        %v10772 = vpack.c.b16 %v9940, %v9924
        %v10773 = vpack.c.b16 %v9941, %v9925
        %v10774 = vpack.c.b16 %v9942, %v9926
        %v10775 = vpack.c.b16 %v9943, %v9927
        %v10776 = vpack.c.b16 %v9944, %v9928
        %v10777 = vpack.c.b16 %v9945, %v9929
        %v10778 = vpack.c.b16 %v9946, %v9930
        %v10779 = vpack.c.b16 %v9947, %v9931
        %v10780 = vpack.c.b16 %v9964, %v9948
        %v10781 = vpack.c.b16 %v9965, %v9949
        %v10782 = vpack.c.b16 %v9966, %v9950
        %v10783 = vpack.c.b16 %v9967, %v9951
        %v10784 = vpack.c.b16 %v9968, %v9952
        %v10785 = vpack.c.b16 %v9969, %v9953
        %v10786 = vpack.c.b16 %v9970, %v9954
        %v10787 = vpack.c.b16 %v9971, %v9955
        %v10788 = vpack.c.b16 %v9972, %v9956
        %v10789 = vpack.c.b16 %v9973, %v9957
        %v10790 = vpack.c.b16 %v9974, %v9958
        %v10791 = vpack.c.b16 %v9975, %v9959
        %v10792 = vpack.c.b16 %v9976, %v9960
        %v10793 = vpack.c.b16 %v9977, %v9961
        %v10794 = vpack.c.b16 %v9978, %v9962
        %v10795 = vpack.c.b16 %v9979, %v9963
        %v10796 = vpack.c.b16 %v9996, %v9980
        %v10797 = vpack.c.b16 %v9997, %v9981
        %v10798 = vpack.c.b16 %v9998, %v9982
        %v10799 = vpack.c.b16 %v9999, %v9983
        %v10800 = vpack.c.b16 %v10000, %v9984
        %v10801 = vpack.c.b16 %v10001, %v9985
        %v10802 = vpack.c.b16 %v10002, %v9986
        %v10803 = vpack.c.b16 %v10003, %v9987
        %v10804 = vpack.c.b16 %v10004, %v9988
        %v10805 = vpack.c.b16 %v10005, %v9989
        %v10806 = vpack.c.b16 %v10006, %v9990
        %v10807 = vpack.c.b16 %v10007, %v9991
        %v10808 = vpack.c.b16 %v10008, %v9992
        %v10809 = vpack.c.b16 %v10009, %v9993
        %v10810 = vpack.c.b16 %v10010, %v9994
        %v10811 = vpack.c.b16 %v10011, %v9995
        %v10812 = vpack.c.b16 %v10028, %v10012
        %v10813 = vpack.c.b16 %v10029, %v10013
        %v10814 = vpack.c.b16 %v10030, %v10014
        %v10815 = vpack.c.b16 %v10031, %v10015
        %v10816 = vpack.c.b16 %v10032, %v10016
        %v10817 = vpack.c.b16 %v10033, %v10017
        %v10818 = vpack.c.b16 %v10034, %v10018
        %v10819 = vpack.c.b16 %v10035, %v10019
        %v10820 = vpack.c.b16 %v10036, %v10020
        %v10821 = vpack.c.b16 %v10037, %v10021
        %v10822 = vpack.c.b16 %v10038, %v10022
        %v10823 = vpack.c.b16 %v10039, %v10023
        %v10824 = vpack.c.b16 %v10040, %v10024
        %v10825 = vpack.c.b16 %v10041, %v10025
        %v10826 = vpack.c.b16 %v10042, %v10026
        %v10827 = vpack.c.b16 %v10043, %v10027
        %v10828 = vpack.c.b16 %v10060, %v10044
        %v10829 = vpack.c.b16 %v10061, %v10045
        %v10830 = vpack.c.b16 %v10062, %v10046
        %v10831 = vpack.c.b16 %v10063, %v10047
        %v10832 = vpack.c.b16 %v10064, %v10048
        %v10833 = vpack.c.b16 %v10065, %v10049
        %v10834 = vpack.c.b16 %v10066, %v10050
        %v10835 = vpack.c.b16 %v10067, %v10051
        %v10836 = vpack.c.b16 %v10068, %v10052
        %v10837 = vpack.c.b16 %v10069, %v10053
        %v10838 = vpack.c.b16 %v10070, %v10054
        %v10839 = vpack.c.b16 %v10071, %v10055
        %v10840 = vpack.c.b16 %v10072, %v10056
        %v10841 = vpack.c.b16 %v10073, %v10057
        %v10842 = vpack.c.b16 %v10074, %v10058
        %v10843 = vpack.c.b16 %v10075, %v10059
        %v10844 = vpack.c.b16 %v10092, %v10076
        %v10845 = vpack.c.b16 %v10093, %v10077
        %v10846 = vpack.c.b16 %v10094, %v10078
        %v10847 = vpack.c.b16 %v10095, %v10079
        %v10848 = vpack.c.b16 %v10096, %v10080
        %v10849 = vpack.c.b16 %v10097, %v10081
        %v10850 = vpack.c.b16 %v10098, %v10082
        %v10851 = vpack.c.b16 %v10099, %v10083
        %v10852 = vpack.c.b16 %v10100, %v10084
        %v10853 = vpack.c.b16 %v10101, %v10085
        %v10854 = vpack.c.b16 %v10102, %v10086
        %v10855 = vpack.c.b16 %v10103, %v10087
        %v10856 = vpack.c.b16 %v10104, %v10088
        %v10857 = vpack.c.b16 %v10105, %v10089
        %v10858 = vpack.c.b16 %v10106, %v10090
        %v10859 = vpack.c.b16 %v10107, %v10091
        %v10860 = vpack.c.b16 %v10124, %v10108
        %v10861 = vpack.c.b16 %v10125, %v10109
        %v10862 = vpack.c.b16 %v10126, %v10110
        %v10863 = vpack.c.b16 %v10127, %v10111
        %v10864 = vpack.c.b16 %v10128, %v10112
        %v10865 = vpack.c.b16 %v10129, %v10113
        %v10866 = vpack.c.b16 %v10130, %v10114
        %v10867 = vpack.c.b16 %v10131, %v10115
        %v10868 = vpack.c.b16 %v10132, %v10116
        %v10869 = vpack.c.b16 %v10133, %v10117
        %v10870 = vpack.c.b16 %v10134, %v10118
        %v10871 = vpack.c.b16 %v10135, %v10119
        %v10872 = vpack.c.b16 %v10136, %v10120
        %v10873 = vpack.c.b16 %v10137, %v10121
        %v10874 = vpack.c.b16 %v10138, %v10122
        %v10875 = vpack.c.b16 %v10139, %v10123
        %v10876 = vpack.c.b16 %v10156, %v10140
        %v10877 = vpack.c.b16 %v10157, %v10141
        %v10878 = vpack.c.b16 %v10158, %v10142
        %v10879 = vpack.c.b16 %v10159, %v10143
        %v10880 = vpack.c.b16 %v10160, %v10144
        %v10881 = vpack.c.b16 %v10161, %v10145
        %v10882 = vpack.c.b16 %v10162, %v10146
        %v10883 = vpack.c.b16 %v10163, %v10147
        %v10884 = vpack.c.b16 %v10164, %v10148
        %v10885 = vpack.c.b16 %v10165, %v10149
        %v10886 = vpack.c.b16 %v10166, %v10150
        %v10887 = vpack.c.b16 %v10167, %v10151
        %v10888 = vpack.c.b16 %v10168, %v10152
        %v10889 = vpack.c.b16 %v10169, %v10153
        %v10890 = vpack.c.b16 %v10170, %v10154
        %v10891 = vpack.c.b16 %v10171, %v10155
        %v10892 = vpack.c.b16 %v10188, %v10172
        %v10893 = vpack.c.b16 %v10189, %v10173
        %v10894 = vpack.c.b16 %v10190, %v10174
        %v10895 = vpack.c.b16 %v10191, %v10175
        %v10896 = vpack.c.b16 %v10192, %v10176
        %v10897 = vpack.c.b16 %v10193, %v10177
        %v10898 = vpack.c.b16 %v10194, %v10178
        %v10899 = vpack.c.b16 %v10195, %v10179
        %v10900 = vpack.c.b16 %v10196, %v10180
        %v10901 = vpack.c.b16 %v10197, %v10181
        %v10902 = vpack.c.b16 %v10198, %v10182
        %v10903 = vpack.c.b16 %v10199, %v10183
        %v10904 = vpack.c.b16 %v10200, %v10184
        %v10905 = vpack.c.b16 %v10201, %v10185
        %v10906 = vpack.c.b16 %v10202, %v10186
        %v10907 = vpack.c.b16 %v10203, %v10187
        %v10908 = vpack.c.b16 %v10220, %v10204
        %v10909 = vpack.c.b16 %v10221, %v10205
        %v10910 = vpack.c.b16 %v10222, %v10206
        %v10911 = vpack.c.b16 %v10223, %v10207
        %v10912 = vpack.c.b16 %v10224, %v10208
        %v10913 = vpack.c.b16 %v10225, %v10209
        %v10914 = vpack.c.b16 %v10226, %v10210
        %v10915 = vpack.c.b16 %v10227, %v10211
        %v10916 = vpack.c.b16 %v10228, %v10212
        %v10917 = vpack.c.b16 %v10229, %v10213
        %v10918 = vpack.c.b16 %v10230, %v10214
        %v10919 = vpack.c.b16 %v10231, %v10215
        %v10920 = vpack.c.b16 %v10232, %v10216
        %v10921 = vpack.c.b16 %v10233, %v10217
        %v10922 = vpack.c.b16 %v10234, %v10218
        %v10923 = vpack.c.b16 %v10235, %v10219
        %v10924 = vpack.c.b16 %v10252, %v10236
        %v10925 = vpack.c.b16 %v10253, %v10237
        %v10926 = vpack.c.b16 %v10254, %v10238
        %v10927 = vpack.c.b16 %v10255, %v10239
        %v10928 = vpack.c.b16 %v10256, %v10240
        %v10929 = vpack.c.b16 %v10257, %v10241
        %v10930 = vpack.c.b16 %v10258, %v10242
        %v10931 = vpack.c.b16 %v10259, %v10243
        %v10932 = vpack.c.b16 %v10260, %v10244
        %v10933 = vpack.c.b16 %v10261, %v10245
        %v10934 = vpack.c.b16 %v10262, %v10246
        %v10935 = vpack.c.b16 %v10263, %v10247
        %v10936 = vpack.c.b16 %v10264, %v10248
        %v10937 = vpack.c.b16 %v10265, %v10249
        %v10938 = vpack.c.b16 %v10266, %v10250
        %v10939 = vpack.c.b16 %v10267, %v10251
        %v10940 = vpack.c.b16 %v10284, %v10268
        %v10941 = vpack.c.b16 %v10285, %v10269
        %v10942 = vpack.c.b16 %v10286, %v10270
        %v10943 = vpack.c.b16 %v10287, %v10271
        %v10944 = vpack.c.b16 %v10288, %v10272
        %v10945 = vpack.c.b16 %v10289, %v10273
        %v10946 = vpack.c.b16 %v10290, %v10274
        %v10947 = vpack.c.b16 %v10291, %v10275
        %v10948 = vpack.c.b16 %v10292, %v10276
        %v10949 = vpack.c.b16 %v10293, %v10277
        %v10950 = vpack.c.b16 %v10294, %v10278
        %v10951 = vpack.c.b16 %v10295, %v10279
        %v10952 = vpack.c.b16 %v10296, %v10280
        %v10953 = vpack.c.b16 %v10297, %v10281
        %v10954 = vpack.c.b16 %v10298, %v10282
        %v10955 = vpack.c.b16 %v10299, %v10283
        %v10956 = vpack.c.b16 %v10316, %v10300
        %v10957 = vpack.c.b16 %v10317, %v10301
        %v10958 = vpack.c.b16 %v10318, %v10302
        %v10959 = vpack.c.b16 %v10319, %v10303
        %v10960 = vpack.c.b16 %v10320, %v10304
        %v10961 = vpack.c.b16 %v10321, %v10305
        %v10962 = vpack.c.b16 %v10322, %v10306
        %v10963 = vpack.c.b16 %v10323, %v10307
        %v10964 = vpack.c.b16 %v10324, %v10308
        %v10965 = vpack.c.b16 %v10325, %v10309
        %v10966 = vpack.c.b16 %v10326, %v10310
        %v10967 = vpack.c.b16 %v10327, %v10311
        %v10968 = vpack.c.b16 %v10328, %v10312
        %v10969 = vpack.c.b16 %v10329, %v10313
        %v10970 = vpack.c.b16 %v10330, %v10314
        %v10971 = vpack.c.b16 %v10331, %v10315
        %v10972 = vpack.c.b16 %v10348, %v10332
        %v10973 = vpack.c.b16 %v10349, %v10333
        %v10974 = vpack.c.b16 %v10350, %v10334
        %v10975 = vpack.c.b16 %v10351, %v10335
        %v10976 = vpack.c.b16 %v10352, %v10336
        %v10977 = vpack.c.b16 %v10353, %v10337
        %v10978 = vpack.c.b16 %v10354, %v10338
        %v10979 = vpack.c.b16 %v10355, %v10339
        %v10980 = vpack.c.b16 %v10356, %v10340
        %v10981 = vpack.c.b16 %v10357, %v10341
        %v10982 = vpack.c.b16 %v10358, %v10342
        %v10983 = vpack.c.b16 %v10359, %v10343
        %v10984 = vpack.c.b16 %v10360, %v10344
        %v10985 = vpack.c.b16 %v10361, %v10345
        %v10986 = vpack.c.b16 %v10362, %v10346
        %v10987 = vpack.c.b16 %v10363, %v10347
        %v10988 = vpack.c.b16 %v10380, %v10364
        %v10989 = vpack.c.b16 %v10381, %v10365
        %v10990 = vpack.c.b16 %v10382, %v10366
        %v10991 = vpack.c.b16 %v10383, %v10367
        %v10992 = vpack.c.b16 %v10384, %v10368
        %v10993 = vpack.c.b16 %v10385, %v10369
        %v10994 = vpack.c.b16 %v10386, %v10370
        %v10995 = vpack.c.b16 %v10387, %v10371
        %v10996 = vpack.c.b16 %v10388, %v10372
        %v10997 = vpack.c.b16 %v10389, %v10373
        %v10998 = vpack.c.b16 %v10390, %v10374
        %v10999 = vpack.c.b16 %v10391, %v10375
        %v11000 = vpack.c.b16 %v10392, %v10376
        %v11001 = vpack.c.b16 %v10393, %v10377
        %v11002 = vpack.c.b16 %v10394, %v10378
        %v11003 = vpack.c.b16 %v10395, %v10379
        %v11004 = vpack.c.b16 %v10412, %v10396
        %v11005 = vpack.c.b16 %v10413, %v10397
        %v11006 = vpack.c.b16 %v10414, %v10398
        %v11007 = vpack.c.b16 %v10415, %v10399
        %v11008 = vpack.c.b16 %v10416, %v10400
        %v11009 = vpack.c.b16 %v10417, %v10401
        %v11010 = vpack.c.b16 %v10418, %v10402
        %v11011 = vpack.c.b16 %v10419, %v10403
        %v11012 = vpack.c.b16 %v10420, %v10404
        %v11013 = vpack.c.b16 %v10421, %v10405
        %v11014 = vpack.c.b16 %v10422, %v10406
        %v11015 = vpack.c.b16 %v10423, %v10407
        %v11016 = vpack.c.b16 %v10424, %v10408
        %v11017 = vpack.c.b16 %v10425, %v10409
        %v11018 = vpack.c.b16 %v10426, %v10410
        %v11019 = vpack.c.b16 %v10427, %v10411
        %v11020 = vpack.c.b16 %v10444, %v10428
        %v11021 = vpack.c.b16 %v10445, %v10429
        %v11022 = vpack.c.b16 %v10446, %v10430
        %v11023 = vpack.c.b16 %v10447, %v10431
        %v11024 = vpack.c.b16 %v10448, %v10432
        %v11025 = vpack.c.b16 %v10449, %v10433
        %v11026 = vpack.c.b16 %v10450, %v10434
        %v11027 = vpack.c.b16 %v10451, %v10435
        %v11028 = vpack.c.b16 %v10452, %v10436
        %v11029 = vpack.c.b16 %v10453, %v10437
        %v11030 = vpack.c.b16 %v10454, %v10438
        %v11031 = vpack.c.b16 %v10455, %v10439
        %v11032 = vpack.c.b16 %v10456, %v10440
        %v11033 = vpack.c.b16 %v10457, %v10441
        %v11034 = vpack.c.b16 %v10458, %v10442
        %v11035 = vpack.c.b16 %v10459, %v10443
        %v11036 = vpack.c.b16 %v10476, %v10460
        %v11037 = vpack.c.b16 %v10477, %v10461
        %v11038 = vpack.c.b16 %v10478, %v10462
        %v11039 = vpack.c.b16 %v10479, %v10463
        %v11040 = vpack.c.b16 %v10480, %v10464
        %v11041 = vpack.c.b16 %v10481, %v10465
        %v11042 = vpack.c.b16 %v10482, %v10466
        %v11043 = vpack.c.b16 %v10483, %v10467
        %v11044 = vpack.c.b16 %v10484, %v10468
        %v11045 = vpack.c.b16 %v10485, %v10469
        %v11046 = vpack.c.b16 %v10486, %v10470
        %v11047 = vpack.c.b16 %v10487, %v10471
        %v11048 = vpack.c.b16 %v10488, %v10472
        %v11049 = vpack.c.b16 %v10489, %v10473
        %v11050 = vpack.c.b16 %v10490, %v10474
        %v11051 = vpack.c.b16 %v10491, %v10475
        %v11052 = vpack.c.b16 %v10508, %v10492
        %v11053 = vpack.c.b16 %v10509, %v10493
        %v11054 = vpack.c.b16 %v10510, %v10494
        %v11055 = vpack.c.b16 %v10511, %v10495
        %v11056 = vpack.c.b16 %v10512, %v10496
        %v11057 = vpack.c.b16 %v10513, %v10497
        %v11058 = vpack.c.b16 %v10514, %v10498
        %v11059 = vpack.c.b16 %v10515, %v10499
        %v11060 = vpack.c.b16 %v10516, %v10500
        %v11061 = vpack.c.b16 %v10517, %v10501
        %v11062 = vpack.c.b16 %v10518, %v10502
        %v11063 = vpack.c.b16 %v10519, %v10503
        %v11064 = vpack.c.b16 %v10520, %v10504
        %v11065 = vpack.c.b16 %v10521, %v10505
        %v11066 = vpack.c.b16 %v10522, %v10506
        %v11067 = vpack.c.b16 %v10523, %v10507
        %v11068 = vpack.c.b16 %v10540, %v10524
        %v11069 = vpack.c.b16 %v10541, %v10525
        %v11070 = vpack.c.b16 %v10542, %v10526
        %v11071 = vpack.c.b16 %v10543, %v10527
        %v11072 = vpack.c.b16 %v10544, %v10528
        %v11073 = vpack.c.b16 %v10545, %v10529
        %v11074 = vpack.c.b16 %v10546, %v10530
        %v11075 = vpack.c.b16 %v10547, %v10531
        %v11076 = vpack.c.b16 %v10548, %v10532
        %v11077 = vpack.c.b16 %v10549, %v10533
        %v11078 = vpack.c.b16 %v10550, %v10534
        %v11079 = vpack.c.b16 %v10551, %v10535
        %v11080 = vpack.c.b16 %v10552, %v10536
        %v11081 = vpack.c.b16 %v10553, %v10537
        %v11082 = vpack.c.b16 %v10554, %v10538
        %v11083 = vpack.c.b16 %v10555, %v10539
        %v11084 = vpack.c.b16 %v10572, %v10556
        %v11085 = vpack.c.b16 %v10573, %v10557
        %v11086 = vpack.c.b16 %v10574, %v10558
        %v11087 = vpack.c.b16 %v10575, %v10559
        %v11088 = vpack.c.b16 %v10576, %v10560
        %v11089 = vpack.c.b16 %v10577, %v10561
        %v11090 = vpack.c.b16 %v10578, %v10562
        %v11091 = vpack.c.b16 %v10579, %v10563
        %v11092 = vpack.c.b16 %v10580, %v10564
        %v11093 = vpack.c.b16 %v10581, %v10565
        %v11094 = vpack.c.b16 %v10582, %v10566
        %v11095 = vpack.c.b16 %v10583, %v10567
        %v11096 = vpack.c.b16 %v10584, %v10568
        %v11097 = vpack.c.b16 %v10585, %v10569
        %v11098 = vpack.c.b16 %v10586, %v10570
        %v11099 = vpack.c.b16 %v10587, %v10571
        %11612 = vmatprep.subr.bf16.mxu0 %v10589
        %11613 = vmatpush1.bf16.msra.mxu0 %v10588
        %11614 = vmatprep.subr.bf16.mxu0 %v10605
        %11615 = vmatpush1.bf16.msra.mxu0 %v10604
        %11616 = vmatprep.subr.bf16.mxu0 %v10621
        %11617 = vmatpush1.bf16.msra.mxu0 %v10620
        %11618 = vmatprep.subr.bf16.mxu0 %v10637
        %11619 = vmatpush1.bf16.msra.mxu0 %v10636
        %11620 = vmatprep.subr.bf16.mxu0 %v10653
        %11621 = vmatpush1.bf16.msra.mxu0 %v10652
        %11622 = vmatprep.subr.bf16.mxu0 %v10669
        %11623 = vmatpush1.bf16.msra.mxu0 %v10668
        %11624 = vmatprep.subr.bf16.mxu0 %v10685
        %11625 = vmatpush1.bf16.msra.mxu0 %v10684
        %11626 = vmatprep.subr.bf16.mxu0 %v10701
        %11627 = vmatpush1.bf16.msra.mxu0 %v10700
        %11628 = vmatprep.subr.bf16.mxu0 %v10717
        %11629 = vmatpush1.bf16.msra.mxu0 %v10716
        %11630 = vmatprep.subr.bf16.mxu0 %v10733
        %11631 = vmatpush1.bf16.msra.mxu0 %v10732
        %11632 = vmatprep.subr.bf16.mxu0 %v10749
        %11633 = vmatpush1.bf16.msra.mxu0 %v10748
        %11634 = vmatprep.subr.bf16.mxu0 %v10765
        %11635 = vmatpush1.bf16.msra.mxu0 %v10764
        %11636 = vmatprep.subr.bf16.mxu0 %v10781
        %11637 = vmatpush1.bf16.msra.mxu0 %v10780
        %11638 = vmatprep.subr.bf16.mxu0 %v10797
        %11639 = vmatpush1.bf16.msra.mxu0 %v10796
        %11640 = vmatprep.subr.bf16.mxu0 %v10813
        %11641 = vmatpush1.bf16.msra.mxu0 %v10812
        %11642 = vmatprep.subr.bf16.mxu0 %v10829
        %11643 = vmatpush1.bf16.msra.mxu0 %v10828
        %11644 = vmatprep.mubr.bf16.mxu0 %v9037
        %11645 = vmatmul.mubr.bf16.gmra.mrb[0].mxu0 %v9036
        %v11646 = vpop.f32.mrb[0].mxu0
        %v11647 = vadd.f32 0.0, %v11646
        %v11648 = vpop.f32.mrb[0].mxu0
        %v11649 = vadd.f32 0.0, %v11648
        %v11650 = vpop.f32.mrb[0].mxu0
        %v11651 = vadd.f32 0.0, %v11650
        %v11652 = vpop.f32.mrb[0].mxu0
        %v11653 = vadd.f32 0.0, %v11652
        %11654 = vmatprep.mubr.bf16.mxu0 %v9041
        %11655 = vmatmul.mubr.bf16.gmra.mrb[0].mxu0 %v9040
        %v11656 = vpop.f32.mrb[0].mxu0
        %v11657 = vadd.f32 0.0, %v11656
        %v11658 = vpop.f32.mrb[0].mxu0
        %v11659 = vadd.f32 0.0, %v11658
        %v11660 = vpop.f32.mrb[0].mxu0
        %v11661 = vadd.f32 0.0, %v11660
        %v11662 = vpop.f32.mrb[0].mxu0
        %v11663 = vadd.f32 0.0, %v11662
        %11664 = vdwg.mxu0
        %11665 = vmatprep.subr.bf16.mxu0 %v10845
        %11666 = vmatpush1.bf16.msra.mxu0 %v10844
        %11667 = vmatprep.subr.bf16.mxu0 %v10861
        %11668 = vmatpush1.bf16.msra.mxu0 %v10860
        %11669 = vmatprep.subr.bf16.mxu0 %v10877
        %11670 = vmatpush1.bf16.msra.mxu0 %v10876
        %11671 = vmatprep.subr.bf16.mxu0 %v10893
        %11672 = vmatpush1.bf16.msra.mxu0 %v10892
        %11673 = vmatprep.subr.bf16.mxu0 %v10909
        %11674 = vmatpush1.bf16.msra.mxu0 %v10908
        %11675 = vmatprep.subr.bf16.mxu0 %v10925
        %11676 = vmatpush1.bf16.msra.mxu0 %v10924
        %11677 = vmatprep.subr.bf16.mxu0 %v10941
        %11678 = vmatpush1.bf16.msra.mxu0 %v10940
        %11679 = vmatprep.subr.bf16.mxu0 %v10957
        %11680 = vmatpush1.bf16.msra.mxu0 %v10956
        %11681 = vmatprep.subr.bf16.mxu0 %v10973
        %11682 = vmatpush1.bf16.msra.mxu0 %v10972
        %11683 = vmatprep.subr.bf16.mxu0 %v10989
        %11684 = vmatpush1.bf16.msra.mxu0 %v10988
        %11685 = vmatprep.subr.bf16.mxu0 %v11005
        %11686 = vmatpush1.bf16.msra.mxu0 %v11004
        %11687 = vmatprep.subr.bf16.mxu0 %v11021
        %11688 = vmatpush1.bf16.msra.mxu0 %v11020
        %11689 = vmatprep.subr.bf16.mxu0 %v11037
        %11690 = vmatpush1.bf16.msra.mxu0 %v11036
        %11691 = vmatprep.subr.bf16.mxu0 %v11053
        %11692 = vmatpush1.bf16.msra.mxu0 %v11052
        %11693 = vmatprep.subr.bf16.mxu0 %v11069
        %11694 = vmatpush1.bf16.msra.mxu0 %v11068
        %11695 = vmatprep.subr.bf16.mxu0 %v11085
        %11696 = vmatpush1.bf16.msra.mxu0 %v11084
        %11697 = vmatprep.mubr.bf16.mxu0 %v9039
        %11698 = vmatmul.mubr.bf16.gmra.mrb[0].mxu0 %v9038
        %v11699 = vpop.f32.mrb[0].mxu0
        %v11700 = vadd.f32 %v11647, %v11699
        %v11701 = vpop.f32.mrb[0].mxu0
        %v11702 = vadd.f32 %v11649, %v11701
        %v11703 = vpop.f32.mrb[0].mxu0
        %v11704 = vadd.f32 %v11651, %v11703
        %v11705 = vpop.f32.mrb[0].mxu0
        %v11706 = vadd.f32 %v11653, %v11705
        %11707 = vmatprep.mubr.bf16.mxu0 %v9043
        %11708 = vmatmul.mubr.bf16.gmra.mrb[0].mxu0 %v9042
        %v11709 = vpop.f32.mrb[0].mxu0
        %v11710 = vadd.f32 %v11657, %v11709
        %v11711 = vpop.f32.mrb[0].mxu0
        %v11712 = vadd.f32 %v11659, %v11711
        %v11713 = vpop.f32.mrb[0].mxu0
        %v11714 = vadd.f32 %v11661, %v11713
        %v11715 = vpop.f32.mrb[0].mxu0
        %v11716 = vadd.f32 %v11663, %v11715
        %11717 = vdwg.mxu0
        %11718 = vmatprep.subr.bf16.mxu0 %v10591
        %11719 = vmatpush1.bf16.msra.mxu0 %v10590
        %11720 = vmatprep.subr.bf16.mxu0 %v10607
        %11721 = vmatpush1.bf16.msra.mxu0 %v10606
        %11722 = vmatprep.subr.bf16.mxu0 %v10623
        %11723 = vmatpush1.bf16.msra.mxu0 %v10622
        %11724 = vmatprep.subr.bf16.mxu0 %v10639
        %11725 = vmatpush1.bf16.msra.mxu0 %v10638
        %11726 = vmatprep.subr.bf16.mxu0 %v10655
        %11727 = vmatpush1.bf16.msra.mxu0 %v10654
        %11728 = vmatprep.subr.bf16.mxu0 %v10671
        %11729 = vmatpush1.bf16.msra.mxu0 %v10670
        %11730 = vmatprep.subr.bf16.mxu0 %v10687
        %11731 = vmatpush1.bf16.msra.mxu0 %v10686
        %11732 = vmatprep.subr.bf16.mxu0 %v10703
        %11733 = vmatpush1.bf16.msra.mxu0 %v10702
        %11734 = vmatprep.subr.bf16.mxu0 %v10719
        %11735 = vmatpush1.bf16.msra.mxu0 %v10718
        %11736 = vmatprep.subr.bf16.mxu0 %v10735
        %11737 = vmatpush1.bf16.msra.mxu0 %v10734
        %11738 = vmatprep.subr.bf16.mxu0 %v10751
        %11739 = vmatpush1.bf16.msra.mxu0 %v10750
        %11740 = vmatprep.subr.bf16.mxu0 %v10767
        %11741 = vmatpush1.bf16.msra.mxu0 %v10766
        %11742 = vmatprep.subr.bf16.mxu0 %v10783
        %11743 = vmatpush1.bf16.msra.mxu0 %v10782
        %11744 = vmatprep.subr.bf16.mxu0 %v10799
        %11745 = vmatpush1.bf16.msra.mxu0 %v10798
        %11746 = vmatprep.subr.bf16.mxu0 %v10815
        %11747 = vmatpush1.bf16.msra.mxu0 %v10814
        %11748 = vmatprep.subr.bf16.mxu0 %v10831
        %11749 = vmatpush1.bf16.msra.mxu0 %v10830
        %11750 = vmatprep.mubr.bf16.mxu0 %v9037
        %11751 = vmatmul.mubr.bf16.gmra.mrb[0].mxu0 %v9036
        %v11752 = vpop.f32.mrb[0].mxu0
        %v11753 = vadd.f32 0.0, %v11752
        %v11754 = vpop.f32.mrb[0].mxu0
        %v11755 = vadd.f32 0.0, %v11754
        %v11756 = vpop.f32.mrb[0].mxu0
        %v11757 = vadd.f32 0.0, %v11756
        %v11758 = vpop.f32.mrb[0].mxu0
        %v11759 = vadd.f32 0.0, %v11758
        %11760 = vmatprep.mubr.bf16.mxu0 %v9041
        %11761 = vmatmul.mubr.bf16.gmra.mrb[0].mxu0 %v9040
        %v11762 = vpop.f32.mrb[0].mxu0
        %v11763 = vadd.f32 0.0, %v11762
        %v11764 = vpop.f32.mrb[0].mxu0
        %v11765 = vadd.f32 0.0, %v11764
        %v11766 = vpop.f32.mrb[0].mxu0
        %v11767 = vadd.f32 0.0, %v11766
        %v11768 = vpop.f32.mrb[0].mxu0
        %v11769 = vadd.f32 0.0, %v11768
        %11770 = vdwg.mxu0
        %11771 = vmatprep.subr.bf16.mxu0 %v10847
        %11772 = vmatpush1.bf16.msra.mxu0 %v10846
        %11773 = vmatprep.subr.bf16.mxu0 %v10863
        %11774 = vmatpush1.bf16.msra.mxu0 %v10862
        %11775 = vmatprep.subr.bf16.mxu0 %v10879
        %11776 = vmatpush1.bf16.msra.mxu0 %v10878
        %11777 = vmatprep.subr.bf16.mxu0 %v10895
        %11778 = vmatpush1.bf16.msra.mxu0 %v10894
        %11779 = vmatprep.subr.bf16.mxu0 %v10911
        %11780 = vmatpush1.bf16.msra.mxu0 %v10910
        %11781 = vmatprep.subr.bf16.mxu0 %v10927
        %11782 = vmatpush1.bf16.msra.mxu0 %v10926
        %11783 = vmatprep.subr.bf16.mxu0 %v10943
        %11784 = vmatpush1.bf16.msra.mxu0 %v10942
        %11785 = vmatprep.subr.bf16.mxu0 %v10959
        %11786 = vmatpush1.bf16.msra.mxu0 %v10958
        %11787 = vmatprep.subr.bf16.mxu0 %v10975
        %11788 = vmatpush1.bf16.msra.mxu0 %v10974
        %11789 = vmatprep.subr.bf16.mxu0 %v10991
        %11790 = vmatpush1.bf16.msra.mxu0 %v10990
        %11791 = vmatprep.subr.bf16.mxu0 %v11007
        %11792 = vmatpush1.bf16.msra.mxu0 %v11006
        %11793 = vmatprep.subr.bf16.mxu0 %v11023
        %11794 = vmatpush1.bf16.msra.mxu0 %v11022
        %11795 = vmatprep.subr.bf16.mxu0 %v11039
        %11796 = vmatpush1.bf16.msra.mxu0 %v11038
        %11797 = vmatprep.subr.bf16.mxu0 %v11055
        %11798 = vmatpush1.bf16.msra.mxu0 %v11054
        %11799 = vmatprep.subr.bf16.mxu0 %v11071
        %11800 = vmatpush1.bf16.msra.mxu0 %v11070
        %11801 = vmatprep.subr.bf16.mxu0 %v11087
        %11802 = vmatpush1.bf16.msra.mxu0 %v11086
        %11803 = vmatprep.mubr.bf16.mxu0 %v9039
        %11804 = vmatmul.mubr.bf16.gmra.mrb[0].mxu0 %v9038
        %v11805 = vpop.f32.mrb[0].mxu0
        %v11806 = vadd.f32 %v11753, %v11805
        %v11807 = vpop.f32.mrb[0].mxu0
        %v11808 = vadd.f32 %v11755, %v11807
        %v11809 = vpop.f32.mrb[0].mxu0
        %v11810 = vadd.f32 %v11757, %v11809
        %v11811 = vpop.f32.mrb[0].mxu0
        %v11812 = vadd.f32 %v11759, %v11811
        %11813 = vmatprep.mubr.bf16.mxu0 %v9043
        %11814 = vmatmul.mubr.bf16.gmra.mrb[0].mxu0 %v9042
        %v11815 = vpop.f32.mrb[0].mxu0
        %v11816 = vadd.f32 %v11763, %v11815
        %v11817 = vpop.f32.mrb[0].mxu0
        %v11818 = vadd.f32 %v11765, %v11817
        %v11819 = vpop.f32.mrb[0].mxu0
        %v11820 = vadd.f32 %v11767, %v11819
        %v11821 = vpop.f32.mrb[0].mxu0
        %v11822 = vadd.f32 %v11769, %v11821
        %11823 = vdwg.mxu0
        %11824 = vmatprep.subr.bf16.mxu0 %v10593
        %11825 = vmatpush1.bf16.msra.mxu0 %v10592
        %11826 = vmatprep.subr.bf16.mxu0 %v10609
        %11827 = vmatpush1.bf16.msra.mxu0 %v10608
        %11828 = vmatprep.subr.bf16.mxu0 %v10625
        %11829 = vmatpush1.bf16.msra.mxu0 %v10624
        %11830 = vmatprep.subr.bf16.mxu0 %v10641
        %11831 = vmatpush1.bf16.msra.mxu0 %v10640
        %11832 = vmatprep.subr.bf16.mxu0 %v10657
        %11833 = vmatpush1.bf16.msra.mxu0 %v10656
        %11834 = vmatprep.subr.bf16.mxu0 %v10673
        %11835 = vmatpush1.bf16.msra.mxu0 %v10672
        %11836 = vmatprep.subr.bf16.mxu0 %v10689
        %11837 = vmatpush1.bf16.msra.mxu0 %v10688
        %11838 = vmatprep.subr.bf16.mxu0 %v10705
        %11839 = vmatpush1.bf16.msra.mxu0 %v10704
        %11840 = vmatprep.subr.bf16.mxu0 %v10721
        %11841 = vmatpush1.bf16.msra.mxu0 %v10720
        %11842 = vmatprep.subr.bf16.mxu0 %v10737
        %11843 = vmatpush1.bf16.msra.mxu0 %v10736
        %11844 = vmatprep.subr.bf16.mxu0 %v10753
        %11845 = vmatpush1.bf16.msra.mxu0 %v10752
        %11846 = vmatprep.subr.bf16.mxu0 %v10769
        %11847 = vmatpush1.bf16.msra.mxu0 %v10768
        %11848 = vmatprep.subr.bf16.mxu0 %v10785
        %11849 = vmatpush1.bf16.msra.mxu0 %v10784
        %11850 = vmatprep.subr.bf16.mxu0 %v10801
        %11851 = vmatpush1.bf16.msra.mxu0 %v10800
        %11852 = vmatprep.subr.bf16.mxu0 %v10817
        %11853 = vmatpush1.bf16.msra.mxu0 %v10816
        %11854 = vmatprep.subr.bf16.mxu0 %v10833
        %11855 = vmatpush1.bf16.msra.mxu0 %v10832
        %11856 = vmatprep.mubr.bf16.mxu0 %v9037
        %11857 = vmatmul.mubr.bf16.gmra.mrb[0].mxu0 %v9036
        %v11858 = vpop.f32.mrb[0].mxu0
        %v11859 = vadd.f32 0.0, %v11858
        %v11860 = vpop.f32.mrb[0].mxu0
        %v11861 = vadd.f32 0.0, %v11860
        %v11862 = vpop.f32.mrb[0].mxu0
        %v11863 = vadd.f32 0.0, %v11862
        %v11864 = vpop.f32.mrb[0].mxu0
        %v11865 = vadd.f32 0.0, %v11864
        %11866 = vmatprep.mubr.bf16.mxu0 %v9041
        %11867 = vmatmul.mubr.bf16.gmra.mrb[0].mxu0 %v9040
        %v11868 = vpop.f32.mrb[0].mxu0
        %v11869 = vadd.f32 0.0, %v11868
        %v11870 = vpop.f32.mrb[0].mxu0
        %v11871 = vadd.f32 0.0, %v11870
        %v11872 = vpop.f32.mrb[0].mxu0
        %v11873 = vadd.f32 0.0, %v11872
        %v11874 = vpop.f32.mrb[0].mxu0
        %v11875 = vadd.f32 0.0, %v11874
        %11876 = vdwg.mxu0
        %11877 = vmatprep.subr.bf16.mxu0 %v10849
        %11878 = vmatpush1.bf16.msra.mxu0 %v10848
        %11879 = vmatprep.subr.bf16.mxu0 %v10865
        %11880 = vmatpush1.bf16.msra.mxu0 %v10864
        %11881 = vmatprep.subr.bf16.mxu0 %v10881
        %11882 = vmatpush1.bf16.msra.mxu0 %v10880
        %11883 = vmatprep.subr.bf16.mxu0 %v10897
        %11884 = vmatpush1.bf16.msra.mxu0 %v10896
        %11885 = vmatprep.subr.bf16.mxu0 %v10913
        %11886 = vmatpush1.bf16.msra.mxu0 %v10912
        %11887 = vmatprep.subr.bf16.mxu0 %v10929
        %11888 = vmatpush1.bf16.msra.mxu0 %v10928
        %11889 = vmatprep.subr.bf16.mxu0 %v10945
        %11890 = vmatpush1.bf16.msra.mxu0 %v10944
        %11891 = vmatprep.subr.bf16.mxu0 %v10961
        %11892 = vmatpush1.bf16.msra.mxu0 %v10960
        %11893 = vmatprep.subr.bf16.mxu0 %v10977
        %11894 = vmatpush1.bf16.msra.mxu0 %v10976
        %11895 = vmatprep.subr.bf16.mxu0 %v10993
        %11896 = vmatpush1.bf16.msra.mxu0 %v10992
        %11897 = vmatprep.subr.bf16.mxu0 %v11009
        %11898 = vmatpush1.bf16.msra.mxu0 %v11008
        %11899 = vmatprep.subr.bf16.mxu0 %v11025
        %11900 = vmatpush1.bf16.msra.mxu0 %v11024
        %11901 = vmatprep.subr.bf16.mxu0 %v11041
        %11902 = vmatpush1.bf16.msra.mxu0 %v11040
        %11903 = vmatprep.subr.bf16.mxu0 %v11057
        %11904 = vmatpush1.bf16.msra.mxu0 %v11056
        %11905 = vmatprep.subr.bf16.mxu0 %v11073
        %11906 = vmatpush1.bf16.msra.mxu0 %v11072
        %11907 = vmatprep.subr.bf16.mxu0 %v11089
        %11908 = vmatpush1.bf16.msra.mxu0 %v11088
        %11909 = vmatprep.mubr.bf16.mxu0 %v9039
        %11910 = vmatmul.mubr.bf16.gmra.mrb[0].mxu0 %v9038
        %v11911 = vpop.f32.mrb[0].mxu0
        %v11912 = vadd.f32 %v11859, %v11911
        %v11913 = vpop.f32.mrb[0].mxu0
        %v11914 = vadd.f32 %v11861, %v11913
        %v11915 = vpop.f32.mrb[0].mxu0
        %v11916 = vadd.f32 %v11863, %v11915
        %v11917 = vpop.f32.mrb[0].mxu0
        %v11918 = vadd.f32 %v11865, %v11917
        %11919 = vmatprep.mubr.bf16.mxu0 %v9043
        %11920 = vmatmul.mubr.bf16.gmra.mrb[0].mxu0 %v9042
        %v11921 = vpop.f32.mrb[0].mxu0
        %v11922 = vadd.f32 %v11869, %v11921
        %v11923 = vpop.f32.mrb[0].mxu0
        %v11924 = vadd.f32 %v11871, %v11923
        %v11925 = vpop.f32.mrb[0].mxu0
        %v11926 = vadd.f32 %v11873, %v11925
        %v11927 = vpop.f32.mrb[0].mxu0
        %v11928 = vadd.f32 %v11875, %v11927
        %11929 = vdwg.mxu0
        %11930 = vmatprep.subr.bf16.mxu0 %v10595
        %11931 = vmatpush1.bf16.msra.mxu0 %v10594
        %11932 = vmatprep.subr.bf16.mxu0 %v10611
        %11933 = vmatpush1.bf16.msra.mxu0 %v10610
        %11934 = vmatprep.subr.bf16.mxu0 %v10627
        %11935 = vmatpush1.bf16.msra.mxu0 %v10626
        %11936 = vmatprep.subr.bf16.mxu0 %v10643
        %11937 = vmatpush1.bf16.msra.mxu0 %v10642
        %11938 = vmatprep.subr.bf16.mxu0 %v10659
        %11939 = vmatpush1.bf16.msra.mxu0 %v10658
        %11940 = vmatprep.subr.bf16.mxu0 %v10675
        %11941 = vmatpush1.bf16.msra.mxu0 %v10674
        %11942 = vmatprep.subr.bf16.mxu0 %v10691
        %11943 = vmatpush1.bf16.msra.mxu0 %v10690
        %11944 = vmatprep.subr.bf16.mxu0 %v10707
        %11945 = vmatpush1.bf16.msra.mxu0 %v10706
        %11946 = vmatprep.subr.bf16.mxu0 %v10723
        %11947 = vmatpush1.bf16.msra.mxu0 %v10722
        %11948 = vmatprep.subr.bf16.mxu0 %v10739
        %11949 = vmatpush1.bf16.msra.mxu0 %v10738
        %11950 = vmatprep.subr.bf16.mxu0 %v10755
        %11951 = vmatpush1.bf16.msra.mxu0 %v10754
        %11952 = vmatprep.subr.bf16.mxu0 %v10771
        %11953 = vmatpush1.bf16.msra.mxu0 %v10770
        %11954 = vmatprep.subr.bf16.mxu0 %v10787
        %11955 = vmatpush1.bf16.msra.mxu0 %v10786
        %11956 = vmatprep.subr.bf16.mxu0 %v10803
        %11957 = vmatpush1.bf16.msra.mxu0 %v10802
        %11958 = vmatprep.subr.bf16.mxu0 %v10819
        %11959 = vmatpush1.bf16.msra.mxu0 %v10818
        %11960 = vmatprep.subr.bf16.mxu0 %v10835
        %11961 = vmatpush1.bf16.msra.mxu0 %v10834
        %11962 = vmatprep.mubr.bf16.mxu0 %v9037
        %11963 = vmatmul.mubr.bf16.gmra.mrb[0].mxu0 %v9036
        %v11964 = vpop.f32.mrb[0].mxu0
        %v11965 = vadd.f32 0.0, %v11964
        %v11966 = vpop.f32.mrb[0].mxu0
        %v11967 = vadd.f32 0.0, %v11966
        %v11968 = vpop.f32.mrb[0].mxu0
        %v11969 = vadd.f32 0.0, %v11968
        %v11970 = vpop.f32.mrb[0].mxu0
        %v11971 = vadd.f32 0.0, %v11970
        %11972 = vmatprep.mubr.bf16.mxu0 %v9041
        %11973 = vmatmul.mubr.bf16.gmra.mrb[0].mxu0 %v9040
        %v11974 = vpop.f32.mrb[0].mxu0
        %v11975 = vadd.f32 0.0, %v11974
        %v11976 = vpop.f32.mrb[0].mxu0
        %v11977 = vadd.f32 0.0, %v11976
        %v11978 = vpop.f32.mrb[0].mxu0
        %v11979 = vadd.f32 0.0, %v11978
        %v11980 = vpop.f32.mrb[0].mxu0
        %v11981 = vadd.f32 0.0, %v11980
        %11982 = vdwg.mxu0
        %11983 = vmatprep.subr.bf16.mxu0 %v10851
        %11984 = vmatpush1.bf16.msra.mxu0 %v10850
        %11985 = vmatprep.subr.bf16.mxu0 %v10867
        %11986 = vmatpush1.bf16.msra.mxu0 %v10866
        %11987 = vmatprep.subr.bf16.mxu0 %v10883
        %11988 = vmatpush1.bf16.msra.mxu0 %v10882
        %11989 = vmatprep.subr.bf16.mxu0 %v10899
        %11990 = vmatpush1.bf16.msra.mxu0 %v10898
        %11991 = vmatprep.subr.bf16.mxu0 %v10915
        %11992 = vmatpush1.bf16.msra.mxu0 %v10914
        %11993 = vmatprep.subr.bf16.mxu0 %v10931
        %11994 = vmatpush1.bf16.msra.mxu0 %v10930
        %11995 = vmatprep.subr.bf16.mxu0 %v10947
        %11996 = vmatpush1.bf16.msra.mxu0 %v10946
        %11997 = vmatprep.subr.bf16.mxu0 %v10963
        %11998 = vmatpush1.bf16.msra.mxu0 %v10962
        %11999 = vmatprep.subr.bf16.mxu0 %v10979
        %12000 = vmatpush1.bf16.msra.mxu0 %v10978
        %12001 = vmatprep.subr.bf16.mxu0 %v10995
        %12002 = vmatpush1.bf16.msra.mxu0 %v10994
        %12003 = vmatprep.subr.bf16.mxu0 %v11011
        %12004 = vmatpush1.bf16.msra.mxu0 %v11010
        %12005 = vmatprep.subr.bf16.mxu0 %v11027
        %12006 = vmatpush1.bf16.msra.mxu0 %v11026
        %12007 = vmatprep.subr.bf16.mxu0 %v11043
        %12008 = vmatpush1.bf16.msra.mxu0 %v11042
        %12009 = vmatprep.subr.bf16.mxu0 %v11059
        %12010 = vmatpush1.bf16.msra.mxu0 %v11058
        %12011 = vmatprep.subr.bf16.mxu0 %v11075
        %12012 = vmatpush1.bf16.msra.mxu0 %v11074
        %12013 = vmatprep.subr.bf16.mxu0 %v11091
        %12014 = vmatpush1.bf16.msra.mxu0 %v11090
        %12015 = vmatprep.mubr.bf16.mxu0 %v9039
        %12016 = vmatmul.mubr.bf16.gmra.mrb[0].mxu0 %v9038
        %v12017 = vpop.f32.mrb[0].mxu0
        %v12018 = vadd.f32 %v11965, %v12017
        %v12019 = vpop.f32.mrb[0].mxu0
        %v12020 = vadd.f32 %v11967, %v12019
        %v12021 = vpop.f32.mrb[0].mxu0
        %v12022 = vadd.f32 %v11969, %v12021
        %v12023 = vpop.f32.mrb[0].mxu0
        %v12024 = vadd.f32 %v11971, %v12023
        %12025 = vmatprep.mubr.bf16.mxu0 %v9043
        %12026 = vmatmul.mubr.bf16.gmra.mrb[0].mxu0 %v9042
        %v12027 = vpop.f32.mrb[0].mxu0
        %v12028 = vadd.f32 %v11975, %v12027
        %v12029 = vpop.f32.mrb[0].mxu0
        %v12030 = vadd.f32 %v11977, %v12029
        %v12031 = vpop.f32.mrb[0].mxu0
        %v12032 = vadd.f32 %v11979, %v12031
        %v12033 = vpop.f32.mrb[0].mxu0
        %v12034 = vadd.f32 %v11981, %v12033
        %12035 = vdwg.mxu0
        %12036 = vmatprep.subr.bf16.mxu0 %v10597
        %12037 = vmatpush1.bf16.msra.mxu0 %v10596
        %12038 = vmatprep.subr.bf16.mxu0 %v10613
        %12039 = vmatpush1.bf16.msra.mxu0 %v10612
        %12040 = vmatprep.subr.bf16.mxu0 %v10629
        %12041 = vmatpush1.bf16.msra.mxu0 %v10628
        %12042 = vmatprep.subr.bf16.mxu0 %v10645
        %12043 = vmatpush1.bf16.msra.mxu0 %v10644
        %12044 = vmatprep.subr.bf16.mxu0 %v10661
        %12045 = vmatpush1.bf16.msra.mxu0 %v10660
        %12046 = vmatprep.subr.bf16.mxu0 %v10677
        %12047 = vmatpush1.bf16.msra.mxu0 %v10676
        %12048 = vmatprep.subr.bf16.mxu0 %v10693
        %12049 = vmatpush1.bf16.msra.mxu0 %v10692
        %12050 = vmatprep.subr.bf16.mxu0 %v10709
        %12051 = vmatpush1.bf16.msra.mxu0 %v10708
        %12052 = vmatprep.subr.bf16.mxu0 %v10725
        %12053 = vmatpush1.bf16.msra.mxu0 %v10724
        %12054 = vmatprep.subr.bf16.mxu0 %v10741
        %12055 = vmatpush1.bf16.msra.mxu0 %v10740
        %12056 = vmatprep.subr.bf16.mxu0 %v10757
        %12057 = vmatpush1.bf16.msra.mxu0 %v10756
        %12058 = vmatprep.subr.bf16.mxu0 %v10773
        %12059 = vmatpush1.bf16.msra.mxu0 %v10772
        %12060 = vmatprep.subr.bf16.mxu0 %v10789
        %12061 = vmatpush1.bf16.msra.mxu0 %v10788
        %12062 = vmatprep.subr.bf16.mxu0 %v10805
        %12063 = vmatpush1.bf16.msra.mxu0 %v10804
        %12064 = vmatprep.subr.bf16.mxu0 %v10821
        %12065 = vmatpush1.bf16.msra.mxu0 %v10820
        %12066 = vmatprep.subr.bf16.mxu0 %v10837
        %12067 = vmatpush1.bf16.msra.mxu0 %v10836
        %12068 = vmatprep.mubr.bf16.mxu0 %v9037
        %12069 = vmatmul.mubr.bf16.gmra.mrb[0].mxu0 %v9036
        %v12070 = vpop.f32.mrb[0].mxu0
        %v12071 = vadd.f32 0.0, %v12070
        %v12072 = vpop.f32.mrb[0].mxu0
        %v12073 = vadd.f32 0.0, %v12072
        %v12074 = vpop.f32.mrb[0].mxu0
        %v12075 = vadd.f32 0.0, %v12074
        %v12076 = vpop.f32.mrb[0].mxu0
        %v12077 = vadd.f32 0.0, %v12076
        %12078 = vmatprep.mubr.bf16.mxu0 %v9041
        %12079 = vmatmul.mubr.bf16.gmra.mrb[0].mxu0 %v9040
        %v12080 = vpop.f32.mrb[0].mxu0
        %v12081 = vadd.f32 0.0, %v12080
        %v12082 = vpop.f32.mrb[0].mxu0
        %v12083 = vadd.f32 0.0, %v12082
        %v12084 = vpop.f32.mrb[0].mxu0
        %v12085 = vadd.f32 0.0, %v12084
        %v12086 = vpop.f32.mrb[0].mxu0
        %v12087 = vadd.f32 0.0, %v12086
        %12088 = vdwg.mxu0
        %12089 = vmatprep.subr.bf16.mxu0 %v10853
        %12090 = vmatpush1.bf16.msra.mxu0 %v10852
        %12091 = vmatprep.subr.bf16.mxu0 %v10869
        %12092 = vmatpush1.bf16.msra.mxu0 %v10868
        %12093 = vmatprep.subr.bf16.mxu0 %v10885
        %12094 = vmatpush1.bf16.msra.mxu0 %v10884
        %12095 = vmatprep.subr.bf16.mxu0 %v10901
        %12096 = vmatpush1.bf16.msra.mxu0 %v10900
        %12097 = vmatprep.subr.bf16.mxu0 %v10917
        %12098 = vmatpush1.bf16.msra.mxu0 %v10916
        %12099 = vmatprep.subr.bf16.mxu0 %v10933
        %12100 = vmatpush1.bf16.msra.mxu0 %v10932
        %12101 = vmatprep.subr.bf16.mxu0 %v10949
        %12102 = vmatpush1.bf16.msra.mxu0 %v10948
        %12103 = vmatprep.subr.bf16.mxu0 %v10965
        %12104 = vmatpush1.bf16.msra.mxu0 %v10964
        %12105 = vmatprep.subr.bf16.mxu0 %v10981
        %12106 = vmatpush1.bf16.msra.mxu0 %v10980
        %12107 = vmatprep.subr.bf16.mxu0 %v10997
        %12108 = vmatpush1.bf16.msra.mxu0 %v10996
        %12109 = vmatprep.subr.bf16.mxu0 %v11013
        %12110 = vmatpush1.bf16.msra.mxu0 %v11012
        %12111 = vmatprep.subr.bf16.mxu0 %v11029
        %12112 = vmatpush1.bf16.msra.mxu0 %v11028
        %12113 = vmatprep.subr.bf16.mxu0 %v11045
        %12114 = vmatpush1.bf16.msra.mxu0 %v11044
        %12115 = vmatprep.subr.bf16.mxu0 %v11061
        %12116 = vmatpush1.bf16.msra.mxu0 %v11060
        %12117 = vmatprep.subr.bf16.mxu0 %v11077
        %12118 = vmatpush1.bf16.msra.mxu0 %v11076
        %12119 = vmatprep.subr.bf16.mxu0 %v11093
        %12120 = vmatpush1.bf16.msra.mxu0 %v11092
        %12121 = vmatprep.mubr.bf16.mxu0 %v9039
        %12122 = vmatmul.mubr.bf16.gmra.mrb[0].mxu0 %v9038
        %v12123 = vpop.f32.mrb[0].mxu0
        %v12124 = vadd.f32 %v12071, %v12123
        %v12125 = vpop.f32.mrb[0].mxu0
        %v12126 = vadd.f32 %v12073, %v12125
        %v12127 = vpop.f32.mrb[0].mxu0
        %v12128 = vadd.f32 %v12075, %v12127
        %v12129 = vpop.f32.mrb[0].mxu0
        %v12130 = vadd.f32 %v12077, %v12129
        %12131 = vmatprep.mubr.bf16.mxu0 %v9043
        %12132 = vmatmul.mubr.bf16.gmra.mrb[0].mxu0 %v9042
        %v12133 = vpop.f32.mrb[0].mxu0
        %v12134 = vadd.f32 %v12081, %v12133
        %v12135 = vpop.f32.mrb[0].mxu0
        %v12136 = vadd.f32 %v12083, %v12135
        %v12137 = vpop.f32.mrb[0].mxu0
        %v12138 = vadd.f32 %v12085, %v12137
        %v12139 = vpop.f32.mrb[0].mxu0
        %v12140 = vadd.f32 %v12087, %v12139
        %12141 = vdwg.mxu0
        %12142 = vmatprep.subr.bf16.mxu0 %v10599
        %12143 = vmatpush1.bf16.msra.mxu0 %v10598
        %12144 = vmatprep.subr.bf16.mxu0 %v10615
        %12145 = vmatpush1.bf16.msra.mxu0 %v10614
        %12146 = vmatprep.subr.bf16.mxu0 %v10631
        %12147 = vmatpush1.bf16.msra.mxu0 %v10630
        %12148 = vmatprep.subr.bf16.mxu0 %v10647
        %12149 = vmatpush1.bf16.msra.mxu0 %v10646
        %12150 = vmatprep.subr.bf16.mxu0 %v10663
        %12151 = vmatpush1.bf16.msra.mxu0 %v10662
        %12152 = vmatprep.subr.bf16.mxu0 %v10679
        %12153 = vmatpush1.bf16.msra.mxu0 %v10678
        %12154 = vmatprep.subr.bf16.mxu0 %v10695
        %12155 = vmatpush1.bf16.msra.mxu0 %v10694
        %12156 = vmatprep.subr.bf16.mxu0 %v10711
        %12157 = vmatpush1.bf16.msra.mxu0 %v10710
        %12158 = vmatprep.subr.bf16.mxu0 %v10727
        %12159 = vmatpush1.bf16.msra.mxu0 %v10726
        %12160 = vmatprep.subr.bf16.mxu0 %v10743
        %12161 = vmatpush1.bf16.msra.mxu0 %v10742
        %12162 = vmatprep.subr.bf16.mxu0 %v10759
        %12163 = vmatpush1.bf16.msra.mxu0 %v10758
        %12164 = vmatprep.subr.bf16.mxu0 %v10775
        %12165 = vmatpush1.bf16.msra.mxu0 %v10774
        %12166 = vmatprep.subr.bf16.mxu0 %v10791
        %12167 = vmatpush1.bf16.msra.mxu0 %v10790
        %12168 = vmatprep.subr.bf16.mxu0 %v10807
        %12169 = vmatpush1.bf16.msra.mxu0 %v10806
        %12170 = vmatprep.subr.bf16.mxu0 %v10823
        %12171 = vmatpush1.bf16.msra.mxu0 %v10822
        %12172 = vmatprep.subr.bf16.mxu0 %v10839
        %12173 = vmatpush1.bf16.msra.mxu0 %v10838
        %12174 = vmatprep.mubr.bf16.mxu0 %v9037
        %12175 = vmatmul.mubr.bf16.gmra.mrb[0].mxu0 %v9036
        %v12176 = vpop.f32.mrb[0].mxu0
        %v12177 = vadd.f32 0.0, %v12176
        %v12178 = vpop.f32.mrb[0].mxu0
        %v12179 = vadd.f32 0.0, %v12178
        %v12180 = vpop.f32.mrb[0].mxu0
        %v12181 = vadd.f32 0.0, %v12180
        %v12182 = vpop.f32.mrb[0].mxu0
        %v12183 = vadd.f32 0.0, %v12182
        %12184 = vmatprep.mubr.bf16.mxu0 %v9041
        %12185 = vmatmul.mubr.bf16.gmra.mrb[0].mxu0 %v9040
        %v12186 = vpop.f32.mrb[0].mxu0
        %v12187 = vadd.f32 0.0, %v12186
        %v12188 = vpop.f32.mrb[0].mxu0
        %v12189 = vadd.f32 0.0, %v12188
        %v12190 = vpop.f32.mrb[0].mxu0
        %v12191 = vadd.f32 0.0, %v12190
        %v12192 = vpop.f32.mrb[0].mxu0
        %v12193 = vadd.f32 0.0, %v12192
        %12194 = vdwg.mxu0
        %12195 = vmatprep.subr.bf16.mxu0 %v10855
        %12196 = vmatpush1.bf16.msra.mxu0 %v10854
        %12197 = vmatprep.subr.bf16.mxu0 %v10871
        %12198 = vmatpush1.bf16.msra.mxu0 %v10870
        %12199 = vmatprep.subr.bf16.mxu0 %v10887
        %12200 = vmatpush1.bf16.msra.mxu0 %v10886
        %12201 = vmatprep.subr.bf16.mxu0 %v10903
        %12202 = vmatpush1.bf16.msra.mxu0 %v10902
        %12203 = vmatprep.subr.bf16.mxu0 %v10919
        %12204 = vmatpush1.bf16.msra.mxu0 %v10918
        %12205 = vmatprep.subr.bf16.mxu0 %v10935
        %12206 = vmatpush1.bf16.msra.mxu0 %v10934
        %12207 = vmatprep.subr.bf16.mxu0 %v10951
        %12208 = vmatpush1.bf16.msra.mxu0 %v10950
        %12209 = vmatprep.subr.bf16.mxu0 %v10967
        %12210 = vmatpush1.bf16.msra.mxu0 %v10966
        %12211 = vmatprep.subr.bf16.mxu0 %v10983
        %12212 = vmatpush1.bf16.msra.mxu0 %v10982
        %12213 = vmatprep.subr.bf16.mxu0 %v10999
        %12214 = vmatpush1.bf16.msra.mxu0 %v10998
        %12215 = vmatprep.subr.bf16.mxu0 %v11015
        %12216 = vmatpush1.bf16.msra.mxu0 %v11014
        %12217 = vmatprep.subr.bf16.mxu0 %v11031
        %12218 = vmatpush1.bf16.msra.mxu0 %v11030
        %12219 = vmatprep.subr.bf16.mxu0 %v11047
        %12220 = vmatpush1.bf16.msra.mxu0 %v11046
        %12221 = vmatprep.subr.bf16.mxu0 %v11063
        %12222 = vmatpush1.bf16.msra.mxu0 %v11062
        %12223 = vmatprep.subr.bf16.mxu0 %v11079
        %12224 = vmatpush1.bf16.msra.mxu0 %v11078
        %12225 = vmatprep.subr.bf16.mxu0 %v11095
        %12226 = vmatpush1.bf16.msra.mxu0 %v11094
        %12227 = vmatprep.mubr.bf16.mxu0 %v9039
        %12228 = vmatmul.mubr.bf16.gmra.mrb[0].mxu0 %v9038
        %v12229 = vpop.f32.mrb[0].mxu0
        %v12230 = vadd.f32 %v12177, %v12229
        %v12231 = vpop.f32.mrb[0].mxu0
        %v12232 = vadd.f32 %v12179, %v12231
        %v12233 = vpop.f32.mrb[0].mxu0
        %v12234 = vadd.f32 %v12181, %v12233
        %v12235 = vpop.f32.mrb[0].mxu0
        %v12236 = vadd.f32 %v12183, %v12235
        %12237 = vmatprep.mubr.bf16.mxu0 %v9043
        %12238 = vmatmul.mubr.bf16.gmra.mrb[0].mxu0 %v9042
        %v12239 = vpop.f32.mrb[0].mxu0
        %v12240 = vadd.f32 %v12187, %v12239
        %v12241 = vpop.f32.mrb[0].mxu0
        %v12242 = vadd.f32 %v12189, %v12241
        %v12243 = vpop.f32.mrb[0].mxu0
        %v12244 = vadd.f32 %v12191, %v12243
        %v12245 = vpop.f32.mrb[0].mxu0
        %v12246 = vadd.f32 %v12193, %v12245
        %12247 = vdwg.mxu0
        %12248 = vmatprep.subr.bf16.mxu0 %v10601
        %12249 = vmatpush1.bf16.msra.mxu0 %v10600
        %12250 = vmatprep.subr.bf16.mxu0 %v10617
        %12251 = vmatpush1.bf16.msra.mxu0 %v10616
        %12252 = vmatprep.subr.bf16.mxu0 %v10633
        %12253 = vmatpush1.bf16.msra.mxu0 %v10632
        %12254 = vmatprep.subr.bf16.mxu0 %v10649
        %12255 = vmatpush1.bf16.msra.mxu0 %v10648
        %12256 = vmatprep.subr.bf16.mxu0 %v10665
        %12257 = vmatpush1.bf16.msra.mxu0 %v10664
        %12258 = vmatprep.subr.bf16.mxu0 %v10681
        %12259 = vmatpush1.bf16.msra.mxu0 %v10680
        %12260 = vmatprep.subr.bf16.mxu0 %v10697
        %12261 = vmatpush1.bf16.msra.mxu0 %v10696
        %12262 = vmatprep.subr.bf16.mxu0 %v10713
        %12263 = vmatpush1.bf16.msra.mxu0 %v10712
        %12264 = vmatprep.subr.bf16.mxu0 %v10729
        %12265 = vmatpush1.bf16.msra.mxu0 %v10728
        %12266 = vmatprep.subr.bf16.mxu0 %v10745
        %12267 = vmatpush1.bf16.msra.mxu0 %v10744
        %12268 = vmatprep.subr.bf16.mxu0 %v10761
        %12269 = vmatpush1.bf16.msra.mxu0 %v10760
        %12270 = vmatprep.subr.bf16.mxu0 %v10777
        %12271 = vmatpush1.bf16.msra.mxu0 %v10776
        %12272 = vmatprep.subr.bf16.mxu0 %v10793
        %12273 = vmatpush1.bf16.msra.mxu0 %v10792
        %12274 = vmatprep.subr.bf16.mxu0 %v10809
        %12275 = vmatpush1.bf16.msra.mxu0 %v10808
        %12276 = vmatprep.subr.bf16.mxu0 %v10825
        %12277 = vmatpush1.bf16.msra.mxu0 %v10824
        %12278 = vmatprep.subr.bf16.mxu0 %v10841
        %12279 = vmatpush1.bf16.msra.mxu0 %v10840
        %12280 = vmatprep.mubr.bf16.mxu0 %v9037
        %12281 = vmatmul.mubr.bf16.gmra.mrb[0].mxu0 %v9036
        %v12282 = vpop.f32.mrb[0].mxu0
        %v12283 = vadd.f32 0.0, %v12282
        %v12284 = vpop.f32.mrb[0].mxu0
        %v12285 = vadd.f32 0.0, %v12284
        %v12286 = vpop.f32.mrb[0].mxu0
        %v12287 = vadd.f32 0.0, %v12286
        %v12288 = vpop.f32.mrb[0].mxu0
        %v12289 = vadd.f32 0.0, %v12288
        %12290 = vmatprep.mubr.bf16.mxu0 %v9041
        %12291 = vmatmul.mubr.bf16.gmra.mrb[0].mxu0 %v9040
        %v12292 = vpop.f32.mrb[0].mxu0
        %v12293 = vadd.f32 0.0, %v12292
        %v12294 = vpop.f32.mrb[0].mxu0
        %v12295 = vadd.f32 0.0, %v12294
        %v12296 = vpop.f32.mrb[0].mxu0
        %v12297 = vadd.f32 0.0, %v12296
        %v12298 = vpop.f32.mrb[0].mxu0
        %v12299 = vadd.f32 0.0, %v12298
        %12300 = vdwg.mxu0
        %12301 = vmatprep.subr.bf16.mxu0 %v10857
        %12302 = vmatpush1.bf16.msra.mxu0 %v10856
        %12303 = vmatprep.subr.bf16.mxu0 %v10873
        %12304 = vmatpush1.bf16.msra.mxu0 %v10872
        %12305 = vmatprep.subr.bf16.mxu0 %v10889
        %12306 = vmatpush1.bf16.msra.mxu0 %v10888
        %12307 = vmatprep.subr.bf16.mxu0 %v10905
        %12308 = vmatpush1.bf16.msra.mxu0 %v10904
        %12309 = vmatprep.subr.bf16.mxu0 %v10921
        %12310 = vmatpush1.bf16.msra.mxu0 %v10920
        %12311 = vmatprep.subr.bf16.mxu0 %v10937
        %12312 = vmatpush1.bf16.msra.mxu0 %v10936
        %12313 = vmatprep.subr.bf16.mxu0 %v10953
        %12314 = vmatpush1.bf16.msra.mxu0 %v10952
        %12315 = vmatprep.subr.bf16.mxu0 %v10969
        %12316 = vmatpush1.bf16.msra.mxu0 %v10968
        %12317 = vmatprep.subr.bf16.mxu0 %v10985
        %12318 = vmatpush1.bf16.msra.mxu0 %v10984
        %12319 = vmatprep.subr.bf16.mxu0 %v11001
        %12320 = vmatpush1.bf16.msra.mxu0 %v11000
        %12321 = vmatprep.subr.bf16.mxu0 %v11017
        %12322 = vmatpush1.bf16.msra.mxu0 %v11016
        %12323 = vmatprep.subr.bf16.mxu0 %v11033
        %12324 = vmatpush1.bf16.msra.mxu0 %v11032
        %12325 = vmatprep.subr.bf16.mxu0 %v11049
        %12326 = vmatpush1.bf16.msra.mxu0 %v11048
        %12327 = vmatprep.subr.bf16.mxu0 %v11065
        %12328 = vmatpush1.bf16.msra.mxu0 %v11064
        %12329 = vmatprep.subr.bf16.mxu0 %v11081
        %12330 = vmatpush1.bf16.msra.mxu0 %v11080
        %12331 = vmatprep.subr.bf16.mxu0 %v11097
        %12332 = vmatpush1.bf16.msra.mxu0 %v11096
        %12333 = vmatprep.mubr.bf16.mxu0 %v9039
        %12334 = vmatmul.mubr.bf16.gmra.mrb[0].mxu0 %v9038
        %v12335 = vpop.f32.mrb[0].mxu0
        %v12336 = vadd.f32 %v12283, %v12335
        %v12337 = vpop.f32.mrb[0].mxu0
        %v12338 = vadd.f32 %v12285, %v12337
        %v12339 = vpop.f32.mrb[0].mxu0
        %v12340 = vadd.f32 %v12287, %v12339
        %v12341 = vpop.f32.mrb[0].mxu0
        %v12342 = vadd.f32 %v12289, %v12341
        %12343 = vmatprep.mubr.bf16.mxu0 %v9043
        %12344 = vmatmul.mubr.bf16.gmra.mrb[0].mxu0 %v9042
        %v12345 = vpop.f32.mrb[0].mxu0
        %v12346 = vadd.f32 %v12293, %v12345
        %v12347 = vpop.f32.mrb[0].mxu0
        %v12348 = vadd.f32 %v12295, %v12347
        %v12349 = vpop.f32.mrb[0].mxu0
        %v12350 = vadd.f32 %v12297, %v12349
        %v12351 = vpop.f32.mrb[0].mxu0
        %v12352 = vadd.f32 %v12299, %v12351
        %12353 = vdwg.mxu0
        %12354 = vmatprep.subr.bf16.mxu0 %v10603
        %12355 = vmatpush1.bf16.msra.mxu0 %v10602
        %12356 = vmatprep.subr.bf16.mxu0 %v10619
        %12357 = vmatpush1.bf16.msra.mxu0 %v10618
        %12358 = vmatprep.subr.bf16.mxu0 %v10635
        %12359 = vmatpush1.bf16.msra.mxu0 %v10634
        %12360 = vmatprep.subr.bf16.mxu0 %v10651
        %12361 = vmatpush1.bf16.msra.mxu0 %v10650
        %12362 = vmatprep.subr.bf16.mxu0 %v10667
        %12363 = vmatpush1.bf16.msra.mxu0 %v10666
        %12364 = vmatprep.subr.bf16.mxu0 %v10683
        %12365 = vmatpush1.bf16.msra.mxu0 %v10682
        %12366 = vmatprep.subr.bf16.mxu0 %v10699
        %12367 = vmatpush1.bf16.msra.mxu0 %v10698
        %12368 = vmatprep.subr.bf16.mxu0 %v10715
        %12369 = vmatpush1.bf16.msra.mxu0 %v10714
        %12370 = vmatprep.subr.bf16.mxu0 %v10731
        %12371 = vmatpush1.bf16.msra.mxu0 %v10730
        %12372 = vmatprep.subr.bf16.mxu0 %v10747
        %12373 = vmatpush1.bf16.msra.mxu0 %v10746
        %12374 = vmatprep.subr.bf16.mxu0 %v10763
        %12375 = vmatpush1.bf16.msra.mxu0 %v10762
        %12376 = vmatprep.subr.bf16.mxu0 %v10779
        %12377 = vmatpush1.bf16.msra.mxu0 %v10778
        %12378 = vmatprep.subr.bf16.mxu0 %v10795
        %12379 = vmatpush1.bf16.msra.mxu0 %v10794
        %12380 = vmatprep.subr.bf16.mxu0 %v10811
        %12381 = vmatpush1.bf16.msra.mxu0 %v10810
        %12382 = vmatprep.subr.bf16.mxu0 %v10827
        %12383 = vmatpush1.bf16.msra.mxu0 %v10826
        %12384 = vmatprep.subr.bf16.mxu0 %v10843
        %12385 = vmatpush1.bf16.msra.mxu0 %v10842
        %12386 = vmatprep.mubr.bf16.mxu0 %v9037
        %12387 = vmatmul.mubr.bf16.gmra.mrb[0].mxu0 %v9036
        %v12388 = vpop.f32.mrb[0].mxu0
        %v12389 = vadd.f32 0.0, %v12388
        %v12390 = vpop.f32.mrb[0].mxu0
        %v12391 = vadd.f32 0.0, %v12390
        %v12392 = vpop.f32.mrb[0].mxu0
        %v12393 = vadd.f32 0.0, %v12392
        %v12394 = vpop.f32.mrb[0].mxu0
        %v12395 = vadd.f32 0.0, %v12394
        %12396 = vmatprep.mubr.bf16.mxu0 %v9041
        %12397 = vmatmul.mubr.bf16.gmra.mrb[0].mxu0 %v9040
        %v12398 = vpop.f32.mrb[0].mxu0
        %v12399 = vadd.f32 0.0, %v12398
        %v12400 = vpop.f32.mrb[0].mxu0
        %v12401 = vadd.f32 0.0, %v12400
        %v12402 = vpop.f32.mrb[0].mxu0
        %v12403 = vadd.f32 0.0, %v12402
        %v12404 = vpop.f32.mrb[0].mxu0
        %v12405 = vadd.f32 0.0, %v12404
        %12406 = vdwg.mxu0
        %12407 = vmatprep.subr.bf16.mxu0 %v10859
        %12408 = vmatpush1.bf16.msra.mxu0 %v10858
        %12409 = vmatprep.subr.bf16.mxu0 %v10875
        %12410 = vmatpush1.bf16.msra.mxu0 %v10874
        %12411 = vmatprep.subr.bf16.mxu0 %v10891
        %12412 = vmatpush1.bf16.msra.mxu0 %v10890
        %12413 = vmatprep.subr.bf16.mxu0 %v10907
        %12414 = vmatpush1.bf16.msra.mxu0 %v10906
        %12415 = vmatprep.subr.bf16.mxu0 %v10923
        %12416 = vmatpush1.bf16.msra.mxu0 %v10922
        %12417 = vmatprep.subr.bf16.mxu0 %v10939
        %12418 = vmatpush1.bf16.msra.mxu0 %v10938
        %12419 = vmatprep.subr.bf16.mxu0 %v10955
        %12420 = vmatpush1.bf16.msra.mxu0 %v10954
        %12421 = vmatprep.subr.bf16.mxu0 %v10971
        %12422 = vmatpush1.bf16.msra.mxu0 %v10970
        %12423 = vmatprep.subr.bf16.mxu0 %v10987
        %12424 = vmatpush1.bf16.msra.mxu0 %v10986
        %12425 = vmatprep.subr.bf16.mxu0 %v11003
        %12426 = vmatpush1.bf16.msra.mxu0 %v11002
        %12427 = vmatprep.subr.bf16.mxu0 %v11019
        %12428 = vmatpush1.bf16.msra.mxu0 %v11018
        %12429 = vmatprep.subr.bf16.mxu0 %v11035
        %12430 = vmatpush1.bf16.msra.mxu0 %v11034
        %12431 = vmatprep.subr.bf16.mxu0 %v11051
        %12432 = vmatpush1.bf16.msra.mxu0 %v11050
        %12433 = vmatprep.subr.bf16.mxu0 %v11067
        %12434 = vmatpush1.bf16.msra.mxu0 %v11066
        %12435 = vmatprep.subr.bf16.mxu0 %v11083
        %12436 = vmatpush1.bf16.msra.mxu0 %v11082
        %12437 = vmatprep.subr.bf16.mxu0 %v11099
        %12438 = vmatpush1.bf16.msra.mxu0 %v11098
        %12439 = vmatprep.mubr.bf16.mxu0 %v9039
        %12440 = vmatmul.mubr.bf16.gmra.mrb[0].mxu0 %v9038
        %v12441 = vpop.f32.mrb[0].mxu0
        %v12442 = vadd.f32 %v12389, %v12441
        %v12443 = vpop.f32.mrb[0].mxu0
        %v12444 = vadd.f32 %v12391, %v12443
        %v12445 = vpop.f32.mrb[0].mxu0
        %v12446 = vadd.f32 %v12393, %v12445
        %v12447 = vpop.f32.mrb[0].mxu0
        %v12448 = vadd.f32 %v12395, %v12447
        %12449 = vmatprep.mubr.bf16.mxu0 %v9043
        %12450 = vmatmul.mubr.bf16.gmra.mrb[0].mxu0 %v9042
        %v12451 = vpop.f32.mrb[0].mxu0
        %v12452 = vadd.f32 %v12399, %v12451
        %v12453 = vpop.f32.mrb[0].mxu0
        %v12454 = vadd.f32 %v12401, %v12453
        %v12455 = vpop.f32.mrb[0].mxu0
        %v12456 = vadd.f32 %v12403, %v12455
        %v12457 = vpop.f32.mrb[0].mxu0
        %v12458 = vadd.f32 %v12405, %v12457
        %12459 = vdwg.mxu0
        %v12460 = vadd.f32 %v8396, %v11700
        %v12461 = vadd.f32 %v8397, %v11702
        %v12462 = vadd.f32 %v8398, %v11806
        %v12463 = vadd.f32 %v8399, %v11808
        %v12464 = vadd.f32 %v8400, %v11912
        %v12465 = vadd.f32 %v8401, %v11914
        %v12466 = vadd.f32 %v8402, %v12018
        %v12467 = vadd.f32 %v8403, %v12020
        %v12468 = vadd.f32 %v8404, %v12124
        %v12469 = vadd.f32 %v8405, %v12126
        %v12470 = vadd.f32 %v8406, %v12230
        %v12471 = vadd.f32 %v8407, %v12232
        %v12472 = vadd.f32 %v8408, %v12336
        %v12473 = vadd.f32 %v8409, %v12338
        %v12474 = vadd.f32 %v8410, %v12442
        %v12475 = vadd.f32 %v8411, %v12444
        %v12476 = vadd.f32 %v8412, %v11704
        %v12477 = vadd.f32 %v8413, %v11706
        %v12478 = vadd.f32 %v8414, %v11810
        %v12479 = vadd.f32 %v8415, %v11812
        %v12480 = vadd.f32 %v8416, %v11916
        %v12481 = vadd.f32 %v8417, %v11918
        %v12482 = vadd.f32 %v8418, %v12022
        %v12483 = vadd.f32 %v8419, %v12024
        %v12484 = vadd.f32 %v8420, %v12128
        %v12485 = vadd.f32 %v8421, %v12130
        %v12486 = vadd.f32 %v8422, %v12234
        %v12487 = vadd.f32 %v8423, %v12236
        %v12488 = vadd.f32 %v8424, %v12340
        %v12489 = vadd.f32 %v8425, %v12342
        %v12490 = vadd.f32 %v8426, %v12446
        %v12491 = vadd.f32 %v8427, %v12448
        %v12492 = vadd.f32 %v8428, %v11710
        %v12493 = vadd.f32 %v8429, %v11712
        %v12494 = vadd.f32 %v8430, %v11816
        %v12495 = vadd.f32 %v8431, %v11818
        %v12496 = vadd.f32 %v8432, %v11922
        %v12497 = vadd.f32 %v8433, %v11924
        %v12498 = vadd.f32 %v8434, %v12028
        %v12499 = vadd.f32 %v8435, %v12030
        %v12500 = vadd.f32 %v8436, %v12134
        %v12501 = vadd.f32 %v8437, %v12136
        %v12502 = vadd.f32 %v8438, %v12240
        %v12503 = vadd.f32 %v8439, %v12242
        %v12504 = vadd.f32 %v8440, %v12346
        %v12505 = vadd.f32 %v8441, %v12348
        %v12506 = vadd.f32 %v8442, %v12452
        %v12507 = vadd.f32 %v8443, %v12454
        %v12508 = vadd.f32 %v8444, %v11714
        %v12509 = vadd.f32 %v8445, %v11716
        %v12510 = vadd.f32 %v8446, %v11820
        %v12511 = vadd.f32 %v8447, %v11822
        %v12512 = vadd.f32 %v8448, %v11926
        %v12513 = vadd.f32 %v8449, %v11928
        %v12514 = vadd.f32 %v8450, %v12032
        %v12515 = vadd.f32 %v8451, %v12034
        %v12516 = vadd.f32 %v8452, %v12138
        %v12517 = vadd.f32 %v8453, %v12140
        %v12518 = vadd.f32 %v8454, %v12244
        %v12519 = vadd.f32 %v8455, %v12246
        %v12520 = vadd.f32 %v8456, %v12350
        %v12521 = vadd.f32 %v8457, %v12352
        %v12522 = vadd.f32 %v8458, %v12456
        %v12523 = vadd.f32 %v8459, %v12458
        %v12524 = vmul.f32 %v12460, 0.5
        %v12525 = vmul.f32 %v12461, 0.5
        %v12526 = vmul.f32 %v12462, 0.5
        %v12527 = vmul.f32 %v12463, 0.5
        %v12528 = vmul.f32 %v12464, 0.5
        %v12529 = vmul.f32 %v12465, 0.5
        %v12530 = vmul.f32 %v12466, 0.5
        %v12531 = vmul.f32 %v12467, 0.5
        %v12532 = vmul.f32 %v12468, 0.5
        %v12533 = vmul.f32 %v12469, 0.5
        %v12534 = vmul.f32 %v12470, 0.5
        %v12535 = vmul.f32 %v12471, 0.5
        %v12536 = vmul.f32 %v12476, 0.5
        %v12537 = vmul.f32 %v12477, 0.5
        %v12538 = vmul.f32 %v12478, 0.5
        %v12539 = vmul.f32 %v12479, 0.5
        %v12540 = vmul.f32 %v12480, 0.5
        %v12541 = vmul.f32 %v12481, 0.5
        %v12542 = vmul.f32 %v12482, 0.5
        %v12543 = vmul.f32 %v12483, 0.5
        %v12544 = vmul.f32 %v12484, 0.5
        %v12545 = vmul.f32 %v12485, 0.5
        %v12546 = vmul.f32 %v12486, 0.5
        %v12547 = vmul.f32 %v12487, 0.5
        %v12548 = vmul.f32 %v12492, 0.5
        %v12549 = vmul.f32 %v12493, 0.5
        %v12550 = vmul.f32 %v12494, 0.5
        %v12551 = vmul.f32 %v12495, 0.5
        %v12552 = vmul.f32 %v12496, 0.5
        %v12553 = vmul.f32 %v12497, 0.5
        %v12554 = vmul.f32 %v12498, 0.5
        %v12555 = vmul.f32 %v12499, 0.5
        %v12556 = vmul.f32 %v12500, 0.5
        %v12557 = vmul.f32 %v12501, 0.5
        %v12558 = vmul.f32 %v12502, 0.5
        %v12559 = vmul.f32 %v12503, 0.5
        %v12560 = vmul.f32 %v12508, 0.5
        %v12561 = vmul.f32 %v12509, 0.5
        %v12562 = vmul.f32 %v12510, 0.5
        %v12563 = vmul.f32 %v12511, 0.5
        %v12564 = vmul.f32 %v12512, 0.5
        %v12565 = vmul.f32 %v12513, 0.5
        %v12566 = vmul.f32 %v12514, 0.5
        %v12567 = vmul.f32 %v12515, 0.5
        %v12568 = vmul.f32 %v12516, 0.5
        %v12569 = vmul.f32 %v12517, 0.5
        %v12570 = vmul.f32 %v12518, 0.5
        %v12571 = vmul.f32 %v12519, 0.5
        %v12572 = vtanh.pop %v12524
        %v12573 = vtanh.pop %v12525
        %v12574 = vtanh.pop %v12526
        %v12575 = vtanh.pop %v12527
        %v12576 = vtanh.pop %v12528
        %v12577 = vtanh.pop %v12529
        %v12578 = vtanh.pop %v12530
        %v12579 = vtanh.pop %v12531
        %v12580 = vtanh.pop %v12532
        %v12581 = vtanh.pop %v12533
        %v12582 = vtanh.pop %v12534
        %v12583 = vtanh.pop %v12535
        %v12584 = vtanh.pop %v12536
        %v12585 = vtanh.pop %v12537
        %v12586 = vtanh.pop %v12538
        %v12587 = vtanh.pop %v12539
        %v12588 = vtanh.pop %v12540
        %v12589 = vtanh.pop %v12541
        %v12590 = vtanh.pop %v12542
        %v12591 = vtanh.pop %v12543
        %v12592 = vtanh.pop %v12544
        %v12593 = vtanh.pop %v12545
        %v12594 = vtanh.pop %v12546
        %v12595 = vtanh.pop %v12547
        %v12596 = vtanh.pop %v12548
        %v12597 = vtanh.pop %v12549
        %v12598 = vtanh.pop %v12550
        %v12599 = vtanh.pop %v12551
        %v12600 = vtanh.pop %v12552
        %v12601 = vtanh.pop %v12553
        %v12602 = vtanh.pop %v12554
        %v12603 = vtanh.pop %v12555
        %v12604 = vtanh.pop %v12556
        %v12605 = vtanh.pop %v12557
        %v12606 = vtanh.pop %v12558
        %v12607 = vtanh.pop %v12559
        %v12608 = vtanh.pop %v12560
        %v12609 = vtanh.pop %v12561
        %v12610 = vtanh.pop %v12562
        %v12611 = vtanh.pop %v12563
        %v12612 = vtanh.pop %v12564
        %v12613 = vtanh.pop %v12565
        %v12614 = vtanh.pop %v12566
        %v12615 = vtanh.pop %v12567
        %v12616 = vtanh.pop %v12568
        %v12617 = vtanh.pop %v12569
        %v12618 = vtanh.pop %v12570
        %v12619 = vtanh.pop %v12571
        %v12620 = vmul.f32 %v12572, 0.5
        %v12621 = vmul.f32 %v12573, 0.5
        %v12622 = vmul.f32 %v12574, 0.5
        %v12623 = vmul.f32 %v12575, 0.5
        %v12624 = vmul.f32 %v12576, 0.5
        %v12625 = vmul.f32 %v12577, 0.5
        %v12626 = vmul.f32 %v12578, 0.5
        %v12627 = vmul.f32 %v12579, 0.5
        %v12628 = vmul.f32 %v12580, 0.5
        %v12629 = vmul.f32 %v12581, 0.5
        %v12630 = vmul.f32 %v12582, 0.5
        %v12631 = vmul.f32 %v12583, 0.5
        %v12632 = vmul.f32 %v12584, 0.5
        %v12633 = vmul.f32 %v12585, 0.5
        %v12634 = vmul.f32 %v12586, 0.5
        %v12635 = vmul.f32 %v12587, 0.5
        %v12636 = vmul.f32 %v12588, 0.5
        %v12637 = vmul.f32 %v12589, 0.5
        %v12638 = vmul.f32 %v12590, 0.5
        %v12639 = vmul.f32 %v12591, 0.5
        %v12640 = vmul.f32 %v12592, 0.5
        %v12641 = vmul.f32 %v12593, 0.5
        %v12642 = vmul.f32 %v12594, 0.5
        %v12643 = vmul.f32 %v12595, 0.5
        %v12644 = vmul.f32 %v12596, 0.5
        %v12645 = vmul.f32 %v12597, 0.5
        %v12646 = vmul.f32 %v12598, 0.5
        %v12647 = vmul.f32 %v12599, 0.5
        %v12648 = vmul.f32 %v12600, 0.5
        %v12649 = vmul.f32 %v12601, 0.5
        %v12650 = vmul.f32 %v12602, 0.5
        %v12651 = vmul.f32 %v12603, 0.5
        %v12652 = vmul.f32 %v12604, 0.5
        %v12653 = vmul.f32 %v12605, 0.5
        %v12654 = vmul.f32 %v12606, 0.5
        %v12655 = vmul.f32 %v12607, 0.5
        %v12656 = vmul.f32 %v12608, 0.5
        %v12657 = vmul.f32 %v12609, 0.5
        %v12658 = vmul.f32 %v12610, 0.5
        %v12659 = vmul.f32 %v12611, 0.5
        %v12660 = vmul.f32 %v12612, 0.5
        %v12661 = vmul.f32 %v12613, 0.5
        %v12662 = vmul.f32 %v12614, 0.5
        %v12663 = vmul.f32 %v12615, 0.5
        %v12664 = vmul.f32 %v12616, 0.5
        %v12665 = vmul.f32 %v12617, 0.5
        %v12666 = vmul.f32 %v12618, 0.5
        %v12667 = vmul.f32 %v12619, 0.5
        %v12668 = vadd.f32 %v12620, 0.5
        %v12669 = vadd.f32 %v12621, 0.5
        %v12670 = vadd.f32 %v12622, 0.5
        %v12671 = vadd.f32 %v12623, 0.5
        %v12672 = vadd.f32 %v12624, 0.5
        %v12673 = vadd.f32 %v12625, 0.5
        %v12674 = vadd.f32 %v12626, 0.5
        %v12675 = vadd.f32 %v12627, 0.5
        %v12676 = vadd.f32 %v12628, 0.5
        %v12677 = vadd.f32 %v12629, 0.5
        %v12678 = vadd.f32 %v12630, 0.5
        %v12679 = vadd.f32 %v12631, 0.5
        %v12680 = vadd.f32 %v12632, 0.5
        %v12681 = vadd.f32 %v12633, 0.5
        %v12682 = vadd.f32 %v12634, 0.5
        %v12683 = vadd.f32 %v12635, 0.5
        %v12684 = vadd.f32 %v12636, 0.5
        %v12685 = vadd.f32 %v12637, 0.5
        %v12686 = vadd.f32 %v12638, 0.5
        %v12687 = vadd.f32 %v12639, 0.5
        %v12688 = vadd.f32 %v12640, 0.5
        %v12689 = vadd.f32 %v12641, 0.5
        %v12690 = vadd.f32 %v12642, 0.5
        %v12691 = vadd.f32 %v12643, 0.5
        %v12692 = vadd.f32 %v12644, 0.5
        %v12693 = vadd.f32 %v12645, 0.5
        %v12694 = vadd.f32 %v12646, 0.5
        %v12695 = vadd.f32 %v12647, 0.5
        %v12696 = vadd.f32 %v12648, 0.5
        %v12697 = vadd.f32 %v12649, 0.5
        %v12698 = vadd.f32 %v12650, 0.5
        %v12699 = vadd.f32 %v12651, 0.5
        %v12700 = vadd.f32 %v12652, 0.5
        %v12701 = vadd.f32 %v12653, 0.5
        %v12702 = vadd.f32 %v12654, 0.5
        %v12703 = vadd.f32 %v12655, 0.5
        %v12704 = vadd.f32 %v12656, 0.5
        %v12705 = vadd.f32 %v12657, 0.5
        %v12706 = vadd.f32 %v12658, 0.5
        %v12707 = vadd.f32 %v12659, 0.5
        %v12708 = vadd.f32 %v12660, 0.5
        %v12709 = vadd.f32 %v12661, 0.5
        %v12710 = vadd.f32 %v12662, 0.5
        %v12711 = vadd.f32 %v12663, 0.5
        %v12712 = vadd.f32 %v12664, 0.5
        %v12713 = vadd.f32 %v12665, 0.5
        %v12714 = vadd.f32 %v12666, 0.5
        %v12715 = vadd.f32 %v12667, 0.5
        %v12716 = vtanh.pop %v12472
        %v12717 = vtanh.pop %v12473
        %v12718 = vtanh.pop %v12474
        %v12719 = vtanh.pop %v12475
        %v12720 = vtanh.pop %v12488
        %v12721 = vtanh.pop %v12489
        %v12722 = vtanh.pop %v12490
        %v12723 = vtanh.pop %v12491
        %v12724 = vtanh.pop %v12504
        %v12725 = vtanh.pop %v12505
        %v12726 = vtanh.pop %v12506
        %v12727 = vtanh.pop %v12507
        %v12728 = vtanh.pop %v12520
        %v12729 = vtanh.pop %v12521
        %v12730 = vtanh.pop %v12522
        %v12731 = vtanh.pop %v12523
        %v12732 = vld [vmem:[#allocation9] sm:$0xff]
        %v12733 = vld [vmem:[#allocation9 + $0x8] sm:$0xff]
        %v12734 = vld [vmem:[#allocation9 + $0x10] sm:$0xff]
        %v12735 = vld [vmem:[#allocation9 + $0x18] sm:$0xff]
        %v12736 = vld [vmem:[#allocation9 + $0x20] sm:$0xff]
        %v12737 = vld [vmem:[#allocation9 + $0x28] sm:$0xff]
        %v12738 = vld [vmem:[#allocation9 + $0x30] sm:$0xff]
        %v12739 = vld [vmem:[#allocation9 + $0x38] sm:$0xff]
        %v12740 = vld [vmem:[#allocation9 + $0x40] sm:$0xff]
        %v12741 = vld [vmem:[#allocation9 + $0x48] sm:$0xff]
        %v12742 = vld [vmem:[#allocation9 + $0x50] sm:$0xff]
        %v12743 = vld [vmem:[#allocation9 + $0x58] sm:$0xff]
        %v12744 = vld [vmem:[#allocation9 + $0x60] sm:$0xff]
        %v12745 = vld [vmem:[#allocation9 + $0x68] sm:$0xff]
        %v12746 = vld [vmem:[#allocation9 + $0x70] sm:$0xff]
        %v12747 = vld [vmem:[#allocation9 + $0x78] sm:$0xff]
        %v12748 = vmul.f32 %v12672, %v12732
        %v12749 = vmul.f32 %v12673, %v12733
        %v12750 = vmul.f32 %v12674, %v12734
        %v12751 = vmul.f32 %v12675, %v12735
        %v12752 = vmul.f32 %v12684, %v12736
        %v12753 = vmul.f32 %v12685, %v12737
        %v12754 = vmul.f32 %v12686, %v12738
        %v12755 = vmul.f32 %v12687, %v12739
        %v12756 = vmul.f32 %v12696, %v12740
        %v12757 = vmul.f32 %v12697, %v12741
        %v12758 = vmul.f32 %v12698, %v12742
        %v12759 = vmul.f32 %v12699, %v12743
        %v12760 = vmul.f32 %v12708, %v12744
        %v12761 = vmul.f32 %v12709, %v12745
        %v12762 = vmul.f32 %v12710, %v12746
        %v12763 = vmul.f32 %v12711, %v12747
        %v12764 = vmul.f32 %v12668, %v12716
        %v12765 = vmul.f32 %v12669, %v12717
        %v12766 = vmul.f32 %v12670, %v12718
        %v12767 = vmul.f32 %v12671, %v12719
        %v12768 = vmul.f32 %v12680, %v12720
        %v12769 = vmul.f32 %v12681, %v12721
        %v12770 = vmul.f32 %v12682, %v12722
        %v12771 = vmul.f32 %v12683, %v12723
        %v12772 = vmul.f32 %v12692, %v12724
        %v12773 = vmul.f32 %v12693, %v12725
        %v12774 = vmul.f32 %v12694, %v12726
        %v12775 = vmul.f32 %v12695, %v12727
        %v12776 = vmul.f32 %v12704, %v12728
        %v12777 = vmul.f32 %v12705, %v12729
        %v12778 = vmul.f32 %v12706, %v12730
        %v12779 = vmul.f32 %v12707, %v12731
        %v12780 = vadd.f32 %v12748, %v12764
        %v12781 = vadd.f32 %v12749, %v12765
        %v12782 = vadd.f32 %v12750, %v12766
        %v12783 = vadd.f32 %v12751, %v12767
        %v12784 = vadd.f32 %v12752, %v12768
        %v12785 = vadd.f32 %v12753, %v12769
        %v12786 = vadd.f32 %v12754, %v12770
        %v12787 = vadd.f32 %v12755, %v12771
        %v12788 = vadd.f32 %v12756, %v12772
        %v12789 = vadd.f32 %v12757, %v12773
        %v12790 = vadd.f32 %v12758, %v12774
        %v12791 = vadd.f32 %v12759, %v12775
        %v12792 = vadd.f32 %v12760, %v12776
        %v12793 = vadd.f32 %v12761, %v12777
        %v12794 = vadd.f32 %v12762, %v12778
        %v12795 = vadd.f32 %v12763, %v12779
        %v12796 = vtanh.pop %v12780
        %v12797 = vtanh.pop %v12781
        %v12798 = vtanh.pop %v12782
        %v12799 = vtanh.pop %v12783
        %v12800 = vtanh.pop %v12784
        %v12801 = vtanh.pop %v12785
        %v12802 = vtanh.pop %v12786
        %v12803 = vtanh.pop %v12787
        %v12804 = vtanh.pop %v12788
        %v12805 = vtanh.pop %v12789
        %v12806 = vtanh.pop %v12790
        %v12807 = vtanh.pop %v12791
        %v12808 = vtanh.pop %v12792
        %v12809 = vtanh.pop %v12793
        %v12810 = vtanh.pop %v12794
        %v12811 = vtanh.pop %v12795
        %v12812 = vmul.f32 %v12676, %v12796
        %v12813 = vmul.f32 %v12677, %v12797
        %v12814 = vmul.f32 %v12678, %v12798
        %v12815 = vmul.f32 %v12679, %v12799
        %v12816 = vmul.f32 %v12688, %v12800
        %v12817 = vmul.f32 %v12689, %v12801
        %v12818 = vmul.f32 %v12690, %v12802
        %v12819 = vmul.f32 %v12691, %v12803
        %v12820 = vmul.f32 %v12700, %v12804
        %v12821 = vmul.f32 %v12701, %v12805
        %v12822 = vmul.f32 %v12702, %v12806
        %v12823 = vmul.f32 %v12703, %v12807
        %v12824 = vmul.f32 %v12712, %v12808
        %v12825 = vmul.f32 %v12713, %v12809
        %v12826 = vmul.f32 %v12714, %v12810
        %v12827 = vmul.f32 %v12715, %v12811
        %12828 = vst [vmem:[#allocation9] sm:$0xff] %v12780
        %12829 = vst [vmem:[#allocation9 + $0x8] sm:$0xff] %v12781
        %12830 = vst [vmem:[#allocation9 + $0x10] sm:$0xff] %v12782
        %12831 = vst [vmem:[#allocation9 + $0x18] sm:$0xff] %v12783
        %12832 = vst [vmem:[#allocation9 + $0x20] sm:$0xff] %v12784
        %12833 = vst [vmem:[#allocation9 + $0x28] sm:$0xff] %v12785
        %12834 = vst [vmem:[#allocation9 + $0x30] sm:$0xff] %v12786
        %12835 = vst [vmem:[#allocation9 + $0x38] sm:$0xff] %v12787
        %12836 = vst [vmem:[#allocation9 + $0x40] sm:$0xff] %v12788
        %12837 = vst [vmem:[#allocation9 + $0x48] sm:$0xff] %v12789
        %12838 = vst [vmem:[#allocation9 + $0x50] sm:$0xff] %v12790
        %12839 = vst [vmem:[#allocation9 + $0x58] sm:$0xff] %v12791
        %12840 = vst [vmem:[#allocation9 + $0x60] sm:$0xff] %v12792
        %12841 = vst [vmem:[#allocation9 + $0x68] sm:$0xff] %v12793
        %12842 = vst [vmem:[#allocation9 + $0x70] sm:$0xff] %v12794
        %12843 = vst [vmem:[#allocation9 + $0x78] sm:$0xff] %v12795
        %v12844 = vpack.c.bf16 %v12816, %v12812
        %v12845 = vpack.c.bf16 %v12817, %v12813
        %v12846 = vpack.c.bf16 %v12818, %v12814
        %v12847 = vpack.c.bf16 %v12819, %v12815
        %v12848 = vpack.c.bf16 %v12824, %v12820
        %v12849 = vpack.c.bf16 %v12825, %v12821
        %v12850 = vpack.c.bf16 %v12826, %v12822
        %v12851 = vpack.c.bf16 %v12827, %v12823
        %v12860 = vunpack.c.l.b16 %v12844
        %v12861 = vunpack.c.l.b16 %v12845
        %v12862 = vunpack.c.l.b16 %v12846
        %v12863 = vunpack.c.l.b16 %v12847
        %v12864 = vunpack.c.h.b16 %v12844
        %v12865 = vunpack.c.h.b16 %v12845
        %v12866 = vunpack.c.h.b16 %v12846
        %v12867 = vunpack.c.h.b16 %v12847
        %v12868 = vunpack.c.l.b16 %v12848
        %v12869 = vunpack.c.l.b16 %v12849
        %v12870 = vunpack.c.l.b16 %v12850
        %v12871 = vunpack.c.l.b16 %v12851
        %v12872 = vunpack.c.h.b16 %v12848
        %v12873 = vunpack.c.h.b16 %v12849
        %v12874 = vunpack.c.h.b16 %v12850
        %v12875 = vunpack.c.h.b16 %v12851
        %v12876 = vpack.c.b16 %v12861, %v12860
        %v12877 = vpack.c.b16 %v12863, %v12862
        %v12878 = vpack.c.b16 %v12865, %v12864
        %v12879 = vpack.c.b16 %v12867, %v12866
        %v12880 = vpack.c.b16 %v12869, %v12868
        %v12881 = vpack.c.b16 %v12871, %v12870
        %v12882 = vpack.c.b16 %v12873, %v12872
        %v12883 = vpack.c.b16 %v12875, %v12874
        %vm12884 = vsmask.f32 256
        %vm12885 = vsmask.f32 4368
        %vm12886 = vmor %vm12884, %vm12885
        %v12888 = vshrl.u32 %v12876, 16
        %v12890 = vrot.slane %v12888, 7
        %v12891 = vshll.u32 %v12876, 16
        %v12893 = vor.u32 %v12890, %v12891
        %v12895 = vshrl.u32 %v12877, 16
        %v12897 = vrot.slane %v12895, 7
        %v12898 = vshll.u32 %v12877, 16
        %v12900 = vor.u32 %v12897, %v12898
        %v12901 = vrot.slane %v12890, 4
        %v12903 = vshrl.u32 %v12878, 16
        %v12905 = vrot.slane %v12903, 7
        %v12906 = vshll.u32 %v12878, 16
        %v12908 = vor.u32 %v12905, %v12906
        %v12909 = vsel %vm12886, %v12901, %v12908
        %v12910 = vrot.slane %v12897, 4
        %v12912 = vshrl.u32 %v12879, 16
        %v12914 = vrot.slane %v12912, 7
        %v12915 = vshll.u32 %v12879, 16
        %v12917 = vor.u32 %v12914, %v12915
        %v12918 = vsel %vm12886, %v12910, %v12917
        %v12919 = vrot.slane %v12905, 4
        %v12920 = vrot.slane %v12914, 4
        %v12922 = vshrl.u32 %v12880, 16
        %v12924 = vrot.slane %v12922, 7
        %v12925 = vshll.u32 %v12880, 16
        %v12927 = vor.u32 %v12924, %v12925
        %v12929 = vshrl.u32 %v12881, 16
        %v12931 = vrot.slane %v12929, 7
        %v12932 = vshll.u32 %v12881, 16
        %v12934 = vor.u32 %v12931, %v12932
        %v12935 = vrot.slane %v12924, 4
        %v12937 = vshrl.u32 %v12882, 16
        %v12939 = vrot.slane %v12937, 7
        %v12940 = vshll.u32 %v12882, 16
        %v12942 = vor.u32 %v12939, %v12940
        %v12943 = vsel %vm12886, %v12935, %v12942
        %v12944 = vrot.slane %v12931, 4
        %v12946 = vshrl.u32 %v12883, 16
        %v12948 = vrot.slane %v12946, 7
        %v12949 = vshll.u32 %v12883, 16
        %v12951 = vor.u32 %v12948, %v12949
        %v12952 = vsel %vm12886, %v12944, %v12951
        %v12953 = vrot.slane %v12939, 4
        %v12954 = vrot.slane %v12948, 4
        %vm12967 = vcmask 1043456
        %vm12968 = vsmask.f32 7938
        %vm12969 = vmand %vm12967, %vm12968
        %vm12970 = vcmask 1047556
        %vm12971 = vsmask.f32 7954
        %vm12972 = vmand %vm12970, %vm12971
        %vm12973 = vmor %vm12972, %vm12969
        %v12974 = vld [vmem:[#allocation2] sm:$0xff]
        %v12975 = vsel %vm12973, %v12893, %v12974
        %12976 = vst [vmem:[#allocation2] sm:$0xff] %v12975
        %v12977 = vld [vmem:[#allocation2 + $0x8] sm:$0xff]
        %v12978 = vsel %vm12973, %v12900, %v12977
        %12979 = vst [vmem:[#allocation2 + $0x8] sm:$0xff] %v12978
        %12980 = vst [vmem:[#allocation2 + $0x10] sm:$0xff] %v12909
        %12981 = vst [vmem:[#allocation2 + $0x18] sm:$0xff] %v12918
        %vm12982 = vcmask 1040384
        %vm12983 = vmand %vm12982, %vm12884
        %vm12984 = vcmask 1044484
        %vm12985 = vsmask.f32 4352
        %vm12986 = vmand %vm12984, %vm12985
        %vm12987 = vmor %vm12986, %vm12983
        %v12988 = vld [vmem:[#allocation2 + $0x20] sm:$0x11]
        %v12989 = vsel %vm12987, %v12919, %v12988
        %12990 = vst [vmem:[#allocation2 + $0x20] sm:$0x11] %v12989
        %v12991 = vld [vmem:[#allocation2 + $0x28] sm:$0x11]
        %v12992 = vsel %vm12987, %v12920, %v12991
        %12993 = vst [vmem:[#allocation2 + $0x28] sm:$0x11] %v12992
        %v12994 = vld [vmem:[#allocation2 + $0x30] sm:$0xff]
        %v12995 = vsel %vm12973, %v12927, %v12994
        %12996 = vst [vmem:[#allocation2 + $0x30] sm:$0xff] %v12995
        %v12997 = vld [vmem:[#allocation2 + $0x38] sm:$0xff]
        %v12998 = vsel %vm12973, %v12934, %v12997
        %12999 = vst [vmem:[#allocation2 + $0x38] sm:$0xff] %v12998
        %13000 = vst [vmem:[#allocation2 + $0x40] sm:$0xff] %v12943
        %13001 = vst [vmem:[#allocation2 + $0x48] sm:$0xff] %v12952
        %v13002 = vld [vmem:[#allocation2 + $0x50] sm:$0x11]
        %v13003 = vsel %vm12987, %v12953, %v13002
        %13004 = vst [vmem:[#allocation2 + $0x50] sm:$0x11] %v13003
        %v13005 = vld [vmem:[#allocation2 + $0x58] sm:$0x11]
        %v13006 = vsel %vm12987, %v12954, %v13005
        %13007 = vst [vmem:[#allocation2 + $0x58] sm:$0x11] %v13006
        %13008 = vst [vmem:[%s200] sm:$0xff] %v12812
        %13009 = vst [vmem:[%s200 + $0x8] sm:$0xff] %v12813
        %13010 = vst [vmem:[%s200 + $0x10] sm:$0xff] %v12814
        %13011 = vst [vmem:[%s200 + $0x18] sm:$0xff] %v12815
        %13012 = vst [vmem:[%s200 + $0x20] sm:$0xff] %v12816
        %13013 = vst [vmem:[%s200 + $0x28] sm:$0xff] %v12817
        %13014 = vst [vmem:[%s200 + $0x30] sm:$0xff] %v12818
        %13015 = vst [vmem:[%s200 + $0x38] sm:$0xff] %v12819
        %13016 = vst [vmem:[%s200 + $0x40] sm:$0xff] %v12820
        %13017 = vst [vmem:[%s200 + $0x48] sm:$0xff] %v12821
        %13018 = vst [vmem:[%s200 + $0x50] sm:$0xff] %v12822
        %13019 = vst [vmem:[%s200 + $0x58] sm:$0xff] %v12823
        %13020 = vst [vmem:[%s200 + $0x60] sm:$0xff] %v12824
        %13021 = vst [vmem:[%s200 + $0x68] sm:$0xff] %v12825
        %13022 = vst [vmem:[%s200 + $0x70] sm:$0xff] %v12826
        %13023 = vst [vmem:[%s200 + $0x78] sm:$0xff] %v12827
        %s13024 = sand.u32 %s78, 1
        %s13025 = scalar_lea.sflag [#allocation5], %s13024
        %s13026 = sand.u32 %s78, 1
        %s13027 = smul.addr %s13026, 128
        %s13028 = scalar_lea.vmem [#allocation8], %s13027
        // Predicated region
        $region41: #{tpu_custom_call.1} parent=27 // pred_check
          %p13029 = pneg %p88
        $region42: #{tpu_custom_call.1} parent=27 // pred_check_branch
          %13031 = sbr.rel (%p13029) target = $region44
        $region43: #{tpu_custom_call.1} parent=27 // pred_region
          %s13033 = ssub.s32 2048, 2048
          %13034 = vsyncadd %s13025, %s13033
          %s13035 = smul.addr %s23, 16
          %s13036 = smul.addr %s13035, 128
          %s13037 = scalar_lea.hbm %s2, %s13036
          %s13038 = sshll.u32 %s13028, 4
          %s13039 = int_to_ptr.vmem [resolvable:$true] %s13038
          %13044 = dma.vmem_to_hbm [thread:$0]  %s13039, 2048, %s13037, %s13025, 512, 512, 32
        $region44: #{tpu_custom_call.1} parent=27 // pred_fallthru
          _
        // Predicated region
        $region45: #{tpu_custom_call.1} parent=27 // pred_check
          %p13045 = pneg %p109
        $region46: #{tpu_custom_call.1} parent=27 // pred_check_branch
          %13047 = sbr.rel (%p13045) target = $region48
        $region47: #{tpu_custom_call.1} parent=27 // pred_region
          %s13049 = ssub.s32 2048, 2048
          %13050 = vsyncadd [#allocation10], %s13049
          %s13051 = sshll.u32 [#allocation9], 4
          %s13052 = int_to_ptr.vmem [resolvable:$true] %s13051
          %13057 = dma.vmem_to_hbm [thread:$0]  %s13052, 2048, %s3, [#allocation10], 512, 512, 32
        $region48: #{tpu_custom_call.1} parent=27 // pred_fallthru
          _
        // Predicated region
        $region49: #{tpu_custom_call.1} parent=27 // pred_check
          %p13058 = pneg %p109
        $region50: #{tpu_custom_call.1} parent=27 // pred_check_branch
          %13060 = sbr.rel (%p13058) target = $region52
        $region51: #{tpu_custom_call.1} parent=27 // pred_region
          %13061 = dma.done [#allocation10], 2048
        $region52: #{tpu_custom_call.1} parent=27 // pred_fallthru
          _
      $region28: #{tpu_custom_call.1} parent=5 // pred_fallthru
        _
      %p13062 = scmp.le.s32.totalorder 2, %s18
      // Predicated region
      $region53: #{tpu_custom_call.1} parent=5 // pred_check
        %p13063 = pneg %p13062
      $region54: #{tpu_custom_call.1} parent=5 // pred_check_branch
        %13065 = sbr.rel (%p13063) target = $region56
      $region55: #{tpu_custom_call.1} parent=5 // pred_region
        %s13066 = ssub.s32 %s18, 2
        // Predicated region
        $region57: #{tpu_custom_call.1} parent=55 // pred_check
          %p13067 = pneg %p94
        $region58: #{tpu_custom_call.1} parent=55 // pred_check_branch
          %13069 = sbr.rel (%p13067) target = $region60
        $region59: #{tpu_custom_call.1} parent=55 // pred_region
          %s13070 = sand.u32 %s79, 1
          %s13071 = scalar_lea.sflag [#allocation5], %s13070
          %s13072 = sand.u32 %s79, 1
          %s13073 = smul.addr %s13072, 128
          %s13074 = scalar_lea.vmem [#allocation8], %s13073
          %13075 = dma.done %s13071, 2048
        $region60: #{tpu_custom_call.1} parent=55 // pred_fallthru
          _
      $region56: #{tpu_custom_call.1} parent=5 // pred_fallthru
        _
    $region6: #{tpu_custom_call.1} parent=1 // loop_footer
      %s22 = sadd.s32 1, %s18
    $region7: #{tpu_custom_call.1} parent=1 // loop_footer_branch
      %17 = sbr.rel target = $region3
    $region8: #{tpu_custom_call.1} parent=1 // loop_exit
      _
    %13076 = vsyncpa [#allocation4], 1
    %s13077 = scalar_lea.sflag [#allocation4], 1
    %13078 = vsyncpa %s13077, 1
    %13079 = vsyncpa [#allocation7], 1
    %13080 = vsyncpa [#allocation5], 1
    %s13081 = scalar_lea.sflag [#allocation5], 1
    %13082 = vsyncpa %s13081, 1
    %13083 = vsyncpa [#allocation10], 1

</llo_original>
